<compile_context>
chip_gen: v6e
topology: v6e:2x2x1
jax: 0.10.0
libtpu: 0.0.40
codegen_flags: <defaults>
</compile_context>

<pallas_src>
import functools

import jax
import jax.numpy as jnp
from jax.experimental import pallas as pl
from jax.experimental.pallas import tpu as pltpu

LANE = 128                      # TPU lane width: GEMM N padded to a multiple of this
MAX_TM = 1024                   # max row tile (review: 512-1024 amortizes step overhead)
VMEM_LIMIT = 32 * 1024 * 1024   # explicit scoped-VMEM budget, safe on v5e/v6e/v7x


def _round_up(x, m):
    return (x + m - 1) // m * m


def _pick_block_m(M, max_tm=MAX_TM):
    """Row tile: whole layer if it fits, else the largest multiple-of-16 divisor of M
    (so no pad / slice glue); fall back to padding only if no divisor exists."""
    if M <= max_tm:
        return M, M
    bm = max_tm - max_tm % 16
    while bm >= 16:
        if M % bm == 0:
            return bm, M
        bm -= 16
    bm = max_tm - max_tm % 16
    return bm, _round_up(M, bm)


# ----------------------------- Pallas kernels ---------------------------------
def _matmul_bias_act_kernel(a_ref, w_ref, b_ref, o_ref, *, act):
    """One row tile of act(A @ W + b).  A/W are bf16, accumulation is f32."""
    acc = jnp.dot(a_ref[...], w_ref[...], preferred_element_type=jnp.float32)
    acc = acc + b_ref[...]                      # (1, Np) bias broadcast
    if act == "relu":
        acc = jnp.maximum(acc, 0.0)
    elif act == "sigmoid":
        # EUP exp + EUP approximate reciprocal (frees VALU slots); the clip keeps
        # the result exactly inside [0, 1] despite the approximate reciprocal.
        e = jnp.exp(-jnp.clip(acc, -30.0, 30.0))
        acc = pl.reciprocal(1.0 + e, approx=True)
        acc = jnp.clip(acc, 0.0, 1.0)
    o_ref[...] = acc.astype(o_ref.dtype)


def matmul_bias_act(a, w, b, act="none", out_dtype=jnp.bfloat16):
    """a: (M, K), w: (K, N), b: (N,) -> act(a @ w + b): (M, N) in out_dtype.

    * weight columns zero-padded to a multiple of 128 -> lane-dense (unmasked) stores
    * MXU inputs cast to bf16, f32 accumulation + f32 bias/activation
    * row tile is a divisor of M whenever possible (no pad / slice on A)
    """
    M, K = a.shape
    Kw, N = w.shape
    assert K == Kw
    Np = max(LANE, _round_up(N, LANE))
    if Np != N:
        w = jnp.pad(w, ((0, 0), (0, Np - N)))
        b = jnp.pad(b, ((0, Np - N),))
    bm, Mp = _pick_block_m(M)
    if Mp != M:
        a = jnp.pad(a, ((0, Mp - M), (0, 0)))

    a = a.astype(jnp.bfloat16)
    w = w.astype(jnp.bfloat16)
    b2 = b.reshape(1, Np).astype(jnp.float32)

    out = pl.pallas_call(
        functools.partial(_matmul_bias_act_kernel, act=act),
        out_shape=jax.ShapeDtypeStruct((Mp, Np), out_dtype),
        grid=(Mp // bm,),
        in_specs=[
            pl.BlockSpec((bm, K), lambda i: (i, 0)),   # row tile of patches
            pl.BlockSpec((K, Np), lambda i: (0, 0)),   # full (padded) weight matrix
            pl.BlockSpec((1, Np), lambda i: (0, 0)),   # bias row
        ],
        out_specs=pl.BlockSpec((bm, Np), lambda i: (i, 0)),
        compiler_params=pltpu.CompilerParams(
            dimension_semantics=("parallel",),
            vmem_limit_bytes=VMEM_LIMIT,
        ),
    )(a, w, b2)
    if Mp != M or Np != N:
        out = out[:M, :N]
    return out


def _fc_fused_kernel(h_ref, we_ref, be_ref, wd_ref, bd_ref, d_ref):
    """fc_decode(fc_encode(h)) in one kernel; the latent z never leaves vregs."""
    z = jnp.dot(h_ref[...], we_ref[...], preferred_element_type=jnp.float32)
    z = z + be_ref[...]
    d = jnp.dot(z.astype(wd_ref.dtype), wd_ref[...],
                preferred_element_type=jnp.float32)
    d = d + bd_ref[...]
    d_ref[...] = d.astype(d_ref.dtype)


def fc_encode_decode(h, we, be, wd, bd, out_dtype=jnp.bfloat16):
    """h: (B, F), we: (F, L), be: (L,), wd: (L, F), bd: (F,) -> (B, F)."""
    B, F = h.shape
    L = we.shape[1]
    Bp = max(16, _round_up(B, 16))     # align the tiny batch to sublane packing
    if Bp != B:
        h = jnp.pad(h, ((0, Bp - B), (0, 0)))
    out = pl.pallas_call(
        _fc_fused_kernel,
        out_shape=jax.ShapeDtypeStruct((Bp, F), out_dtype),
        grid=(1,),
        in_specs=[
            pl.BlockSpec((Bp, F), lambda i: (0, 0)),
            pl.BlockSpec((F, L), lambda i: (0, 0)),
            pl.BlockSpec((1, L), lambda i: (0, 0)),
            pl.BlockSpec((L, F), lambda i: (0, 0)),
            pl.BlockSpec((1, F), lambda i: (0, 0)),
        ],
        out_specs=pl.BlockSpec((Bp, F), lambda i: (0, 0)),
        compiler_params=pltpu.CompilerParams(
            dimension_semantics=("arbitrary",),
            vmem_limit_bytes=VMEM_LIMIT,
        ),
    )(h.astype(jnp.bfloat16), we.astype(jnp.bfloat16),
      be.reshape(1, L).astype(jnp.float32),
      wd.astype(jnp.bfloat16), bd.reshape(1, F).astype(jnp.float32))
    return out[:B] if Bp != B else out


# ------------------------------ conv glue --------------------------------------
# Activations are channels-last (N, D, H, W, C): the GEMM output reshapes straight
# into the next layer's im2col without a big transpose.

def im2col_3d(x, ksize, stride, pad):
    """x: (N, D, H, W, C) -> (N*Do*Ho*Wo, k^3*C) patches, column order (kd,kh,kw,c)."""
    N, D, H, W, C = x.shape
    if pad:
        x = jnp.pad(x, ((0, 0), (pad, pad), (pad, pad), (pad, pad), (0, 0)))
    Dp, Hp, Wp = D + 2 * pad, H + 2 * pad, W + 2 * pad
    Do = (Dp - ksize) // stride + 1
    Ho = (Hp - ksize) // stride + 1
    Wo = (Wp - ksize) // stride + 1
    cols = []
    for kd in range(ksize):
        for kh in range(ksize):
            for kw in range(ksize):
                cols.append(
                    x[:,
                      kd:kd + (Do - 1) * stride + 1:stride,
                      kh:kh + (Ho - 1) * stride + 1:stride,
                      kw:kw + (Wo - 1) * stride + 1:stride, :])
    p = jnp.stack(cols, axis=4)                        # (N, Do, Ho, Wo, k^3, C)
    p = p.reshape(N * Do * Ho * Wo, ksize ** 3 * C)
    return p, (Do, Ho, Wo)


def conv3d(x, w, b, stride, pad, act, out_dtype=jnp.bfloat16):
    """x: (N,D,H,W,C), w: (O,C,k,k,k) [PyTorch layout], b: (O,) -> (N,Do,Ho,Wo,O)."""
    N = x.shape[0]
    O, C, k = w.shape[0], w.shape[1], w.shape[2]
    patches, (Do, Ho, Wo) = im2col_3d(x, k, stride, pad)
    wm = jnp.transpose(w, (2, 3, 4, 1, 0)).reshape(k ** 3 * C, O)  # rows (kd,kh,kw,c)
    y = matmul_bias_act(patches, wm, b, act=act, out_dtype=out_dtype)
    return y.reshape(N, Do, Ho, Wo, O)


def conv_transpose3d(x, wt, b, stride, pad, out_pad, act, out_dtype=jnp.bfloat16):
    """PyTorch ConvTranspose3d via zero-dilation + flipped-kernel conv.
    x: (N,D,H,W,Cin), wt: (Cin,Cout,k,k,k) [PyTorch layout], out_pad: 3-tuple."""
    # NOTE: with stride 2 in 3-D, 7/8 of the dilated input is zeros; a parity
    # sub-conv formulation would shrink the patch slab further (perf only).
    N, D, H, W, C = x.shape
    k = wt.shape[2]
    xd = jnp.zeros(
        (N, (D - 1) * stride + 1, (H - 1) * stride + 1, (W - 1) * stride + 1, C),
        x.dtype)
    xd = xd.at[:, ::stride, ::stride, ::stride, :].set(x)
    lp = k - 1 - pad
    xd = jnp.pad(
        xd,
        ((0, 0), (lp, lp + out_pad[0]), (lp, lp + out_pad[1]),
         (lp, lp + out_pad[2]), (0, 0)))
    wc = jnp.flip(wt, axis=(2, 3, 4)).transpose(1, 0, 2, 3, 4)  # (Cout, Cin, k,k,k)
    return conv3d(xd, wc, b, stride=1, pad=0, act=act, out_dtype=out_dtype)


# ------------------------------- ConvAE ------------------------------------------
LATENT_DIM = 32
KMUL = 2
KN = 16
C2 = KMUL * KN                  # 32 bottleneck channels
FLAT = C2 * 6 * 4 * 4           # 3072 = flatten_dim in the PyTorch module


def init_params(key):
    ks = jax.random.split(key, 12)

    def u(k, shape, fan_in):
        bound = 1.0 / jnp.sqrt(jnp.float32(fan_in))
        return jax.random.uniform(k, shape, jnp.float32, -bound, bound)

    p = {}
    p["w1"] = u(ks[0], (KN, 1, 3, 3, 3), 1 * 27)                 # Conv3d(1, 16)
    p["b1"] = u(ks[1], (KN,), 1 * 27)
    p["w2"] = u(ks[2], (C2, KN, 3, 3, 3), KN * 27)               # Conv3d(16, 32)
    p["b2"] = u(ks[3], (C2,), KN * 27)
    p["we"] = u(ks[4], (FLAT, LATENT_DIM), FLAT)                 # fc_encode (in, out)
    p["be"] = u(ks[5], (LATENT_DIM,), FLAT)
    p["wd"] = u(ks[6], (LATENT_DIM, FLAT), LATENT_DIM)           # fc_decode (in, out)
    p["bd"] = u(ks[7], (FLAT,), LATENT_DIM)
    p["wt1"] = u(ks[8], (C2, KN, 3, 3, 3), C2 * 27)              # ConvT3d(32, 16)
    p["bt1"] = u(ks[9], (KN,), C2 * 27)
    p["wt2"] = u(ks[10], (KN, 1, 3, 3, 3), KN * 27)              # ConvT3d(16, 1)
    p["bt2"] = u(ks[11], (1,), KN * 27)
    return p


def conv_ae_forward(params, x):
    """x: (N, 1, 24, 15, 15) float32 -> x_hat: (N, 1, 24, 15, 15) float32."""
    N = x.shape[0]
    # NCDHW -> NDHWC, bf16 activations on the conv path (f32 accumulate in-kernel).
    xc = jnp.transpose(x, (0, 2, 3, 4, 1)).astype(jnp.bfloat16)

    # encoder
    h = conv3d(xc, params["w1"], params["b1"], stride=2, pad=1, act="relu")   # (N,12,8,8,16)
    h = conv3d(h, params["w2"], params["b2"], stride=2, pad=1, act="relu")    # (N,6,4,4,32)
    h = h.reshape(N, FLAT)                          # channels-last flatten (d, h, w, c)

    # fc_encode + fc_decode fused into one pallas_call.  PyTorch's Linear weights act
    # on an NCDHW flatten; permute their rows/columns (tiny transform on the weights)
    # so the kernel consumes/produces the channels-last flatten — semantics identical.
    we_cl = params["we"].reshape(C2, 6, 4, 4, LATENT_DIM) \
                        .transpose(1, 2, 3, 0, 4).reshape(FLAT, LATENT_DIM)
    wd_cl = params["wd"].reshape(LATENT_DIM, C2, 6, 4, 4) \
                        .transpose(0, 2, 3, 4, 1).reshape(LATENT_DIM, FLAT)
    bd_cl = params["bd"].reshape(C2, 6, 4, 4).transpose(1, 2, 3, 0).reshape(FLAT)
    d = fc_encode_decode(h, we_cl, params["be"], wd_cl, bd_cl)                # (N, 3072)
    d = d.reshape(N, 6, 4, 4, C2)

    # decoder
    d = conv_transpose3d(d, params["wt1"], params["bt1"], stride=2, pad=1,
                         out_pad=(1, 1, 1), act="relu")                       # (N,12,8,8,16)
    y = conv_transpose3d(d, params["wt2"], params["bt2"], stride=2, pad=1,
                         out_pad=(1, 0, 0), act="sigmoid",
                         out_dtype=jnp.float32)                               # (N,24,15,15,1)
    return jnp.transpose(y, (0, 4, 1, 2, 3))                                  # -> NCDHW


if __name__ == "__main__":
    key = jax.random.PRNGKey(0)
    pkey, xkey = jax.random.split(key)
    params = init_params(pkey)
    # Input spatial dims are fixed by the module's flatten_dim (32*6*4*4):
    # (D, H, W) = (24, 15, 15) encodes to (6, 4, 4) after two stride-2 convs.
    x = jax.random.uniform(xkey, (2, 1, 24, 15, 15), jnp.float32)

    x_hat = jax.jit(conv_ae_forward)(params, x)
    x_hat = jax.block_until_ready(x_hat)

    assert x_hat.shape == (2, 1, 24, 15, 15), x_hat.shape
    assert x_hat.dtype == jnp.float32
    assert bool(jnp.all(jnp.isfinite(x_hat)))
    assert bool(jnp.all((x_hat >= 0.0) & (x_hat <= 1.0)))  # sigmoid output range
    print("KERNEL_OK")
</pallas_src>

<mosaic_0001>
module attributes {stable_mosaic.version = 11 : i64} {
  func.func @_matmul_bias_act_kernel(%arg0: i32, %arg1: memref<768x27xbf16, #tpu.memory_space<vmem>>, %arg2: memref<27x128xbf16, #tpu.memory_space<vmem>>, %arg3: memref<1x128xf32, #tpu.memory_space<vmem>>, %arg4: memref<768x128xbf16, #tpu.memory_space<vmem>>) attributes {dimension_semantics = [#tpu.dimension_semantics<parallel>], iteration_bounds = array<i64: 2>, scalar_prefetch = 0 : i64, scratch_operands = 0 : i64, tpu.core_type = #tpu.core_type<tc>, window_params = [{transform_indices = @transform_0, window_bounds = array<i64: 768, 27>}, {pipeline_mode = #tpu.pipeline_mode<synchronous>, transform_indices = @transform_1, window_bounds = array<i64: 27, 128>}, {pipeline_mode = #tpu.pipeline_mode<synchronous>, transform_indices = @transform_2, window_bounds = array<i64: 1, 128>}, {transform_indices = @transform_3, window_bounds = array<i64: 768, 128>}]} {
    %c0 = arith.constant 0 : index
    %c0_0 = arith.constant 0 : index
    %0 = vector.load %arg1[%c0, %c0_0] : memref<768x27xbf16, #tpu.memory_space<vmem>>, vector<768x27xbf16>
    %c0_1 = arith.constant 0 : index
    %c0_2 = arith.constant 0 : index
    %1 = vector.load %arg2[%c0_1, %c0_2] : memref<27x128xbf16, #tpu.memory_space<vmem>>, vector<27x128xbf16>
    %cst = arith.constant dense<0.000000e+00> : vector<768x128xf32>
    %2 = tpu.matmul %0, %1, %cst {dimension_numbers = #tpu.dot_dimension_numbers<[1], [0], [0], [1], [0, 0, 1, 1], [], []>} : vector<768x27xbf16>, vector<27x128xbf16>, vector<768x128xf32> -> vector<768x128xf32>
    %c0_3 = arith.constant 0 : index
    %c0_4 = arith.constant 0 : index
    %3 = vector.load %arg3[%c0_3, %c0_4] : memref<1x128xf32, #tpu.memory_space<vmem>>, vector<1x128xf32>
    %4 = vector.broadcast %3 : vector<1x128xf32> to vector<768x128xf32>
    %5 = arith.addf %2, %4 : vector<768x128xf32>
    %cst_5 = arith.constant 0.000000e+00 : f32
    %6 = vector.broadcast %cst_5 : f32 to vector<768x128xf32>
    %7 = arith.maximumf %5, %6 : vector<768x128xf32>
    %8 = arith.truncf %7 : vector<768x128xf32> to vector<768x128xbf16>
    %c0_6 = arith.constant 0 : index
    %c0_7 = arith.constant 0 : index
    %9 = vector.load %arg4[%c0_6, %c0_7] : memref<768x128xbf16, #tpu.memory_space<vmem>>, vector<768x128xbf16>
    tpu.vector_store %arg4[%c0_6, %c0_7], %8 {strides = array<i32>} : memref<768x128xbf16, #tpu.memory_space<vmem>>, vector<768x128xbf16>,
    return
  }
  func.func @transform_0(%arg0: i32) -> (i32, i32) {
    %c0_i32 = arith.constant 0 : i32
    %c0_i32_0 = arith.constant 0 : i32
    return %arg0, %c0_i32 : i32, i32
  }
  func.func @transform_1(%arg0: i32) -> (i32, i32) {
    %c0_i32 = arith.constant 0 : i32
    %c0_i32_0 = arith.constant 0 : i32
    %c0_i32_1 = arith.constant 0 : i32
    return %c0_i32, %c0_i32_0 : i32, i32
  }
  func.func @transform_2(%arg0: i32) -> (i32, i32) {
    %c0_i32 = arith.constant 0 : i32
    %c0_i32_0 = arith.constant 0 : i32
    %c0_i32_1 = arith.constant 0 : i32
    return %c0_i32, %c0_i32_0 : i32, i32
  }
  func.func @transform_3(%arg0: i32) -> (i32, i32) {
    %c0_i32 = arith.constant 0 : i32
    %c0_i32_0 = arith.constant 0 : i32
    return %arg0, %c0_i32 : i32, i32
  }
}

module attributes {stable_mosaic.version = 11 : i64} {
  func.func @_matmul_bias_act_kernel(%arg0: i32, %arg1: memref<192x432xbf16, #tpu.memory_space<vmem>>, %arg2: memref<432x128xbf16, #tpu.memory_space<vmem>>, %arg3: memref<1x128xf32, #tpu.memory_space<vmem>>, %arg4: memref<192x128xbf16, #tpu.memory_space<vmem>>) attributes {dimension_semantics = [#tpu.dimension_semantics<parallel>], iteration_bounds = array<i64: 1>, scalar_prefetch = 0 : i64, scratch_operands = 0 : i64, tpu.core_type = #tpu.core_type<tc>, window_params = [{transform_indices = @transform_0, window_bounds = array<i64: 192, 432>}, {pipeline_mode = #tpu.pipeline_mode<synchronous>, transform_indices = @transform_1, window_bounds = array<i64: 432, 128>}, {pipeline_mode = #tpu.pipeline_mode<synchronous>, transform_indices = @transform_2, window_bounds = array<i64: 1, 128>}, {transform_indices = @transform_3, window_bounds = array<i64: 192, 128>}]} {
    %c0 = arith.constant 0 : index
    %c0_0 = arith.constant 0 : index
    %0 = vector.load %arg1[%c0, %c0_0] : memref<192x432xbf16, #tpu.memory_space<vmem>>, vector<192x432xbf16>
    %c0_1 = arith.constant 0 : index
    %c0_2 = arith.constant 0 : index
    %1 = vector.load %arg2[%c0_1, %c0_2] : memref<432x128xbf16, #tpu.memory_space<vmem>>, vector<432x128xbf16>
    %cst = arith.constant dense<0.000000e+00> : vector<192x128xf32>
    %2 = tpu.matmul %0, %1, %cst {dimension_numbers = #tpu.dot_dimension_numbers<[1], [0], [0], [1], [0, 0, 1, 1], [], []>} : vector<192x432xbf16>, vector<432x128xbf16>, vector<192x128xf32> -> vector<192x128xf32>
    %c0_3 = arith.constant 0 : index
    %c0_4 = arith.constant 0 : index
    %3 = vector.load %arg3[%c0_3, %c0_4] : memref<1x128xf32, #tpu.memory_space<vmem>>, vector<1x128xf32>
    %4 = vector.broadcast %3 : vector<1x128xf32> to vector<192x128xf32>
    %5 = arith.addf %2, %4 : vector<192x128xf32>
    %cst_5 = arith.constant 0.000000e+00 : f32
    %6 = vector.broadcast %cst_5 : f32 to vector<192x128xf32>
    %7 = arith.maximumf %5, %6 : vector<192x128xf32>
    %8 = arith.truncf %7 : vector<192x128xf32> to vector<192x128xbf16>
    %c0_6 = arith.constant 0 : index
    %c0_7 = arith.constant 0 : index
    %9 = vector.load %arg4[%c0_6, %c0_7] : memref<192x128xbf16, #tpu.memory_space<vmem>>, vector<192x128xbf16>
    tpu.vector_store %arg4[%c0_6, %c0_7], %8 {strides = array<i32>} : memref<192x128xbf16, #tpu.memory_space<vmem>>, vector<192x128xbf16>,
    return
  }
  func.func @transform_0(%arg0: i32) -> (i32, i32) {
    %c0_i32 = arith.constant 0 : i32
    %c0_i32_0 = arith.constant 0 : i32
    return %arg0, %c0_i32 : i32, i32
  }
  func.func @transform_1(%arg0: i32) -> (i32, i32) {
    %c0_i32 = arith.constant 0 : i32
    %c0_i32_0 = arith.constant 0 : i32
    %c0_i32_1 = arith.constant 0 : i32
    return %c0_i32, %c0_i32_0 : i32, i32
  }
  func.func @transform_2(%arg0: i32) -> (i32, i32) {
    %c0_i32 = arith.constant 0 : i32
    %c0_i32_0 = arith.constant 0 : i32
    %c0_i32_1 = arith.constant 0 : i32
    return %c0_i32, %c0_i32_0 : i32, i32
  }
  func.func @transform_3(%arg0: i32) -> (i32, i32) {
    %c0_i32 = arith.constant 0 : i32
    %c0_i32_0 = arith.constant 0 : i32
    return %arg0, %c0_i32 : i32, i32
  }
}

module attributes {stable_mosaic.version = 11 : i64} {
  func.func @_fc_fused_kernel(%arg0: i32, %arg1: memref<16x3072xbf16, #tpu.memory_space<vmem>>, %arg2: memref<3072x32xbf16, #tpu.memory_space<vmem>>, %arg3: memref<1x32xf32, #tpu.memory_space<vmem>>, %arg4: memref<32x3072xbf16, #tpu.memory_space<vmem>>, %arg5: memref<1x3072xf32, #tpu.memory_space<vmem>>, %arg6: memref<16x3072xbf16, #tpu.memory_space<vmem>>) attributes {dimension_semantics = [#tpu.dimension_semantics<arbitrary>], iteration_bounds = array<i64: 1>, scalar_prefetch = 0 : i64, scratch_operands = 0 : i64, tpu.core_type = #tpu.core_type<tc>, window_params = [{pipeline_mode = #tpu.pipeline_mode<synchronous>, transform_indices = @transform_0, window_bounds = array<i64: 16, 3072>}, {pipeline_mode = #tpu.pipeline_mode<synchronous>, transform_indices = @transform_1, window_bounds = array<i64: 3072, 32>}, {pipeline_mode = #tpu.pipeline_mode<synchronous>, transform_indices = @transform_2, window_bounds = array<i64: 1, 32>}, {pipeline_mode = #tpu.pipeline_mode<synchronous>, transform_indices = @transform_3, window_bounds = array<i64: 32, 3072>}, {pipeline_mode = #tpu.pipeline_mode<synchronous>, transform_indices = @transform_4, window_bounds = array<i64: 1, 3072>}, {pipeline_mode = #tpu.pipeline_mode<synchronous>, transform_indices = @transform_5, window_bounds = array<i64: 16, 3072>}]} {
    %c0 = arith.constant 0 : index
    %c0_0 = arith.constant 0 : index
    %0 = vector.load %arg1[%c0, %c0_0] : memref<16x3072xbf16, #tpu.memory_space<vmem>>, vector<16x3072xbf16>
    %c0_1 = arith.constant 0 : index
    %c0_2 = arith.constant 0 : index
    %1 = vector.load %arg2[%c0_1, %c0_2] : memref<3072x32xbf16, #tpu.memory_space<vmem>>, vector<3072x32xbf16>
    %cst = arith.constant dense<0.000000e+00> : vector<16x32xf32>
    %2 = tpu.matmul %0, %1, %cst {dimension_numbers = #tpu.dot_dimension_numbers<[1], [0], [0], [1], [0, 0, 1, 1], [], []>} : vector<16x3072xbf16>, vector<3072x32xbf16>, vector<16x32xf32> -> vector<16x32xf32>
    %c0_3 = arith.constant 0 : index
    %c0_4 = arith.constant 0 : index
    %3 = vector.load %arg3[%c0_3, %c0_4] : memref<1x32xf32, #tpu.memory_space<vmem>>, vector<1x32xf32>
    %4 = vector.broadcast %3 : vector<1x32xf32> to vector<16x32xf32>
    %5 = arith.addf %2, %4 : vector<16x32xf32>
    %6 = arith.truncf %5 : vector<16x32xf32> to vector<16x32xbf16>
    %c0_5 = arith.constant 0 : index
    %c0_6 = arith.constant 0 : index
    %7 = vector.load %arg4[%c0_5, %c0_6] : memref<32x3072xbf16, #tpu.memory_space<vmem>>, vector<32x3072xbf16>
    %cst_7 = arith.constant dense<0.000000e+00> : vector<16x3072xf32>
    %8 = tpu.matmul %6, %7, %cst_7 {dimension_numbers = #tpu.dot_dimension_numbers<[1], [0], [0], [1], [0, 0, 1, 1], [], []>} : vector<16x32xbf16>, vector<32x3072xbf16>, vector<16x3072xf32> -> vector<16x3072xf32>
    %c0_8 = arith.constant 0 : index
    %c0_9 = arith.constant 0 : index
    %9 = vector.load %arg5[%c0_8, %c0_9] : memref<1x3072xf32, #tpu.memory_space<vmem>>, vector<1x3072xf32>
    %10 = vector.broadcast %9 : vector<1x3072xf32> to vector<16x3072xf32>
    %11 = arith.addf %8, %10 : vector<16x3072xf32>
    %12 = arith.truncf %11 : vector<16x3072xf32> to vector<16x3072xbf16>
    %c0_10 = arith.constant 0 : index
    %c0_11 = arith.constant 0 : index
    %13 = vector.load %arg6[%c0_10, %c0_11] : memref<16x3072xbf16, #tpu.memory_space<vmem>>, vector<16x3072xbf16>
    tpu.vector_store %arg6[%c0_10, %c0_11], %12 {strides = array<i32>} : memref<16x3072xbf16, #tpu.memory_space<vmem>>, vector<16x3072xbf16>,
    return
  }
  func.func @transform_0(%arg0: i32) -> (i32, i32) {
    %c0_i32 = arith.constant 0 : i32
    %c0_i32_0 = arith.constant 0 : i32
    %c0_i32_1 = arith.constant 0 : i32
    return %c0_i32, %c0_i32_0 : i32, i32
  }
  func.func @transform_1(%arg0: i32) -> (i32, i32) {
    %c0_i32 = arith.constant 0 : i32
    %c0_i32_0 = arith.constant 0 : i32
    %c0_i32_1 = arith.constant 0 : i32
    return %c0_i32, %c0_i32_0 : i32, i32
  }
  func.func @transform_2(%arg0: i32) -> (i32, i32) {
    %c0_i32 = arith.constant 0 : i32
    %c0_i32_0 = arith.constant 0 : i32
    %c0_i32_1 = arith.constant 0 : i32
    return %c0_i32, %c0_i32_0 : i32, i32
  }
  func.func @transform_3(%arg0: i32) -> (i32, i32) {
    %c0_i32 = arith.constant 0 : i32
    %c0_i32_0 = arith.constant 0 : i32
    %c0_i32_1 = arith.constant 0 : i32
    return %c0_i32, %c0_i32_0 : i32, i32
  }
  func.func @transform_4(%arg0: i32) -> (i32, i32) {
    %c0_i32 = arith.constant 0 : i32
    %c0_i32_0 = arith.constant 0 : i32
    %c0_i32_1 = arith.constant 0 : i32
    return %c0_i32, %c0_i32_0 : i32, i32
  }
  func.func @transform_5(%arg0: i32) -> (i32, i32) {
    %c0_i32 = arith.constant 0 : i32
    %c0_i32_0 = arith.constant 0 : i32
    %c0_i32_1 = arith.constant 0 : i32
    return %c0_i32, %c0_i32_0 : i32, i32
  }
}

module attributes {stable_mosaic.version = 11 : i64} {
  func.func @_matmul_bias_act_kernel(%arg0: i32, %arg1: memref<768x864xbf16, #tpu.memory_space<vmem>>, %arg2: memref<864x128xbf16, #tpu.memory_space<vmem>>, %arg3: memref<1x128xf32, #tpu.memory_space<vmem>>, %arg4: memref<768x128xbf16, #tpu.memory_space<vmem>>) attributes {dimension_semantics = [#tpu.dimension_semantics<parallel>], iteration_bounds = array<i64: 2>, scalar_prefetch = 0 : i64, scratch_operands = 0 : i64, tpu.core_type = #tpu.core_type<tc>, window_params = [{transform_indices = @transform_0, window_bounds = array<i64: 768, 864>}, {pipeline_mode = #tpu.pipeline_mode<synchronous>, transform_indices = @transform_1, window_bounds = array<i64: 864, 128>}, {pipeline_mode = #tpu.pipeline_mode<synchronous>, transform_indices = @transform_2, window_bounds = array<i64: 1, 128>}, {transform_indices = @transform_3, window_bounds = array<i64: 768, 128>}]} {
    %c0 = arith.constant 0 : index
    %c0_0 = arith.constant 0 : index
    %0 = vector.load %arg1[%c0, %c0_0] : memref<768x864xbf16, #tpu.memory_space<vmem>>, vector<768x864xbf16>
    %c0_1 = arith.constant 0 : index
    %c0_2 = arith.constant 0 : index
    %1 = vector.load %arg2[%c0_1, %c0_2] : memref<864x128xbf16, #tpu.memory_space<vmem>>, vector<864x128xbf16>
    %cst = arith.constant dense<0.000000e+00> : vector<768x128xf32>
    %2 = tpu.matmul %0, %1, %cst {dimension_numbers = #tpu.dot_dimension_numbers<[1], [0], [0], [1], [0, 0, 1, 1], [], []>} : vector<768x864xbf16>, vector<864x128xbf16>, vector<768x128xf32> -> vector<768x128xf32>
    %c0_3 = arith.constant 0 : index
    %c0_4 = arith.constant 0 : index
    %3 = vector.load %arg3[%c0_3, %c0_4] : memref<1x128xf32, #tpu.memory_space<vmem>>, vector<1x128xf32>
    %4 = vector.broadcast %3 : vector<1x128xf32> to vector<768x128xf32>
    %5 = arith.addf %2, %4 : vector<768x128xf32>
    %cst_5 = arith.constant 0.000000e+00 : f32
    %6 = vector.broadcast %cst_5 : f32 to vector<768x128xf32>
    %7 = arith.maximumf %5, %6 : vector<768x128xf32>
    %8 = arith.truncf %7 : vector<768x128xf32> to vector<768x128xbf16>
    %c0_6 = arith.constant 0 : index
    %c0_7 = arith.constant 0 : index
    %9 = vector.load %arg4[%c0_6, %c0_7] : memref<768x128xbf16, #tpu.memory_space<vmem>>, vector<768x128xbf16>
    tpu.vector_store %arg4[%c0_6, %c0_7], %8 {strides = array<i32>} : memref<768x128xbf16, #tpu.memory_space<vmem>>, vector<768x128xbf16>,
    return
  }
  func.func @transform_0(%arg0: i32) -> (i32, i32) {
    %c0_i32 = arith.constant 0 : i32
    %c0_i32_0 = arith.constant 0 : i32
    return %arg0, %c0_i32 : i32, i32
  }
  func.func @transform_1(%arg0: i32) -> (i32, i32) {
    %c0_i32 = arith.constant 0 : i32
    %c0_i32_0 = arith.constant 0 : i32
    %c0_i32_1 = arith.constant 0 : i32
    return %c0_i32, %c0_i32_0 : i32, i32
  }
  func.func @transform_2(%arg0: i32) -> (i32, i32) {
    %c0_i32 = arith.constant 0 : i32
    %c0_i32_0 = arith.constant 0 : i32
    %c0_i32_1 = arith.constant 0 : i32
    return %c0_i32, %c0_i32_0 : i32, i32
  }
  func.func @transform_3(%arg0: i32) -> (i32, i32) {
    %c0_i32 = arith.constant 0 : i32
    %c0_i32_0 = arith.constant 0 : i32
    return %arg0, %c0_i32 : i32, i32
  }
}

module attributes {stable_mosaic.version = 11 : i64} {
  func.func @_matmul_bias_act_kernel(%arg0: i32, %arg1: memref<720x432xbf16, #tpu.memory_space<vmem>>, %arg2: memref<432x128xbf16, #tpu.memory_space<vmem>>, %arg3: memref<1x128xf32, #tpu.memory_space<vmem>>, %arg4: memref<720x128xf32, #tpu.memory_space<vmem>>) attributes {dimension_semantics = [#tpu.dimension_semantics<parallel>], iteration_bounds = array<i64: 15>, scalar_prefetch = 0 : i64, scratch_operands = 0 : i64, tpu.core_type = #tpu.core_type<tc>, window_params = [{transform_indices = @transform_0, window_bounds = array<i64: 720, 432>}, {pipeline_mode = #tpu.pipeline_mode<synchronous>, transform_indices = @transform_1, window_bounds = array<i64: 432, 128>}, {pipeline_mode = #tpu.pipeline_mode<synchronous>, transform_indices = @transform_2, window_bounds = array<i64: 1, 128>}, {transform_indices = @transform_3, window_bounds = array<i64: 720, 128>}]} {
    %c0 = arith.constant 0 : index
    %c0_0 = arith.constant 0 : index
    %0 = vector.load %arg1[%c0, %c0_0] : memref<720x432xbf16, #tpu.memory_space<vmem>>, vector<720x432xbf16>
    %c0_1 = arith.constant 0 : index
    %c0_2 = arith.constant 0 : index
    %1 = vector.load %arg2[%c0_1, %c0_2] : memref<432x128xbf16, #tpu.memory_space<vmem>>, vector<432x128xbf16>
    %cst = arith.constant dense<0.000000e+00> : vector<720x128xf32>
    %2 = tpu.matmul %0, %1, %cst {dimension_numbers = #tpu.dot_dimension_numbers<[1], [0], [0], [1], [0, 0, 1, 1], [], []>} : vector<720x432xbf16>, vector<432x128xbf16>, vector<720x128xf32> -> vector<720x128xf32>
    %c0_3 = arith.constant 0 : index
    %c0_4 = arith.constant 0 : index
    %3 = vector.load %arg3[%c0_3, %c0_4] : memref<1x128xf32, #tpu.memory_space<vmem>>, vector<1x128xf32>
    %4 = vector.broadcast %3 : vector<1x128xf32> to vector<720x128xf32>
    %5 = arith.addf %2, %4 : vector<720x128xf32>
    %cst_5 = arith.constant -3.000000e+01 : f32
    %cst_6 = arith.constant 3.000000e+01 : f32
    %6 = vector.broadcast %cst_5 : f32 to vector<720x128xf32>
    %7 = arith.maximumf %6, %5 : vector<720x128xf32>
    %8 = vector.broadcast %cst_6 : f32 to vector<720x128xf32>
    %9 = arith.minimumf %8, %7 : vector<720x128xf32>
    %cst_7 = arith.constant 0.000000e+00 : f32
    %10 = vector.broadcast %cst_7 : f32 to vector<720x128xf32>
    %11 = arith.subf %10, %9 : vector<720x128xf32>
    %12 = math.exp %11 : vector<720x128xf32>
    %cst_8 = arith.constant 1.000000e+00 : f32
    %13 = vector.broadcast %cst_8 : f32 to vector<720x128xf32>
    %14 = arith.addf %13, %12 : vector<720x128xf32>
    %15 = tpu.reciprocal %14 {approx = true} : vector<720x128xf32> -> vector<720x128xf32>
    %cst_9 = arith.constant 0.000000e+00 : f32
    %cst_10 = arith.constant 1.000000e+00 : f32
    %16 = vector.broadcast %cst_9 : f32 to vector<720x128xf32>
    %17 = arith.maximumf %16, %15 : vector<720x128xf32>
    %18 = vector.broadcast %cst_10 : f32 to vector<720x128xf32>
    %19 = arith.minimumf %18, %17 : vector<720x128xf32>
    %c0_11 = arith.constant 0 : index
    %c0_12 = arith.constant 0 : index
    %20 = vector.load %arg4[%c0_11, %c0_12] : memref<720x128xf32, #tpu.memory_space<vmem>>, vector<720x128xf32>
    tpu.vector_store %arg4[%c0_11, %c0_12], %19 {strides = array<i32>} : memref<720x128xf32, #tpu.memory_space<vmem>>, vector<720x128xf32>,
    return
  }
  func.func @transform_0(%arg0: i32) -> (i32, i32) {
    %c0_i32 = arith.constant 0 : i32
    %c0_i32_0 = arith.constant 0 : i32
    return %arg0, %c0_i32 : i32, i32
  }
  func.func @transform_1(%arg0: i32) -> (i32, i32) {
    %c0_i32 = arith.constant 0 : i32
    %c0_i32_0 = arith.constant 0 : i32
    %c0_i32_1 = arith.constant 0 : i32
    return %c0_i32, %c0_i32_0 : i32, i32
  }
  func.func @transform_2(%arg0: i32) -> (i32, i32) {
    %c0_i32 = arith.constant 0 : i32
    %c0_i32_0 = arith.constant 0 : i32
    %c0_i32_1 = arith.constant 0 : i32
    return %c0_i32, %c0_i32_0 : i32, i32
  }
  func.func @transform_3(%arg0: i32) -> (i32, i32) {
    %c0_i32 = arith.constant 0 : i32
    %c0_i32_0 = arith.constant 0 : i32
    return %arg0, %c0_i32 : i32, i32
  }
}

</mosaic_0001>

<llo_original>
// kernel: conv_ae_forward.5
$region0: #{conv_ae_forward.5}
  #allocation0 [shape = 'u32[]', space=smem, size = 0x4, offset = 0x4, fixed_abs, tag = 'smem constant byte address 0x4 - core index']
  #allocation1 [shape = 'u32[144,128]{1,0:T(1,128)}', space=vmem, size = 0x12000, scoped, tag = 'internal scratch']
  %s0 = inlined_call_operand.vmem [shape: bf16[1536,27], index: 0, kind: input, shape index: {}]
  %s1 = inlined_call_operand.vmem [shape: bf16[27,128], index: 1, kind: input, shape index: {}]
  %s2 = inlined_call_operand.vmem [shape: f32[1,128], index: 2, kind: input, shape index: {}]
  %s3 = inlined_call_operand.vmem [shape: bf16[1536,128], index: 3, kind: output, shape index: {}]
  %s4 = sld [smem:[#allocation0]]
  $region45: #{conv_ae_forward.5} parent=0
    _
  %s6 = ssub.s32 1, %s4
  %s7 = scalar_select 0, %s6, %s4
  loop: start=0, step=1, limit=4
  $region2: #{conv_ae_forward.5} parent=0 // loop_pre_header
    _
  $region3: #{conv_ae_forward.5} parent=0 // loop_header
    %s9 = sphi 0, %s13
    %p10 = scmp.ge.s32.totalorder %s9, 4
    %s19 = sphi 0, %s21
    %s22 = sphi 0, %s19
    %s23 = sphi 0, %s22
    %s39 = sphi 0, %s23
    %s43 = sphi 0, %s43
    %s45 = sphi 0, %s43
    %s46 = sphi 0, %s45
    %s60 = sphi 0, %s46
    %s64 = sphi 0, %s64
    %s66 = sphi 0, %s64
    %s67 = sphi 0, %s66
    %s81 = sphi 0, %s67
    %s87 = sphi 0, %s89
    %s90 = sphi 0, %s87
    %s91 = sphi 0, %s90
    %s107 = sphi 0, %s91
  $region4: #{conv_ae_forward.5} parent=0 // loop_header_branch
    %12 = sbr.rel (%p10) target = $region8
  $region5: #{conv_ae_forward.5} parent=0 // loop_body
    %s14 = ssub.s32 %s9, 1
    %s15 = ssub.s32 %s9, 2
    %s16 = sadd.s32 %s9, 1
    %s17 = ssub.s32 %s9, %s16
    %p18 = scmp.eq.s32.totalorder %s17, 0
    %s20 = sadd.s32 %s19, 1
    %s21 = scalar_select %p18, %s19, %s20
    %p24 = pneg %p18
    %p25 = scmp.eq.s32.totalorder %s9, 1
    %p26 = por %p24, %p25
    %p27 = scmp.ne.s32.totalorder %s19, %s22
    %p28 = scmp.eq.s32.totalorder %s9, 0
    %p29 = por %p27, %p28
    %p30 = scmp.ne.s32.totalorder %s19, %s22
    %p31 = scmp.eq.s32.totalorder %s14, 1
    %p32 = por %p30, %p31
    %p33 = scmp.ne.s32.totalorder %s22, %s23
    %p34 = scmp.eq.s32.totalorder %s14, 0
    %p35 = por %p33, %p34
    %p36 = scmp.ne.s32.totalorder %s22, %s23
    %p37 = scmp.eq.s32.totalorder %s15, 1
    %p38 = por %p36, %p37
    %p40 = scmp.ne.s32.totalorder %s23, %s39
    %p41 = scmp.eq.s32.totalorder %s15, 0
    %p42 = por %p40, %p41
    %s44 = sadd.s32 %s43, 1
    %p47 = scmp.eq.s32.totalorder %s9, 1
    %p48 = scmp.ne.s32.totalorder %s43, %s45
    %p49 = scmp.eq.s32.totalorder %s9, 0
    %p50 = por %p48, %p49
    %p51 = scmp.ne.s32.totalorder %s43, %s45
    %p52 = scmp.eq.s32.totalorder %s14, 1
    %p53 = por %p51, %p52
    %p54 = scmp.ne.s32.totalorder %s45, %s46
    %p55 = scmp.eq.s32.totalorder %s14, 0
    %p56 = por %p54, %p55
    %p57 = scmp.ne.s32.totalorder %s45, %s46
    %p58 = scmp.eq.s32.totalorder %s15, 1
    %p59 = por %p57, %p58
    %p61 = scmp.ne.s32.totalorder %s46, %s60
    %p62 = scmp.eq.s32.totalorder %s15, 0
    %p63 = por %p61, %p62
    %s65 = sadd.s32 %s64, 1
    %p68 = scmp.eq.s32.totalorder %s9, 1
    %p69 = scmp.ne.s32.totalorder %s64, %s66
    %p70 = scmp.eq.s32.totalorder %s9, 0
    %p71 = por %p69, %p70
    %p72 = scmp.ne.s32.totalorder %s64, %s66
    %p73 = scmp.eq.s32.totalorder %s14, 1
    %p74 = por %p72, %p73
    %p75 = scmp.ne.s32.totalorder %s66, %s67
    %p76 = scmp.eq.s32.totalorder %s14, 0
    %p77 = por %p75, %p76
    %p78 = scmp.ne.s32.totalorder %s66, %s67
    %p79 = scmp.eq.s32.totalorder %s15, 1
    %p80 = por %p78, %p79
    %p82 = scmp.ne.s32.totalorder %s67, %s81
    %p83 = scmp.eq.s32.totalorder %s15, 0
    %p84 = por %p82, %p83
    %s85 = ssub.s32 %s9, %s16
    %p86 = scmp.eq.s32.totalorder %s85, 0
    %s88 = sadd.s32 %s87, 1
    %s89 = scalar_select %p86, %s87, %s88
    %p92 = pneg %p86
    %p93 = scmp.eq.s32.totalorder %s9, 1
    %p94 = por %p92, %p93
    %p95 = scmp.ne.s32.totalorder %s87, %s90
    %p96 = scmp.eq.s32.totalorder %s9, 0
    %p97 = por %p95, %p96
    %p98 = scmp.ne.s32.totalorder %s87, %s90
    %p99 = scmp.eq.s32.totalorder %s14, 1
    %p100 = por %p98, %p99
    %p101 = scmp.ne.s32.totalorder %s90, %s91
    %p102 = scmp.eq.s32.totalorder %s14, 0
    %p103 = por %p101, %p102
    %p104 = scmp.ne.s32.totalorder %s90, %s91
    %p105 = scmp.eq.s32.totalorder %s15, 1
    %p106 = por %p104, %p105
    %p108 = scmp.ne.s32.totalorder %s91, %s107
    %p109 = scmp.eq.s32.totalorder %s15, 0
    %p110 = por %p108, %p109
    %p111 = scmp.le.s32.totalorder 1, %s9
    %p112 = scmp.lt.s32.totalorder %s9, 3
    %p113 = pnand %p111, %p112
    %p114 = pneg %p113
    // Predicated region
    $region9: #{conv_ae_forward.5} parent=5 // pred_check
      _
    $region10: #{conv_ae_forward.5} parent=5 // pred_check_branch
      %116 = sbr.rel (%p113) target = $region12
    $region11: #{conv_ae_forward.5} parent=5 // pred_region
      %s117 = ssub.s32 %s9, 1
      // Predicated region
      $region13: #{conv_ae_forward.5} parent=11 // pred_check
        %p118 = pneg %p56
      $region14: #{conv_ae_forward.5} parent=11 // pred_check_branch
        %120 = sbr.rel (%p118) target = $region16
      $region15: #{conv_ae_forward.5} parent=11 // pred_region
        _
      $region16: #{conv_ae_forward.5} parent=11 // pred_fallthru
        _
      // Predicated region
      $region17: #{conv_ae_forward.5} parent=11 // pred_check
        %p121 = pneg %p77
      $region18: #{conv_ae_forward.5} parent=11 // pred_check_branch
        %123 = sbr.rel (%p121) target = $region20
      $region19: #{conv_ae_forward.5} parent=11 // pred_region
        _
      $region20: #{conv_ae_forward.5} parent=11 // pred_fallthru
        _
    $region12: #{conv_ae_forward.5} parent=5 // pred_fallthru
      _
    %p124 = scmp.lt.s32.totalorder %s9, 2
    // Predicated region
    $region21: #{conv_ae_forward.5} parent=5 // pred_check
      %p125 = pneg %p124
    $region22: #{conv_ae_forward.5} parent=5 // pred_check_branch
      %127 = sbr.rel (%p125) target = $region24
    $region23: #{conv_ae_forward.5} parent=5 // pred_region
      // Predicated region
      $region25: #{conv_ae_forward.5} parent=23 // pred_check
        %p128 = pneg %p29
      $region26: #{conv_ae_forward.5} parent=23 // pred_check_branch
        %130 = sbr.rel (%p128) target = $region28
      $region27: #{conv_ae_forward.5} parent=23 // pred_region
        %s131 = smul.u32 96, %s9
        %p132 = scmp.lt.s32.totalorder %s131, 191
        %s133 = scalar_select %p132, %s131, 191
        %s134 = smul.addr %s133, 4
        %s135 = scalar_lea.vmem %s0, %s134
        %s136 = smul.u32 96, %s9
      $region28: #{conv_ae_forward.5} parent=23 // pred_fallthru
        _
    $region24: #{conv_ae_forward.5} parent=5 // pred_fallthru
      _
    %p137 = scmp.le.s32.totalorder 1, %s9
    %p138 = scmp.lt.s32.totalorder %s9, 3
    %p139 = pnand %p137, %p138
    %p140 = pneg %p139
    // Predicated region
    $region29: #{conv_ae_forward.5} parent=5 // pred_check
      _
    $region30: #{conv_ae_forward.5} parent=5 // pred_check_branch
      %142 = sbr.rel (%p139) target = $region32
    $region31: #{conv_ae_forward.5} parent=5 // pred_region
      %s143 = ssub.s32 %s9, 1
      %s144 = smul.u32 96, %s14
      %p145 = scmp.lt.s32.totalorder %s144, 191
      %s146 = scalar_select %p145, %s144, 191
      %s147 = smul.addr %s146, 4
      %s148 = scalar_lea.vmem %s0, %s147
      %p149 = pneg %p35
      %p150 = pneg %p32
      %p151 = pneg %p56
      %p152 = pneg %p53
      %p153 = pneg %p77
      %p154 = pneg %p74
      %p155 = pneg %p103
      %p156 = pneg %p100
      %s157 = smul.u32 96, %s14
      %p158 = scmp.lt.s32.totalorder %s157, 191
      %s159 = scalar_select %p158, %s157, 191
      %s160 = smul.addr %s159, 4
      %s161 = scalar_lea.vmem %s3, %s160
      %s162 = smul.u32 96, %s14
      %p163 = scmp.lt.s32.totalorder %s162, 191
      %s164 = scalar_select %p163, %s162, 191
      %s165 = smul.addr %s164, 4
      %s166 = scalar_lea.vmem %s0, %s165
      %s167 = smul.u32 96, %s14
      %s168 = smul.u32 96, %s14
      %p169 = scmp.lt.s32.totalorder %s168, 191
      %s170 = scalar_select %p169, %s168, 191
      %s171 = smul.addr %s170, 4
      %s172 = scalar_lea.vmem %s3, %s171
      %s173 = smul.u32 96, %s14
      %v175 = vld [vmem:[%s166] sm:$0xf]
      %v176 = vld [vmem:[%s166 + $0x4] sm:$0xf]
      %v177 = vld [vmem:[%s166 + $0x8] sm:$0xf]
      %v178 = vld [vmem:[%s166 + $0xc] sm:$0xf]
      %v179 = vld [vmem:[%s166 + $0x10] sm:$0xf]
      %v180 = vld [vmem:[%s166 + $0x14] sm:$0xf]
      %v181 = vld [vmem:[%s166 + $0x18] sm:$0xf]
      %v182 = vld [vmem:[%s166 + $0x1c] sm:$0xf]
      %v183 = vld [vmem:[%s166 + $0x20] sm:$0xf]
      %v184 = vld [vmem:[%s166 + $0x24] sm:$0xf]
      %v185 = vld [vmem:[%s166 + $0x28] sm:$0xf]
      %v186 = vld [vmem:[%s166 + $0x2c] sm:$0xf]
      %v187 = vld [vmem:[%s166 + $0x30] sm:$0xf]
      %v188 = vld [vmem:[%s166 + $0x34] sm:$0xf]
      %v189 = vld [vmem:[%s166 + $0x38] sm:$0xf]
      %v190 = vld [vmem:[%s166 + $0x3c] sm:$0xf]
      %v191 = vld [vmem:[%s166 + $0x40] sm:$0xf]
      %v192 = vld [vmem:[%s166 + $0x44] sm:$0xf]
      %v193 = vld [vmem:[%s166 + $0x48] sm:$0xf]
      %v194 = vld [vmem:[%s166 + $0x4c] sm:$0xf]
      %v195 = vld [vmem:[%s166 + $0x50] sm:$0xf]
      %v196 = vld [vmem:[%s166 + $0x54] sm:$0xf]
      %v197 = vld [vmem:[%s166 + $0x58] sm:$0xf]
      %v198 = vld [vmem:[%s166 + $0x5c] sm:$0xf]
      %v199 = vld [vmem:[%s166 + $0x60] sm:$0xf]
      %v200 = vld [vmem:[%s166 + $0x64] sm:$0xf]
      %v201 = vld [vmem:[%s166 + $0x68] sm:$0xf]
      %v202 = vld [vmem:[%s166 + $0x6c] sm:$0xf]
      %v203 = vld [vmem:[%s166 + $0x70] sm:$0xf]
      %v204 = vld [vmem:[%s166 + $0x74] sm:$0xf]
      %v205 = vld [vmem:[%s166 + $0x78] sm:$0xf]
      %v206 = vld [vmem:[%s166 + $0x7c] sm:$0xf]
      %v207 = vld [vmem:[%s166 + $0x80] sm:$0xf]
      %v208 = vld [vmem:[%s166 + $0x84] sm:$0xf]
      %v209 = vld [vmem:[%s166 + $0x88] sm:$0xf]
      %v210 = vld [vmem:[%s166 + $0x8c] sm:$0xf]
      %v211 = vld [vmem:[%s166 + $0x90] sm:$0xf]
      %v212 = vld [vmem:[%s166 + $0x94] sm:$0xf]
      %v213 = vld [vmem:[%s166 + $0x98] sm:$0xf]
      %v214 = vld [vmem:[%s166 + $0x9c] sm:$0xf]
      %v215 = vld [vmem:[%s166 + $0xa0] sm:$0xf]
      %v216 = vld [vmem:[%s166 + $0xa4] sm:$0xf]
      %v217 = vld [vmem:[%s166 + $0xa8] sm:$0xf]
      %v218 = vld [vmem:[%s166 + $0xac] sm:$0xf]
      %v219 = vld [vmem:[%s166 + $0xb0] sm:$0xf]
      %v220 = vld [vmem:[%s166 + $0xb4] sm:$0xf]
      %v221 = vld [vmem:[%s166 + $0xb8] sm:$0xf]
      %v222 = vld [vmem:[%s166 + $0xbc] sm:$0xf]
      %v223 = vld [vmem:[%s166 + $0xc0] sm:$0xf]
      %v224 = vld [vmem:[%s166 + $0xc4] sm:$0xf]
      %v225 = vld [vmem:[%s166 + $0xc8] sm:$0xf]
      %v226 = vld [vmem:[%s166 + $0xcc] sm:$0xf]
      %v227 = vld [vmem:[%s166 + $0xd0] sm:$0xf]
      %v228 = vld [vmem:[%s166 + $0xd4] sm:$0xf]
      %v229 = vld [vmem:[%s166 + $0xd8] sm:$0xf]
      %v230 = vld [vmem:[%s166 + $0xdc] sm:$0xf]
      %v231 = vld [vmem:[%s166 + $0xe0] sm:$0xf]
      %v232 = vld [vmem:[%s166 + $0xe4] sm:$0xf]
      %v233 = vld [vmem:[%s166 + $0xe8] sm:$0xf]
      %v234 = vld [vmem:[%s166 + $0xec] sm:$0xf]
      %v235 = vld [vmem:[%s166 + $0xf0] sm:$0xf]
      %v236 = vld [vmem:[%s166 + $0xf4] sm:$0xf]
      %v237 = vld [vmem:[%s166 + $0xf8] sm:$0xf]
      %v238 = vld [vmem:[%s166 + $0xfc] sm:$0xf]
      %v239 = vld [vmem:[%s166 + $0x100] sm:$0xf]
      %v240 = vld [vmem:[%s166 + $0x104] sm:$0xf]
      %v241 = vld [vmem:[%s166 + $0x108] sm:$0xf]
      %v242 = vld [vmem:[%s166 + $0x10c] sm:$0xf]
      %v243 = vld [vmem:[%s166 + $0x110] sm:$0xf]
      %v244 = vld [vmem:[%s166 + $0x114] sm:$0xf]
      %v245 = vld [vmem:[%s166 + $0x118] sm:$0xf]
      %v246 = vld [vmem:[%s166 + $0x11c] sm:$0xf]
      %v247 = vld [vmem:[%s166 + $0x120] sm:$0xf]
      %v248 = vld [vmem:[%s166 + $0x124] sm:$0xf]
      %v249 = vld [vmem:[%s166 + $0x128] sm:$0xf]
      %v250 = vld [vmem:[%s166 + $0x12c] sm:$0xf]
      %v251 = vld [vmem:[%s166 + $0x130] sm:$0xf]
      %v252 = vld [vmem:[%s166 + $0x134] sm:$0xf]
      %v253 = vld [vmem:[%s166 + $0x138] sm:$0xf]
      %v254 = vld [vmem:[%s166 + $0x13c] sm:$0xf]
      %v255 = vld [vmem:[%s166 + $0x140] sm:$0xf]
      %v256 = vld [vmem:[%s166 + $0x144] sm:$0xf]
      %v257 = vld [vmem:[%s166 + $0x148] sm:$0xf]
      %v258 = vld [vmem:[%s166 + $0x14c] sm:$0xf]
      %v259 = vld [vmem:[%s166 + $0x150] sm:$0xf]
      %v260 = vld [vmem:[%s166 + $0x154] sm:$0xf]
      %v261 = vld [vmem:[%s166 + $0x158] sm:$0xf]
      %v262 = vld [vmem:[%s166 + $0x15c] sm:$0xf]
      %v263 = vld [vmem:[%s166 + $0x160] sm:$0xf]
      %v264 = vld [vmem:[%s166 + $0x164] sm:$0xf]
      %v265 = vld [vmem:[%s166 + $0x168] sm:$0xf]
      %v266 = vld [vmem:[%s166 + $0x16c] sm:$0xf]
      %v267 = vld [vmem:[%s166 + $0x170] sm:$0xf]
      %v268 = vld [vmem:[%s166 + $0x174] sm:$0xf]
      %v269 = vld [vmem:[%s166 + $0x178] sm:$0xf]
      %v270 = vld [vmem:[%s166 + $0x17c] sm:$0xf]
      %v271 = vld [vmem:[%s1] sm:$0xf]
      %v272 = vld [vmem:[%s1 + $0x4] sm:$0xf]
      %v273 = vld [vmem:[%s1 + $0x8] sm:$0xf]
      %v274 = vld [vmem:[%s1 + $0xc] sm:$0x3]
      %v275 = vld [vmem:[%s2] sm:$0x1]
      %v277 = vlaneseq
      %v278 = vshrl.u32 %v277, 7
      %v279 = vsub.s32 0, %v278
      %v280 = vrot.slane %v275, %v279
      %v378 = vunpack.c.l.b16 %v175
      %v379 = vunpack.c.l.b16 %v176
      %v380 = vunpack.c.l.b16 %v177
      %v381 = vunpack.c.l.b16 %v178
      %v382 = vunpack.c.l.b16 %v179
      %v383 = vunpack.c.l.b16 %v180
      %v384 = vunpack.c.l.b16 %v181
      %v385 = vunpack.c.l.b16 %v182
      %v386 = vunpack.c.l.b16 %v183
      %v387 = vunpack.c.l.b16 %v184
      %v388 = vunpack.c.l.b16 %v185
      %v389 = vunpack.c.l.b16 %v186
      %v390 = vunpack.c.l.b16 %v187
      %v391 = vunpack.c.l.b16 %v188
      %v392 = vunpack.c.l.b16 %v189
      %v393 = vunpack.c.l.b16 %v190
      %v394 = vunpack.c.l.b16 %v191
      %v395 = vunpack.c.l.b16 %v192
      %v396 = vunpack.c.l.b16 %v193
      %v397 = vunpack.c.l.b16 %v194
      %v398 = vunpack.c.l.b16 %v195
      %v399 = vunpack.c.l.b16 %v196
      %v400 = vunpack.c.l.b16 %v197
      %v401 = vunpack.c.l.b16 %v198
      %v402 = vunpack.c.l.b16 %v199
      %v403 = vunpack.c.l.b16 %v200
      %v404 = vunpack.c.l.b16 %v201
      %v405 = vunpack.c.l.b16 %v202
      %v406 = vunpack.c.l.b16 %v203
      %v407 = vunpack.c.l.b16 %v204
      %v408 = vunpack.c.l.b16 %v205
      %v409 = vunpack.c.l.b16 %v206
      %v410 = vunpack.c.l.b16 %v207
      %v411 = vunpack.c.l.b16 %v208
      %v412 = vunpack.c.l.b16 %v209
      %v413 = vunpack.c.l.b16 %v210
      %v414 = vunpack.c.l.b16 %v211
      %v415 = vunpack.c.l.b16 %v212
      %v416 = vunpack.c.l.b16 %v213
      %v417 = vunpack.c.l.b16 %v214
      %v418 = vunpack.c.l.b16 %v215
      %v419 = vunpack.c.l.b16 %v216
      %v420 = vunpack.c.l.b16 %v217
      %v421 = vunpack.c.l.b16 %v218
      %v422 = vunpack.c.l.b16 %v219
      %v423 = vunpack.c.l.b16 %v220
      %v424 = vunpack.c.l.b16 %v221
      %v425 = vunpack.c.l.b16 %v222
      %v426 = vunpack.c.l.b16 %v223
      %v427 = vunpack.c.l.b16 %v224
      %v428 = vunpack.c.l.b16 %v225
      %v429 = vunpack.c.l.b16 %v226
      %v430 = vunpack.c.l.b16 %v227
      %v431 = vunpack.c.l.b16 %v228
      %v432 = vunpack.c.l.b16 %v229
      %v433 = vunpack.c.l.b16 %v230
      %v434 = vunpack.c.l.b16 %v231
      %v435 = vunpack.c.l.b16 %v232
      %v436 = vunpack.c.l.b16 %v233
      %v437 = vunpack.c.l.b16 %v234
      %v438 = vunpack.c.l.b16 %v235
      %v439 = vunpack.c.l.b16 %v236
      %v440 = vunpack.c.l.b16 %v237
      %v441 = vunpack.c.l.b16 %v238
      %v442 = vunpack.c.l.b16 %v239
      %v443 = vunpack.c.l.b16 %v240
      %v444 = vunpack.c.l.b16 %v241
      %v445 = vunpack.c.l.b16 %v242
      %v446 = vunpack.c.l.b16 %v243
      %v447 = vunpack.c.l.b16 %v244
      %v448 = vunpack.c.l.b16 %v245
      %v449 = vunpack.c.l.b16 %v246
      %v450 = vunpack.c.l.b16 %v247
      %v451 = vunpack.c.l.b16 %v248
      %v452 = vunpack.c.l.b16 %v249
      %v453 = vunpack.c.l.b16 %v250
      %v454 = vunpack.c.l.b16 %v251
      %v455 = vunpack.c.l.b16 %v252
      %v456 = vunpack.c.l.b16 %v253
      %v457 = vunpack.c.l.b16 %v254
      %v458 = vunpack.c.l.b16 %v255
      %v459 = vunpack.c.l.b16 %v256
      %v460 = vunpack.c.l.b16 %v257
      %v461 = vunpack.c.l.b16 %v258
      %v462 = vunpack.c.l.b16 %v259
      %v463 = vunpack.c.l.b16 %v260
      %v464 = vunpack.c.l.b16 %v261
      %v465 = vunpack.c.l.b16 %v262
      %v466 = vunpack.c.l.b16 %v263
      %v467 = vunpack.c.l.b16 %v264
      %v468 = vunpack.c.l.b16 %v265
      %v469 = vunpack.c.l.b16 %v266
      %v470 = vunpack.c.l.b16 %v267
      %v471 = vunpack.c.l.b16 %v268
      %v472 = vunpack.c.l.b16 %v269
      %v473 = vunpack.c.l.b16 %v270
      %v474 = vpack.c.b16 %v379, %v378
      %v475 = vpack.c.b16 %v381, %v380
      %v476 = vpack.c.b16 %v383, %v382
      %v477 = vpack.c.b16 %v385, %v384
      %v478 = vpack.c.b16 %v387, %v386
      %v479 = vpack.c.b16 %v389, %v388
      %v480 = vpack.c.b16 %v391, %v390
      %v481 = vpack.c.b16 %v393, %v392
      %v482 = vpack.c.b16 %v395, %v394
      %v483 = vpack.c.b16 %v397, %v396
      %v484 = vpack.c.b16 %v399, %v398
      %v485 = vpack.c.b16 %v401, %v400
      %v486 = vpack.c.b16 %v403, %v402
      %v487 = vpack.c.b16 %v405, %v404
      %v488 = vpack.c.b16 %v407, %v406
      %v489 = vpack.c.b16 %v409, %v408
      %v490 = vpack.c.b16 %v411, %v410
      %v491 = vpack.c.b16 %v413, %v412
      %v492 = vpack.c.b16 %v415, %v414
      %v493 = vpack.c.b16 %v417, %v416
      %v494 = vpack.c.b16 %v419, %v418
      %v495 = vpack.c.b16 %v421, %v420
      %v496 = vpack.c.b16 %v423, %v422
      %v497 = vpack.c.b16 %v425, %v424
      %v498 = vpack.c.b16 %v427, %v426
      %v499 = vpack.c.b16 %v429, %v428
      %v500 = vpack.c.b16 %v431, %v430
      %v501 = vpack.c.b16 %v433, %v432
      %v502 = vpack.c.b16 %v435, %v434
      %v503 = vpack.c.b16 %v437, %v436
      %v504 = vpack.c.b16 %v439, %v438
      %v505 = vpack.c.b16 %v441, %v440
      %v506 = vpack.c.b16 %v443, %v442
      %v507 = vpack.c.b16 %v445, %v444
      %v508 = vpack.c.b16 %v447, %v446
      %v509 = vpack.c.b16 %v449, %v448
      %v510 = vpack.c.b16 %v451, %v450
      %v511 = vpack.c.b16 %v453, %v452
      %v512 = vpack.c.b16 %v455, %v454
      %v513 = vpack.c.b16 %v457, %v456
      %v514 = vpack.c.b16 %v459, %v458
      %v515 = vpack.c.b16 %v461, %v460
      %v516 = vpack.c.b16 %v463, %v462
      %v517 = vpack.c.b16 %v465, %v464
      %v518 = vpack.c.b16 %v467, %v466
      %v519 = vpack.c.b16 %v469, %v468
      %v520 = vpack.c.b16 %v471, %v470
      %v521 = vpack.c.b16 %v473, %v472
      %v526 = vunpack.c.l.b16 %v271
      %v527 = vunpack.c.l.b16 %v272
      %v528 = vunpack.c.l.b16 %v273
      %v529 = vunpack.c.l.b16 %v274
      %v530 = vpack.c.b16 %v527, %v526
      %v531 = vpack.c.b16 %v529, %v528
      %vm533 = vcmask 220160
      %v535 = vsel %vm533, %v474, 0
      %v538 = vsel %vm533, %v475, 0
      %v541 = vsel %vm533, %v476, 0
      %v544 = vsel %vm533, %v477, 0
      %v547 = vsel %vm533, %v478, 0
      %v550 = vsel %vm533, %v479, 0
      %v553 = vsel %vm533, %v480, 0
      %v556 = vsel %vm533, %v481, 0
      %v559 = vsel %vm533, %v482, 0
      %v562 = vsel %vm533, %v483, 0
      %v565 = vsel %vm533, %v484, 0
      %v568 = vsel %vm533, %v485, 0
      %v571 = vsel %vm533, %v486, 0
      %v574 = vsel %vm533, %v487, 0
      %v577 = vsel %vm533, %v488, 0
      %v580 = vsel %vm533, %v489, 0
      %v583 = vsel %vm533, %v490, 0
      %v586 = vsel %vm533, %v491, 0
      %v589 = vsel %vm533, %v492, 0
      %v592 = vsel %vm533, %v493, 0
      %v595 = vsel %vm533, %v494, 0
      %v598 = vsel %vm533, %v495, 0
      %v601 = vsel %vm533, %v496, 0
      %v604 = vsel %vm533, %v497, 0
      %v607 = vsel %vm533, %v498, 0
      %v610 = vsel %vm533, %v499, 0
      %v613 = vsel %vm533, %v500, 0
      %v616 = vsel %vm533, %v501, 0
      %v619 = vsel %vm533, %v502, 0
      %v622 = vsel %vm533, %v503, 0
      %v625 = vsel %vm533, %v504, 0
      %v628 = vsel %vm533, %v505, 0
      %v631 = vsel %vm533, %v506, 0
      %v634 = vsel %vm533, %v507, 0
      %v637 = vsel %vm533, %v508, 0
      %v640 = vsel %vm533, %v509, 0
      %v643 = vsel %vm533, %v510, 0
      %v646 = vsel %vm533, %v511, 0
      %v649 = vsel %vm533, %v512, 0
      %v652 = vsel %vm533, %v513, 0
      %v655 = vsel %vm533, %v514, 0
      %v658 = vsel %vm533, %v515, 0
      %v661 = vsel %vm533, %v516, 0
      %v664 = vsel %vm533, %v517, 0
      %v667 = vsel %vm533, %v518, 0
      %v670 = vsel %vm533, %v519, 0
      %v673 = vsel %vm533, %v520, 0
      %v676 = vsel %vm533, %v521, 0
      %vm678 = vcmask 1044480
      %vm679 = vcmask 1045504
      %v680 = vsel %vm678, 4294967295, 65535
      %v681 = vsel %vm679, %v680, 0
      %v683 = vand.u32 %v531, %v681
      %685 = vmatprep.subr.bf16.mxu0 0
      %686 = vmatpush1.bf16.msra.mxu0 0
      %687 = vmatprep.subr.bf16.mxu0 0
      %688 = vmatpush1.bf16.msra.mxu0 0
      %689 = vmatprep.subr.bf16.mxu0 0
      %690 = vmatpush1.bf16.msra.mxu0 0
      %691 = vmatprep.subr.bf16.mxu0 0
      %692 = vmatpush1.bf16.msra.mxu0 0
      %693 = vmatprep.subr.bf16.mxu0 0
      %694 = vmatpush1.bf16.msra.mxu0 0
      %695 = vmatprep.subr.bf16.mxu0 0
      %696 = vmatpush1.bf16.msra.mxu0 0
      %697 = vmatprep.subr.bf16.mxu0 0
      %698 = vmatpush1.bf16.msra.mxu0 %v683
      %699 = vmatprep.subr.bf16.mxu0 0
      %700 = vmatpush1.bf16.msra.mxu0 %v530
      %701 = vmatprep.subr.bf16.mxu0 0
      %702 = vmatpush2.bf16.msra.mxu0 0
      %703 = vmatprep.subr.bf16.mxu0 0
      %704 = vmatpush2.bf16.msra.mxu0 0
      %705 = vmatprep.subr.bf16.mxu0 0
      %706 = vmatpush2.bf16.msra.mxu0 0
      %707 = vmatprep.subr.bf16.mxu0 0
      %708 = vmatpush2.bf16.msra.mxu0 0
      %709 = vmatprep.subr.bf16.mxu0 0
      %710 = vmatpush2.bf16.msra.mxu0 0
      %711 = vmatprep.subr.bf16.mxu0 0
      %712 = vmatpush2.bf16.msra.mxu0 0
      %713 = vmatprep.subr.bf16.mxu0 0
      %714 = vmatpush2.bf16.msra.mxu0 0
      %715 = vmatprep.subr.bf16.mxu0 0
      %716 = vmatpush2.bf16.msra.mxu0 0
      %717 = vmatprep.mubr.bf16.mxu0 0
      %718 = vmatmul.mubr.bf16.gmra.mxu0 %v535
      %v719 = vpop.f32.mrf.mxu0
      %v720 = vadd.f32 %v280, %v719
      %v721 = vpop.f32.mrf.mxu0
      %v722 = vpop.f32.mrf.mxu0
      %v723 = vadd.f32 %v280, %v722
      %v724 = vpop.f32.mrf.mxu0
      %725 = vmatprep.mubr.bf16.mxu0 0
      %726 = vmatmul.mubr.bf16.gmra.mxu0 %v538
      %v727 = vpop.f32.mrf.mxu0
      %v728 = vadd.f32 %v280, %v727
      %v729 = vpop.f32.mrf.mxu0
      %v730 = vpop.f32.mrf.mxu0
      %v731 = vadd.f32 %v280, %v730
      %v732 = vpop.f32.mrf.mxu0
      %733 = vmatprep.mubr.bf16.mxu0 0
      %734 = vmatmul.mubr.bf16.gmra.mxu0 %v541
      %v735 = vpop.f32.mrf.mxu0
      %v736 = vadd.f32 %v280, %v735
      %v737 = vpop.f32.mrf.mxu0
      %v738 = vpop.f32.mrf.mxu0
      %v739 = vadd.f32 %v280, %v738
      %v740 = vpop.f32.mrf.mxu0
      %741 = vmatprep.mubr.bf16.mxu0 0
      %742 = vmatmul.mubr.bf16.gmra.mxu0 %v544
      %v743 = vpop.f32.mrf.mxu0
      %v744 = vadd.f32 %v280, %v743
      %v745 = vpop.f32.mrf.mxu0
      %v746 = vpop.f32.mrf.mxu0
      %v747 = vadd.f32 %v280, %v746
      %v748 = vpop.f32.mrf.mxu0
      %749 = vmatprep.mubr.bf16.mxu0 0
      %750 = vmatmul.mubr.bf16.gmra.mxu0 %v547
      %v751 = vpop.f32.mrf.mxu0
      %v752 = vadd.f32 %v280, %v751
      %v753 = vpop.f32.mrf.mxu0
      %v754 = vpop.f32.mrf.mxu0
      %v755 = vadd.f32 %v280, %v754
      %v756 = vpop.f32.mrf.mxu0
      %757 = vmatprep.mubr.bf16.mxu0 0
      %758 = vmatmul.mubr.bf16.gmra.mxu0 %v550
      %v759 = vpop.f32.mrf.mxu0
      %v760 = vadd.f32 %v280, %v759
      %v761 = vpop.f32.mrf.mxu0
      %v762 = vpop.f32.mrf.mxu0
      %v763 = vadd.f32 %v280, %v762
      %v764 = vpop.f32.mrf.mxu0
      %765 = vmatprep.mubr.bf16.mxu0 0
      %766 = vmatmul.mubr.bf16.gmra.mxu0 %v553
      %v767 = vpop.f32.mrf.mxu0
      %v768 = vadd.f32 %v280, %v767
      %v769 = vpop.f32.mrf.mxu0
      %v770 = vpop.f32.mrf.mxu0
      %v771 = vadd.f32 %v280, %v770
      %v772 = vpop.f32.mrf.mxu0
      %773 = vmatprep.mubr.bf16.mxu0 0
      %774 = vmatmul.mubr.bf16.gmra.mxu0 %v556
      %v775 = vpop.f32.mrf.mxu0
      %v776 = vadd.f32 %v280, %v775
      %v777 = vpop.f32.mrf.mxu0
      %v778 = vpop.f32.mrf.mxu0
      %v779 = vadd.f32 %v280, %v778
      %v780 = vpop.f32.mrf.mxu0
      %781 = vmatprep.mubr.bf16.mxu0 0
      %782 = vmatmul.mubr.bf16.gmra.mxu0 %v559
      %v783 = vpop.f32.mrf.mxu0
      %v784 = vadd.f32 %v280, %v783
      %v785 = vpop.f32.mrf.mxu0
      %v786 = vpop.f32.mrf.mxu0
      %v787 = vadd.f32 %v280, %v786
      %v788 = vpop.f32.mrf.mxu0
      %789 = vmatprep.mubr.bf16.mxu0 0
      %790 = vmatmul.mubr.bf16.gmra.mxu0 %v562
      %v791 = vpop.f32.mrf.mxu0
      %v792 = vadd.f32 %v280, %v791
      %v793 = vpop.f32.mrf.mxu0
      %v794 = vpop.f32.mrf.mxu0
      %v795 = vadd.f32 %v280, %v794
      %v796 = vpop.f32.mrf.mxu0
      %797 = vmatprep.mubr.bf16.mxu0 0
      %798 = vmatmul.mubr.bf16.gmra.mxu0 %v565
      %v799 = vpop.f32.mrf.mxu0
      %v800 = vadd.f32 %v280, %v799
      %v801 = vpop.f32.mrf.mxu0
      %v802 = vpop.f32.mrf.mxu0
      %v803 = vadd.f32 %v280, %v802
      %v804 = vpop.f32.mrf.mxu0
      %805 = vmatprep.mubr.bf16.mxu0 0
      %806 = vmatmul.mubr.bf16.gmra.mxu0 %v568
      %v807 = vpop.f32.mrf.mxu0
      %v808 = vadd.f32 %v280, %v807
      %v809 = vpop.f32.mrf.mxu0
      %v810 = vpop.f32.mrf.mxu0
      %v811 = vadd.f32 %v280, %v810
      %v812 = vpop.f32.mrf.mxu0
      %813 = vmatprep.mubr.bf16.mxu0 0
      %814 = vmatmul.mubr.bf16.gmra.mxu0 %v571
      %v815 = vpop.f32.mrf.mxu0
      %v816 = vadd.f32 %v280, %v815
      %v817 = vpop.f32.mrf.mxu0
      %v818 = vpop.f32.mrf.mxu0
      %v819 = vadd.f32 %v280, %v818
      %v820 = vpop.f32.mrf.mxu0
      %821 = vmatprep.mubr.bf16.mxu0 0
      %822 = vmatmul.mubr.bf16.gmra.mxu0 %v574
      %v823 = vpop.f32.mrf.mxu0
      %v824 = vadd.f32 %v280, %v823
      %v825 = vpop.f32.mrf.mxu0
      %v826 = vpop.f32.mrf.mxu0
      %v827 = vadd.f32 %v280, %v826
      %v828 = vpop.f32.mrf.mxu0
      %829 = vmatprep.mubr.bf16.mxu0 0
      %830 = vmatmul.mubr.bf16.gmra.mxu0 %v577
      %v831 = vpop.f32.mrf.mxu0
      %v832 = vadd.f32 %v280, %v831
      %v833 = vpop.f32.mrf.mxu0
      %v834 = vpop.f32.mrf.mxu0
      %v835 = vadd.f32 %v280, %v834
      %v836 = vpop.f32.mrf.mxu0
      %837 = vmatprep.mubr.bf16.mxu0 0
      %838 = vmatmul.mubr.bf16.gmra.mxu0 %v580
      %v839 = vpop.f32.mrf.mxu0
      %v840 = vadd.f32 %v280, %v839
      %v841 = vpop.f32.mrf.mxu0
      %v842 = vpop.f32.mrf.mxu0
      %v843 = vadd.f32 %v280, %v842
      %v844 = vpop.f32.mrf.mxu0
      %845 = vmatprep.mubr.bf16.mxu0 0
      %846 = vmatmul.mubr.bf16.gmra.mxu0 %v583
      %v847 = vpop.f32.mrf.mxu0
      %v848 = vadd.f32 %v280, %v847
      %v849 = vpop.f32.mrf.mxu0
      %v850 = vpop.f32.mrf.mxu0
      %v851 = vadd.f32 %v280, %v850
      %v852 = vpop.f32.mrf.mxu0
      %853 = vmatprep.mubr.bf16.mxu0 0
      %854 = vmatmul.mubr.bf16.gmra.mxu0 %v586
      %v855 = vpop.f32.mrf.mxu0
      %v856 = vadd.f32 %v280, %v855
      %v857 = vpop.f32.mrf.mxu0
      %v858 = vpop.f32.mrf.mxu0
      %v859 = vadd.f32 %v280, %v858
      %v860 = vpop.f32.mrf.mxu0
      %861 = vmatprep.mubr.bf16.mxu0 0
      %862 = vmatmul.mubr.bf16.gmra.mxu0 %v589
      %v863 = vpop.f32.mrf.mxu0
      %v864 = vadd.f32 %v280, %v863
      %v865 = vpop.f32.mrf.mxu0
      %v866 = vpop.f32.mrf.mxu0
      %v867 = vadd.f32 %v280, %v866
      %v868 = vpop.f32.mrf.mxu0
      %869 = vmatprep.mubr.bf16.mxu0 0
      %870 = vmatmul.mubr.bf16.gmra.mxu0 %v592
      %v871 = vpop.f32.mrf.mxu0
      %v872 = vadd.f32 %v280, %v871
      %v873 = vpop.f32.mrf.mxu0
      %v874 = vpop.f32.mrf.mxu0
      %v875 = vadd.f32 %v280, %v874
      %v876 = vpop.f32.mrf.mxu0
      %877 = vmatprep.mubr.bf16.mxu0 0
      %878 = vmatmul.mubr.bf16.gmra.mxu0 %v595
      %v879 = vpop.f32.mrf.mxu0
      %v880 = vadd.f32 %v280, %v879
      %v881 = vpop.f32.mrf.mxu0
      %v882 = vpop.f32.mrf.mxu0
      %v883 = vadd.f32 %v280, %v882
      %v884 = vpop.f32.mrf.mxu0
      %885 = vmatprep.mubr.bf16.mxu0 0
      %886 = vmatmul.mubr.bf16.gmra.mxu0 %v598
      %v887 = vpop.f32.mrf.mxu0
      %v888 = vadd.f32 %v280, %v887
      %v889 = vpop.f32.mrf.mxu0
      %v890 = vpop.f32.mrf.mxu0
      %v891 = vadd.f32 %v280, %v890
      %v892 = vpop.f32.mrf.mxu0
      %893 = vmatprep.mubr.bf16.mxu0 0
      %894 = vmatmul.mubr.bf16.gmra.mxu0 %v601
      %v895 = vpop.f32.mrf.mxu0
      %v896 = vadd.f32 %v280, %v895
      %v897 = vpop.f32.mrf.mxu0
      %v898 = vpop.f32.mrf.mxu0
      %v899 = vadd.f32 %v280, %v898
      %v900 = vpop.f32.mrf.mxu0
      %901 = vmatprep.mubr.bf16.mxu0 0
      %902 = vmatmul.mubr.bf16.gmra.mxu0 %v604
      %v903 = vpop.f32.mrf.mxu0
      %v904 = vadd.f32 %v280, %v903
      %v905 = vpop.f32.mrf.mxu0
      %v906 = vpop.f32.mrf.mxu0
      %v907 = vadd.f32 %v280, %v906
      %v908 = vpop.f32.mrf.mxu0
      %909 = vmatprep.mubr.bf16.mxu0 0
      %910 = vmatmul.mubr.bf16.gmra.mxu0 %v607
      %v911 = vpop.f32.mrf.mxu0
      %v912 = vadd.f32 %v280, %v911
      %v913 = vpop.f32.mrf.mxu0
      %v914 = vpop.f32.mrf.mxu0
      %v915 = vadd.f32 %v280, %v914
      %v916 = vpop.f32.mrf.mxu0
      %917 = vmatprep.mubr.bf16.mxu0 0
      %918 = vmatmul.mubr.bf16.gmra.mxu0 %v610
      %v919 = vpop.f32.mrf.mxu0
      %v920 = vadd.f32 %v280, %v919
      %v921 = vpop.f32.mrf.mxu0
      %v922 = vpop.f32.mrf.mxu0
      %v923 = vadd.f32 %v280, %v922
      %v924 = vpop.f32.mrf.mxu0
      %925 = vmatprep.mubr.bf16.mxu0 0
      %926 = vmatmul.mubr.bf16.gmra.mxu0 %v613
      %v927 = vpop.f32.mrf.mxu0
      %v928 = vadd.f32 %v280, %v927
      %v929 = vpop.f32.mrf.mxu0
      %v930 = vpop.f32.mrf.mxu0
      %v931 = vadd.f32 %v280, %v930
      %v932 = vpop.f32.mrf.mxu0
      %933 = vmatprep.mubr.bf16.mxu0 0
      %934 = vmatmul.mubr.bf16.gmra.mxu0 %v616
      %v935 = vpop.f32.mrf.mxu0
      %v936 = vadd.f32 %v280, %v935
      %v937 = vpop.f32.mrf.mxu0
      %v938 = vpop.f32.mrf.mxu0
      %v939 = vadd.f32 %v280, %v938
      %v940 = vpop.f32.mrf.mxu0
      %941 = vmatprep.mubr.bf16.mxu0 0
      %942 = vmatmul.mubr.bf16.gmra.mxu0 %v619
      %v943 = vpop.f32.mrf.mxu0
      %v944 = vadd.f32 %v280, %v943
      %v945 = vpop.f32.mrf.mxu0
      %v946 = vpop.f32.mrf.mxu0
      %v947 = vadd.f32 %v280, %v946
      %v948 = vpop.f32.mrf.mxu0
      %949 = vmatprep.mubr.bf16.mxu0 0
      %950 = vmatmul.mubr.bf16.gmra.mxu0 %v622
      %v951 = vpop.f32.mrf.mxu0
      %v952 = vadd.f32 %v280, %v951
      %v953 = vpop.f32.mrf.mxu0
      %v954 = vpop.f32.mrf.mxu0
      %v955 = vadd.f32 %v280, %v954
      %v956 = vpop.f32.mrf.mxu0
      %957 = vmatprep.mubr.bf16.mxu0 0
      %958 = vmatmul.mubr.bf16.gmra.mxu0 %v625
      %v959 = vpop.f32.mrf.mxu0
      %v960 = vadd.f32 %v280, %v959
      %v961 = vpop.f32.mrf.mxu0
      %v962 = vpop.f32.mrf.mxu0
      %v963 = vadd.f32 %v280, %v962
      %v964 = vpop.f32.mrf.mxu0
      %965 = vmatprep.mubr.bf16.mxu0 0
      %966 = vmatmul.mubr.bf16.gmra.mxu0 %v628
      %v967 = vpop.f32.mrf.mxu0
      %v968 = vadd.f32 %v280, %v967
      %v969 = vpop.f32.mrf.mxu0
      %v970 = vpop.f32.mrf.mxu0
      %v971 = vadd.f32 %v280, %v970
      %v972 = vpop.f32.mrf.mxu0
      %973 = vmatprep.mubr.bf16.mxu0 0
      %974 = vmatmul.mubr.bf16.gmra.mxu0 %v631
      %v975 = vpop.f32.mrf.mxu0
      %v976 = vadd.f32 %v280, %v975
      %v977 = vpop.f32.mrf.mxu0
      %v978 = vpop.f32.mrf.mxu0
      %v979 = vadd.f32 %v280, %v978
      %v980 = vpop.f32.mrf.mxu0
      %981 = vmatprep.mubr.bf16.mxu0 0
      %982 = vmatmul.mubr.bf16.gmra.mxu0 %v634
      %v983 = vpop.f32.mrf.mxu0
      %v984 = vadd.f32 %v280, %v983
      %v985 = vpop.f32.mrf.mxu0
      %v986 = vpop.f32.mrf.mxu0
      %v987 = vadd.f32 %v280, %v986
      %v988 = vpop.f32.mrf.mxu0
      %989 = vmatprep.mubr.bf16.mxu0 0
      %990 = vmatmul.mubr.bf16.gmra.mxu0 %v637
      %v991 = vpop.f32.mrf.mxu0
      %v992 = vadd.f32 %v280, %v991
      %v993 = vpop.f32.mrf.mxu0
      %v994 = vpop.f32.mrf.mxu0
      %v995 = vadd.f32 %v280, %v994
      %v996 = vpop.f32.mrf.mxu0
      %997 = vmatprep.mubr.bf16.mxu0 0
      %998 = vmatmul.mubr.bf16.gmra.mxu0 %v640
      %v999 = vpop.f32.mrf.mxu0
      %v1000 = vadd.f32 %v280, %v999
      %v1001 = vpop.f32.mrf.mxu0
      %v1002 = vpop.f32.mrf.mxu0
      %v1003 = vadd.f32 %v280, %v1002
      %v1004 = vpop.f32.mrf.mxu0
      %1005 = vmatprep.mubr.bf16.mxu0 0
      %1006 = vmatmul.mubr.bf16.gmra.mxu0 %v643
      %v1007 = vpop.f32.mrf.mxu0
      %v1008 = vadd.f32 %v280, %v1007
      %v1009 = vpop.f32.mrf.mxu0
      %v1010 = vpop.f32.mrf.mxu0
      %v1011 = vadd.f32 %v280, %v1010
      %v1012 = vpop.f32.mrf.mxu0
      %1013 = vmatprep.mubr.bf16.mxu0 0
      %1014 = vmatmul.mubr.bf16.gmra.mxu0 %v646
      %v1015 = vpop.f32.mrf.mxu0
      %v1016 = vadd.f32 %v280, %v1015
      %v1017 = vpop.f32.mrf.mxu0
      %v1018 = vpop.f32.mrf.mxu0
      %v1019 = vadd.f32 %v280, %v1018
      %v1020 = vpop.f32.mrf.mxu0
      %1021 = vmatprep.mubr.bf16.mxu0 0
      %1022 = vmatmul.mubr.bf16.gmra.mxu0 %v649
      %v1023 = vpop.f32.mrf.mxu0
      %v1024 = vadd.f32 %v280, %v1023
      %v1025 = vpop.f32.mrf.mxu0
      %v1026 = vpop.f32.mrf.mxu0
      %v1027 = vadd.f32 %v280, %v1026
      %v1028 = vpop.f32.mrf.mxu0
      %1029 = vmatprep.mubr.bf16.mxu0 0
      %1030 = vmatmul.mubr.bf16.gmra.mxu0 %v652
      %v1031 = vpop.f32.mrf.mxu0
      %v1032 = vadd.f32 %v280, %v1031
      %v1033 = vpop.f32.mrf.mxu0
      %v1034 = vpop.f32.mrf.mxu0
      %v1035 = vadd.f32 %v280, %v1034
      %v1036 = vpop.f32.mrf.mxu0
      %1037 = vmatprep.mubr.bf16.mxu0 0
      %1038 = vmatmul.mubr.bf16.gmra.mxu0 %v655
      %v1039 = vpop.f32.mrf.mxu0
      %v1040 = vadd.f32 %v280, %v1039
      %v1041 = vpop.f32.mrf.mxu0
      %v1042 = vpop.f32.mrf.mxu0
      %v1043 = vadd.f32 %v280, %v1042
      %v1044 = vpop.f32.mrf.mxu0
      %1045 = vmatprep.mubr.bf16.mxu0 0
      %1046 = vmatmul.mubr.bf16.gmra.mxu0 %v658
      %v1047 = vpop.f32.mrf.mxu0
      %v1048 = vadd.f32 %v280, %v1047
      %v1049 = vpop.f32.mrf.mxu0
      %v1050 = vpop.f32.mrf.mxu0
      %v1051 = vadd.f32 %v280, %v1050
      %v1052 = vpop.f32.mrf.mxu0
      %1053 = vmatprep.mubr.bf16.mxu0 0
      %1054 = vmatmul.mubr.bf16.gmra.mxu0 %v661
      %v1055 = vpop.f32.mrf.mxu0
      %v1056 = vadd.f32 %v280, %v1055
      %v1057 = vpop.f32.mrf.mxu0
      %v1058 = vpop.f32.mrf.mxu0
      %v1059 = vadd.f32 %v280, %v1058
      %v1060 = vpop.f32.mrf.mxu0
      %1061 = vmatprep.mubr.bf16.mxu0 0
      %1062 = vmatmul.mubr.bf16.gmra.mxu0 %v664
      %v1063 = vpop.f32.mrf.mxu0
      %v1064 = vadd.f32 %v280, %v1063
      %v1065 = vpop.f32.mrf.mxu0
      %v1066 = vpop.f32.mrf.mxu0
      %v1067 = vadd.f32 %v280, %v1066
      %v1068 = vpop.f32.mrf.mxu0
      %1069 = vmatprep.mubr.bf16.mxu0 0
      %1070 = vmatmul.mubr.bf16.gmra.mxu0 %v667
      %v1071 = vpop.f32.mrf.mxu0
      %v1072 = vadd.f32 %v280, %v1071
      %v1073 = vpop.f32.mrf.mxu0
      %v1074 = vpop.f32.mrf.mxu0
      %v1075 = vadd.f32 %v280, %v1074
      %v1076 = vpop.f32.mrf.mxu0
      %1077 = vmatprep.mubr.bf16.mxu0 0
      %1078 = vmatmul.mubr.bf16.gmra.mxu0 %v670
      %v1079 = vpop.f32.mrf.mxu0
      %v1080 = vadd.f32 %v280, %v1079
      %v1081 = vpop.f32.mrf.mxu0
      %v1082 = vpop.f32.mrf.mxu0
      %v1083 = vadd.f32 %v280, %v1082
      %v1084 = vpop.f32.mrf.mxu0
      %1085 = vmatprep.mubr.bf16.mxu0 0
      %1086 = vmatmul.mubr.bf16.gmra.mxu0 %v673
      %v1087 = vpop.f32.mrf.mxu0
      %v1088 = vadd.f32 %v280, %v1087
      %v1089 = vpop.f32.mrf.mxu0
      %v1090 = vpop.f32.mrf.mxu0
      %v1091 = vadd.f32 %v280, %v1090
      %v1092 = vpop.f32.mrf.mxu0
      %1093 = vmatprep.mubr.bf16.mxu0 0
      %1094 = vmatmul.mubr.bf16.gmra.mxu0 %v676
      %v1095 = vpop.f32.mrf.mxu0
      %v1096 = vadd.f32 %v280, %v1095
      %v1097 = vpop.f32.mrf.mxu0
      %v1098 = vpop.f32.mrf.mxu0
      %v1099 = vadd.f32 %v280, %v1098
      %v1100 = vpop.f32.mrf.mxu0
      %1101 = vdwg.mxu0
      %v1102 = vmax.f32 %v720, 0.0
      %v1103 = vmax.f32 %v723, 0.0
      %v1104 = vmax.f32 %v728, 0.0
      %v1105 = vmax.f32 %v731, 0.0
      %v1106 = vmax.f32 %v736, 0.0
      %v1107 = vmax.f32 %v739, 0.0
      %v1108 = vmax.f32 %v744, 0.0
      %v1109 = vmax.f32 %v747, 0.0
      %v1110 = vmax.f32 %v752, 0.0
      %v1111 = vmax.f32 %v755, 0.0
      %v1112 = vmax.f32 %v760, 0.0
      %v1113 = vmax.f32 %v763, 0.0
      %v1114 = vmax.f32 %v768, 0.0
      %v1115 = vmax.f32 %v771, 0.0
      %v1116 = vmax.f32 %v776, 0.0
      %v1117 = vmax.f32 %v779, 0.0
      %v1118 = vmax.f32 %v784, 0.0
      %v1119 = vmax.f32 %v787, 0.0
      %v1120 = vmax.f32 %v792, 0.0
      %v1121 = vmax.f32 %v795, 0.0
      %v1122 = vmax.f32 %v800, 0.0
      %v1123 = vmax.f32 %v803, 0.0
      %v1124 = vmax.f32 %v808, 0.0
      %v1125 = vmax.f32 %v811, 0.0
      %v1126 = vmax.f32 %v816, 0.0
      %v1127 = vmax.f32 %v819, 0.0
      %v1128 = vmax.f32 %v824, 0.0
      %v1129 = vmax.f32 %v827, 0.0
      %v1130 = vmax.f32 %v832, 0.0
      %v1131 = vmax.f32 %v835, 0.0
      %v1132 = vmax.f32 %v840, 0.0
      %v1133 = vmax.f32 %v843, 0.0
      %v1134 = vmax.f32 %v848, 0.0
      %v1135 = vmax.f32 %v851, 0.0
      %v1136 = vmax.f32 %v856, 0.0
      %v1137 = vmax.f32 %v859, 0.0
      %v1138 = vmax.f32 %v864, 0.0
      %v1139 = vmax.f32 %v867, 0.0
      %v1140 = vmax.f32 %v872, 0.0
      %v1141 = vmax.f32 %v875, 0.0
      %v1142 = vmax.f32 %v880, 0.0
      %v1143 = vmax.f32 %v883, 0.0
      %v1144 = vmax.f32 %v888, 0.0
      %v1145 = vmax.f32 %v891, 0.0
      %v1146 = vmax.f32 %v896, 0.0
      %v1147 = vmax.f32 %v899, 0.0
      %v1148 = vmax.f32 %v904, 0.0
      %v1149 = vmax.f32 %v907, 0.0
      %v1150 = vmax.f32 %v912, 0.0
      %v1151 = vmax.f32 %v915, 0.0
      %v1152 = vmax.f32 %v920, 0.0
      %v1153 = vmax.f32 %v923, 0.0
      %v1154 = vmax.f32 %v928, 0.0
      %v1155 = vmax.f32 %v931, 0.0
      %v1156 = vmax.f32 %v936, 0.0
      %v1157 = vmax.f32 %v939, 0.0
      %v1158 = vmax.f32 %v944, 0.0
      %v1159 = vmax.f32 %v947, 0.0
      %v1160 = vmax.f32 %v952, 0.0
      %v1161 = vmax.f32 %v955, 0.0
      %v1162 = vmax.f32 %v960, 0.0
      %v1163 = vmax.f32 %v963, 0.0
      %v1164 = vmax.f32 %v968, 0.0
      %v1165 = vmax.f32 %v971, 0.0
      %v1166 = vmax.f32 %v976, 0.0
      %v1167 = vmax.f32 %v979, 0.0
      %v1168 = vmax.f32 %v984, 0.0
      %v1169 = vmax.f32 %v987, 0.0
      %v1170 = vmax.f32 %v992, 0.0
      %v1171 = vmax.f32 %v995, 0.0
      %v1172 = vmax.f32 %v1000, 0.0
      %v1173 = vmax.f32 %v1003, 0.0
      %v1174 = vmax.f32 %v1008, 0.0
      %v1175 = vmax.f32 %v1011, 0.0
      %v1176 = vmax.f32 %v1016, 0.0
      %v1177 = vmax.f32 %v1019, 0.0
      %v1178 = vmax.f32 %v1024, 0.0
      %v1179 = vmax.f32 %v1027, 0.0
      %v1180 = vmax.f32 %v1032, 0.0
      %v1181 = vmax.f32 %v1035, 0.0
      %v1182 = vmax.f32 %v1040, 0.0
      %v1183 = vmax.f32 %v1043, 0.0
      %v1184 = vmax.f32 %v1048, 0.0
      %v1185 = vmax.f32 %v1051, 0.0
      %v1186 = vmax.f32 %v1056, 0.0
      %v1187 = vmax.f32 %v1059, 0.0
      %v1188 = vmax.f32 %v1064, 0.0
      %v1189 = vmax.f32 %v1067, 0.0
      %v1190 = vmax.f32 %v1072, 0.0
      %v1191 = vmax.f32 %v1075, 0.0
      %v1192 = vmax.f32 %v1080, 0.0
      %v1193 = vmax.f32 %v1083, 0.0
      %v1194 = vmax.f32 %v1088, 0.0
      %v1195 = vmax.f32 %v1091, 0.0
      %v1196 = vmax.f32 %v1096, 0.0
      %v1197 = vmax.f32 %v1099, 0.0
      %v1198 = vpack.c.bf16 %v1103, %v1102
      %v1199 = vpack.c.bf16 %v1105, %v1104
      %v1200 = vpack.c.bf16 %v1107, %v1106
      %v1201 = vpack.c.bf16 %v1109, %v1108
      %v1202 = vpack.c.bf16 %v1111, %v1110
      %v1203 = vpack.c.bf16 %v1113, %v1112
      %v1204 = vpack.c.bf16 %v1115, %v1114
      %v1205 = vpack.c.bf16 %v1117, %v1116
      %v1206 = vpack.c.bf16 %v1119, %v1118
      %v1207 = vpack.c.bf16 %v1121, %v1120
      %v1208 = vpack.c.bf16 %v1123, %v1122
      %v1209 = vpack.c.bf16 %v1125, %v1124
      %v1210 = vpack.c.bf16 %v1127, %v1126
      %v1211 = vpack.c.bf16 %v1129, %v1128
      %v1212 = vpack.c.bf16 %v1131, %v1130
      %v1213 = vpack.c.bf16 %v1133, %v1132
      %v1214 = vpack.c.bf16 %v1135, %v1134
      %v1215 = vpack.c.bf16 %v1137, %v1136
      %v1216 = vpack.c.bf16 %v1139, %v1138
      %v1217 = vpack.c.bf16 %v1141, %v1140
      %v1218 = vpack.c.bf16 %v1143, %v1142
      %v1219 = vpack.c.bf16 %v1145, %v1144
      %v1220 = vpack.c.bf16 %v1147, %v1146
      %v1221 = vpack.c.bf16 %v1149, %v1148
      %v1222 = vpack.c.bf16 %v1151, %v1150
      %v1223 = vpack.c.bf16 %v1153, %v1152
      %v1224 = vpack.c.bf16 %v1155, %v1154
      %v1225 = vpack.c.bf16 %v1157, %v1156
      %v1226 = vpack.c.bf16 %v1159, %v1158
      %v1227 = vpack.c.bf16 %v1161, %v1160
      %v1228 = vpack.c.bf16 %v1163, %v1162
      %v1229 = vpack.c.bf16 %v1165, %v1164
      %v1230 = vpack.c.bf16 %v1167, %v1166
      %v1231 = vpack.c.bf16 %v1169, %v1168
      %v1232 = vpack.c.bf16 %v1171, %v1170
      %v1233 = vpack.c.bf16 %v1173, %v1172
      %v1234 = vpack.c.bf16 %v1175, %v1174
      %v1235 = vpack.c.bf16 %v1177, %v1176
      %v1236 = vpack.c.bf16 %v1179, %v1178
      %v1237 = vpack.c.bf16 %v1181, %v1180
      %v1238 = vpack.c.bf16 %v1183, %v1182
      %v1239 = vpack.c.bf16 %v1185, %v1184
      %v1240 = vpack.c.bf16 %v1187, %v1186
      %v1241 = vpack.c.bf16 %v1189, %v1188
      %v1242 = vpack.c.bf16 %v1191, %v1190
      %v1243 = vpack.c.bf16 %v1193, %v1192
      %v1244 = vpack.c.bf16 %v1195, %v1194
      %v1245 = vpack.c.bf16 %v1197, %v1196
      %v1294 = vunpack.c.l.b16 %v1198
      %v1295 = vunpack.c.h.b16 %v1198
      %v1296 = vunpack.c.l.b16 %v1199
      %v1297 = vunpack.c.h.b16 %v1199
      %v1298 = vunpack.c.l.b16 %v1200
      %v1299 = vunpack.c.h.b16 %v1200
      %v1300 = vunpack.c.l.b16 %v1201
      %v1301 = vunpack.c.h.b16 %v1201
      %v1302 = vunpack.c.l.b16 %v1202
      %v1303 = vunpack.c.h.b16 %v1202
      %v1304 = vunpack.c.l.b16 %v1203
      %v1305 = vunpack.c.h.b16 %v1203
      %v1306 = vunpack.c.l.b16 %v1204
      %v1307 = vunpack.c.h.b16 %v1204
      %v1308 = vunpack.c.l.b16 %v1205
      %v1309 = vunpack.c.h.b16 %v1205
      %v1310 = vunpack.c.l.b16 %v1206
      %v1311 = vunpack.c.h.b16 %v1206
      %v1312 = vunpack.c.l.b16 %v1207
      %v1313 = vunpack.c.h.b16 %v1207
      %v1314 = vunpack.c.l.b16 %v1208
      %v1315 = vunpack.c.h.b16 %v1208
      %v1316 = vunpack.c.l.b16 %v1209
      %v1317 = vunpack.c.h.b16 %v1209
      %v1318 = vunpack.c.l.b16 %v1210
      %v1319 = vunpack.c.h.b16 %v1210
      %v1320 = vunpack.c.l.b16 %v1211
      %v1321 = vunpack.c.h.b16 %v1211
      %v1322 = vunpack.c.l.b16 %v1212
      %v1323 = vunpack.c.h.b16 %v1212
      %v1324 = vunpack.c.l.b16 %v1213
      %v1325 = vunpack.c.h.b16 %v1213
      %v1326 = vunpack.c.l.b16 %v1214
      %v1327 = vunpack.c.h.b16 %v1214
      %v1328 = vunpack.c.l.b16 %v1215
      %v1329 = vunpack.c.h.b16 %v1215
      %v1330 = vunpack.c.l.b16 %v1216
      %v1331 = vunpack.c.h.b16 %v1216
      %v1332 = vunpack.c.l.b16 %v1217
      %v1333 = vunpack.c.h.b16 %v1217
      %v1334 = vunpack.c.l.b16 %v1218
      %v1335 = vunpack.c.h.b16 %v1218
      %v1336 = vunpack.c.l.b16 %v1219
      %v1337 = vunpack.c.h.b16 %v1219
      %v1338 = vunpack.c.l.b16 %v1220
      %v1339 = vunpack.c.h.b16 %v1220
      %v1340 = vunpack.c.l.b16 %v1221
      %v1341 = vunpack.c.h.b16 %v1221
      %v1342 = vunpack.c.l.b16 %v1222
      %v1343 = vunpack.c.h.b16 %v1222
      %v1344 = vunpack.c.l.b16 %v1223
      %v1345 = vunpack.c.h.b16 %v1223
      %v1346 = vunpack.c.l.b16 %v1224
      %v1347 = vunpack.c.h.b16 %v1224
      %v1348 = vunpack.c.l.b16 %v1225
      %v1349 = vunpack.c.h.b16 %v1225
      %v1350 = vunpack.c.l.b16 %v1226
      %v1351 = vunpack.c.h.b16 %v1226
      %v1352 = vunpack.c.l.b16 %v1227
      %v1353 = vunpack.c.h.b16 %v1227
      %v1354 = vunpack.c.l.b16 %v1228
      %v1355 = vunpack.c.h.b16 %v1228
      %v1356 = vunpack.c.l.b16 %v1229
      %v1357 = vunpack.c.h.b16 %v1229
      %v1358 = vunpack.c.l.b16 %v1230
      %v1359 = vunpack.c.h.b16 %v1230
      %v1360 = vunpack.c.l.b16 %v1231
      %v1361 = vunpack.c.h.b16 %v1231
      %v1362 = vunpack.c.l.b16 %v1232
      %v1363 = vunpack.c.h.b16 %v1232
      %v1364 = vunpack.c.l.b16 %v1233
      %v1365 = vunpack.c.h.b16 %v1233
      %v1366 = vunpack.c.l.b16 %v1234
      %v1367 = vunpack.c.h.b16 %v1234
      %v1368 = vunpack.c.l.b16 %v1235
      %v1369 = vunpack.c.h.b16 %v1235
      %v1370 = vunpack.c.l.b16 %v1236
      %v1371 = vunpack.c.h.b16 %v1236
      %v1372 = vunpack.c.l.b16 %v1237
      %v1373 = vunpack.c.h.b16 %v1237
      %v1374 = vunpack.c.l.b16 %v1238
      %v1375 = vunpack.c.h.b16 %v1238
      %v1376 = vunpack.c.l.b16 %v1239
      %v1377 = vunpack.c.h.b16 %v1239
      %v1378 = vunpack.c.l.b16 %v1240
      %v1379 = vunpack.c.h.b16 %v1240
      %v1380 = vunpack.c.l.b16 %v1241
      %v1381 = vunpack.c.h.b16 %v1241
      %v1382 = vunpack.c.l.b16 %v1242
      %v1383 = vunpack.c.h.b16 %v1242
      %v1384 = vunpack.c.l.b16 %v1243
      %v1385 = vunpack.c.h.b16 %v1243
      %v1386 = vunpack.c.l.b16 %v1244
      %v1387 = vunpack.c.h.b16 %v1244
      %v1388 = vunpack.c.l.b16 %v1245
      %v1389 = vunpack.c.h.b16 %v1245
      %v1390 = vpack.c.b16 %v1294, %v1294
      %v1391 = vpack.c.b16 %v1295, %v1295
      %v1392 = vpack.c.b16 %v1296, %v1296
      %v1393 = vpack.c.b16 %v1297, %v1297
      %v1394 = vpack.c.b16 %v1298, %v1298
      %v1395 = vpack.c.b16 %v1299, %v1299
      %v1396 = vpack.c.b16 %v1300, %v1300
      %v1397 = vpack.c.b16 %v1301, %v1301
      %v1398 = vpack.c.b16 %v1302, %v1302
      %v1399 = vpack.c.b16 %v1303, %v1303
      %v1400 = vpack.c.b16 %v1304, %v1304
      %v1401 = vpack.c.b16 %v1305, %v1305
      %v1402 = vpack.c.b16 %v1306, %v1306
      %v1403 = vpack.c.b16 %v1307, %v1307
      %v1404 = vpack.c.b16 %v1308, %v1308
      %v1405 = vpack.c.b16 %v1309, %v1309
      %v1406 = vpack.c.b16 %v1310, %v1310
      %v1407 = vpack.c.b16 %v1311, %v1311
      %v1408 = vpack.c.b16 %v1312, %v1312
      %v1409 = vpack.c.b16 %v1313, %v1313
      %v1410 = vpack.c.b16 %v1314, %v1314
      %v1411 = vpack.c.b16 %v1315, %v1315
      %v1412 = vpack.c.b16 %v1316, %v1316
      %v1413 = vpack.c.b16 %v1317, %v1317
      %v1414 = vpack.c.b16 %v1318, %v1318
      %v1415 = vpack.c.b16 %v1319, %v1319
      %v1416 = vpack.c.b16 %v1320, %v1320
      %v1417 = vpack.c.b16 %v1321, %v1321
      %v1418 = vpack.c.b16 %v1322, %v1322
      %v1419 = vpack.c.b16 %v1323, %v1323
      %v1420 = vpack.c.b16 %v1324, %v1324
      %v1421 = vpack.c.b16 %v1325, %v1325
      %v1422 = vpack.c.b16 %v1326, %v1326
      %v1423 = vpack.c.b16 %v1327, %v1327
      %v1424 = vpack.c.b16 %v1328, %v1328
      %v1425 = vpack.c.b16 %v1329, %v1329
      %v1426 = vpack.c.b16 %v1330, %v1330
      %v1427 = vpack.c.b16 %v1331, %v1331
      %v1428 = vpack.c.b16 %v1332, %v1332
      %v1429 = vpack.c.b16 %v1333, %v1333
      %v1430 = vpack.c.b16 %v1334, %v1334
      %v1431 = vpack.c.b16 %v1335, %v1335
      %v1432 = vpack.c.b16 %v1336, %v1336
      %v1433 = vpack.c.b16 %v1337, %v1337
      %v1434 = vpack.c.b16 %v1338, %v1338
      %v1435 = vpack.c.b16 %v1339, %v1339
      %v1436 = vpack.c.b16 %v1340, %v1340
      %v1437 = vpack.c.b16 %v1341, %v1341
      %v1438 = vpack.c.b16 %v1342, %v1342
      %v1439 = vpack.c.b16 %v1343, %v1343
      %v1440 = vpack.c.b16 %v1344, %v1344
      %v1441 = vpack.c.b16 %v1345, %v1345
      %v1442 = vpack.c.b16 %v1346, %v1346
      %v1443 = vpack.c.b16 %v1347, %v1347
      %v1444 = vpack.c.b16 %v1348, %v1348
      %v1445 = vpack.c.b16 %v1349, %v1349
      %v1446 = vpack.c.b16 %v1350, %v1350
      %v1447 = vpack.c.b16 %v1351, %v1351
      %v1448 = vpack.c.b16 %v1352, %v1352
      %v1449 = vpack.c.b16 %v1353, %v1353
      %v1450 = vpack.c.b16 %v1354, %v1354
      %v1451 = vpack.c.b16 %v1355, %v1355
      %v1452 = vpack.c.b16 %v1356, %v1356
      %v1453 = vpack.c.b16 %v1357, %v1357
      %v1454 = vpack.c.b16 %v1358, %v1358
      %v1455 = vpack.c.b16 %v1359, %v1359
      %v1456 = vpack.c.b16 %v1360, %v1360
      %v1457 = vpack.c.b16 %v1361, %v1361
      %v1458 = vpack.c.b16 %v1362, %v1362
      %v1459 = vpack.c.b16 %v1363, %v1363
      %v1460 = vpack.c.b16 %v1364, %v1364
      %v1461 = vpack.c.b16 %v1365, %v1365
      %v1462 = vpack.c.b16 %v1366, %v1366
      %v1463 = vpack.c.b16 %v1367, %v1367
      %v1464 = vpack.c.b16 %v1368, %v1368
      %v1465 = vpack.c.b16 %v1369, %v1369
      %v1466 = vpack.c.b16 %v1370, %v1370
      %v1467 = vpack.c.b16 %v1371, %v1371
      %v1468 = vpack.c.b16 %v1372, %v1372
      %v1469 = vpack.c.b16 %v1373, %v1373
      %v1470 = vpack.c.b16 %v1374, %v1374
      %v1471 = vpack.c.b16 %v1375, %v1375
      %v1472 = vpack.c.b16 %v1376, %v1376
      %v1473 = vpack.c.b16 %v1377, %v1377
      %v1474 = vpack.c.b16 %v1378, %v1378
      %v1475 = vpack.c.b16 %v1379, %v1379
      %v1476 = vpack.c.b16 %v1380, %v1380
      %v1477 = vpack.c.b16 %v1381, %v1381
      %v1478 = vpack.c.b16 %v1382, %v1382
      %v1479 = vpack.c.b16 %v1383, %v1383
      %v1480 = vpack.c.b16 %v1384, %v1384
      %v1481 = vpack.c.b16 %v1385, %v1385
      %v1482 = vpack.c.b16 %v1386, %v1386
      %v1483 = vpack.c.b16 %v1387, %v1387
      %v1484 = vpack.c.b16 %v1388, %v1388
      %v1485 = vpack.c.b16 %v1389, %v1389
      %1582 = vst [vmem:[%s172] sm:$0xf] %v1390
      %1583 = vst [vmem:[%s172 + $0x4] sm:$0xf] %v1391
      %1584 = vst [vmem:[%s172 + $0x8] sm:$0xf] %v1392
      %1585 = vst [vmem:[%s172 + $0xc] sm:$0xf] %v1393
      %1586 = vst [vmem:[%s172 + $0x10] sm:$0xf] %v1394
      %1587 = vst [vmem:[%s172 + $0x14] sm:$0xf] %v1395
      %1588 = vst [vmem:[%s172 + $0x18] sm:$0xf] %v1396
      %1589 = vst [vmem:[%s172 + $0x1c] sm:$0xf] %v1397
      %1590 = vst [vmem:[%s172 + $0x20] sm:$0xf] %v1398
      %1591 = vst [vmem:[%s172 + $0x24] sm:$0xf] %v1399
      %1592 = vst [vmem:[%s172 + $0x28] sm:$0xf] %v1400
      %1593 = vst [vmem:[%s172 + $0x2c] sm:$0xf] %v1401
      %1594 = vst [vmem:[%s172 + $0x30] sm:$0xf] %v1402
      %1595 = vst [vmem:[%s172 + $0x34] sm:$0xf] %v1403
      %1596 = vst [vmem:[%s172 + $0x38] sm:$0xf] %v1404
      %1597 = vst [vmem:[%s172 + $0x3c] sm:$0xf] %v1405
      %1598 = vst [vmem:[%s172 + $0x40] sm:$0xf] %v1406
      %1599 = vst [vmem:[%s172 + $0x44] sm:$0xf] %v1407
      %1600 = vst [vmem:[%s172 + $0x48] sm:$0xf] %v1408
      %1601 = vst [vmem:[%s172 + $0x4c] sm:$0xf] %v1409
      %1602 = vst [vmem:[%s172 + $0x50] sm:$0xf] %v1410
      %1603 = vst [vmem:[%s172 + $0x54] sm:$0xf] %v1411
      %1604 = vst [vmem:[%s172 + $0x58] sm:$0xf] %v1412
      %1605 = vst [vmem:[%s172 + $0x5c] sm:$0xf] %v1413
      %1606 = vst [vmem:[%s172 + $0x60] sm:$0xf] %v1414
      %1607 = vst [vmem:[%s172 + $0x64] sm:$0xf] %v1415
      %1608 = vst [vmem:[%s172 + $0x68] sm:$0xf] %v1416
      %1609 = vst [vmem:[%s172 + $0x6c] sm:$0xf] %v1417
      %1610 = vst [vmem:[%s172 + $0x70] sm:$0xf] %v1418
      %1611 = vst [vmem:[%s172 + $0x74] sm:$0xf] %v1419
      %1612 = vst [vmem:[%s172 + $0x78] sm:$0xf] %v1420
      %1613 = vst [vmem:[%s172 + $0x7c] sm:$0xf] %v1421
      %1614 = vst [vmem:[%s172 + $0x80] sm:$0xf] %v1422
      %1615 = vst [vmem:[%s172 + $0x84] sm:$0xf] %v1423
      %1616 = vst [vmem:[%s172 + $0x88] sm:$0xf] %v1424
      %1617 = vst [vmem:[%s172 + $0x8c] sm:$0xf] %v1425
      %1618 = vst [vmem:[%s172 + $0x90] sm:$0xf] %v1426
      %1619 = vst [vmem:[%s172 + $0x94] sm:$0xf] %v1427
      %1620 = vst [vmem:[%s172 + $0x98] sm:$0xf] %v1428
      %1621 = vst [vmem:[%s172 + $0x9c] sm:$0xf] %v1429
      %1622 = vst [vmem:[%s172 + $0xa0] sm:$0xf] %v1430
      %1623 = vst [vmem:[%s172 + $0xa4] sm:$0xf] %v1431
      %1624 = vst [vmem:[%s172 + $0xa8] sm:$0xf] %v1432
      %1625 = vst [vmem:[%s172 + $0xac] sm:$0xf] %v1433
      %1626 = vst [vmem:[%s172 + $0xb0] sm:$0xf] %v1434
      %1627 = vst [vmem:[%s172 + $0xb4] sm:$0xf] %v1435
      %1628 = vst [vmem:[%s172 + $0xb8] sm:$0xf] %v1436
      %1629 = vst [vmem:[%s172 + $0xbc] sm:$0xf] %v1437
      %1630 = vst [vmem:[%s172 + $0xc0] sm:$0xf] %v1438
      %1631 = vst [vmem:[%s172 + $0xc4] sm:$0xf] %v1439
      %1632 = vst [vmem:[%s172 + $0xc8] sm:$0xf] %v1440
      %1633 = vst [vmem:[%s172 + $0xcc] sm:$0xf] %v1441
      %1634 = vst [vmem:[%s172 + $0xd0] sm:$0xf] %v1442
      %1635 = vst [vmem:[%s172 + $0xd4] sm:$0xf] %v1443
      %1636 = vst [vmem:[%s172 + $0xd8] sm:$0xf] %v1444
      %1637 = vst [vmem:[%s172 + $0xdc] sm:$0xf] %v1445
      %1638 = vst [vmem:[%s172 + $0xe0] sm:$0xf] %v1446
      %1639 = vst [vmem:[%s172 + $0xe4] sm:$0xf] %v1447
      %1640 = vst [vmem:[%s172 + $0xe8] sm:$0xf] %v1448
      %1641 = vst [vmem:[%s172 + $0xec] sm:$0xf] %v1449
      %1642 = vst [vmem:[%s172 + $0xf0] sm:$0xf] %v1450
      %1643 = vst [vmem:[%s172 + $0xf4] sm:$0xf] %v1451
      %1644 = vst [vmem:[%s172 + $0xf8] sm:$0xf] %v1452
      %1645 = vst [vmem:[%s172 + $0xfc] sm:$0xf] %v1453
      %1646 = vst [vmem:[%s172 + $0x100] sm:$0xf] %v1454
      %1647 = vst [vmem:[%s172 + $0x104] sm:$0xf] %v1455
      %1648 = vst [vmem:[%s172 + $0x108] sm:$0xf] %v1456
      %1649 = vst [vmem:[%s172 + $0x10c] sm:$0xf] %v1457
      %1650 = vst [vmem:[%s172 + $0x110] sm:$0xf] %v1458
      %1651 = vst [vmem:[%s172 + $0x114] sm:$0xf] %v1459
      %1652 = vst [vmem:[%s172 + $0x118] sm:$0xf] %v1460
      %1653 = vst [vmem:[%s172 + $0x11c] sm:$0xf] %v1461
      %1654 = vst [vmem:[%s172 + $0x120] sm:$0xf] %v1462
      %1655 = vst [vmem:[%s172 + $0x124] sm:$0xf] %v1463
      %1656 = vst [vmem:[%s172 + $0x128] sm:$0xf] %v1464
      %1657 = vst [vmem:[%s172 + $0x12c] sm:$0xf] %v1465
      %1658 = vst [vmem:[%s172 + $0x130] sm:$0xf] %v1466
      %1659 = vst [vmem:[%s172 + $0x134] sm:$0xf] %v1467
      %1660 = vst [vmem:[%s172 + $0x138] sm:$0xf] %v1468
      %1661 = vst [vmem:[%s172 + $0x13c] sm:$0xf] %v1469
      %1662 = vst [vmem:[%s172 + $0x140] sm:$0xf] %v1470
      %1663 = vst [vmem:[%s172 + $0x144] sm:$0xf] %v1471
      %1664 = vst [vmem:[%s172 + $0x148] sm:$0xf] %v1472
      %1665 = vst [vmem:[%s172 + $0x14c] sm:$0xf] %v1473
      %1666 = vst [vmem:[%s172 + $0x150] sm:$0xf] %v1474
      %1667 = vst [vmem:[%s172 + $0x154] sm:$0xf] %v1475
      %1668 = vst [vmem:[%s172 + $0x158] sm:$0xf] %v1476
      %1669 = vst [vmem:[%s172 + $0x15c] sm:$0xf] %v1477
      %1670 = vst [vmem:[%s172 + $0x160] sm:$0xf] %v1478
      %1671 = vst [vmem:[%s172 + $0x164] sm:$0xf] %v1479
      %1672 = vst [vmem:[%s172 + $0x168] sm:$0xf] %v1480
      %1673 = vst [vmem:[%s172 + $0x16c] sm:$0xf] %v1481
      %1674 = vst [vmem:[%s172 + $0x170] sm:$0xf] %v1482
      %1675 = vst [vmem:[%s172 + $0x174] sm:$0xf] %v1483
      %1676 = vst [vmem:[%s172 + $0x178] sm:$0xf] %v1484
      %1677 = vst [vmem:[%s172 + $0x17c] sm:$0xf] %v1485
      %s1678 = smul.u32 96, %s14
      %p1679 = scmp.lt.s32.totalorder %s1678, 191
      %s1680 = scalar_select %p1679, %s1678, 191
      %s1681 = smul.addr %s1680, 4
      %s1682 = scalar_lea.vmem %s3, %s1681
      // Predicated region
      $region33: #{conv_ae_forward.5} parent=31 // pred_check
        %p1683 = pneg %p100
      $region34: #{conv_ae_forward.5} parent=31 // pred_check_branch
        %1685 = sbr.rel (%p1683) target = $region36
      $region35: #{conv_ae_forward.5} parent=31 // pred_region
        %s1686 = smul.u32 96, %s14
      $region36: #{conv_ae_forward.5} parent=31 // pred_fallthru
        _
    $region32: #{conv_ae_forward.5} parent=5 // pred_fallthru
      _
    %p1687 = scmp.le.s32.totalorder 2, %s9
    // Predicated region
    $region37: #{conv_ae_forward.5} parent=5 // pred_check
      %p1688 = pneg %p1687
    $region38: #{conv_ae_forward.5} parent=5 // pred_check_branch
      %1690 = sbr.rel (%p1688) target = $region40
    $region39: #{conv_ae_forward.5} parent=5 // pred_region
      %s1691 = ssub.s32 %s9, 2
      // Predicated region
      $region41: #{conv_ae_forward.5} parent=39 // pred_check
        %p1692 = pneg %p106
      $region42: #{conv_ae_forward.5} parent=39 // pred_check_branch
        %1694 = sbr.rel (%p1692) target = $region44
      $region43: #{conv_ae_forward.5} parent=39 // pred_region
        %s1695 = smul.u32 96, %s15
        %p1696 = scmp.lt.s32.totalorder %s1695, 191
        %s1697 = scalar_select %p1696, %s1695, 191
        %s1698 = smul.addr %s1697, 4
        %s1699 = scalar_lea.vmem %s3, %s1698
      $region44: #{conv_ae_forward.5} parent=39 // pred_fallthru
        _
    $region40: #{conv_ae_forward.5} parent=5 // pred_fallthru
      _
  $region6: #{conv_ae_forward.5} parent=0 // loop_footer
    %s13 = sadd.s32 1, %s9
  $region7: #{conv_ae_forward.5} parent=0 // loop_footer_branch
    %8 = sbr.rel target = $region3
  $region8: #{conv_ae_forward.5} parent=0 // loop_exit
    _

// kernel: conv_ae_forward.6
$region0: #{conv_ae_forward.6}
  #allocation0 [shape = 'u32[]', space=smem, size = 0x4, offset = 0x4, fixed_abs, tag = 'smem constant byte address 0x4 - core index']
  #allocation1 [shape = 'u32[144,128]{1,0:T(1,128)}', space=vmem, size = 0x12000, scoped, tag = 'internal scratch']
  %s0 = inlined_call_operand.vmem [shape: bf16[192,432], index: 0, kind: input, shape index: {}]
  %s1 = inlined_call_operand.vmem [shape: bf16[432,128], index: 1, kind: input, shape index: {}]
  %s2 = inlined_call_operand.vmem [shape: f32[1,128], index: 2, kind: input, shape index: {}]
  %s3 = inlined_call_operand.vmem [shape: bf16[192,128], index: 3, kind: output, shape index: {}]
  %s4 = sld [smem:[#allocation0]]
  $region22: #{conv_ae_forward.6} parent=0
    _
  %s6 = ssub.s32 1, %s4
  %s7 = scalar_select 0, %s6, %s4
  // Predicated region
  $region2: #{conv_ae_forward.6} parent=0 // pred_check
    _
  $region3: #{conv_ae_forward.6} parent=0 // pred_check_branch
    %9 = sbr.rel (0) target = $region5
  $region4: #{conv_ae_forward.6} parent=0 // pred_region
    _
  $region5: #{conv_ae_forward.6} parent=0 // pred_fallthru
    _
  // Predicated region
  $region6: #{conv_ae_forward.6} parent=0 // pred_check
    _
  $region7: #{conv_ae_forward.6} parent=0 // pred_check_branch
    %11 = sbr.rel (0) target = $region9
  $region8: #{conv_ae_forward.6} parent=0 // pred_region
    _
  $region9: #{conv_ae_forward.6} parent=0 // pred_fallthru
    _
  // Predicated region
  $region10: #{conv_ae_forward.6} parent=0 // pred_check
    _
  $region11: #{conv_ae_forward.6} parent=0 // pred_check_branch
    %13 = sbr.rel (0) target = $region13
  $region12: #{conv_ae_forward.6} parent=0 // pred_region
    _
  $region13: #{conv_ae_forward.6} parent=0 // pred_fallthru
    _
  %v15 = vld [vmem:[%s0] sm:$0xff]
  %v16 = vld [vmem:[%s0 + $0x8] sm:$0xff]
  %v17 = vld [vmem:[%s0 + $0x10] sm:$0xff]
  %v18 = vld [vmem:[%s0 + $0x18] sm:$0xff]
  %v19 = vld [vmem:[%s0 + $0x20] sm:$0xff]
  %v20 = vld [vmem:[%s0 + $0x28] sm:$0xff]
  %v21 = vld [vmem:[%s0 + $0x30] sm:$0xff]
  %v22 = vld [vmem:[%s0 + $0x38] sm:$0xff]
  %v23 = vld [vmem:[%s0 + $0x40] sm:$0xff]
  %v24 = vld [vmem:[%s0 + $0x48] sm:$0xff]
  %v25 = vld [vmem:[%s0 + $0x50] sm:$0xff]
  %v26 = vld [vmem:[%s0 + $0x58] sm:$0xff]
  %v27 = vld [vmem:[%s0 + $0x60] sm:$0xff]
  %v28 = vld [vmem:[%s0 + $0x68] sm:$0xff]
  %v29 = vld [vmem:[%s0 + $0x70] sm:$0xff]
  %v30 = vld [vmem:[%s0 + $0x78] sm:$0xff]
  %v31 = vld [vmem:[%s0 + $0x80] sm:$0xff]
  %v32 = vld [vmem:[%s0 + $0x88] sm:$0xff]
  %v33 = vld [vmem:[%s0 + $0x90] sm:$0xff]
  %v34 = vld [vmem:[%s0 + $0x98] sm:$0xff]
  %v35 = vld [vmem:[%s0 + $0xa0] sm:$0xff]
  %v36 = vld [vmem:[%s0 + $0xa8] sm:$0xff]
  %v37 = vld [vmem:[%s0 + $0xb0] sm:$0xff]
  %v38 = vld [vmem:[%s0 + $0xb8] sm:$0xff]
  %v39 = vld [vmem:[%s0 + $0xc0] sm:$0xff]
  %v40 = vld [vmem:[%s0 + $0xc8] sm:$0xff]
  %v41 = vld [vmem:[%s0 + $0xd0] sm:$0xff]
  %v42 = vld [vmem:[%s0 + $0xd8] sm:$0xff]
  %v43 = vld [vmem:[%s0 + $0xe0] sm:$0xff]
  %v44 = vld [vmem:[%s0 + $0xe8] sm:$0xff]
  %v45 = vld [vmem:[%s0 + $0xf0] sm:$0xff]
  %v46 = vld [vmem:[%s0 + $0xf8] sm:$0xff]
  %v47 = vld [vmem:[%s0 + $0x100] sm:$0xff]
  %v48 = vld [vmem:[%s0 + $0x108] sm:$0xff]
  %v49 = vld [vmem:[%s0 + $0x110] sm:$0xff]
  %v50 = vld [vmem:[%s0 + $0x118] sm:$0xff]
  %v51 = vld [vmem:[%s0 + $0x120] sm:$0xff]
  %v52 = vld [vmem:[%s0 + $0x128] sm:$0xff]
  %v53 = vld [vmem:[%s0 + $0x130] sm:$0xff]
  %v54 = vld [vmem:[%s0 + $0x138] sm:$0xff]
  %v55 = vld [vmem:[%s0 + $0x140] sm:$0xff]
  %v56 = vld [vmem:[%s0 + $0x148] sm:$0xff]
  %v57 = vld [vmem:[%s0 + $0x150] sm:$0xff]
  %v58 = vld [vmem:[%s0 + $0x158] sm:$0xff]
  %v59 = vld [vmem:[%s0 + $0x160] sm:$0xff]
  %v60 = vld [vmem:[%s0 + $0x168] sm:$0xff]
  %v61 = vld [vmem:[%s0 + $0x170] sm:$0xff]
  %v62 = vld [vmem:[%s0 + $0x178] sm:$0xff]
  %v63 = vld [vmem:[%s1] sm:$0xf]
  %v64 = vld [vmem:[%s1 + $0x4] sm:$0xf]
  %v65 = vld [vmem:[%s1 + $0x8] sm:$0xf]
  %v66 = vld [vmem:[%s1 + $0xc] sm:$0xf]
  %v67 = vld [vmem:[%s1 + $0x10] sm:$0xf]
  %v68 = vld [vmem:[%s1 + $0x14] sm:$0xf]
  %v69 = vld [vmem:[%s1 + $0x18] sm:$0xf]
  %v70 = vld [vmem:[%s1 + $0x1c] sm:$0xf]
  %v71 = vld [vmem:[%s1 + $0x20] sm:$0xf]
  %v72 = vld [vmem:[%s1 + $0x24] sm:$0xf]
  %v73 = vld [vmem:[%s1 + $0x28] sm:$0xf]
  %v74 = vld [vmem:[%s1 + $0x2c] sm:$0xf]
  %v75 = vld [vmem:[%s1 + $0x30] sm:$0xf]
  %v76 = vld [vmem:[%s1 + $0x34] sm:$0xf]
  %v77 = vld [vmem:[%s1 + $0x38] sm:$0xf]
  %v78 = vld [vmem:[%s1 + $0x3c] sm:$0xf]
  %v79 = vld [vmem:[%s1 + $0x40] sm:$0xf]
  %v80 = vld [vmem:[%s1 + $0x44] sm:$0xf]
  %v81 = vld [vmem:[%s1 + $0x48] sm:$0xf]
  %v82 = vld [vmem:[%s1 + $0x4c] sm:$0xf]
  %v83 = vld [vmem:[%s1 + $0x50] sm:$0xf]
  %v84 = vld [vmem:[%s1 + $0x54] sm:$0xf]
  %v85 = vld [vmem:[%s1 + $0x58] sm:$0xf]
  %v86 = vld [vmem:[%s1 + $0x5c] sm:$0xf]
  %v87 = vld [vmem:[%s1 + $0x60] sm:$0xf]
  %v88 = vld [vmem:[%s1 + $0x64] sm:$0xf]
  %v89 = vld [vmem:[%s1 + $0x68] sm:$0xf]
  %v90 = vld [vmem:[%s1 + $0x6c] sm:$0xf]
  %v91 = vld [vmem:[%s1 + $0x70] sm:$0xf]
  %v92 = vld [vmem:[%s1 + $0x74] sm:$0xf]
  %v93 = vld [vmem:[%s1 + $0x78] sm:$0xf]
  %v94 = vld [vmem:[%s1 + $0x7c] sm:$0xf]
  %v95 = vld [vmem:[%s1 + $0x80] sm:$0xf]
  %v96 = vld [vmem:[%s1 + $0x84] sm:$0xf]
  %v97 = vld [vmem:[%s1 + $0x88] sm:$0xf]
  %v98 = vld [vmem:[%s1 + $0x8c] sm:$0xf]
  %v99 = vld [vmem:[%s1 + $0x90] sm:$0xf]
  %v100 = vld [vmem:[%s1 + $0x94] sm:$0xf]
  %v101 = vld [vmem:[%s1 + $0x98] sm:$0xf]
  %v102 = vld [vmem:[%s1 + $0x9c] sm:$0xf]
  %v103 = vld [vmem:[%s1 + $0xa0] sm:$0xf]
  %v104 = vld [vmem:[%s1 + $0xa4] sm:$0xf]
  %v105 = vld [vmem:[%s1 + $0xa8] sm:$0xf]
  %v106 = vld [vmem:[%s1 + $0xac] sm:$0xf]
  %v107 = vld [vmem:[%s1 + $0xb0] sm:$0xf]
  %v108 = vld [vmem:[%s1 + $0xb4] sm:$0xf]
  %v109 = vld [vmem:[%s1 + $0xb8] sm:$0xf]
  %v110 = vld [vmem:[%s1 + $0xbc] sm:$0xf]
  %v111 = vld [vmem:[%s1 + $0xc0] sm:$0xf]
  %v112 = vld [vmem:[%s1 + $0xc4] sm:$0xf]
  %v113 = vld [vmem:[%s1 + $0xc8] sm:$0xf]
  %v114 = vld [vmem:[%s1 + $0xcc] sm:$0xf]
  %v115 = vld [vmem:[%s1 + $0xd0] sm:$0xf]
  %v116 = vld [vmem:[%s1 + $0xd4] sm:$0xf]
  %v117 = vld [vmem:[%s2] sm:$0x1]
  %v119 = vlaneseq
  %v120 = vshrl.u32 %v119, 7
  %v121 = vsub.s32 0, %v120
  %v122 = vrot.slane %v117, %v121
  %v172 = vunpack.c.l.b16 %v15
  %v173 = vunpack.c.h.b16 %v15
  %v174 = vunpack.c.l.b16 %v16
  %v175 = vunpack.c.h.b16 %v16
  %v176 = vunpack.c.l.b16 %v17
  %v177 = vunpack.c.h.b16 %v17
  %v178 = vunpack.c.l.b16 %v18
  %v179 = vunpack.c.h.b16 %v18
  %v180 = vunpack.c.l.b16 %v19
  %v181 = vunpack.c.h.b16 %v19
  %v182 = vunpack.c.l.b16 %v20
  %v183 = vunpack.c.h.b16 %v20
  %v184 = vunpack.c.l.b16 %v21
  %v185 = vunpack.c.h.b16 %v21
  %v186 = vunpack.c.l.b16 %v22
  %v187 = vunpack.c.h.b16 %v22
  %v188 = vunpack.c.l.b16 %v23
  %v189 = vunpack.c.h.b16 %v23
  %v190 = vunpack.c.l.b16 %v24
  %v191 = vunpack.c.h.b16 %v24
  %v192 = vunpack.c.l.b16 %v25
  %v193 = vunpack.c.h.b16 %v25
  %v194 = vunpack.c.l.b16 %v26
  %v195 = vunpack.c.h.b16 %v26
  %v196 = vunpack.c.l.b16 %v27
  %v197 = vunpack.c.h.b16 %v27
  %v198 = vunpack.c.l.b16 %v28
  %v199 = vunpack.c.h.b16 %v28
  %v200 = vunpack.c.l.b16 %v29
  %v201 = vunpack.c.h.b16 %v29
  %v202 = vunpack.c.l.b16 %v30
  %v203 = vunpack.c.h.b16 %v30
  %v204 = vunpack.c.l.b16 %v31
  %v205 = vunpack.c.h.b16 %v31
  %v206 = vunpack.c.l.b16 %v32
  %v207 = vunpack.c.h.b16 %v32
  %v208 = vunpack.c.l.b16 %v33
  %v209 = vunpack.c.h.b16 %v33
  %v210 = vunpack.c.l.b16 %v34
  %v211 = vunpack.c.h.b16 %v34
  %v212 = vunpack.c.l.b16 %v35
  %v213 = vunpack.c.h.b16 %v35
  %v214 = vunpack.c.l.b16 %v36
  %v215 = vunpack.c.h.b16 %v36
  %v216 = vunpack.c.l.b16 %v37
  %v217 = vunpack.c.h.b16 %v37
  %v218 = vunpack.c.l.b16 %v38
  %v219 = vunpack.c.h.b16 %v38
  %v220 = vunpack.c.l.b16 %v39
  %v221 = vunpack.c.h.b16 %v39
  %v222 = vunpack.c.l.b16 %v40
  %v223 = vunpack.c.h.b16 %v40
  %v224 = vunpack.c.l.b16 %v41
  %v225 = vunpack.c.h.b16 %v41
  %v226 = vunpack.c.l.b16 %v42
  %v227 = vunpack.c.h.b16 %v42
  %v228 = vunpack.c.l.b16 %v43
  %v229 = vunpack.c.h.b16 %v43
  %v230 = vunpack.c.l.b16 %v44
  %v231 = vunpack.c.h.b16 %v44
  %v232 = vunpack.c.l.b16 %v45
  %v233 = vunpack.c.h.b16 %v45
  %v234 = vunpack.c.l.b16 %v46
  %v235 = vunpack.c.h.b16 %v46
  %v236 = vunpack.c.l.b16 %v47
  %v237 = vunpack.c.h.b16 %v47
  %v238 = vunpack.c.l.b16 %v48
  %v239 = vunpack.c.h.b16 %v48
  %v240 = vunpack.c.l.b16 %v49
  %v241 = vunpack.c.h.b16 %v49
  %v242 = vunpack.c.l.b16 %v50
  %v243 = vunpack.c.h.b16 %v50
  %v244 = vunpack.c.l.b16 %v51
  %v245 = vunpack.c.h.b16 %v51
  %v246 = vunpack.c.l.b16 %v52
  %v247 = vunpack.c.h.b16 %v52
  %v248 = vunpack.c.l.b16 %v53
  %v249 = vunpack.c.h.b16 %v53
  %v250 = vunpack.c.l.b16 %v54
  %v251 = vunpack.c.h.b16 %v54
  %v252 = vunpack.c.l.b16 %v55
  %v253 = vunpack.c.h.b16 %v55
  %v254 = vunpack.c.l.b16 %v56
  %v255 = vunpack.c.h.b16 %v56
  %v256 = vunpack.c.l.b16 %v57
  %v257 = vunpack.c.h.b16 %v57
  %v258 = vunpack.c.l.b16 %v58
  %v259 = vunpack.c.h.b16 %v58
  %v260 = vunpack.c.l.b16 %v59
  %v261 = vunpack.c.h.b16 %v59
  %v262 = vunpack.c.l.b16 %v60
  %v263 = vunpack.c.h.b16 %v60
  %v264 = vunpack.c.l.b16 %v61
  %v265 = vunpack.c.h.b16 %v61
  %v266 = vunpack.c.l.b16 %v62
  %v267 = vunpack.c.h.b16 %v62
  %v268 = vpack.c.b16 %v176, %v172
  %v269 = vpack.c.b16 %v177, %v173
  %v270 = vpack.c.b16 %v178, %v174
  %v271 = vpack.c.b16 %v179, %v175
  %v272 = vpack.c.b16 %v184, %v180
  %v273 = vpack.c.b16 %v185, %v181
  %v274 = vpack.c.b16 %v186, %v182
  %v275 = vpack.c.b16 %v187, %v183
  %v276 = vpack.c.b16 %v192, %v188
  %v277 = vpack.c.b16 %v193, %v189
  %v278 = vpack.c.b16 %v194, %v190
  %v279 = vpack.c.b16 %v195, %v191
  %v280 = vpack.c.b16 %v200, %v196
  %v281 = vpack.c.b16 %v201, %v197
  %v282 = vpack.c.b16 %v202, %v198
  %v283 = vpack.c.b16 %v203, %v199
  %v284 = vpack.c.b16 %v208, %v204
  %v285 = vpack.c.b16 %v209, %v205
  %v286 = vpack.c.b16 %v210, %v206
  %v287 = vpack.c.b16 %v211, %v207
  %v288 = vpack.c.b16 %v216, %v212
  %v289 = vpack.c.b16 %v217, %v213
  %v290 = vpack.c.b16 %v218, %v214
  %v291 = vpack.c.b16 %v219, %v215
  %v292 = vpack.c.b16 %v224, %v220
  %v293 = vpack.c.b16 %v225, %v221
  %v294 = vpack.c.b16 %v226, %v222
  %v295 = vpack.c.b16 %v227, %v223
  %v296 = vpack.c.b16 %v232, %v228
  %v297 = vpack.c.b16 %v233, %v229
  %v298 = vpack.c.b16 %v234, %v230
  %v299 = vpack.c.b16 %v235, %v231
  %v300 = vpack.c.b16 %v240, %v236
  %v301 = vpack.c.b16 %v241, %v237
  %v302 = vpack.c.b16 %v242, %v238
  %v303 = vpack.c.b16 %v243, %v239
  %v304 = vpack.c.b16 %v248, %v244
  %v305 = vpack.c.b16 %v249, %v245
  %v306 = vpack.c.b16 %v250, %v246
  %v307 = vpack.c.b16 %v251, %v247
  %v308 = vpack.c.b16 %v256, %v252
  %v309 = vpack.c.b16 %v257, %v253
  %v310 = vpack.c.b16 %v258, %v254
  %v311 = vpack.c.b16 %v259, %v255
  %v312 = vpack.c.b16 %v264, %v260
  %v313 = vpack.c.b16 %v265, %v261
  %v314 = vpack.c.b16 %v266, %v262
  %v315 = vpack.c.b16 %v267, %v263
  %v406 = vunpack.c.l.b16 %v63
  %v407 = vunpack.c.l.b16 %v64
  %v408 = vunpack.c.l.b16 %v65
  %v409 = vunpack.c.l.b16 %v66
  %v410 = vunpack.c.l.b16 %v67
  %v411 = vunpack.c.l.b16 %v68
  %v412 = vunpack.c.l.b16 %v69
  %v413 = vunpack.c.l.b16 %v70
  %v414 = vunpack.c.l.b16 %v71
  %v415 = vunpack.c.l.b16 %v72
  %v416 = vunpack.c.l.b16 %v73
  %v417 = vunpack.c.l.b16 %v74
  %v418 = vunpack.c.l.b16 %v75
  %v419 = vunpack.c.l.b16 %v76
  %v420 = vunpack.c.l.b16 %v77
  %v421 = vunpack.c.l.b16 %v78
  %v422 = vunpack.c.l.b16 %v79
  %v423 = vunpack.c.l.b16 %v80
  %v424 = vunpack.c.l.b16 %v81
  %v425 = vunpack.c.l.b16 %v82
  %v426 = vunpack.c.l.b16 %v83
  %v427 = vunpack.c.l.b16 %v84
  %v428 = vunpack.c.l.b16 %v85
  %v429 = vunpack.c.l.b16 %v86
  %v430 = vunpack.c.l.b16 %v87
  %v431 = vunpack.c.l.b16 %v88
  %v432 = vunpack.c.l.b16 %v89
  %v433 = vunpack.c.l.b16 %v90
  %v434 = vunpack.c.l.b16 %v91
  %v435 = vunpack.c.l.b16 %v92
  %v436 = vunpack.c.l.b16 %v93
  %v437 = vunpack.c.l.b16 %v94
  %v438 = vunpack.c.l.b16 %v95
  %v439 = vunpack.c.l.b16 %v96
  %v440 = vunpack.c.l.b16 %v97
  %v441 = vunpack.c.l.b16 %v98
  %v442 = vunpack.c.l.b16 %v99
  %v443 = vunpack.c.l.b16 %v100
  %v444 = vunpack.c.l.b16 %v101
  %v445 = vunpack.c.l.b16 %v102
  %v446 = vunpack.c.l.b16 %v103
  %v447 = vunpack.c.l.b16 %v104
  %v448 = vunpack.c.l.b16 %v105
  %v449 = vunpack.c.l.b16 %v106
  %v450 = vunpack.c.l.b16 %v107
  %v451 = vunpack.c.l.b16 %v108
  %v452 = vunpack.c.l.b16 %v109
  %v453 = vunpack.c.l.b16 %v110
  %v454 = vunpack.c.l.b16 %v111
  %v455 = vunpack.c.l.b16 %v112
  %v456 = vunpack.c.l.b16 %v113
  %v457 = vunpack.c.l.b16 %v114
  %v458 = vunpack.c.l.b16 %v115
  %v459 = vunpack.c.l.b16 %v116
  %v460 = vpack.c.b16 %v407, %v406
  %v461 = vpack.c.b16 %v409, %v408
  %v462 = vpack.c.b16 %v411, %v410
  %v463 = vpack.c.b16 %v413, %v412
  %v464 = vpack.c.b16 %v415, %v414
  %v465 = vpack.c.b16 %v417, %v416
  %v466 = vpack.c.b16 %v419, %v418
  %v467 = vpack.c.b16 %v421, %v420
  %v468 = vpack.c.b16 %v423, %v422
  %v469 = vpack.c.b16 %v425, %v424
  %v470 = vpack.c.b16 %v427, %v426
  %v471 = vpack.c.b16 %v429, %v428
  %v472 = vpack.c.b16 %v431, %v430
  %v473 = vpack.c.b16 %v433, %v432
  %v474 = vpack.c.b16 %v435, %v434
  %v475 = vpack.c.b16 %v437, %v436
  %v476 = vpack.c.b16 %v439, %v438
  %v477 = vpack.c.b16 %v441, %v440
  %v478 = vpack.c.b16 %v443, %v442
  %v479 = vpack.c.b16 %v445, %v444
  %v480 = vpack.c.b16 %v447, %v446
  %v481 = vpack.c.b16 %v449, %v448
  %v482 = vpack.c.b16 %v451, %v450
  %v483 = vpack.c.b16 %v453, %v452
  %v484 = vpack.c.b16 %v455, %v454
  %v485 = vpack.c.b16 %v457, %v456
  %v486 = vpack.c.b16 %v459, %v458
  %vm514 = vcmask 392192
  %v516 = vsel %vm514, %v271, 0
  %v519 = vsel %vm514, %v275, 0
  %v522 = vsel %vm514, %v279, 0
  %v525 = vsel %vm514, %v283, 0
  %v528 = vsel %vm514, %v287, 0
  %v531 = vsel %vm514, %v291, 0
  %v534 = vsel %vm514, %v295, 0
  %v537 = vsel %vm514, %v299, 0
  %v540 = vsel %vm514, %v303, 0
  %v543 = vsel %vm514, %v307, 0
  %v546 = vsel %vm514, %v311, 0
  %v549 = vsel %vm514, %v315, 0
  %551 = vmatprep.subr.bf16.mxu0 0
  %552 = vmatpush1.bf16.msra.mxu0 %v467
  %553 = vmatprep.subr.bf16.mxu0 0
  %554 = vmatpush1.bf16.msra.mxu0 %v466
  %555 = vmatprep.subr.bf16.mxu0 0
  %556 = vmatpush1.bf16.msra.mxu0 %v465
  %557 = vmatprep.subr.bf16.mxu0 0
  %558 = vmatpush1.bf16.msra.mxu0 %v464
  %559 = vmatprep.subr.bf16.mxu0 0
  %560 = vmatpush1.bf16.msra.mxu0 %v463
  %561 = vmatprep.subr.bf16.mxu0 0
  %562 = vmatpush1.bf16.msra.mxu0 %v462
  %563 = vmatprep.subr.bf16.mxu0 0
  %564 = vmatpush1.bf16.msra.mxu0 %v461
  %565 = vmatprep.subr.bf16.mxu0 0
  %566 = vmatpush1.bf16.msra.mxu0 %v460
  %567 = vmatprep.subr.bf16.mxu0 0
  %568 = vmatpush2.bf16.msra.mxu0 %v475
  %569 = vmatprep.subr.bf16.mxu0 0
  %570 = vmatpush2.bf16.msra.mxu0 %v474
  %571 = vmatprep.subr.bf16.mxu0 0
  %572 = vmatpush2.bf16.msra.mxu0 %v473
  %573 = vmatprep.subr.bf16.mxu0 0
  %574 = vmatpush2.bf16.msra.mxu0 %v472
  %575 = vmatprep.subr.bf16.mxu0 0
  %576 = vmatpush2.bf16.msra.mxu0 %v471
  %577 = vmatprep.subr.bf16.mxu0 0
  %578 = vmatpush2.bf16.msra.mxu0 %v470
  %579 = vmatprep.subr.bf16.mxu0 0
  %580 = vmatpush2.bf16.msra.mxu0 %v469
  %581 = vmatprep.subr.bf16.mxu0 0
  %582 = vmatpush2.bf16.msra.mxu0 %v468
  %583 = vmatprep.mubr.bf16.mxu0 %v269
  %584 = vmatmul.mubr.bf16.gmra.mxu0 %v268
  %v585 = vpop.f32.mrf.mxu0
  %v586 = vadd.f32 %v122, %v585
  %v587 = vpop.f32.mrf.mxu0
  %v588 = vpop.f32.mrf.mxu0
  %v589 = vadd.f32 %v122, %v588
  %v590 = vpop.f32.mrf.mxu0
  %591 = vmatprep.mubr.bf16.mxu0 %v273
  %592 = vmatmul.mubr.bf16.gmra.mxu0 %v272
  %v593 = vpop.f32.mrf.mxu0
  %v594 = vadd.f32 %v122, %v593
  %v595 = vpop.f32.mrf.mxu0
  %v596 = vpop.f32.mrf.mxu0
  %v597 = vadd.f32 %v122, %v596
  %v598 = vpop.f32.mrf.mxu0
  %599 = vmatprep.mubr.bf16.mxu0 %v277
  %600 = vmatmul.mubr.bf16.gmra.mxu0 %v276
  %v601 = vpop.f32.mrf.mxu0
  %v602 = vadd.f32 %v122, %v601
  %v603 = vpop.f32.mrf.mxu0
  %v604 = vpop.f32.mrf.mxu0
  %v605 = vadd.f32 %v122, %v604
  %v606 = vpop.f32.mrf.mxu0
  %607 = vmatprep.mubr.bf16.mxu0 %v281
  %608 = vmatmul.mubr.bf16.gmra.mxu0 %v280
  %v609 = vpop.f32.mrf.mxu0
  %v610 = vadd.f32 %v122, %v609
  %v611 = vpop.f32.mrf.mxu0
  %v612 = vpop.f32.mrf.mxu0
  %v613 = vadd.f32 %v122, %v612
  %v614 = vpop.f32.mrf.mxu0
  %615 = vmatprep.mubr.bf16.mxu0 %v285
  %616 = vmatmul.mubr.bf16.gmra.mxu0 %v284
  %v617 = vpop.f32.mrf.mxu0
  %v618 = vadd.f32 %v122, %v617
  %v619 = vpop.f32.mrf.mxu0
  %v620 = vpop.f32.mrf.mxu0
  %v621 = vadd.f32 %v122, %v620
  %v622 = vpop.f32.mrf.mxu0
  %623 = vmatprep.mubr.bf16.mxu0 %v289
  %624 = vmatmul.mubr.bf16.gmra.mxu0 %v288
  %v625 = vpop.f32.mrf.mxu0
  %v626 = vadd.f32 %v122, %v625
  %v627 = vpop.f32.mrf.mxu0
  %v628 = vpop.f32.mrf.mxu0
  %v629 = vadd.f32 %v122, %v628
  %v630 = vpop.f32.mrf.mxu0
  %631 = vmatprep.mubr.bf16.mxu0 %v293
  %632 = vmatmul.mubr.bf16.gmra.mxu0 %v292
  %v633 = vpop.f32.mrf.mxu0
  %v634 = vadd.f32 %v122, %v633
  %v635 = vpop.f32.mrf.mxu0
  %v636 = vpop.f32.mrf.mxu0
  %v637 = vadd.f32 %v122, %v636
  %v638 = vpop.f32.mrf.mxu0
  %639 = vmatprep.mubr.bf16.mxu0 %v297
  %640 = vmatmul.mubr.bf16.gmra.mxu0 %v296
  %v641 = vpop.f32.mrf.mxu0
  %v642 = vadd.f32 %v122, %v641
  %v643 = vpop.f32.mrf.mxu0
  %v644 = vpop.f32.mrf.mxu0
  %v645 = vadd.f32 %v122, %v644
  %v646 = vpop.f32.mrf.mxu0
  %647 = vmatprep.mubr.bf16.mxu0 %v301
  %648 = vmatmul.mubr.bf16.gmra.mxu0 %v300
  %v649 = vpop.f32.mrf.mxu0
  %v650 = vadd.f32 %v122, %v649
  %v651 = vpop.f32.mrf.mxu0
  %v652 = vpop.f32.mrf.mxu0
  %v653 = vadd.f32 %v122, %v652
  %v654 = vpop.f32.mrf.mxu0
  %655 = vmatprep.mubr.bf16.mxu0 %v305
  %656 = vmatmul.mubr.bf16.gmra.mxu0 %v304
  %v657 = vpop.f32.mrf.mxu0
  %v658 = vadd.f32 %v122, %v657
  %v659 = vpop.f32.mrf.mxu0
  %v660 = vpop.f32.mrf.mxu0
  %v661 = vadd.f32 %v122, %v660
  %v662 = vpop.f32.mrf.mxu0
  %663 = vmatprep.mubr.bf16.mxu0 %v309
  %664 = vmatmul.mubr.bf16.gmra.mxu0 %v308
  %v665 = vpop.f32.mrf.mxu0
  %v666 = vadd.f32 %v122, %v665
  %v667 = vpop.f32.mrf.mxu0
  %v668 = vpop.f32.mrf.mxu0
  %v669 = vadd.f32 %v122, %v668
  %v670 = vpop.f32.mrf.mxu0
  %671 = vmatprep.mubr.bf16.mxu0 %v313
  %672 = vmatmul.mubr.bf16.gmra.mxu0 %v312
  %v673 = vpop.f32.mrf.mxu0
  %v674 = vadd.f32 %v122, %v673
  %v675 = vpop.f32.mrf.mxu0
  %v676 = vpop.f32.mrf.mxu0
  %v677 = vadd.f32 %v122, %v676
  %v678 = vpop.f32.mrf.mxu0
  %679 = vdwg.mxu0
  %680 = vmatprep.subr.bf16.mxu0 0
  %681 = vmatpush1.bf16.msra.mxu0 %v483
  %682 = vmatprep.subr.bf16.mxu0 0
  %683 = vmatpush1.bf16.msra.mxu0 %v482
  %684 = vmatprep.subr.bf16.mxu0 0
  %685 = vmatpush1.bf16.msra.mxu0 %v481
  %686 = vmatprep.subr.bf16.mxu0 0
  %687 = vmatpush1.bf16.msra.mxu0 %v480
  %688 = vmatprep.subr.bf16.mxu0 0
  %689 = vmatpush1.bf16.msra.mxu0 %v479
  %690 = vmatprep.subr.bf16.mxu0 0
  %691 = vmatpush1.bf16.msra.mxu0 %v478
  %692 = vmatprep.subr.bf16.mxu0 0
  %693 = vmatpush1.bf16.msra.mxu0 %v477
  %694 = vmatprep.subr.bf16.mxu0 0
  %695 = vmatpush1.bf16.msra.mxu0 %v476
  %696 = vmatprep.subr.bf16.mxu0 0
  %697 = vmatpush2.bf16.msra.mxu0 0
  %698 = vmatprep.subr.bf16.mxu0 0
  %699 = vmatpush2.bf16.msra.mxu0 0
  %700 = vmatprep.subr.bf16.mxu0 0
  %701 = vmatpush2.bf16.msra.mxu0 0
  %702 = vmatprep.subr.bf16.mxu0 0
  %703 = vmatpush2.bf16.msra.mxu0 0
  %704 = vmatprep.subr.bf16.mxu0 0
  %705 = vmatpush2.bf16.msra.mxu0 0
  %706 = vmatprep.subr.bf16.mxu0 0
  %707 = vmatpush2.bf16.msra.mxu0 %v486
  %708 = vmatprep.subr.bf16.mxu0 0
  %709 = vmatpush2.bf16.msra.mxu0 %v485
  %710 = vmatprep.subr.bf16.mxu0 0
  %711 = vmatpush2.bf16.msra.mxu0 %v484
  %712 = vmatprep.mubr.bf16.mxu0 %v516
  %713 = vmatmul.mubr.bf16.gmra.mxu0 %v270
  %v714 = vpop.f32.mrf.mxu0
  %v715 = vadd.f32 %v586, %v714
  %v716 = vpop.f32.mrf.mxu0
  %v717 = vpop.f32.mrf.mxu0
  %v718 = vadd.f32 %v589, %v717
  %v719 = vpop.f32.mrf.mxu0
  %720 = vmatprep.mubr.bf16.mxu0 %v519
  %721 = vmatmul.mubr.bf16.gmra.mxu0 %v274
  %v722 = vpop.f32.mrf.mxu0
  %v723 = vadd.f32 %v594, %v722
  %v724 = vpop.f32.mrf.mxu0
  %v725 = vpop.f32.mrf.mxu0
  %v726 = vadd.f32 %v597, %v725
  %v727 = vpop.f32.mrf.mxu0
  %728 = vmatprep.mubr.bf16.mxu0 %v522
  %729 = vmatmul.mubr.bf16.gmra.mxu0 %v278
  %v730 = vpop.f32.mrf.mxu0
  %v731 = vadd.f32 %v602, %v730
  %v732 = vpop.f32.mrf.mxu0
  %v733 = vpop.f32.mrf.mxu0
  %v734 = vadd.f32 %v605, %v733
  %v735 = vpop.f32.mrf.mxu0
  %736 = vmatprep.mubr.bf16.mxu0 %v525
  %737 = vmatmul.mubr.bf16.gmra.mxu0 %v282
  %v738 = vpop.f32.mrf.mxu0
  %v739 = vadd.f32 %v610, %v738
  %v740 = vpop.f32.mrf.mxu0
  %v741 = vpop.f32.mrf.mxu0
  %v742 = vadd.f32 %v613, %v741
  %v743 = vpop.f32.mrf.mxu0
  %744 = vmatprep.mubr.bf16.mxu0 %v528
  %745 = vmatmul.mubr.bf16.gmra.mxu0 %v286
  %v746 = vpop.f32.mrf.mxu0
  %v747 = vadd.f32 %v618, %v746
  %v748 = vpop.f32.mrf.mxu0
  %v749 = vpop.f32.mrf.mxu0
  %v750 = vadd.f32 %v621, %v749
  %v751 = vpop.f32.mrf.mxu0
  %752 = vmatprep.mubr.bf16.mxu0 %v531
  %753 = vmatmul.mubr.bf16.gmra.mxu0 %v290
  %v754 = vpop.f32.mrf.mxu0
  %v755 = vadd.f32 %v626, %v754
  %v756 = vpop.f32.mrf.mxu0
  %v757 = vpop.f32.mrf.mxu0
  %v758 = vadd.f32 %v629, %v757
  %v759 = vpop.f32.mrf.mxu0
  %760 = vmatprep.mubr.bf16.mxu0 %v534
  %761 = vmatmul.mubr.bf16.gmra.mxu0 %v294
  %v762 = vpop.f32.mrf.mxu0
  %v763 = vadd.f32 %v634, %v762
  %v764 = vpop.f32.mrf.mxu0
  %v765 = vpop.f32.mrf.mxu0
  %v766 = vadd.f32 %v637, %v765
  %v767 = vpop.f32.mrf.mxu0
  %768 = vmatprep.mubr.bf16.mxu0 %v537
  %769 = vmatmul.mubr.bf16.gmra.mxu0 %v298
  %v770 = vpop.f32.mrf.mxu0
  %v771 = vadd.f32 %v642, %v770
  %v772 = vpop.f32.mrf.mxu0
  %v773 = vpop.f32.mrf.mxu0
  %v774 = vadd.f32 %v645, %v773
  %v775 = vpop.f32.mrf.mxu0
  %776 = vmatprep.mubr.bf16.mxu0 %v540
  %777 = vmatmul.mubr.bf16.gmra.mxu0 %v302
  %v778 = vpop.f32.mrf.mxu0
  %v779 = vadd.f32 %v650, %v778
  %v780 = vpop.f32.mrf.mxu0
  %v781 = vpop.f32.mrf.mxu0
  %v782 = vadd.f32 %v653, %v781
  %v783 = vpop.f32.mrf.mxu0
  %784 = vmatprep.mubr.bf16.mxu0 %v543
  %785 = vmatmul.mubr.bf16.gmra.mxu0 %v306
  %v786 = vpop.f32.mrf.mxu0
  %v787 = vadd.f32 %v658, %v786
  %v788 = vpop.f32.mrf.mxu0
  %v789 = vpop.f32.mrf.mxu0
  %v790 = vadd.f32 %v661, %v789
  %v791 = vpop.f32.mrf.mxu0
  %792 = vmatprep.mubr.bf16.mxu0 %v546
  %793 = vmatmul.mubr.bf16.gmra.mxu0 %v310
  %v794 = vpop.f32.mrf.mxu0
  %v795 = vadd.f32 %v666, %v794
  %v796 = vpop.f32.mrf.mxu0
  %v797 = vpop.f32.mrf.mxu0
  %v798 = vadd.f32 %v669, %v797
  %v799 = vpop.f32.mrf.mxu0
  %800 = vmatprep.mubr.bf16.mxu0 %v549
  %801 = vmatmul.mubr.bf16.gmra.mxu0 %v314
  %v802 = vpop.f32.mrf.mxu0
  %v803 = vadd.f32 %v674, %v802
  %v804 = vpop.f32.mrf.mxu0
  %v805 = vpop.f32.mrf.mxu0
  %v806 = vadd.f32 %v677, %v805
  %v807 = vpop.f32.mrf.mxu0
  %808 = vdwg.mxu0
  %v809 = vmax.f32 %v715, 0.0
  %v810 = vmax.f32 %v718, 0.0
  %v811 = vmax.f32 %v723, 0.0
  %v812 = vmax.f32 %v726, 0.0
  %v813 = vmax.f32 %v731, 0.0
  %v814 = vmax.f32 %v734, 0.0
  %v815 = vmax.f32 %v739, 0.0
  %v816 = vmax.f32 %v742, 0.0
  %v817 = vmax.f32 %v747, 0.0
  %v818 = vmax.f32 %v750, 0.0
  %v819 = vmax.f32 %v755, 0.0
  %v820 = vmax.f32 %v758, 0.0
  %v821 = vmax.f32 %v763, 0.0
  %v822 = vmax.f32 %v766, 0.0
  %v823 = vmax.f32 %v771, 0.0
  %v824 = vmax.f32 %v774, 0.0
  %v825 = vmax.f32 %v779, 0.0
  %v826 = vmax.f32 %v782, 0.0
  %v827 = vmax.f32 %v787, 0.0
  %v828 = vmax.f32 %v790, 0.0
  %v829 = vmax.f32 %v795, 0.0
  %v830 = vmax.f32 %v798, 0.0
  %v831 = vmax.f32 %v803, 0.0
  %v832 = vmax.f32 %v806, 0.0
  %v833 = vpack.c.bf16 %v810, %v809
  %v834 = vpack.c.bf16 %v812, %v811
  %v835 = vpack.c.bf16 %v814, %v813
  %v836 = vpack.c.bf16 %v816, %v815
  %v837 = vpack.c.bf16 %v818, %v817
  %v838 = vpack.c.bf16 %v820, %v819
  %v839 = vpack.c.bf16 %v822, %v821
  %v840 = vpack.c.bf16 %v824, %v823
  %v841 = vpack.c.bf16 %v826, %v825
  %v842 = vpack.c.bf16 %v828, %v827
  %v843 = vpack.c.bf16 %v830, %v829
  %v844 = vpack.c.bf16 %v832, %v831
  %v857 = vunpack.c.l.b16 %v833
  %v858 = vunpack.c.h.b16 %v833
  %v859 = vunpack.c.l.b16 %v834
  %v860 = vunpack.c.h.b16 %v834
  %v861 = vunpack.c.l.b16 %v835
  %v862 = vunpack.c.h.b16 %v835
  %v863 = vunpack.c.l.b16 %v836
  %v864 = vunpack.c.h.b16 %v836
  %v865 = vunpack.c.l.b16 %v837
  %v866 = vunpack.c.h.b16 %v837
  %v867 = vunpack.c.l.b16 %v838
  %v868 = vunpack.c.h.b16 %v838
  %v869 = vunpack.c.l.b16 %v839
  %v870 = vunpack.c.h.b16 %v839
  %v871 = vunpack.c.l.b16 %v840
  %v872 = vunpack.c.h.b16 %v840
  %v873 = vunpack.c.l.b16 %v841
  %v874 = vunpack.c.h.b16 %v841
  %v875 = vunpack.c.l.b16 %v842
  %v876 = vunpack.c.h.b16 %v842
  %v877 = vunpack.c.l.b16 %v843
  %v878 = vunpack.c.h.b16 %v843
  %v879 = vunpack.c.l.b16 %v844
  %v880 = vunpack.c.h.b16 %v844
  %v881 = vpack.c.b16 %v857, %v857
  %v882 = vpack.c.b16 %v858, %v858
  %v883 = vpack.c.b16 %v859, %v859
  %v884 = vpack.c.b16 %v860, %v860
  %v885 = vpack.c.b16 %v861, %v861
  %v886 = vpack.c.b16 %v862, %v862
  %v887 = vpack.c.b16 %v863, %v863
  %v888 = vpack.c.b16 %v864, %v864
  %v889 = vpack.c.b16 %v865, %v865
  %v890 = vpack.c.b16 %v866, %v866
  %v891 = vpack.c.b16 %v867, %v867
  %v892 = vpack.c.b16 %v868, %v868
  %v893 = vpack.c.b16 %v869, %v869
  %v894 = vpack.c.b16 %v870, %v870
  %v895 = vpack.c.b16 %v871, %v871
  %v896 = vpack.c.b16 %v872, %v872
  %v897 = vpack.c.b16 %v873, %v873
  %v898 = vpack.c.b16 %v874, %v874
  %v899 = vpack.c.b16 %v875, %v875
  %v900 = vpack.c.b16 %v876, %v876
  %v901 = vpack.c.b16 %v877, %v877
  %v902 = vpack.c.b16 %v878, %v878
  %v903 = vpack.c.b16 %v879, %v879
  %v904 = vpack.c.b16 %v880, %v880
  %929 = vst [vmem:[%s3] sm:$0xf] %v881
  %930 = vst [vmem:[%s3 + $0x4] sm:$0xf] %v882
  %931 = vst [vmem:[%s3 + $0x8] sm:$0xf] %v883
  %932 = vst [vmem:[%s3 + $0xc] sm:$0xf] %v884
  %933 = vst [vmem:[%s3 + $0x10] sm:$0xf] %v885
  %934 = vst [vmem:[%s3 + $0x14] sm:$0xf] %v886
  %935 = vst [vmem:[%s3 + $0x18] sm:$0xf] %v887
  %936 = vst [vmem:[%s3 + $0x1c] sm:$0xf] %v888
  %937 = vst [vmem:[%s3 + $0x20] sm:$0xf] %v889
  %938 = vst [vmem:[%s3 + $0x24] sm:$0xf] %v890
  %939 = vst [vmem:[%s3 + $0x28] sm:$0xf] %v891
  %940 = vst [vmem:[%s3 + $0x2c] sm:$0xf] %v892
  %941 = vst [vmem:[%s3 + $0x30] sm:$0xf] %v893
  %942 = vst [vmem:[%s3 + $0x34] sm:$0xf] %v894
  %943 = vst [vmem:[%s3 + $0x38] sm:$0xf] %v895
  %944 = vst [vmem:[%s3 + $0x3c] sm:$0xf] %v896
  %945 = vst [vmem:[%s3 + $0x40] sm:$0xf] %v897
  %946 = vst [vmem:[%s3 + $0x44] sm:$0xf] %v898
  %947 = vst [vmem:[%s3 + $0x48] sm:$0xf] %v899
  %948 = vst [vmem:[%s3 + $0x4c] sm:$0xf] %v900
  %949 = vst [vmem:[%s3 + $0x50] sm:$0xf] %v901
  %950 = vst [vmem:[%s3 + $0x54] sm:$0xf] %v902
  %951 = vst [vmem:[%s3 + $0x58] sm:$0xf] %v903
  %952 = vst [vmem:[%s3 + $0x5c] sm:$0xf] %v904
  // Predicated region
  $region14: #{conv_ae_forward.6} parent=0 // pred_check
    _
  $region15: #{conv_ae_forward.6} parent=0 // pred_check_branch
    %954 = sbr.rel (0) target = $region17
  $region16: #{conv_ae_forward.6} parent=0 // pred_region
    _
  $region17: #{conv_ae_forward.6} parent=0 // pred_fallthru
    _
  // Predicated region
  $region18: #{conv_ae_forward.6} parent=0 // pred_check
    _
  $region19: #{conv_ae_forward.6} parent=0 // pred_check_branch
    %956 = sbr.rel (0) target = $region21
  $region20: #{conv_ae_forward.6} parent=0 // pred_region
    _
  $region21: #{conv_ae_forward.6} parent=0 // pred_fallthru
    _

// kernel: conv_ae_forward.7
$region0: #{conv_ae_forward.7}
  #allocation0 [shape = 'u32[]', space=smem, size = 0x4, offset = 0x4, fixed_abs, tag = 'smem constant byte address 0x4 - core index']
  #allocation1 [shape = 'u32[144,128]{1,0:T(1,128)}', space=vmem, size = 0x12000, scoped, tag = 'internal scratch']
  %s0 = inlined_call_operand.vmem [shape: bf16[16,3072], index: 0, kind: input, shape index: {}]
  %s1 = inlined_call_operand.vmem [shape: bf16[3072,32], index: 1, kind: input, shape index: {}]
  %s2 = inlined_call_operand.vmem [shape: f32[1,32], index: 2, kind: input, shape index: {}]
  %s3 = inlined_call_operand.vmem [shape: bf16[32,3072], index: 3, kind: input, shape index: {}]
  %s4 = inlined_call_operand.vmem [shape: f32[1,3072], index: 4, kind: input, shape index: {}]
  %s5 = inlined_call_operand.vmem [shape: bf16[16,3072], index: 5, kind: output, shape index: {}]
  %s6 = sld [smem:[#allocation0]]
  $region30: #{conv_ae_forward.7} parent=0
    _
  %s8 = ssub.s32 1, %s6
  %s9 = scalar_select 0, %s8, %s6
  // Predicated region
  $region2: #{conv_ae_forward.7} parent=0 // pred_check
    _
  $region3: #{conv_ae_forward.7} parent=0 // pred_check_branch
    %11 = sbr.rel (0) target = $region5
  $region4: #{conv_ae_forward.7} parent=0 // pred_region
    _
  $region5: #{conv_ae_forward.7} parent=0 // pred_fallthru
    _
  // Predicated region
  $region6: #{conv_ae_forward.7} parent=0 // pred_check
    _
  $region7: #{conv_ae_forward.7} parent=0 // pred_check_branch
    %13 = sbr.rel (0) target = $region9
  $region8: #{conv_ae_forward.7} parent=0 // pred_region
    _
  $region9: #{conv_ae_forward.7} parent=0 // pred_fallthru
    _
  // Predicated region
  $region10: #{conv_ae_forward.7} parent=0 // pred_check
    _
  $region11: #{conv_ae_forward.7} parent=0 // pred_check_branch
    %15 = sbr.rel (0) target = $region13
  $region12: #{conv_ae_forward.7} parent=0 // pred_region
    _
  $region13: #{conv_ae_forward.7} parent=0 // pred_fallthru
    _
  // Predicated region
  $region14: #{conv_ae_forward.7} parent=0 // pred_check
    _
  $region15: #{conv_ae_forward.7} parent=0 // pred_check_branch
    %17 = sbr.rel (0) target = $region17
  $region16: #{conv_ae_forward.7} parent=0 // pred_region
    _
  $region17: #{conv_ae_forward.7} parent=0 // pred_fallthru
    _
  // Predicated region
  $region18: #{conv_ae_forward.7} parent=0 // pred_check
    _
  $region19: #{conv_ae_forward.7} parent=0 // pred_check_branch
    %19 = sbr.rel (0) target = $region21
  $region20: #{conv_ae_forward.7} parent=0 // pred_region
    _
  $region21: #{conv_ae_forward.7} parent=0 // pred_fallthru
    _
  %v21 = vld [vmem:[%s0] sm:$0xff]
  %v22 = vld [vmem:[%s0 + $0x8] sm:$0xff]
  %v23 = vld [vmem:[%s0 + $0x10] sm:$0xff]
  %v24 = vld [vmem:[%s0 + $0x18] sm:$0xff]
  %v25 = vld [vmem:[%s0 + $0x20] sm:$0xff]
  %v26 = vld [vmem:[%s0 + $0x28] sm:$0xff]
  %v27 = vld [vmem:[%s0 + $0x30] sm:$0xff]
  %v28 = vld [vmem:[%s0 + $0x38] sm:$0xff]
  %v29 = vld [vmem:[%s0 + $0x40] sm:$0xff]
  %v30 = vld [vmem:[%s0 + $0x48] sm:$0xff]
  %v31 = vld [vmem:[%s0 + $0x50] sm:$0xff]
  %v32 = vld [vmem:[%s0 + $0x58] sm:$0xff]
  %v33 = vld [vmem:[%s0 + $0x60] sm:$0xff]
  %v34 = vld [vmem:[%s0 + $0x68] sm:$0xff]
  %v35 = vld [vmem:[%s0 + $0x70] sm:$0xff]
  %v36 = vld [vmem:[%s0 + $0x78] sm:$0xff]
  %v37 = vld [vmem:[%s0 + $0x80] sm:$0xff]
  %v38 = vld [vmem:[%s0 + $0x88] sm:$0xff]
  %v39 = vld [vmem:[%s0 + $0x90] sm:$0xff]
  %v40 = vld [vmem:[%s0 + $0x98] sm:$0xff]
  %v41 = vld [vmem:[%s0 + $0xa0] sm:$0xff]
  %v42 = vld [vmem:[%s0 + $0xa8] sm:$0xff]
  %v43 = vld [vmem:[%s0 + $0xb0] sm:$0xff]
  %v44 = vld [vmem:[%s0 + $0xb8] sm:$0xff]
  %v45 = vld [vmem:[%s1] sm:$0xf]
  %v46 = vld [vmem:[%s1 + $0x4] sm:$0xf]
  %v47 = vld [vmem:[%s1 + $0x8] sm:$0xf]
  %v48 = vld [vmem:[%s1 + $0xc] sm:$0xf]
  %v49 = vld [vmem:[%s1 + $0x10] sm:$0xf]
  %v50 = vld [vmem:[%s1 + $0x14] sm:$0xf]
  %v51 = vld [vmem:[%s1 + $0x18] sm:$0xf]
  %v52 = vld [vmem:[%s1 + $0x1c] sm:$0xf]
  %v53 = vld [vmem:[%s1 + $0x20] sm:$0xf]
  %v54 = vld [vmem:[%s1 + $0x24] sm:$0xf]
  %v55 = vld [vmem:[%s1 + $0x28] sm:$0xf]
  %v56 = vld [vmem:[%s1 + $0x2c] sm:$0xf]
  %v57 = vld [vmem:[%s1 + $0x30] sm:$0xf]
  %v58 = vld [vmem:[%s1 + $0x34] sm:$0xf]
  %v59 = vld [vmem:[%s1 + $0x38] sm:$0xf]
  %v60 = vld [vmem:[%s1 + $0x3c] sm:$0xf]
  %v61 = vld [vmem:[%s1 + $0x40] sm:$0xf]
  %v62 = vld [vmem:[%s1 + $0x44] sm:$0xf]
  %v63 = vld [vmem:[%s1 + $0x48] sm:$0xf]
  %v64 = vld [vmem:[%s1 + $0x4c] sm:$0xf]
  %v65 = vld [vmem:[%s1 + $0x50] sm:$0xf]
  %v66 = vld [vmem:[%s1 + $0x54] sm:$0xf]
  %v67 = vld [vmem:[%s1 + $0x58] sm:$0xf]
  %v68 = vld [vmem:[%s1 + $0x5c] sm:$0xf]
  %v69 = vld [vmem:[%s1 + $0x60] sm:$0xf]
  %v70 = vld [vmem:[%s1 + $0x64] sm:$0xf]
  %v71 = vld [vmem:[%s1 + $0x68] sm:$0xf]
  %v72 = vld [vmem:[%s1 + $0x6c] sm:$0xf]
  %v73 = vld [vmem:[%s1 + $0x70] sm:$0xf]
  %v74 = vld [vmem:[%s1 + $0x74] sm:$0xf]
  %v75 = vld [vmem:[%s1 + $0x78] sm:$0xf]
  %v76 = vld [vmem:[%s1 + $0x7c] sm:$0xf]
  %v77 = vld [vmem:[%s1 + $0x80] sm:$0xf]
  %v78 = vld [vmem:[%s1 + $0x84] sm:$0xf]
  %v79 = vld [vmem:[%s1 + $0x88] sm:$0xf]
  %v80 = vld [vmem:[%s1 + $0x8c] sm:$0xf]
  %v81 = vld [vmem:[%s1 + $0x90] sm:$0xf]
  %v82 = vld [vmem:[%s1 + $0x94] sm:$0xf]
  %v83 = vld [vmem:[%s1 + $0x98] sm:$0xf]
  %v84 = vld [vmem:[%s1 + $0x9c] sm:$0xf]
  %v85 = vld [vmem:[%s1 + $0xa0] sm:$0xf]
  %v86 = vld [vmem:[%s1 + $0xa4] sm:$0xf]
  %v87 = vld [vmem:[%s1 + $0xa8] sm:$0xf]
  %v88 = vld [vmem:[%s1 + $0xac] sm:$0xf]
  %v89 = vld [vmem:[%s1 + $0xb0] sm:$0xf]
  %v90 = vld [vmem:[%s1 + $0xb4] sm:$0xf]
  %v91 = vld [vmem:[%s1 + $0xb8] sm:$0xf]
  %v92 = vld [vmem:[%s1 + $0xbc] sm:$0xf]
  %v93 = vld [vmem:[%s1 + $0xc0] sm:$0xf]
  %v94 = vld [vmem:[%s1 + $0xc4] sm:$0xf]
  %v95 = vld [vmem:[%s1 + $0xc8] sm:$0xf]
  %v96 = vld [vmem:[%s1 + $0xcc] sm:$0xf]
  %v97 = vld [vmem:[%s1 + $0xd0] sm:$0xf]
  %v98 = vld [vmem:[%s1 + $0xd4] sm:$0xf]
  %v99 = vld [vmem:[%s1 + $0xd8] sm:$0xf]
  %v100 = vld [vmem:[%s1 + $0xdc] sm:$0xf]
  %v101 = vld [vmem:[%s1 + $0xe0] sm:$0xf]
  %v102 = vld [vmem:[%s1 + $0xe4] sm:$0xf]
  %v103 = vld [vmem:[%s1 + $0xe8] sm:$0xf]
  %v104 = vld [vmem:[%s1 + $0xec] sm:$0xf]
  %v105 = vld [vmem:[%s1 + $0xf0] sm:$0xf]
  %v106 = vld [vmem:[%s1 + $0xf4] sm:$0xf]
  %v107 = vld [vmem:[%s1 + $0xf8] sm:$0xf]
  %v108 = vld [vmem:[%s1 + $0xfc] sm:$0xf]
  %v109 = vld [vmem:[%s1 + $0x100] sm:$0xf]
  %v110 = vld [vmem:[%s1 + $0x104] sm:$0xf]
  %v111 = vld [vmem:[%s1 + $0x108] sm:$0xf]
  %v112 = vld [vmem:[%s1 + $0x10c] sm:$0xf]
  %v113 = vld [vmem:[%s1 + $0x110] sm:$0xf]
  %v114 = vld [vmem:[%s1 + $0x114] sm:$0xf]
  %v115 = vld [vmem:[%s1 + $0x118] sm:$0xf]
  %v116 = vld [vmem:[%s1 + $0x11c] sm:$0xf]
  %v117 = vld [vmem:[%s1 + $0x120] sm:$0xf]
  %v118 = vld [vmem:[%s1 + $0x124] sm:$0xf]
  %v119 = vld [vmem:[%s1 + $0x128] sm:$0xf]
  %v120 = vld [vmem:[%s1 + $0x12c] sm:$0xf]
  %v121 = vld [vmem:[%s1 + $0x130] sm:$0xf]
  %v122 = vld [vmem:[%s1 + $0x134] sm:$0xf]
  %v123 = vld [vmem:[%s1 + $0x138] sm:$0xf]
  %v124 = vld [vmem:[%s1 + $0x13c] sm:$0xf]
  %v125 = vld [vmem:[%s1 + $0x140] sm:$0xf]
  %v126 = vld [vmem:[%s1 + $0x144] sm:$0xf]
  %v127 = vld [vmem:[%s1 + $0x148] sm:$0xf]
  %v128 = vld [vmem:[%s1 + $0x14c] sm:$0xf]
  %v129 = vld [vmem:[%s1 + $0x150] sm:$0xf]
  %v130 = vld [vmem:[%s1 + $0x154] sm:$0xf]
  %v131 = vld [vmem:[%s1 + $0x158] sm:$0xf]
  %v132 = vld [vmem:[%s1 + $0x15c] sm:$0xf]
  %v133 = vld [vmem:[%s1 + $0x160] sm:$0xf]
  %v134 = vld [vmem:[%s1 + $0x164] sm:$0xf]
  %v135 = vld [vmem:[%s1 + $0x168] sm:$0xf]
  %v136 = vld [vmem:[%s1 + $0x16c] sm:$0xf]
  %v137 = vld [vmem:[%s1 + $0x170] sm:$0xf]
  %v138 = vld [vmem:[%s1 + $0x174] sm:$0xf]
  %v139 = vld [vmem:[%s1 + $0x178] sm:$0xf]
  %v140 = vld [vmem:[%s1 + $0x17c] sm:$0xf]
  %v141 = vld [vmem:[%s1 + $0x180] sm:$0xf]
  %v142 = vld [vmem:[%s1 + $0x184] sm:$0xf]
  %v143 = vld [vmem:[%s1 + $0x188] sm:$0xf]
  %v144 = vld [vmem:[%s1 + $0x18c] sm:$0xf]
  %v145 = vld [vmem:[%s1 + $0x190] sm:$0xf]
  %v146 = vld [vmem:[%s1 + $0x194] sm:$0xf]
  %v147 = vld [vmem:[%s1 + $0x198] sm:$0xf]
  %v148 = vld [vmem:[%s1 + $0x19c] sm:$0xf]
  %v149 = vld [vmem:[%s1 + $0x1a0] sm:$0xf]
  %v150 = vld [vmem:[%s1 + $0x1a4] sm:$0xf]
  %v151 = vld [vmem:[%s1 + $0x1a8] sm:$0xf]
  %v152 = vld [vmem:[%s1 + $0x1ac] sm:$0xf]
  %v153 = vld [vmem:[%s1 + $0x1b0] sm:$0xf]
  %v154 = vld [vmem:[%s1 + $0x1b4] sm:$0xf]
  %v155 = vld [vmem:[%s1 + $0x1b8] sm:$0xf]
  %v156 = vld [vmem:[%s1 + $0x1bc] sm:$0xf]
  %v157 = vld [vmem:[%s1 + $0x1c0] sm:$0xf]
  %v158 = vld [vmem:[%s1 + $0x1c4] sm:$0xf]
  %v159 = vld [vmem:[%s1 + $0x1c8] sm:$0xf]
  %v160 = vld [vmem:[%s1 + $0x1cc] sm:$0xf]
  %v161 = vld [vmem:[%s1 + $0x1d0] sm:$0xf]
  %v162 = vld [vmem:[%s1 + $0x1d4] sm:$0xf]
  %v163 = vld [vmem:[%s1 + $0x1d8] sm:$0xf]
  %v164 = vld [vmem:[%s1 + $0x1dc] sm:$0xf]
  %v165 = vld [vmem:[%s1 + $0x1e0] sm:$0xf]
  %v166 = vld [vmem:[%s1 + $0x1e4] sm:$0xf]
  %v167 = vld [vmem:[%s1 + $0x1e8] sm:$0xf]
  %v168 = vld [vmem:[%s1 + $0x1ec] sm:$0xf]
  %v169 = vld [vmem:[%s1 + $0x1f0] sm:$0xf]
  %v170 = vld [vmem:[%s1 + $0x1f4] sm:$0xf]
  %v171 = vld [vmem:[%s1 + $0x1f8] sm:$0xf]
  %v172 = vld [vmem:[%s1 + $0x1fc] sm:$0xf]
  %v173 = vld [vmem:[%s1 + $0x200] sm:$0xf]
  %v174 = vld [vmem:[%s1 + $0x204] sm:$0xf]
  %v175 = vld [vmem:[%s1 + $0x208] sm:$0xf]
  %v176 = vld [vmem:[%s1 + $0x20c] sm:$0xf]
  %v177 = vld [vmem:[%s1 + $0x210] sm:$0xf]
  %v178 = vld [vmem:[%s1 + $0x214] sm:$0xf]
  %v179 = vld [vmem:[%s1 + $0x218] sm:$0xf]
  %v180 = vld [vmem:[%s1 + $0x21c] sm:$0xf]
  %v181 = vld [vmem:[%s1 + $0x220] sm:$0xf]
  %v182 = vld [vmem:[%s1 + $0x224] sm:$0xf]
  %v183 = vld [vmem:[%s1 + $0x228] sm:$0xf]
  %v184 = vld [vmem:[%s1 + $0x22c] sm:$0xf]
  %v185 = vld [vmem:[%s1 + $0x230] sm:$0xf]
  %v186 = vld [vmem:[%s1 + $0x234] sm:$0xf]
  %v187 = vld [vmem:[%s1 + $0x238] sm:$0xf]
  %v188 = vld [vmem:[%s1 + $0x23c] sm:$0xf]
  %v189 = vld [vmem:[%s1 + $0x240] sm:$0xf]
  %v190 = vld [vmem:[%s1 + $0x244] sm:$0xf]
  %v191 = vld [vmem:[%s1 + $0x248] sm:$0xf]
  %v192 = vld [vmem:[%s1 + $0x24c] sm:$0xf]
  %v193 = vld [vmem:[%s1 + $0x250] sm:$0xf]
  %v194 = vld [vmem:[%s1 + $0x254] sm:$0xf]
  %v195 = vld [vmem:[%s1 + $0x258] sm:$0xf]
  %v196 = vld [vmem:[%s1 + $0x25c] sm:$0xf]
  %v197 = vld [vmem:[%s1 + $0x260] sm:$0xf]
  %v198 = vld [vmem:[%s1 + $0x264] sm:$0xf]
  %v199 = vld [vmem:[%s1 + $0x268] sm:$0xf]
  %v200 = vld [vmem:[%s1 + $0x26c] sm:$0xf]
  %v201 = vld [vmem:[%s1 + $0x270] sm:$0xf]
  %v202 = vld [vmem:[%s1 + $0x274] sm:$0xf]
  %v203 = vld [vmem:[%s1 + $0x278] sm:$0xf]
  %v204 = vld [vmem:[%s1 + $0x27c] sm:$0xf]
  %v205 = vld [vmem:[%s1 + $0x280] sm:$0xf]
  %v206 = vld [vmem:[%s1 + $0x284] sm:$0xf]
  %v207 = vld [vmem:[%s1 + $0x288] sm:$0xf]
  %v208 = vld [vmem:[%s1 + $0x28c] sm:$0xf]
  %v209 = vld [vmem:[%s1 + $0x290] sm:$0xf]
  %v210 = vld [vmem:[%s1 + $0x294] sm:$0xf]
  %v211 = vld [vmem:[%s1 + $0x298] sm:$0xf]
  %v212 = vld [vmem:[%s1 + $0x29c] sm:$0xf]
  %v213 = vld [vmem:[%s1 + $0x2a0] sm:$0xf]
  %v214 = vld [vmem:[%s1 + $0x2a4] sm:$0xf]
  %v215 = vld [vmem:[%s1 + $0x2a8] sm:$0xf]
  %v216 = vld [vmem:[%s1 + $0x2ac] sm:$0xf]
  %v217 = vld [vmem:[%s1 + $0x2b0] sm:$0xf]
  %v218 = vld [vmem:[%s1 + $0x2b4] sm:$0xf]
  %v219 = vld [vmem:[%s1 + $0x2b8] sm:$0xf]
  %v220 = vld [vmem:[%s1 + $0x2bc] sm:$0xf]
  %v221 = vld [vmem:[%s1 + $0x2c0] sm:$0xf]
  %v222 = vld [vmem:[%s1 + $0x2c4] sm:$0xf]
  %v223 = vld [vmem:[%s1 + $0x2c8] sm:$0xf]
  %v224 = vld [vmem:[%s1 + $0x2cc] sm:$0xf]
  %v225 = vld [vmem:[%s1 + $0x2d0] sm:$0xf]
  %v226 = vld [vmem:[%s1 + $0x2d4] sm:$0xf]
  %v227 = vld [vmem:[%s1 + $0x2d8] sm:$0xf]
  %v228 = vld [vmem:[%s1 + $0x2dc] sm:$0xf]
  %v229 = vld [vmem:[%s1 + $0x2e0] sm:$0xf]
  %v230 = vld [vmem:[%s1 + $0x2e4] sm:$0xf]
  %v231 = vld [vmem:[%s1 + $0x2e8] sm:$0xf]
  %v232 = vld [vmem:[%s1 + $0x2ec] sm:$0xf]
  %v233 = vld [vmem:[%s1 + $0x2f0] sm:$0xf]
  %v234 = vld [vmem:[%s1 + $0x2f4] sm:$0xf]
  %v235 = vld [vmem:[%s1 + $0x2f8] sm:$0xf]
  %v236 = vld [vmem:[%s1 + $0x2fc] sm:$0xf]
  %v237 = vld [vmem:[%s1 + $0x300] sm:$0xf]
  %v238 = vld [vmem:[%s1 + $0x304] sm:$0xf]
  %v239 = vld [vmem:[%s1 + $0x308] sm:$0xf]
  %v240 = vld [vmem:[%s1 + $0x30c] sm:$0xf]
  %v241 = vld [vmem:[%s1 + $0x310] sm:$0xf]
  %v242 = vld [vmem:[%s1 + $0x314] sm:$0xf]
  %v243 = vld [vmem:[%s1 + $0x318] sm:$0xf]
  %v244 = vld [vmem:[%s1 + $0x31c] sm:$0xf]
  %v245 = vld [vmem:[%s1 + $0x320] sm:$0xf]
  %v246 = vld [vmem:[%s1 + $0x324] sm:$0xf]
  %v247 = vld [vmem:[%s1 + $0x328] sm:$0xf]
  %v248 = vld [vmem:[%s1 + $0x32c] sm:$0xf]
  %v249 = vld [vmem:[%s1 + $0x330] sm:$0xf]
  %v250 = vld [vmem:[%s1 + $0x334] sm:$0xf]
  %v251 = vld [vmem:[%s1 + $0x338] sm:$0xf]
  %v252 = vld [vmem:[%s1 + $0x33c] sm:$0xf]
  %v253 = vld [vmem:[%s1 + $0x340] sm:$0xf]
  %v254 = vld [vmem:[%s1 + $0x344] sm:$0xf]
  %v255 = vld [vmem:[%s1 + $0x348] sm:$0xf]
  %v256 = vld [vmem:[%s1 + $0x34c] sm:$0xf]
  %v257 = vld [vmem:[%s1 + $0x350] sm:$0xf]
  %v258 = vld [vmem:[%s1 + $0x354] sm:$0xf]
  %v259 = vld [vmem:[%s1 + $0x358] sm:$0xf]
  %v260 = vld [vmem:[%s1 + $0x35c] sm:$0xf]
  %v261 = vld [vmem:[%s1 + $0x360] sm:$0xf]
  %v262 = vld [vmem:[%s1 + $0x364] sm:$0xf]
  %v263 = vld [vmem:[%s1 + $0x368] sm:$0xf]
  %v264 = vld [vmem:[%s1 + $0x36c] sm:$0xf]
  %v265 = vld [vmem:[%s1 + $0x370] sm:$0xf]
  %v266 = vld [vmem:[%s1 + $0x374] sm:$0xf]
  %v267 = vld [vmem:[%s1 + $0x378] sm:$0xf]
  %v268 = vld [vmem:[%s1 + $0x37c] sm:$0xf]
  %v269 = vld [vmem:[%s1 + $0x380] sm:$0xf]
  %v270 = vld [vmem:[%s1 + $0x384] sm:$0xf]
  %v271 = vld [vmem:[%s1 + $0x388] sm:$0xf]
  %v272 = vld [vmem:[%s1 + $0x38c] sm:$0xf]
  %v273 = vld [vmem:[%s1 + $0x390] sm:$0xf]
  %v274 = vld [vmem:[%s1 + $0x394] sm:$0xf]
  %v275 = vld [vmem:[%s1 + $0x398] sm:$0xf]
  %v276 = vld [vmem:[%s1 + $0x39c] sm:$0xf]
  %v277 = vld [vmem:[%s1 + $0x3a0] sm:$0xf]
  %v278 = vld [vmem:[%s1 + $0x3a4] sm:$0xf]
  %v279 = vld [vmem:[%s1 + $0x3a8] sm:$0xf]
  %v280 = vld [vmem:[%s1 + $0x3ac] sm:$0xf]
  %v281 = vld [vmem:[%s1 + $0x3b0] sm:$0xf]
  %v282 = vld [vmem:[%s1 + $0x3b4] sm:$0xf]
  %v283 = vld [vmem:[%s1 + $0x3b8] sm:$0xf]
  %v284 = vld [vmem:[%s1 + $0x3bc] sm:$0xf]
  %v285 = vld [vmem:[%s1 + $0x3c0] sm:$0xf]
  %v286 = vld [vmem:[%s1 + $0x3c4] sm:$0xf]
  %v287 = vld [vmem:[%s1 + $0x3c8] sm:$0xf]
  %v288 = vld [vmem:[%s1 + $0x3cc] sm:$0xf]
  %v289 = vld [vmem:[%s1 + $0x3d0] sm:$0xf]
  %v290 = vld [vmem:[%s1 + $0x3d4] sm:$0xf]
  %v291 = vld [vmem:[%s1 + $0x3d8] sm:$0xf]
  %v292 = vld [vmem:[%s1 + $0x3dc] sm:$0xf]
  %v293 = vld [vmem:[%s1 + $0x3e0] sm:$0xf]
  %v294 = vld [vmem:[%s1 + $0x3e4] sm:$0xf]
  %v295 = vld [vmem:[%s1 + $0x3e8] sm:$0xf]
  %v296 = vld [vmem:[%s1 + $0x3ec] sm:$0xf]
  %v297 = vld [vmem:[%s1 + $0x3f0] sm:$0xf]
  %v298 = vld [vmem:[%s1 + $0x3f4] sm:$0xf]
  %v299 = vld [vmem:[%s1 + $0x3f8] sm:$0xf]
  %v300 = vld [vmem:[%s1 + $0x3fc] sm:$0xf]
  %v301 = vld [vmem:[%s1 + $0x400] sm:$0xf]
  %v302 = vld [vmem:[%s1 + $0x404] sm:$0xf]
  %v303 = vld [vmem:[%s1 + $0x408] sm:$0xf]
  %v304 = vld [vmem:[%s1 + $0x40c] sm:$0xf]
  %v305 = vld [vmem:[%s1 + $0x410] sm:$0xf]
  %v306 = vld [vmem:[%s1 + $0x414] sm:$0xf]
  %v307 = vld [vmem:[%s1 + $0x418] sm:$0xf]
  %v308 = vld [vmem:[%s1 + $0x41c] sm:$0xf]
  %v309 = vld [vmem:[%s1 + $0x420] sm:$0xf]
  %v310 = vld [vmem:[%s1 + $0x424] sm:$0xf]
  %v311 = vld [vmem:[%s1 + $0x428] sm:$0xf]
  %v312 = vld [vmem:[%s1 + $0x42c] sm:$0xf]
  %v313 = vld [vmem:[%s1 + $0x430] sm:$0xf]
  %v314 = vld [vmem:[%s1 + $0x434] sm:$0xf]
  %v315 = vld [vmem:[%s1 + $0x438] sm:$0xf]
  %v316 = vld [vmem:[%s1 + $0x43c] sm:$0xf]
  %v317 = vld [vmem:[%s1 + $0x440] sm:$0xf]
  %v318 = vld [vmem:[%s1 + $0x444] sm:$0xf]
  %v319 = vld [vmem:[%s1 + $0x448] sm:$0xf]
  %v320 = vld [vmem:[%s1 + $0x44c] sm:$0xf]
  %v321 = vld [vmem:[%s1 + $0x450] sm:$0xf]
  %v322 = vld [vmem:[%s1 + $0x454] sm:$0xf]
  %v323 = vld [vmem:[%s1 + $0x458] sm:$0xf]
  %v324 = vld [vmem:[%s1 + $0x45c] sm:$0xf]
  %v325 = vld [vmem:[%s1 + $0x460] sm:$0xf]
  %v326 = vld [vmem:[%s1 + $0x464] sm:$0xf]
  %v327 = vld [vmem:[%s1 + $0x468] sm:$0xf]
  %v328 = vld [vmem:[%s1 + $0x46c] sm:$0xf]
  %v329 = vld [vmem:[%s1 + $0x470] sm:$0xf]
  %v330 = vld [vmem:[%s1 + $0x474] sm:$0xf]
  %v331 = vld [vmem:[%s1 + $0x478] sm:$0xf]
  %v332 = vld [vmem:[%s1 + $0x47c] sm:$0xf]
  %v333 = vld [vmem:[%s1 + $0x480] sm:$0xf]
  %v334 = vld [vmem:[%s1 + $0x484] sm:$0xf]
  %v335 = vld [vmem:[%s1 + $0x488] sm:$0xf]
  %v336 = vld [vmem:[%s1 + $0x48c] sm:$0xf]
  %v337 = vld [vmem:[%s1 + $0x490] sm:$0xf]
  %v338 = vld [vmem:[%s1 + $0x494] sm:$0xf]
  %v339 = vld [vmem:[%s1 + $0x498] sm:$0xf]
  %v340 = vld [vmem:[%s1 + $0x49c] sm:$0xf]
  %v341 = vld [vmem:[%s1 + $0x4a0] sm:$0xf]
  %v342 = vld [vmem:[%s1 + $0x4a4] sm:$0xf]
  %v343 = vld [vmem:[%s1 + $0x4a8] sm:$0xf]
  %v344 = vld [vmem:[%s1 + $0x4ac] sm:$0xf]
  %v345 = vld [vmem:[%s1 + $0x4b0] sm:$0xf]
  %v346 = vld [vmem:[%s1 + $0x4b4] sm:$0xf]
  %v347 = vld [vmem:[%s1 + $0x4b8] sm:$0xf]
  %v348 = vld [vmem:[%s1 + $0x4bc] sm:$0xf]
  %v349 = vld [vmem:[%s1 + $0x4c0] sm:$0xf]
  %v350 = vld [vmem:[%s1 + $0x4c4] sm:$0xf]
  %v351 = vld [vmem:[%s1 + $0x4c8] sm:$0xf]
  %v352 = vld [vmem:[%s1 + $0x4cc] sm:$0xf]
  %v353 = vld [vmem:[%s1 + $0x4d0] sm:$0xf]
  %v354 = vld [vmem:[%s1 + $0x4d4] sm:$0xf]
  %v355 = vld [vmem:[%s1 + $0x4d8] sm:$0xf]
  %v356 = vld [vmem:[%s1 + $0x4dc] sm:$0xf]
  %v357 = vld [vmem:[%s1 + $0x4e0] sm:$0xf]
  %v358 = vld [vmem:[%s1 + $0x4e4] sm:$0xf]
  %v359 = vld [vmem:[%s1 + $0x4e8] sm:$0xf]
  %v360 = vld [vmem:[%s1 + $0x4ec] sm:$0xf]
  %v361 = vld [vmem:[%s1 + $0x4f0] sm:$0xf]
  %v362 = vld [vmem:[%s1 + $0x4f4] sm:$0xf]
  %v363 = vld [vmem:[%s1 + $0x4f8] sm:$0xf]
  %v364 = vld [vmem:[%s1 + $0x4fc] sm:$0xf]
  %v365 = vld [vmem:[%s1 + $0x500] sm:$0xf]
  %v366 = vld [vmem:[%s1 + $0x504] sm:$0xf]
  %v367 = vld [vmem:[%s1 + $0x508] sm:$0xf]
  %v368 = vld [vmem:[%s1 + $0x50c] sm:$0xf]
  %v369 = vld [vmem:[%s1 + $0x510] sm:$0xf]
  %v370 = vld [vmem:[%s1 + $0x514] sm:$0xf]
  %v371 = vld [vmem:[%s1 + $0x518] sm:$0xf]
  %v372 = vld [vmem:[%s1 + $0x51c] sm:$0xf]
  %v373 = vld [vmem:[%s1 + $0x520] sm:$0xf]
  %v374 = vld [vmem:[%s1 + $0x524] sm:$0xf]
  %v375 = vld [vmem:[%s1 + $0x528] sm:$0xf]
  %v376 = vld [vmem:[%s1 + $0x52c] sm:$0xf]
  %v377 = vld [vmem:[%s1 + $0x530] sm:$0xf]
  %v378 = vld [vmem:[%s1 + $0x534] sm:$0xf]
  %v379 = vld [vmem:[%s1 + $0x538] sm:$0xf]
  %v380 = vld [vmem:[%s1 + $0x53c] sm:$0xf]
  %v381 = vld [vmem:[%s1 + $0x540] sm:$0xf]
  %v382 = vld [vmem:[%s1 + $0x544] sm:$0xf]
  %v383 = vld [vmem:[%s1 + $0x548] sm:$0xf]
  %v384 = vld [vmem:[%s1 + $0x54c] sm:$0xf]
  %v385 = vld [vmem:[%s1 + $0x550] sm:$0xf]
  %v386 = vld [vmem:[%s1 + $0x554] sm:$0xf]
  %v387 = vld [vmem:[%s1 + $0x558] sm:$0xf]
  %v388 = vld [vmem:[%s1 + $0x55c] sm:$0xf]
  %v389 = vld [vmem:[%s1 + $0x560] sm:$0xf]
  %v390 = vld [vmem:[%s1 + $0x564] sm:$0xf]
  %v391 = vld [vmem:[%s1 + $0x568] sm:$0xf]
  %v392 = vld [vmem:[%s1 + $0x56c] sm:$0xf]
  %v393 = vld [vmem:[%s1 + $0x570] sm:$0xf]
  %v394 = vld [vmem:[%s1 + $0x574] sm:$0xf]
  %v395 = vld [vmem:[%s1 + $0x578] sm:$0xf]
  %v396 = vld [vmem:[%s1 + $0x57c] sm:$0xf]
  %v397 = vld [vmem:[%s1 + $0x580] sm:$0xf]
  %v398 = vld [vmem:[%s1 + $0x584] sm:$0xf]
  %v399 = vld [vmem:[%s1 + $0x588] sm:$0xf]
  %v400 = vld [vmem:[%s1 + $0x58c] sm:$0xf]
  %v401 = vld [vmem:[%s1 + $0x590] sm:$0xf]
  %v402 = vld [vmem:[%s1 + $0x594] sm:$0xf]
  %v403 = vld [vmem:[%s1 + $0x598] sm:$0xf]
  %v404 = vld [vmem:[%s1 + $0x59c] sm:$0xf]
  %v405 = vld [vmem:[%s1 + $0x5a0] sm:$0xf]
  %v406 = vld [vmem:[%s1 + $0x5a4] sm:$0xf]
  %v407 = vld [vmem:[%s1 + $0x5a8] sm:$0xf]
  %v408 = vld [vmem:[%s1 + $0x5ac] sm:$0xf]
  %v409 = vld [vmem:[%s1 + $0x5b0] sm:$0xf]
  %v410 = vld [vmem:[%s1 + $0x5b4] sm:$0xf]
  %v411 = vld [vmem:[%s1 + $0x5b8] sm:$0xf]
  %v412 = vld [vmem:[%s1 + $0x5bc] sm:$0xf]
  %v413 = vld [vmem:[%s1 + $0x5c0] sm:$0xf]
  %v414 = vld [vmem:[%s1 + $0x5c4] sm:$0xf]
  %v415 = vld [vmem:[%s1 + $0x5c8] sm:$0xf]
  %v416 = vld [vmem:[%s1 + $0x5cc] sm:$0xf]
  %v417 = vld [vmem:[%s1 + $0x5d0] sm:$0xf]
  %v418 = vld [vmem:[%s1 + $0x5d4] sm:$0xf]
  %v419 = vld [vmem:[%s1 + $0x5d8] sm:$0xf]
  %v420 = vld [vmem:[%s1 + $0x5dc] sm:$0xf]
  %v421 = vld [vmem:[%s1 + $0x5e0] sm:$0xf]
  %v422 = vld [vmem:[%s1 + $0x5e4] sm:$0xf]
  %v423 = vld [vmem:[%s1 + $0x5e8] sm:$0xf]
  %v424 = vld [vmem:[%s1 + $0x5ec] sm:$0xf]
  %v425 = vld [vmem:[%s1 + $0x5f0] sm:$0xf]
  %v426 = vld [vmem:[%s1 + $0x5f4] sm:$0xf]
  %v427 = vld [vmem:[%s1 + $0x5f8] sm:$0xf]
  %v428 = vld [vmem:[%s1 + $0x5fc] sm:$0xf]
  %v429 = vld [vmem:[%s2] sm:$0x1]
  %v431 = vlaneseq
  %v432 = vshrl.u32 %v431, 7
  %v433 = vsub.s32 0, %v432
  %v434 = vrot.slane %v429, %v433
  %v460 = vunpack.c.l.b16 %v21
  %v461 = vunpack.c.h.b16 %v21
  %v462 = vunpack.c.l.b16 %v22
  %v463 = vunpack.c.h.b16 %v22
  %v464 = vunpack.c.l.b16 %v23
  %v465 = vunpack.c.h.b16 %v23
  %v466 = vunpack.c.l.b16 %v24
  %v467 = vunpack.c.h.b16 %v24
  %v468 = vunpack.c.l.b16 %v25
  %v469 = vunpack.c.h.b16 %v25
  %v470 = vunpack.c.l.b16 %v26
  %v471 = vunpack.c.h.b16 %v26
  %v472 = vunpack.c.l.b16 %v27
  %v473 = vunpack.c.h.b16 %v27
  %v474 = vunpack.c.l.b16 %v28
  %v475 = vunpack.c.h.b16 %v28
  %v476 = vunpack.c.l.b16 %v29
  %v477 = vunpack.c.h.b16 %v29
  %v478 = vunpack.c.l.b16 %v30
  %v479 = vunpack.c.h.b16 %v30
  %v480 = vunpack.c.l.b16 %v31
  %v481 = vunpack.c.h.b16 %v31
  %v482 = vunpack.c.l.b16 %v32
  %v483 = vunpack.c.h.b16 %v32
  %v484 = vunpack.c.l.b16 %v33
  %v485 = vunpack.c.h.b16 %v33
  %v486 = vunpack.c.l.b16 %v34
  %v487 = vunpack.c.h.b16 %v34
  %v488 = vunpack.c.l.b16 %v35
  %v489 = vunpack.c.h.b16 %v35
  %v490 = vunpack.c.l.b16 %v36
  %v491 = vunpack.c.h.b16 %v36
  %v492 = vunpack.c.l.b16 %v37
  %v493 = vunpack.c.h.b16 %v37
  %v494 = vunpack.c.l.b16 %v38
  %v495 = vunpack.c.h.b16 %v38
  %v496 = vunpack.c.l.b16 %v39
  %v497 = vunpack.c.h.b16 %v39
  %v498 = vunpack.c.l.b16 %v40
  %v499 = vunpack.c.h.b16 %v40
  %v500 = vunpack.c.l.b16 %v41
  %v501 = vunpack.c.h.b16 %v41
  %v502 = vunpack.c.l.b16 %v42
  %v503 = vunpack.c.h.b16 %v42
  %v504 = vunpack.c.l.b16 %v43
  %v505 = vunpack.c.h.b16 %v43
  %v506 = vunpack.c.l.b16 %v44
  %v507 = vunpack.c.h.b16 %v44
  %v508 = vpack.c.b16 %v484, %v460
  %v509 = vpack.c.b16 %v485, %v461
  %v510 = vpack.c.b16 %v486, %v462
  %v511 = vpack.c.b16 %v487, %v463
  %v512 = vpack.c.b16 %v488, %v464
  %v513 = vpack.c.b16 %v489, %v465
  %v514 = vpack.c.b16 %v490, %v466
  %v515 = vpack.c.b16 %v491, %v467
  %v516 = vpack.c.b16 %v492, %v468
  %v517 = vpack.c.b16 %v493, %v469
  %v518 = vpack.c.b16 %v494, %v470
  %v519 = vpack.c.b16 %v495, %v471
  %v520 = vpack.c.b16 %v496, %v472
  %v521 = vpack.c.b16 %v497, %v473
  %v522 = vpack.c.b16 %v498, %v474
  %v523 = vpack.c.b16 %v499, %v475
  %v524 = vpack.c.b16 %v500, %v476
  %v525 = vpack.c.b16 %v501, %v477
  %v526 = vpack.c.b16 %v502, %v478
  %v527 = vpack.c.b16 %v503, %v479
  %v528 = vpack.c.b16 %v504, %v480
  %v529 = vpack.c.b16 %v505, %v481
  %v530 = vpack.c.b16 %v506, %v482
  %v531 = vpack.c.b16 %v507, %v483
  %v940 = vunpack.c.l.b16 %v45
  %v941 = vunpack.c.l.b16 %v46
  %v942 = vunpack.c.l.b16 %v47
  %v943 = vunpack.c.l.b16 %v48
  %v944 = vunpack.c.l.b16 %v49
  %v945 = vunpack.c.l.b16 %v50
  %v946 = vunpack.c.l.b16 %v51
  %v947 = vunpack.c.l.b16 %v52
  %v948 = vunpack.c.l.b16 %v53
  %v949 = vunpack.c.l.b16 %v54
  %v950 = vunpack.c.l.b16 %v55
  %v951 = vunpack.c.l.b16 %v56
  %v952 = vunpack.c.l.b16 %v57
  %v953 = vunpack.c.l.b16 %v58
  %v954 = vunpack.c.l.b16 %v59
  %v955 = vunpack.c.l.b16 %v60
  %v956 = vunpack.c.l.b16 %v61
  %v957 = vunpack.c.l.b16 %v62
  %v958 = vunpack.c.l.b16 %v63
  %v959 = vunpack.c.l.b16 %v64
  %v960 = vunpack.c.l.b16 %v65
  %v961 = vunpack.c.l.b16 %v66
  %v962 = vunpack.c.l.b16 %v67
  %v963 = vunpack.c.l.b16 %v68
  %v964 = vunpack.c.l.b16 %v69
  %v965 = vunpack.c.l.b16 %v70
  %v966 = vunpack.c.l.b16 %v71
  %v967 = vunpack.c.l.b16 %v72
  %v968 = vunpack.c.l.b16 %v73
  %v969 = vunpack.c.l.b16 %v74
  %v970 = vunpack.c.l.b16 %v75
  %v971 = vunpack.c.l.b16 %v76
  %v972 = vunpack.c.l.b16 %v77
  %v973 = vunpack.c.l.b16 %v78
  %v974 = vunpack.c.l.b16 %v79
  %v975 = vunpack.c.l.b16 %v80
  %v976 = vunpack.c.l.b16 %v81
  %v977 = vunpack.c.l.b16 %v82
  %v978 = vunpack.c.l.b16 %v83
  %v979 = vunpack.c.l.b16 %v84
  %v980 = vunpack.c.l.b16 %v85
  %v981 = vunpack.c.l.b16 %v86
  %v982 = vunpack.c.l.b16 %v87
  %v983 = vunpack.c.l.b16 %v88
  %v984 = vunpack.c.l.b16 %v89
  %v985 = vunpack.c.l.b16 %v90
  %v986 = vunpack.c.l.b16 %v91
  %v987 = vunpack.c.l.b16 %v92
  %v988 = vunpack.c.l.b16 %v93
  %v989 = vunpack.c.l.b16 %v94
  %v990 = vunpack.c.l.b16 %v95
  %v991 = vunpack.c.l.b16 %v96
  %v992 = vunpack.c.l.b16 %v97
  %v993 = vunpack.c.l.b16 %v98
  %v994 = vunpack.c.l.b16 %v99
  %v995 = vunpack.c.l.b16 %v100
  %v996 = vunpack.c.l.b16 %v101
  %v997 = vunpack.c.l.b16 %v102
  %v998 = vunpack.c.l.b16 %v103
  %v999 = vunpack.c.l.b16 %v104
  %v1000 = vunpack.c.l.b16 %v105
  %v1001 = vunpack.c.l.b16 %v106
  %v1002 = vunpack.c.l.b16 %v107
  %v1003 = vunpack.c.l.b16 %v108
  %v1004 = vunpack.c.l.b16 %v109
  %v1005 = vunpack.c.l.b16 %v110
  %v1006 = vunpack.c.l.b16 %v111
  %v1007 = vunpack.c.l.b16 %v112
  %v1008 = vunpack.c.l.b16 %v113
  %v1009 = vunpack.c.l.b16 %v114
  %v1010 = vunpack.c.l.b16 %v115
  %v1011 = vunpack.c.l.b16 %v116
  %v1012 = vunpack.c.l.b16 %v117
  %v1013 = vunpack.c.l.b16 %v118
  %v1014 = vunpack.c.l.b16 %v119
  %v1015 = vunpack.c.l.b16 %v120
  %v1016 = vunpack.c.l.b16 %v121
  %v1017 = vunpack.c.l.b16 %v122
  %v1018 = vunpack.c.l.b16 %v123
  %v1019 = vunpack.c.l.b16 %v124
  %v1020 = vunpack.c.l.b16 %v125
  %v1021 = vunpack.c.l.b16 %v126
  %v1022 = vunpack.c.l.b16 %v127
  %v1023 = vunpack.c.l.b16 %v128
  %v1024 = vunpack.c.l.b16 %v129
  %v1025 = vunpack.c.l.b16 %v130
  %v1026 = vunpack.c.l.b16 %v131
  %v1027 = vunpack.c.l.b16 %v132
  %v1028 = vunpack.c.l.b16 %v133
  %v1029 = vunpack.c.l.b16 %v134
  %v1030 = vunpack.c.l.b16 %v135
  %v1031 = vunpack.c.l.b16 %v136
  %v1032 = vunpack.c.l.b16 %v137
  %v1033 = vunpack.c.l.b16 %v138
  %v1034 = vunpack.c.l.b16 %v139
  %v1035 = vunpack.c.l.b16 %v140
  %v1036 = vunpack.c.l.b16 %v141
  %v1037 = vunpack.c.l.b16 %v142
  %v1038 = vunpack.c.l.b16 %v143
  %v1039 = vunpack.c.l.b16 %v144
  %v1040 = vunpack.c.l.b16 %v145
  %v1041 = vunpack.c.l.b16 %v146
  %v1042 = vunpack.c.l.b16 %v147
  %v1043 = vunpack.c.l.b16 %v148
  %v1044 = vunpack.c.l.b16 %v149
  %v1045 = vunpack.c.l.b16 %v150
  %v1046 = vunpack.c.l.b16 %v151
  %v1047 = vunpack.c.l.b16 %v152
  %v1048 = vunpack.c.l.b16 %v153
  %v1049 = vunpack.c.l.b16 %v154
  %v1050 = vunpack.c.l.b16 %v155
  %v1051 = vunpack.c.l.b16 %v156
  %v1052 = vunpack.c.l.b16 %v157
  %v1053 = vunpack.c.l.b16 %v158
  %v1054 = vunpack.c.l.b16 %v159
  %v1055 = vunpack.c.l.b16 %v160
  %v1056 = vunpack.c.l.b16 %v161
  %v1057 = vunpack.c.l.b16 %v162
  %v1058 = vunpack.c.l.b16 %v163
  %v1059 = vunpack.c.l.b16 %v164
  %v1060 = vunpack.c.l.b16 %v165
  %v1061 = vunpack.c.l.b16 %v166
  %v1062 = vunpack.c.l.b16 %v167
  %v1063 = vunpack.c.l.b16 %v168
  %v1064 = vunpack.c.l.b16 %v169
  %v1065 = vunpack.c.l.b16 %v170
  %v1066 = vunpack.c.l.b16 %v171
  %v1067 = vunpack.c.l.b16 %v172
  %v1068 = vunpack.c.l.b16 %v173
  %v1069 = vunpack.c.l.b16 %v174
  %v1070 = vunpack.c.l.b16 %v175
  %v1071 = vunpack.c.l.b16 %v176
  %v1072 = vunpack.c.l.b16 %v177
  %v1073 = vunpack.c.l.b16 %v178
  %v1074 = vunpack.c.l.b16 %v179
  %v1075 = vunpack.c.l.b16 %v180
  %v1076 = vunpack.c.l.b16 %v181
  %v1077 = vunpack.c.l.b16 %v182
  %v1078 = vunpack.c.l.b16 %v183
  %v1079 = vunpack.c.l.b16 %v184
  %v1080 = vunpack.c.l.b16 %v185
  %v1081 = vunpack.c.l.b16 %v186
  %v1082 = vunpack.c.l.b16 %v187
  %v1083 = vunpack.c.l.b16 %v188
  %v1084 = vunpack.c.l.b16 %v189
  %v1085 = vunpack.c.l.b16 %v190
  %v1086 = vunpack.c.l.b16 %v191
  %v1087 = vunpack.c.l.b16 %v192
  %v1088 = vunpack.c.l.b16 %v193
  %v1089 = vunpack.c.l.b16 %v194
  %v1090 = vunpack.c.l.b16 %v195
  %v1091 = vunpack.c.l.b16 %v196
  %v1092 = vunpack.c.l.b16 %v197
  %v1093 = vunpack.c.l.b16 %v198
  %v1094 = vunpack.c.l.b16 %v199
  %v1095 = vunpack.c.l.b16 %v200
  %v1096 = vunpack.c.l.b16 %v201
  %v1097 = vunpack.c.l.b16 %v202
  %v1098 = vunpack.c.l.b16 %v203
  %v1099 = vunpack.c.l.b16 %v204
  %v1100 = vunpack.c.l.b16 %v205
  %v1101 = vunpack.c.l.b16 %v206
  %v1102 = vunpack.c.l.b16 %v207
  %v1103 = vunpack.c.l.b16 %v208
  %v1104 = vunpack.c.l.b16 %v209
  %v1105 = vunpack.c.l.b16 %v210
  %v1106 = vunpack.c.l.b16 %v211
  %v1107 = vunpack.c.l.b16 %v212
  %v1108 = vunpack.c.l.b16 %v213
  %v1109 = vunpack.c.l.b16 %v214
  %v1110 = vunpack.c.l.b16 %v215
  %v1111 = vunpack.c.l.b16 %v216
  %v1112 = vunpack.c.l.b16 %v217
  %v1113 = vunpack.c.l.b16 %v218
  %v1114 = vunpack.c.l.b16 %v219
  %v1115 = vunpack.c.l.b16 %v220
  %v1116 = vunpack.c.l.b16 %v221
  %v1117 = vunpack.c.l.b16 %v222
  %v1118 = vunpack.c.l.b16 %v223
  %v1119 = vunpack.c.l.b16 %v224
  %v1120 = vunpack.c.l.b16 %v225
  %v1121 = vunpack.c.l.b16 %v226
  %v1122 = vunpack.c.l.b16 %v227
  %v1123 = vunpack.c.l.b16 %v228
  %v1124 = vunpack.c.l.b16 %v229
  %v1125 = vunpack.c.l.b16 %v230
  %v1126 = vunpack.c.l.b16 %v231
  %v1127 = vunpack.c.l.b16 %v232
  %v1128 = vunpack.c.l.b16 %v233
  %v1129 = vunpack.c.l.b16 %v234
  %v1130 = vunpack.c.l.b16 %v235
  %v1131 = vunpack.c.l.b16 %v236
  %v1132 = vunpack.c.l.b16 %v237
  %v1133 = vunpack.c.l.b16 %v238
  %v1134 = vunpack.c.l.b16 %v239
  %v1135 = vunpack.c.l.b16 %v240
  %v1136 = vunpack.c.l.b16 %v241
  %v1137 = vunpack.c.l.b16 %v242
  %v1138 = vunpack.c.l.b16 %v243
  %v1139 = vunpack.c.l.b16 %v244
  %v1140 = vunpack.c.l.b16 %v245
  %v1141 = vunpack.c.l.b16 %v246
  %v1142 = vunpack.c.l.b16 %v247
  %v1143 = vunpack.c.l.b16 %v248
  %v1144 = vunpack.c.l.b16 %v249
  %v1145 = vunpack.c.l.b16 %v250
  %v1146 = vunpack.c.l.b16 %v251
  %v1147 = vunpack.c.l.b16 %v252
  %v1148 = vunpack.c.l.b16 %v253
  %v1149 = vunpack.c.l.b16 %v254
  %v1150 = vunpack.c.l.b16 %v255
  %v1151 = vunpack.c.l.b16 %v256
  %v1152 = vunpack.c.l.b16 %v257
  %v1153 = vunpack.c.l.b16 %v258
  %v1154 = vunpack.c.l.b16 %v259
  %v1155 = vunpack.c.l.b16 %v260
  %v1156 = vunpack.c.l.b16 %v261
  %v1157 = vunpack.c.l.b16 %v262
  %v1158 = vunpack.c.l.b16 %v263
  %v1159 = vunpack.c.l.b16 %v264
  %v1160 = vunpack.c.l.b16 %v265
  %v1161 = vunpack.c.l.b16 %v266
  %v1162 = vunpack.c.l.b16 %v267
  %v1163 = vunpack.c.l.b16 %v268
  %v1164 = vunpack.c.l.b16 %v269
  %v1165 = vunpack.c.l.b16 %v270
  %v1166 = vunpack.c.l.b16 %v271
  %v1167 = vunpack.c.l.b16 %v272
  %v1168 = vunpack.c.l.b16 %v273
  %v1169 = vunpack.c.l.b16 %v274
  %v1170 = vunpack.c.l.b16 %v275
  %v1171 = vunpack.c.l.b16 %v276
  %v1172 = vunpack.c.l.b16 %v277
  %v1173 = vunpack.c.l.b16 %v278
  %v1174 = vunpack.c.l.b16 %v279
  %v1175 = vunpack.c.l.b16 %v280
  %v1176 = vunpack.c.l.b16 %v281
  %v1177 = vunpack.c.l.b16 %v282
  %v1178 = vunpack.c.l.b16 %v283
  %v1179 = vunpack.c.l.b16 %v284
  %v1180 = vunpack.c.l.b16 %v285
  %v1181 = vunpack.c.l.b16 %v286
  %v1182 = vunpack.c.l.b16 %v287
  %v1183 = vunpack.c.l.b16 %v288
  %v1184 = vunpack.c.l.b16 %v289
  %v1185 = vunpack.c.l.b16 %v290
  %v1186 = vunpack.c.l.b16 %v291
  %v1187 = vunpack.c.l.b16 %v292
  %v1188 = vunpack.c.l.b16 %v293
  %v1189 = vunpack.c.l.b16 %v294
  %v1190 = vunpack.c.l.b16 %v295
  %v1191 = vunpack.c.l.b16 %v296
  %v1192 = vunpack.c.l.b16 %v297
  %v1193 = vunpack.c.l.b16 %v298
  %v1194 = vunpack.c.l.b16 %v299
  %v1195 = vunpack.c.l.b16 %v300
  %v1196 = vunpack.c.l.b16 %v301
  %v1197 = vunpack.c.l.b16 %v302
  %v1198 = vunpack.c.l.b16 %v303
  %v1199 = vunpack.c.l.b16 %v304
  %v1200 = vunpack.c.l.b16 %v305
  %v1201 = vunpack.c.l.b16 %v306
  %v1202 = vunpack.c.l.b16 %v307
  %v1203 = vunpack.c.l.b16 %v308
  %v1204 = vunpack.c.l.b16 %v309
  %v1205 = vunpack.c.l.b16 %v310
  %v1206 = vunpack.c.l.b16 %v311
  %v1207 = vunpack.c.l.b16 %v312
  %v1208 = vunpack.c.l.b16 %v313
  %v1209 = vunpack.c.l.b16 %v314
  %v1210 = vunpack.c.l.b16 %v315
  %v1211 = vunpack.c.l.b16 %v316
  %v1212 = vunpack.c.l.b16 %v317
  %v1213 = vunpack.c.l.b16 %v318
  %v1214 = vunpack.c.l.b16 %v319
  %v1215 = vunpack.c.l.b16 %v320
  %v1216 = vunpack.c.l.b16 %v321
  %v1217 = vunpack.c.l.b16 %v322
  %v1218 = vunpack.c.l.b16 %v323
  %v1219 = vunpack.c.l.b16 %v324
  %v1220 = vunpack.c.l.b16 %v325
  %v1221 = vunpack.c.l.b16 %v326
  %v1222 = vunpack.c.l.b16 %v327
  %v1223 = vunpack.c.l.b16 %v328
  %v1224 = vunpack.c.l.b16 %v329
  %v1225 = vunpack.c.l.b16 %v330
  %v1226 = vunpack.c.l.b16 %v331
  %v1227 = vunpack.c.l.b16 %v332
  %v1228 = vunpack.c.l.b16 %v333
  %v1229 = vunpack.c.l.b16 %v334
  %v1230 = vunpack.c.l.b16 %v335
  %v1231 = vunpack.c.l.b16 %v336
  %v1232 = vunpack.c.l.b16 %v337
  %v1233 = vunpack.c.l.b16 %v338
  %v1234 = vunpack.c.l.b16 %v339
  %v1235 = vunpack.c.l.b16 %v340
  %v1236 = vunpack.c.l.b16 %v341
  %v1237 = vunpack.c.l.b16 %v342
  %v1238 = vunpack.c.l.b16 %v343
  %v1239 = vunpack.c.l.b16 %v344
  %v1240 = vunpack.c.l.b16 %v345
  %v1241 = vunpack.c.l.b16 %v346
  %v1242 = vunpack.c.l.b16 %v347
  %v1243 = vunpack.c.l.b16 %v348
  %v1244 = vunpack.c.l.b16 %v349
  %v1245 = vunpack.c.l.b16 %v350
  %v1246 = vunpack.c.l.b16 %v351
  %v1247 = vunpack.c.l.b16 %v352
  %v1248 = vunpack.c.l.b16 %v353
  %v1249 = vunpack.c.l.b16 %v354
  %v1250 = vunpack.c.l.b16 %v355
  %v1251 = vunpack.c.l.b16 %v356
  %v1252 = vunpack.c.l.b16 %v357
  %v1253 = vunpack.c.l.b16 %v358
  %v1254 = vunpack.c.l.b16 %v359
  %v1255 = vunpack.c.l.b16 %v360
  %v1256 = vunpack.c.l.b16 %v361
  %v1257 = vunpack.c.l.b16 %v362
  %v1258 = vunpack.c.l.b16 %v363
  %v1259 = vunpack.c.l.b16 %v364
  %v1260 = vunpack.c.l.b16 %v365
  %v1261 = vunpack.c.l.b16 %v366
  %v1262 = vunpack.c.l.b16 %v367
  %v1263 = vunpack.c.l.b16 %v368
  %v1264 = vunpack.c.l.b16 %v369
  %v1265 = vunpack.c.l.b16 %v370
  %v1266 = vunpack.c.l.b16 %v371
  %v1267 = vunpack.c.l.b16 %v372
  %v1268 = vunpack.c.l.b16 %v373
  %v1269 = vunpack.c.l.b16 %v374
  %v1270 = vunpack.c.l.b16 %v375
  %v1271 = vunpack.c.l.b16 %v376
  %v1272 = vunpack.c.l.b16 %v377
  %v1273 = vunpack.c.l.b16 %v378
  %v1274 = vunpack.c.l.b16 %v379
  %v1275 = vunpack.c.l.b16 %v380
  %v1276 = vunpack.c.l.b16 %v381
  %v1277 = vunpack.c.l.b16 %v382
  %v1278 = vunpack.c.l.b16 %v383
  %v1279 = vunpack.c.l.b16 %v384
  %v1280 = vunpack.c.l.b16 %v385
  %v1281 = vunpack.c.l.b16 %v386
  %v1282 = vunpack.c.l.b16 %v387
  %v1283 = vunpack.c.l.b16 %v388
  %v1284 = vunpack.c.l.b16 %v389
  %v1285 = vunpack.c.l.b16 %v390
  %v1286 = vunpack.c.l.b16 %v391
  %v1287 = vunpack.c.l.b16 %v392
  %v1288 = vunpack.c.l.b16 %v393
  %v1289 = vunpack.c.l.b16 %v394
  %v1290 = vunpack.c.l.b16 %v395
  %v1291 = vunpack.c.l.b16 %v396
  %v1292 = vunpack.c.l.b16 %v397
  %v1293 = vunpack.c.l.b16 %v398
  %v1294 = vunpack.c.l.b16 %v399
  %v1295 = vunpack.c.l.b16 %v400
  %v1296 = vunpack.c.l.b16 %v401
  %v1297 = vunpack.c.l.b16 %v402
  %v1298 = vunpack.c.l.b16 %v403
  %v1299 = vunpack.c.l.b16 %v404
  %v1300 = vunpack.c.l.b16 %v405
  %v1301 = vunpack.c.l.b16 %v406
  %v1302 = vunpack.c.l.b16 %v407
  %v1303 = vunpack.c.l.b16 %v408
  %v1304 = vunpack.c.l.b16 %v409
  %v1305 = vunpack.c.l.b16 %v410
  %v1306 = vunpack.c.l.b16 %v411
  %v1307 = vunpack.c.l.b16 %v412
  %v1308 = vunpack.c.l.b16 %v413
  %v1309 = vunpack.c.l.b16 %v414
  %v1310 = vunpack.c.l.b16 %v415
  %v1311 = vunpack.c.l.b16 %v416
  %v1312 = vunpack.c.l.b16 %v417
  %v1313 = vunpack.c.l.b16 %v418
  %v1314 = vunpack.c.l.b16 %v419
  %v1315 = vunpack.c.l.b16 %v420
  %v1316 = vunpack.c.l.b16 %v421
  %v1317 = vunpack.c.l.b16 %v422
  %v1318 = vunpack.c.l.b16 %v423
  %v1319 = vunpack.c.l.b16 %v424
  %v1320 = vunpack.c.l.b16 %v425
  %v1321 = vunpack.c.l.b16 %v426
  %v1322 = vunpack.c.l.b16 %v427
  %v1323 = vunpack.c.l.b16 %v428
  %v1324 = vpack.c.b16 %v941, %v940
  %v1325 = vpack.c.b16 %v943, %v942
  %v1326 = vpack.c.b16 %v945, %v944
  %v1327 = vpack.c.b16 %v947, %v946
  %v1328 = vpack.c.b16 %v949, %v948
  %v1329 = vpack.c.b16 %v951, %v950
  %v1330 = vpack.c.b16 %v953, %v952
  %v1331 = vpack.c.b16 %v955, %v954
  %v1332 = vpack.c.b16 %v957, %v956
  %v1333 = vpack.c.b16 %v959, %v958
  %v1334 = vpack.c.b16 %v961, %v960
  %v1335 = vpack.c.b16 %v963, %v962
  %v1336 = vpack.c.b16 %v965, %v964
  %v1337 = vpack.c.b16 %v967, %v966
  %v1338 = vpack.c.b16 %v969, %v968
  %v1339 = vpack.c.b16 %v971, %v970
  %v1340 = vpack.c.b16 %v973, %v972
  %v1341 = vpack.c.b16 %v975, %v974
  %v1342 = vpack.c.b16 %v977, %v976
  %v1343 = vpack.c.b16 %v979, %v978
  %v1344 = vpack.c.b16 %v981, %v980
  %v1345 = vpack.c.b16 %v983, %v982
  %v1346 = vpack.c.b16 %v985, %v984
  %v1347 = vpack.c.b16 %v987, %v986
  %v1348 = vpack.c.b16 %v989, %v988
  %v1349 = vpack.c.b16 %v991, %v990
  %v1350 = vpack.c.b16 %v993, %v992
  %v1351 = vpack.c.b16 %v995, %v994
  %v1352 = vpack.c.b16 %v997, %v996
  %v1353 = vpack.c.b16 %v999, %v998
  %v1354 = vpack.c.b16 %v1001, %v1000
  %v1355 = vpack.c.b16 %v1003, %v1002
  %v1356 = vpack.c.b16 %v1005, %v1004
  %v1357 = vpack.c.b16 %v1007, %v1006
  %v1358 = vpack.c.b16 %v1009, %v1008
  %v1359 = vpack.c.b16 %v1011, %v1010
  %v1360 = vpack.c.b16 %v1013, %v1012
  %v1361 = vpack.c.b16 %v1015, %v1014
  %v1362 = vpack.c.b16 %v1017, %v1016
  %v1363 = vpack.c.b16 %v1019, %v1018
  %v1364 = vpack.c.b16 %v1021, %v1020
  %v1365 = vpack.c.b16 %v1023, %v1022
  %v1366 = vpack.c.b16 %v1025, %v1024
  %v1367 = vpack.c.b16 %v1027, %v1026
  %v1368 = vpack.c.b16 %v1029, %v1028
  %v1369 = vpack.c.b16 %v1031, %v1030
  %v1370 = vpack.c.b16 %v1033, %v1032
  %v1371 = vpack.c.b16 %v1035, %v1034
  %v1372 = vpack.c.b16 %v1037, %v1036
  %v1373 = vpack.c.b16 %v1039, %v1038
  %v1374 = vpack.c.b16 %v1041, %v1040
  %v1375 = vpack.c.b16 %v1043, %v1042
  %v1376 = vpack.c.b16 %v1045, %v1044
  %v1377 = vpack.c.b16 %v1047, %v1046
  %v1378 = vpack.c.b16 %v1049, %v1048
  %v1379 = vpack.c.b16 %v1051, %v1050
  %v1380 = vpack.c.b16 %v1053, %v1052
  %v1381 = vpack.c.b16 %v1055, %v1054
  %v1382 = vpack.c.b16 %v1057, %v1056
  %v1383 = vpack.c.b16 %v1059, %v1058
  %v1384 = vpack.c.b16 %v1061, %v1060
  %v1385 = vpack.c.b16 %v1063, %v1062
  %v1386 = vpack.c.b16 %v1065, %v1064
  %v1387 = vpack.c.b16 %v1067, %v1066
  %v1388 = vpack.c.b16 %v1069, %v1068
  %v1389 = vpack.c.b16 %v1071, %v1070
  %v1390 = vpack.c.b16 %v1073, %v1072
  %v1391 = vpack.c.b16 %v1075, %v1074
  %v1392 = vpack.c.b16 %v1077, %v1076
  %v1393 = vpack.c.b16 %v1079, %v1078
  %v1394 = vpack.c.b16 %v1081, %v1080
  %v1395 = vpack.c.b16 %v1083, %v1082
  %v1396 = vpack.c.b16 %v1085, %v1084
  %v1397 = vpack.c.b16 %v1087, %v1086
  %v1398 = vpack.c.b16 %v1089, %v1088
  %v1399 = vpack.c.b16 %v1091, %v1090
  %v1400 = vpack.c.b16 %v1093, %v1092
  %v1401 = vpack.c.b16 %v1095, %v1094
  %v1402 = vpack.c.b16 %v1097, %v1096
  %v1403 = vpack.c.b16 %v1099, %v1098
  %v1404 = vpack.c.b16 %v1101, %v1100
  %v1405 = vpack.c.b16 %v1103, %v1102
  %v1406 = vpack.c.b16 %v1105, %v1104
  %v1407 = vpack.c.b16 %v1107, %v1106
  %v1408 = vpack.c.b16 %v1109, %v1108
  %v1409 = vpack.c.b16 %v1111, %v1110
  %v1410 = vpack.c.b16 %v1113, %v1112
  %v1411 = vpack.c.b16 %v1115, %v1114
  %v1412 = vpack.c.b16 %v1117, %v1116
  %v1413 = vpack.c.b16 %v1119, %v1118
  %v1414 = vpack.c.b16 %v1121, %v1120
  %v1415 = vpack.c.b16 %v1123, %v1122
  %v1416 = vpack.c.b16 %v1125, %v1124
  %v1417 = vpack.c.b16 %v1127, %v1126
  %v1418 = vpack.c.b16 %v1129, %v1128
  %v1419 = vpack.c.b16 %v1131, %v1130
  %v1420 = vpack.c.b16 %v1133, %v1132
  %v1421 = vpack.c.b16 %v1135, %v1134
  %v1422 = vpack.c.b16 %v1137, %v1136
  %v1423 = vpack.c.b16 %v1139, %v1138
  %v1424 = vpack.c.b16 %v1141, %v1140
  %v1425 = vpack.c.b16 %v1143, %v1142
  %v1426 = vpack.c.b16 %v1145, %v1144
  %v1427 = vpack.c.b16 %v1147, %v1146
  %v1428 = vpack.c.b16 %v1149, %v1148
  %v1429 = vpack.c.b16 %v1151, %v1150
  %v1430 = vpack.c.b16 %v1153, %v1152
  %v1431 = vpack.c.b16 %v1155, %v1154
  %v1432 = vpack.c.b16 %v1157, %v1156
  %v1433 = vpack.c.b16 %v1159, %v1158
  %v1434 = vpack.c.b16 %v1161, %v1160
  %v1435 = vpack.c.b16 %v1163, %v1162
  %v1436 = vpack.c.b16 %v1165, %v1164
  %v1437 = vpack.c.b16 %v1167, %v1166
  %v1438 = vpack.c.b16 %v1169, %v1168
  %v1439 = vpack.c.b16 %v1171, %v1170
  %v1440 = vpack.c.b16 %v1173, %v1172
  %v1441 = vpack.c.b16 %v1175, %v1174
  %v1442 = vpack.c.b16 %v1177, %v1176
  %v1443 = vpack.c.b16 %v1179, %v1178
  %v1444 = vpack.c.b16 %v1181, %v1180
  %v1445 = vpack.c.b16 %v1183, %v1182
  %v1446 = vpack.c.b16 %v1185, %v1184
  %v1447 = vpack.c.b16 %v1187, %v1186
  %v1448 = vpack.c.b16 %v1189, %v1188
  %v1449 = vpack.c.b16 %v1191, %v1190
  %v1450 = vpack.c.b16 %v1193, %v1192
  %v1451 = vpack.c.b16 %v1195, %v1194
  %v1452 = vpack.c.b16 %v1197, %v1196
  %v1453 = vpack.c.b16 %v1199, %v1198
  %v1454 = vpack.c.b16 %v1201, %v1200
  %v1455 = vpack.c.b16 %v1203, %v1202
  %v1456 = vpack.c.b16 %v1205, %v1204
  %v1457 = vpack.c.b16 %v1207, %v1206
  %v1458 = vpack.c.b16 %v1209, %v1208
  %v1459 = vpack.c.b16 %v1211, %v1210
  %v1460 = vpack.c.b16 %v1213, %v1212
  %v1461 = vpack.c.b16 %v1215, %v1214
  %v1462 = vpack.c.b16 %v1217, %v1216
  %v1463 = vpack.c.b16 %v1219, %v1218
  %v1464 = vpack.c.b16 %v1221, %v1220
  %v1465 = vpack.c.b16 %v1223, %v1222
  %v1466 = vpack.c.b16 %v1225, %v1224
  %v1467 = vpack.c.b16 %v1227, %v1226
  %v1468 = vpack.c.b16 %v1229, %v1228
  %v1469 = vpack.c.b16 %v1231, %v1230
  %v1470 = vpack.c.b16 %v1233, %v1232
  %v1471 = vpack.c.b16 %v1235, %v1234
  %v1472 = vpack.c.b16 %v1237, %v1236
  %v1473 = vpack.c.b16 %v1239, %v1238
  %v1474 = vpack.c.b16 %v1241, %v1240
  %v1475 = vpack.c.b16 %v1243, %v1242
  %v1476 = vpack.c.b16 %v1245, %v1244
  %v1477 = vpack.c.b16 %v1247, %v1246
  %v1478 = vpack.c.b16 %v1249, %v1248
  %v1479 = vpack.c.b16 %v1251, %v1250
  %v1480 = vpack.c.b16 %v1253, %v1252
  %v1481 = vpack.c.b16 %v1255, %v1254
  %v1482 = vpack.c.b16 %v1257, %v1256
  %v1483 = vpack.c.b16 %v1259, %v1258
  %v1484 = vpack.c.b16 %v1261, %v1260
  %v1485 = vpack.c.b16 %v1263, %v1262
  %v1486 = vpack.c.b16 %v1265, %v1264
  %v1487 = vpack.c.b16 %v1267, %v1266
  %v1488 = vpack.c.b16 %v1269, %v1268
  %v1489 = vpack.c.b16 %v1271, %v1270
  %v1490 = vpack.c.b16 %v1273, %v1272
  %v1491 = vpack.c.b16 %v1275, %v1274
  %v1492 = vpack.c.b16 %v1277, %v1276
  %v1493 = vpack.c.b16 %v1279, %v1278
  %v1494 = vpack.c.b16 %v1281, %v1280
  %v1495 = vpack.c.b16 %v1283, %v1282
  %v1496 = vpack.c.b16 %v1285, %v1284
  %v1497 = vpack.c.b16 %v1287, %v1286
  %v1498 = vpack.c.b16 %v1289, %v1288
  %v1499 = vpack.c.b16 %v1291, %v1290
  %v1500 = vpack.c.b16 %v1293, %v1292
  %v1501 = vpack.c.b16 %v1295, %v1294
  %v1502 = vpack.c.b16 %v1297, %v1296
  %v1503 = vpack.c.b16 %v1299, %v1298
  %v1504 = vpack.c.b16 %v1301, %v1300
  %v1505 = vpack.c.b16 %v1303, %v1302
  %v1506 = vpack.c.b16 %v1305, %v1304
  %v1507 = vpack.c.b16 %v1307, %v1306
  %v1508 = vpack.c.b16 %v1309, %v1308
  %v1509 = vpack.c.b16 %v1311, %v1310
  %v1510 = vpack.c.b16 %v1313, %v1312
  %v1511 = vpack.c.b16 %v1315, %v1314
  %v1512 = vpack.c.b16 %v1317, %v1316
  %v1513 = vpack.c.b16 %v1319, %v1318
  %v1514 = vpack.c.b16 %v1321, %v1320
  %v1515 = vpack.c.b16 %v1323, %v1322
  %1708 = vmatprep.subr.bf16.mxu0 0
  %1709 = vmatpush1.bf16.msra.mxu0 %v1331
  %1710 = vmatprep.subr.bf16.mxu0 0
  %1711 = vmatpush1.bf16.msra.mxu0 %v1330
  %1712 = vmatprep.subr.bf16.mxu0 0
  %1713 = vmatpush1.bf16.msra.mxu0 %v1329
  %1714 = vmatprep.subr.bf16.mxu0 0
  %1715 = vmatpush1.bf16.msra.mxu0 %v1328
  %1716 = vmatprep.subr.bf16.mxu0 0
  %1717 = vmatpush1.bf16.msra.mxu0 %v1327
  %1718 = vmatprep.subr.bf16.mxu0 0
  %1719 = vmatpush1.bf16.msra.mxu0 %v1326
  %1720 = vmatprep.subr.bf16.mxu0 0
  %1721 = vmatpush1.bf16.msra.mxu0 %v1325
  %1722 = vmatprep.subr.bf16.mxu0 0
  %1723 = vmatpush1.bf16.msra.mxu0 %v1324
  %1724 = vmatprep.subr.bf16.mxu0 0
  %1725 = vmatpush2.bf16.msra.mxu0 %v1339
  %1726 = vmatprep.subr.bf16.mxu0 0
  %1727 = vmatpush2.bf16.msra.mxu0 %v1338
  %1728 = vmatprep.subr.bf16.mxu0 0
  %1729 = vmatpush2.bf16.msra.mxu0 %v1337
  %1730 = vmatprep.subr.bf16.mxu0 0
  %1731 = vmatpush2.bf16.msra.mxu0 %v1336
  %1732 = vmatprep.subr.bf16.mxu0 0
  %1733 = vmatpush2.bf16.msra.mxu0 %v1335
  %1734 = vmatprep.subr.bf16.mxu0 0
  %1735 = vmatpush2.bf16.msra.mxu0 %v1334
  %1736 = vmatprep.subr.bf16.mxu0 0
  %1737 = vmatpush2.bf16.msra.mxu0 %v1333
  %1738 = vmatprep.subr.bf16.mxu0 0
  %1739 = vmatpush2.bf16.msra.mxu0 %v1332
  %1740 = vmatprep.mubr.bf16.mxu0 %v509
  %1741 = vmatmul.mubr.bf16.gmra.mxu0 %v508
  %v1742 = vpop.f32.mrf.mxu0
  %v1743 = vadd.f32 %v434, %v1742
  %v1744 = vpop.f32.mrf.mxu0
  %v1745 = vpop.f32.mrf.mxu0
  %v1746 = vadd.f32 %v434, %v1745
  %v1747 = vpop.f32.mrf.mxu0
  %1748 = vdwg.mxu0
  %1749 = vmatprep.subr.bf16.mxu0 0
  %1750 = vmatpush1.bf16.msra.mxu0 %v1347
  %1751 = vmatprep.subr.bf16.mxu0 0
  %1752 = vmatpush1.bf16.msra.mxu0 %v1346
  %1753 = vmatprep.subr.bf16.mxu0 0
  %1754 = vmatpush1.bf16.msra.mxu0 %v1345
  %1755 = vmatprep.subr.bf16.mxu0 0
  %1756 = vmatpush1.bf16.msra.mxu0 %v1344
  %1757 = vmatprep.subr.bf16.mxu0 0
  %1758 = vmatpush1.bf16.msra.mxu0 %v1343
  %1759 = vmatprep.subr.bf16.mxu0 0
  %1760 = vmatpush1.bf16.msra.mxu0 %v1342
  %1761 = vmatprep.subr.bf16.mxu0 0
  %1762 = vmatpush1.bf16.msra.mxu0 %v1341
  %1763 = vmatprep.subr.bf16.mxu0 0
  %1764 = vmatpush1.bf16.msra.mxu0 %v1340
  %1765 = vmatprep.subr.bf16.mxu0 0
  %1766 = vmatpush2.bf16.msra.mxu0 %v1355
  %1767 = vmatprep.subr.bf16.mxu0 0
  %1768 = vmatpush2.bf16.msra.mxu0 %v1354
  %1769 = vmatprep.subr.bf16.mxu0 0
  %1770 = vmatpush2.bf16.msra.mxu0 %v1353
  %1771 = vmatprep.subr.bf16.mxu0 0
  %1772 = vmatpush2.bf16.msra.mxu0 %v1352
  %1773 = vmatprep.subr.bf16.mxu0 0
  %1774 = vmatpush2.bf16.msra.mxu0 %v1351
  %1775 = vmatprep.subr.bf16.mxu0 0
  %1776 = vmatpush2.bf16.msra.mxu0 %v1350
  %1777 = vmatprep.subr.bf16.mxu0 0
  %1778 = vmatpush2.bf16.msra.mxu0 %v1349
  %1779 = vmatprep.subr.bf16.mxu0 0
  %1780 = vmatpush2.bf16.msra.mxu0 %v1348
  %1781 = vmatprep.mubr.bf16.mxu0 %v511
  %1782 = vmatmul.mubr.bf16.gmra.mxu0 %v510
  %v1783 = vpop.f32.mrf.mxu0
  %v1784 = vadd.f32 %v1743, %v1783
  %v1785 = vpop.f32.mrf.mxu0
  %v1786 = vpop.f32.mrf.mxu0
  %v1787 = vadd.f32 %v1746, %v1786
  %v1788 = vpop.f32.mrf.mxu0
  %1789 = vdwg.mxu0
  %1790 = vmatprep.subr.bf16.mxu0 0
  %1791 = vmatpush1.bf16.msra.mxu0 %v1363
  %1792 = vmatprep.subr.bf16.mxu0 0
  %1793 = vmatpush1.bf16.msra.mxu0 %v1362
  %1794 = vmatprep.subr.bf16.mxu0 0
  %1795 = vmatpush1.bf16.msra.mxu0 %v1361
  %1796 = vmatprep.subr.bf16.mxu0 0
  %1797 = vmatpush1.bf16.msra.mxu0 %v1360
  %1798 = vmatprep.subr.bf16.mxu0 0
  %1799 = vmatpush1.bf16.msra.mxu0 %v1359
  %1800 = vmatprep.subr.bf16.mxu0 0
  %1801 = vmatpush1.bf16.msra.mxu0 %v1358
  %1802 = vmatprep.subr.bf16.mxu0 0
  %1803 = vmatpush1.bf16.msra.mxu0 %v1357
  %1804 = vmatprep.subr.bf16.mxu0 0
  %1805 = vmatpush1.bf16.msra.mxu0 %v1356
  %1806 = vmatprep.subr.bf16.mxu0 0
  %1807 = vmatpush2.bf16.msra.mxu0 %v1371
  %1808 = vmatprep.subr.bf16.mxu0 0
  %1809 = vmatpush2.bf16.msra.mxu0 %v1370
  %1810 = vmatprep.subr.bf16.mxu0 0
  %1811 = vmatpush2.bf16.msra.mxu0 %v1369
  %1812 = vmatprep.subr.bf16.mxu0 0
  %1813 = vmatpush2.bf16.msra.mxu0 %v1368
  %1814 = vmatprep.subr.bf16.mxu0 0
  %1815 = vmatpush2.bf16.msra.mxu0 %v1367
  %1816 = vmatprep.subr.bf16.mxu0 0
  %1817 = vmatpush2.bf16.msra.mxu0 %v1366
  %1818 = vmatprep.subr.bf16.mxu0 0
  %1819 = vmatpush2.bf16.msra.mxu0 %v1365
  %1820 = vmatprep.subr.bf16.mxu0 0
  %1821 = vmatpush2.bf16.msra.mxu0 %v1364
  %1822 = vmatprep.mubr.bf16.mxu0 %v513
  %1823 = vmatmul.mubr.bf16.gmra.mxu0 %v512
  %v1824 = vpop.f32.mrf.mxu0
  %v1825 = vadd.f32 %v1784, %v1824
  %v1826 = vpop.f32.mrf.mxu0
  %v1827 = vpop.f32.mrf.mxu0
  %v1828 = vadd.f32 %v1787, %v1827
  %v1829 = vpop.f32.mrf.mxu0
  %1830 = vdwg.mxu0
  %1831 = vmatprep.subr.bf16.mxu0 0
  %1832 = vmatpush1.bf16.msra.mxu0 %v1379
  %1833 = vmatprep.subr.bf16.mxu0 0
  %1834 = vmatpush1.bf16.msra.mxu0 %v1378
  %1835 = vmatprep.subr.bf16.mxu0 0
  %1836 = vmatpush1.bf16.msra.mxu0 %v1377
  %1837 = vmatprep.subr.bf16.mxu0 0
  %1838 = vmatpush1.bf16.msra.mxu0 %v1376
  %1839 = vmatprep.subr.bf16.mxu0 0
  %1840 = vmatpush1.bf16.msra.mxu0 %v1375
  %1841 = vmatprep.subr.bf16.mxu0 0
  %1842 = vmatpush1.bf16.msra.mxu0 %v1374
  %1843 = vmatprep.subr.bf16.mxu0 0
  %1844 = vmatpush1.bf16.msra.mxu0 %v1373
  %1845 = vmatprep.subr.bf16.mxu0 0
  %1846 = vmatpush1.bf16.msra.mxu0 %v1372
  %1847 = vmatprep.subr.bf16.mxu0 0
  %1848 = vmatpush2.bf16.msra.mxu0 %v1387
  %1849 = vmatprep.subr.bf16.mxu0 0
  %1850 = vmatpush2.bf16.msra.mxu0 %v1386
  %1851 = vmatprep.subr.bf16.mxu0 0
  %1852 = vmatpush2.bf16.msra.mxu0 %v1385
  %1853 = vmatprep.subr.bf16.mxu0 0
  %1854 = vmatpush2.bf16.msra.mxu0 %v1384
  %1855 = vmatprep.subr.bf16.mxu0 0
  %1856 = vmatpush2.bf16.msra.mxu0 %v1383
  %1857 = vmatprep.subr.bf16.mxu0 0
  %1858 = vmatpush2.bf16.msra.mxu0 %v1382
  %1859 = vmatprep.subr.bf16.mxu0 0
  %1860 = vmatpush2.bf16.msra.mxu0 %v1381
  %1861 = vmatprep.subr.bf16.mxu0 0
  %1862 = vmatpush2.bf16.msra.mxu0 %v1380
  %1863 = vmatprep.mubr.bf16.mxu0 %v515
  %1864 = vmatmul.mubr.bf16.gmra.mxu0 %v514
  %v1865 = vpop.f32.mrf.mxu0
  %v1866 = vadd.f32 %v1825, %v1865
  %v1867 = vpop.f32.mrf.mxu0
  %v1868 = vpop.f32.mrf.mxu0
  %v1869 = vadd.f32 %v1828, %v1868
  %v1870 = vpop.f32.mrf.mxu0
  %1871 = vdwg.mxu0
  %1872 = vmatprep.subr.bf16.mxu0 0
  %1873 = vmatpush1.bf16.msra.mxu0 %v1395
  %1874 = vmatprep.subr.bf16.mxu0 0
  %1875 = vmatpush1.bf16.msra.mxu0 %v1394
  %1876 = vmatprep.subr.bf16.mxu0 0
  %1877 = vmatpush1.bf16.msra.mxu0 %v1393
  %1878 = vmatprep.subr.bf16.mxu0 0
  %1879 = vmatpush1.bf16.msra.mxu0 %v1392
  %1880 = vmatprep.subr.bf16.mxu0 0
  %1881 = vmatpush1.bf16.msra.mxu0 %v1391
  %1882 = vmatprep.subr.bf16.mxu0 0
  %1883 = vmatpush1.bf16.msra.mxu0 %v1390
  %1884 = vmatprep.subr.bf16.mxu0 0
  %1885 = vmatpush1.bf16.msra.mxu0 %v1389
  %1886 = vmatprep.subr.bf16.mxu0 0
  %1887 = vmatpush1.bf16.msra.mxu0 %v1388
  %1888 = vmatprep.subr.bf16.mxu0 0
  %1889 = vmatpush2.bf16.msra.mxu0 %v1403
  %1890 = vmatprep.subr.bf16.mxu0 0
  %1891 = vmatpush2.bf16.msra.mxu0 %v1402
  %1892 = vmatprep.subr.bf16.mxu0 0
  %1893 = vmatpush2.bf16.msra.mxu0 %v1401
  %1894 = vmatprep.subr.bf16.mxu0 0
  %1895 = vmatpush2.bf16.msra.mxu0 %v1400
  %1896 = vmatprep.subr.bf16.mxu0 0
  %1897 = vmatpush2.bf16.msra.mxu0 %v1399
  %1898 = vmatprep.subr.bf16.mxu0 0
  %1899 = vmatpush2.bf16.msra.mxu0 %v1398
  %1900 = vmatprep.subr.bf16.mxu0 0
  %1901 = vmatpush2.bf16.msra.mxu0 %v1397
  %1902 = vmatprep.subr.bf16.mxu0 0
  %1903 = vmatpush2.bf16.msra.mxu0 %v1396
  %1904 = vmatprep.mubr.bf16.mxu0 %v517
  %1905 = vmatmul.mubr.bf16.gmra.mxu0 %v516
  %v1906 = vpop.f32.mrf.mxu0
  %v1907 = vadd.f32 %v1866, %v1906
  %v1908 = vpop.f32.mrf.mxu0
  %v1909 = vpop.f32.mrf.mxu0
  %v1910 = vadd.f32 %v1869, %v1909
  %v1911 = vpop.f32.mrf.mxu0
  %1912 = vdwg.mxu0
  %1913 = vmatprep.subr.bf16.mxu0 0
  %1914 = vmatpush1.bf16.msra.mxu0 %v1411
  %1915 = vmatprep.subr.bf16.mxu0 0
  %1916 = vmatpush1.bf16.msra.mxu0 %v1410
  %1917 = vmatprep.subr.bf16.mxu0 0
  %1918 = vmatpush1.bf16.msra.mxu0 %v1409
  %1919 = vmatprep.subr.bf16.mxu0 0
  %1920 = vmatpush1.bf16.msra.mxu0 %v1408
  %1921 = vmatprep.subr.bf16.mxu0 0
  %1922 = vmatpush1.bf16.msra.mxu0 %v1407
  %1923 = vmatprep.subr.bf16.mxu0 0
  %1924 = vmatpush1.bf16.msra.mxu0 %v1406
  %1925 = vmatprep.subr.bf16.mxu0 0
  %1926 = vmatpush1.bf16.msra.mxu0 %v1405
  %1927 = vmatprep.subr.bf16.mxu0 0
  %1928 = vmatpush1.bf16.msra.mxu0 %v1404
  %1929 = vmatprep.subr.bf16.mxu0 0
  %1930 = vmatpush2.bf16.msra.mxu0 %v1419
  %1931 = vmatprep.subr.bf16.mxu0 0
  %1932 = vmatpush2.bf16.msra.mxu0 %v1418
  %1933 = vmatprep.subr.bf16.mxu0 0
  %1934 = vmatpush2.bf16.msra.mxu0 %v1417
  %1935 = vmatprep.subr.bf16.mxu0 0
  %1936 = vmatpush2.bf16.msra.mxu0 %v1416
  %1937 = vmatprep.subr.bf16.mxu0 0
  %1938 = vmatpush2.bf16.msra.mxu0 %v1415
  %1939 = vmatprep.subr.bf16.mxu0 0
  %1940 = vmatpush2.bf16.msra.mxu0 %v1414
  %1941 = vmatprep.subr.bf16.mxu0 0
  %1942 = vmatpush2.bf16.msra.mxu0 %v1413
  %1943 = vmatprep.subr.bf16.mxu0 0
  %1944 = vmatpush2.bf16.msra.mxu0 %v1412
  %1945 = vmatprep.mubr.bf16.mxu0 %v519
  %1946 = vmatmul.mubr.bf16.gmra.mxu0 %v518
  %v1947 = vpop.f32.mrf.mxu0
  %v1948 = vadd.f32 %v1907, %v1947
  %v1949 = vpop.f32.mrf.mxu0
  %v1950 = vpop.f32.mrf.mxu0
  %v1951 = vadd.f32 %v1910, %v1950
  %v1952 = vpop.f32.mrf.mxu0
  %1953 = vdwg.mxu0
  %1954 = vmatprep.subr.bf16.mxu0 0
  %1955 = vmatpush1.bf16.msra.mxu0 %v1427
  %1956 = vmatprep.subr.bf16.mxu0 0
  %1957 = vmatpush1.bf16.msra.mxu0 %v1426
  %1958 = vmatprep.subr.bf16.mxu0 0
  %1959 = vmatpush1.bf16.msra.mxu0 %v1425
  %1960 = vmatprep.subr.bf16.mxu0 0
  %1961 = vmatpush1.bf16.msra.mxu0 %v1424
  %1962 = vmatprep.subr.bf16.mxu0 0
  %1963 = vmatpush1.bf16.msra.mxu0 %v1423
  %1964 = vmatprep.subr.bf16.mxu0 0
  %1965 = vmatpush1.bf16.msra.mxu0 %v1422
  %1966 = vmatprep.subr.bf16.mxu0 0
  %1967 = vmatpush1.bf16.msra.mxu0 %v1421
  %1968 = vmatprep.subr.bf16.mxu0 0
  %1969 = vmatpush1.bf16.msra.mxu0 %v1420
  %1970 = vmatprep.subr.bf16.mxu0 0
  %1971 = vmatpush2.bf16.msra.mxu0 %v1435
  %1972 = vmatprep.subr.bf16.mxu0 0
  %1973 = vmatpush2.bf16.msra.mxu0 %v1434
  %1974 = vmatprep.subr.bf16.mxu0 0
  %1975 = vmatpush2.bf16.msra.mxu0 %v1433
  %1976 = vmatprep.subr.bf16.mxu0 0
  %1977 = vmatpush2.bf16.msra.mxu0 %v1432
  %1978 = vmatprep.subr.bf16.mxu0 0
  %1979 = vmatpush2.bf16.msra.mxu0 %v1431
  %1980 = vmatprep.subr.bf16.mxu0 0
  %1981 = vmatpush2.bf16.msra.mxu0 %v1430
  %1982 = vmatprep.subr.bf16.mxu0 0
  %1983 = vmatpush2.bf16.msra.mxu0 %v1429
  %1984 = vmatprep.subr.bf16.mxu0 0
  %1985 = vmatpush2.bf16.msra.mxu0 %v1428
  %1986 = vmatprep.mubr.bf16.mxu0 %v521
  %1987 = vmatmul.mubr.bf16.gmra.mxu0 %v520
  %v1988 = vpop.f32.mrf.mxu0
  %v1989 = vadd.f32 %v1948, %v1988
  %v1990 = vpop.f32.mrf.mxu0
  %v1991 = vpop.f32.mrf.mxu0
  %v1992 = vadd.f32 %v1951, %v1991
  %v1993 = vpop.f32.mrf.mxu0
  %1994 = vdwg.mxu0
  %1995 = vmatprep.subr.bf16.mxu0 0
  %1996 = vmatpush1.bf16.msra.mxu0 %v1443
  %1997 = vmatprep.subr.bf16.mxu0 0
  %1998 = vmatpush1.bf16.msra.mxu0 %v1442
  %1999 = vmatprep.subr.bf16.mxu0 0
  %2000 = vmatpush1.bf16.msra.mxu0 %v1441
  %2001 = vmatprep.subr.bf16.mxu0 0
  %2002 = vmatpush1.bf16.msra.mxu0 %v1440
  %2003 = vmatprep.subr.bf16.mxu0 0
  %2004 = vmatpush1.bf16.msra.mxu0 %v1439
  %2005 = vmatprep.subr.bf16.mxu0 0
  %2006 = vmatpush1.bf16.msra.mxu0 %v1438
  %2007 = vmatprep.subr.bf16.mxu0 0
  %2008 = vmatpush1.bf16.msra.mxu0 %v1437
  %2009 = vmatprep.subr.bf16.mxu0 0
  %2010 = vmatpush1.bf16.msra.mxu0 %v1436
  %2011 = vmatprep.subr.bf16.mxu0 0
  %2012 = vmatpush2.bf16.msra.mxu0 %v1451
  %2013 = vmatprep.subr.bf16.mxu0 0
  %2014 = vmatpush2.bf16.msra.mxu0 %v1450
  %2015 = vmatprep.subr.bf16.mxu0 0
  %2016 = vmatpush2.bf16.msra.mxu0 %v1449
  %2017 = vmatprep.subr.bf16.mxu0 0
  %2018 = vmatpush2.bf16.msra.mxu0 %v1448
  %2019 = vmatprep.subr.bf16.mxu0 0
  %2020 = vmatpush2.bf16.msra.mxu0 %v1447
  %2021 = vmatprep.subr.bf16.mxu0 0
  %2022 = vmatpush2.bf16.msra.mxu0 %v1446
  %2023 = vmatprep.subr.bf16.mxu0 0
  %2024 = vmatpush2.bf16.msra.mxu0 %v1445
  %2025 = vmatprep.subr.bf16.mxu0 0
  %2026 = vmatpush2.bf16.msra.mxu0 %v1444
  %2027 = vmatprep.mubr.bf16.mxu0 %v523
  %2028 = vmatmul.mubr.bf16.gmra.mxu0 %v522
  %v2029 = vpop.f32.mrf.mxu0
  %v2030 = vadd.f32 %v1989, %v2029
  %v2031 = vpop.f32.mrf.mxu0
  %v2032 = vpop.f32.mrf.mxu0
  %v2033 = vadd.f32 %v1992, %v2032
  %v2034 = vpop.f32.mrf.mxu0
  %2035 = vdwg.mxu0
  %2036 = vmatprep.subr.bf16.mxu0 0
  %2037 = vmatpush1.bf16.msra.mxu0 %v1459
  %2038 = vmatprep.subr.bf16.mxu0 0
  %2039 = vmatpush1.bf16.msra.mxu0 %v1458
  %2040 = vmatprep.subr.bf16.mxu0 0
  %2041 = vmatpush1.bf16.msra.mxu0 %v1457
  %2042 = vmatprep.subr.bf16.mxu0 0
  %2043 = vmatpush1.bf16.msra.mxu0 %v1456
  %2044 = vmatprep.subr.bf16.mxu0 0
  %2045 = vmatpush1.bf16.msra.mxu0 %v1455
  %2046 = vmatprep.subr.bf16.mxu0 0
  %2047 = vmatpush1.bf16.msra.mxu0 %v1454
  %2048 = vmatprep.subr.bf16.mxu0 0
  %2049 = vmatpush1.bf16.msra.mxu0 %v1453
  %2050 = vmatprep.subr.bf16.mxu0 0
  %2051 = vmatpush1.bf16.msra.mxu0 %v1452
  %2052 = vmatprep.subr.bf16.mxu0 0
  %2053 = vmatpush2.bf16.msra.mxu0 %v1467
  %2054 = vmatprep.subr.bf16.mxu0 0
  %2055 = vmatpush2.bf16.msra.mxu0 %v1466
  %2056 = vmatprep.subr.bf16.mxu0 0
  %2057 = vmatpush2.bf16.msra.mxu0 %v1465
  %2058 = vmatprep.subr.bf16.mxu0 0
  %2059 = vmatpush2.bf16.msra.mxu0 %v1464
  %2060 = vmatprep.subr.bf16.mxu0 0
  %2061 = vmatpush2.bf16.msra.mxu0 %v1463
  %2062 = vmatprep.subr.bf16.mxu0 0
  %2063 = vmatpush2.bf16.msra.mxu0 %v1462
  %2064 = vmatprep.subr.bf16.mxu0 0
  %2065 = vmatpush2.bf16.msra.mxu0 %v1461
  %2066 = vmatprep.subr.bf16.mxu0 0
  %2067 = vmatpush2.bf16.msra.mxu0 %v1460
  %2068 = vmatprep.mubr.bf16.mxu0 %v525
  %2069 = vmatmul.mubr.bf16.gmra.mxu0 %v524
  %v2070 = vpop.f32.mrf.mxu0
  %v2071 = vadd.f32 %v2030, %v2070
  %v2072 = vpop.f32.mrf.mxu0
  %v2073 = vpop.f32.mrf.mxu0
  %v2074 = vadd.f32 %v2033, %v2073
  %v2075 = vpop.f32.mrf.mxu0
  %2076 = vdwg.mxu0
  %2077 = vmatprep.subr.bf16.mxu0 0
  %2078 = vmatpush1.bf16.msra.mxu0 %v1475
  %2079 = vmatprep.subr.bf16.mxu0 0
  %2080 = vmatpush1.bf16.msra.mxu0 %v1474
  %2081 = vmatprep.subr.bf16.mxu0 0
  %2082 = vmatpush1.bf16.msra.mxu0 %v1473
  %2083 = vmatprep.subr.bf16.mxu0 0
  %2084 = vmatpush1.bf16.msra.mxu0 %v1472
  %2085 = vmatprep.subr.bf16.mxu0 0
  %2086 = vmatpush1.bf16.msra.mxu0 %v1471
  %2087 = vmatprep.subr.bf16.mxu0 0
  %2088 = vmatpush1.bf16.msra.mxu0 %v1470
  %2089 = vmatprep.subr.bf16.mxu0 0
  %2090 = vmatpush1.bf16.msra.mxu0 %v1469
  %2091 = vmatprep.subr.bf16.mxu0 0
  %2092 = vmatpush1.bf16.msra.mxu0 %v1468
  %2093 = vmatprep.subr.bf16.mxu0 0
  %2094 = vmatpush2.bf16.msra.mxu0 %v1483
  %2095 = vmatprep.subr.bf16.mxu0 0
  %2096 = vmatpush2.bf16.msra.mxu0 %v1482
  %2097 = vmatprep.subr.bf16.mxu0 0
  %2098 = vmatpush2.bf16.msra.mxu0 %v1481
  %2099 = vmatprep.subr.bf16.mxu0 0
  %2100 = vmatpush2.bf16.msra.mxu0 %v1480
  %2101 = vmatprep.subr.bf16.mxu0 0
  %2102 = vmatpush2.bf16.msra.mxu0 %v1479
  %2103 = vmatprep.subr.bf16.mxu0 0
  %2104 = vmatpush2.bf16.msra.mxu0 %v1478
  %2105 = vmatprep.subr.bf16.mxu0 0
  %2106 = vmatpush2.bf16.msra.mxu0 %v1477
  %2107 = vmatprep.subr.bf16.mxu0 0
  %2108 = vmatpush2.bf16.msra.mxu0 %v1476
  %2109 = vmatprep.mubr.bf16.mxu0 %v527
  %2110 = vmatmul.mubr.bf16.gmra.mxu0 %v526
  %v2111 = vpop.f32.mrf.mxu0
  %v2112 = vadd.f32 %v2071, %v2111
  %v2113 = vpop.f32.mrf.mxu0
  %v2114 = vpop.f32.mrf.mxu0
  %v2115 = vadd.f32 %v2074, %v2114
  %v2116 = vpop.f32.mrf.mxu0
  %2117 = vdwg.mxu0
  %2118 = vmatprep.subr.bf16.mxu0 0
  %2119 = vmatpush1.bf16.msra.mxu0 %v1491
  %2120 = vmatprep.subr.bf16.mxu0 0
  %2121 = vmatpush1.bf16.msra.mxu0 %v1490
  %2122 = vmatprep.subr.bf16.mxu0 0
  %2123 = vmatpush1.bf16.msra.mxu0 %v1489
  %2124 = vmatprep.subr.bf16.mxu0 0
  %2125 = vmatpush1.bf16.msra.mxu0 %v1488
  %2126 = vmatprep.subr.bf16.mxu0 0
  %2127 = vmatpush1.bf16.msra.mxu0 %v1487
  %2128 = vmatprep.subr.bf16.mxu0 0
  %2129 = vmatpush1.bf16.msra.mxu0 %v1486
  %2130 = vmatprep.subr.bf16.mxu0 0
  %2131 = vmatpush1.bf16.msra.mxu0 %v1485
  %2132 = vmatprep.subr.bf16.mxu0 0
  %2133 = vmatpush1.bf16.msra.mxu0 %v1484
  %2134 = vmatprep.subr.bf16.mxu0 0
  %2135 = vmatpush2.bf16.msra.mxu0 %v1499
  %2136 = vmatprep.subr.bf16.mxu0 0
  %2137 = vmatpush2.bf16.msra.mxu0 %v1498
  %2138 = vmatprep.subr.bf16.mxu0 0
  %2139 = vmatpush2.bf16.msra.mxu0 %v1497
  %2140 = vmatprep.subr.bf16.mxu0 0
  %2141 = vmatpush2.bf16.msra.mxu0 %v1496
  %2142 = vmatprep.subr.bf16.mxu0 0
  %2143 = vmatpush2.bf16.msra.mxu0 %v1495
  %2144 = vmatprep.subr.bf16.mxu0 0
  %2145 = vmatpush2.bf16.msra.mxu0 %v1494
  %2146 = vmatprep.subr.bf16.mxu0 0
  %2147 = vmatpush2.bf16.msra.mxu0 %v1493
  %2148 = vmatprep.subr.bf16.mxu0 0
  %2149 = vmatpush2.bf16.msra.mxu0 %v1492
  %2150 = vmatprep.mubr.bf16.mxu0 %v529
  %2151 = vmatmul.mubr.bf16.gmra.mxu0 %v528
  %v2152 = vpop.f32.mrf.mxu0
  %v2153 = vadd.f32 %v2112, %v2152
  %v2154 = vpop.f32.mrf.mxu0
  %v2155 = vpop.f32.mrf.mxu0
  %v2156 = vadd.f32 %v2115, %v2155
  %v2157 = vpop.f32.mrf.mxu0
  %2158 = vdwg.mxu0
  %2159 = vmatprep.subr.bf16.mxu0 0
  %2160 = vmatpush1.bf16.msra.mxu0 %v1507
  %2161 = vmatprep.subr.bf16.mxu0 0
  %2162 = vmatpush1.bf16.msra.mxu0 %v1506
  %2163 = vmatprep.subr.bf16.mxu0 0
  %2164 = vmatpush1.bf16.msra.mxu0 %v1505
  %2165 = vmatprep.subr.bf16.mxu0 0
  %2166 = vmatpush1.bf16.msra.mxu0 %v1504
  %2167 = vmatprep.subr.bf16.mxu0 0
  %2168 = vmatpush1.bf16.msra.mxu0 %v1503
  %2169 = vmatprep.subr.bf16.mxu0 0
  %2170 = vmatpush1.bf16.msra.mxu0 %v1502
  %2171 = vmatprep.subr.bf16.mxu0 0
  %2172 = vmatpush1.bf16.msra.mxu0 %v1501
  %2173 = vmatprep.subr.bf16.mxu0 0
  %2174 = vmatpush1.bf16.msra.mxu0 %v1500
  %2175 = vmatprep.subr.bf16.mxu0 0
  %2176 = vmatpush2.bf16.msra.mxu0 %v1515
  %2177 = vmatprep.subr.bf16.mxu0 0
  %2178 = vmatpush2.bf16.msra.mxu0 %v1514
  %2179 = vmatprep.subr.bf16.mxu0 0
  %2180 = vmatpush2.bf16.msra.mxu0 %v1513
  %2181 = vmatprep.subr.bf16.mxu0 0
  %2182 = vmatpush2.bf16.msra.mxu0 %v1512
  %2183 = vmatprep.subr.bf16.mxu0 0
  %2184 = vmatpush2.bf16.msra.mxu0 %v1511
  %2185 = vmatprep.subr.bf16.mxu0 0
  %2186 = vmatpush2.bf16.msra.mxu0 %v1510
  %2187 = vmatprep.subr.bf16.mxu0 0
  %2188 = vmatpush2.bf16.msra.mxu0 %v1509
  %2189 = vmatprep.subr.bf16.mxu0 0
  %2190 = vmatpush2.bf16.msra.mxu0 %v1508
  %2191 = vmatprep.mubr.bf16.mxu0 %v531
  %2192 = vmatmul.mubr.bf16.gmra.mxu0 %v530
  %v2193 = vpop.f32.mrf.mxu0
  %v2194 = vadd.f32 %v2153, %v2193
  %v2195 = vpop.f32.mrf.mxu0
  %v2196 = vpop.f32.mrf.mxu0
  %v2197 = vadd.f32 %v2156, %v2196
  %v2198 = vpop.f32.mrf.mxu0
  %2199 = vdwg.mxu0
  %v2200 = vpack.c.bf16 %v2197, %v2194
  %v2201 = vld [vmem:[%s3] sm:$0xff]
  %v2202 = vld [vmem:[%s3 + $0x8] sm:$0xff]
  %v2203 = vld [vmem:[%s3 + $0x10] sm:$0xff]
  %v2204 = vld [vmem:[%s3 + $0x18] sm:$0xff]
  %v2205 = vld [vmem:[%s3 + $0x20] sm:$0xff]
  %v2206 = vld [vmem:[%s3 + $0x28] sm:$0xff]
  %v2207 = vld [vmem:[%s3 + $0x30] sm:$0xff]
  %v2208 = vld [vmem:[%s3 + $0x38] sm:$0xff]
  %v2209 = vld [vmem:[%s3 + $0x40] sm:$0xff]
  %v2210 = vld [vmem:[%s3 + $0x48] sm:$0xff]
  %v2211 = vld [vmem:[%s3 + $0x50] sm:$0xff]
  %v2212 = vld [vmem:[%s3 + $0x58] sm:$0xff]
  %v2213 = vld [vmem:[%s3 + $0x60] sm:$0xff]
  %v2214 = vld [vmem:[%s3 + $0x68] sm:$0xff]
  %v2215 = vld [vmem:[%s3 + $0x70] sm:$0xff]
  %v2216 = vld [vmem:[%s3 + $0x78] sm:$0xff]
  %v2217 = vld [vmem:[%s3 + $0x80] sm:$0xff]
  %v2218 = vld [vmem:[%s3 + $0x88] sm:$0xff]
  %v2219 = vld [vmem:[%s3 + $0x90] sm:$0xff]
  %v2220 = vld [vmem:[%s3 + $0x98] sm:$0xff]
  %v2221 = vld [vmem:[%s3 + $0xa0] sm:$0xff]
  %v2222 = vld [vmem:[%s3 + $0xa8] sm:$0xff]
  %v2223 = vld [vmem:[%s3 + $0xb0] sm:$0xff]
  %v2224 = vld [vmem:[%s3 + $0xb8] sm:$0xff]
  %v2225 = vld [vmem:[%s3 + $0xc0] sm:$0xff]
  %v2226 = vld [vmem:[%s3 + $0xc8] sm:$0xff]
  %v2227 = vld [vmem:[%s3 + $0xd0] sm:$0xff]
  %v2228 = vld [vmem:[%s3 + $0xd8] sm:$0xff]
  %v2229 = vld [vmem:[%s3 + $0xe0] sm:$0xff]
  %v2230 = vld [vmem:[%s3 + $0xe8] sm:$0xff]
  %v2231 = vld [vmem:[%s3 + $0xf0] sm:$0xff]
  %v2232 = vld [vmem:[%s3 + $0xf8] sm:$0xff]
  %v2233 = vld [vmem:[%s3 + $0x100] sm:$0xff]
  %v2234 = vld [vmem:[%s3 + $0x108] sm:$0xff]
  %v2235 = vld [vmem:[%s3 + $0x110] sm:$0xff]
  %v2236 = vld [vmem:[%s3 + $0x118] sm:$0xff]
  %v2237 = vld [vmem:[%s3 + $0x120] sm:$0xff]
  %v2238 = vld [vmem:[%s3 + $0x128] sm:$0xff]
  %v2239 = vld [vmem:[%s3 + $0x130] sm:$0xff]
  %v2240 = vld [vmem:[%s3 + $0x138] sm:$0xff]
  %v2241 = vld [vmem:[%s3 + $0x140] sm:$0xff]
  %v2242 = vld [vmem:[%s3 + $0x148] sm:$0xff]
  %v2243 = vld [vmem:[%s3 + $0x150] sm:$0xff]
  %v2244 = vld [vmem:[%s3 + $0x158] sm:$0xff]
  %v2245 = vld [vmem:[%s3 + $0x160] sm:$0xff]
  %v2246 = vld [vmem:[%s3 + $0x168] sm:$0xff]
  %v2247 = vld [vmem:[%s3 + $0x170] sm:$0xff]
  %v2248 = vld [vmem:[%s3 + $0x178] sm:$0xff]
  %v2249 = vld [vmem:[%s4] sm:$0xff]
  %v2250 = vld [vmem:[%s4 + $0x8] sm:$0xff]
  %v2251 = vld [vmem:[%s4 + $0x10] sm:$0xff]
  %v2255 = vlaneseq
  %v2256 = vshrl.u32 %v2255, 7
  %v2257 = vsub.s32 0, %v2256
  %v2258 = vrot.slane %v2249, %v2257
  %v2259 = vlaneseq
  %v2260 = vshrl.u32 %v2259, 7
  %v2261 = vsub.s32 1, %v2260
  %v2262 = vrot.slane %v2249, %v2261
  %v2263 = vlaneseq
  %v2264 = vshrl.u32 %v2263, 7
  %v2265 = vsub.s32 2, %v2264
  %v2266 = vrot.slane %v2249, %v2265
  %v2267 = vlaneseq
  %v2268 = vshrl.u32 %v2267, 7
  %v2269 = vsub.s32 3, %v2268
  %v2270 = vrot.slane %v2249, %v2269
  %v2271 = vlaneseq
  %v2272 = vshrl.u32 %v2271, 7
  %v2273 = vsub.s32 4, %v2272
  %v2274 = vrot.slane %v2249, %v2273
  %v2275 = vlaneseq
  %v2276 = vshrl.u32 %v2275, 7
  %v2277 = vsub.s32 5, %v2276
  %v2278 = vrot.slane %v2249, %v2277
  %v2279 = vlaneseq
  %v2280 = vshrl.u32 %v2279, 7
  %v2281 = vsub.s32 6, %v2280
  %v2282 = vrot.slane %v2249, %v2281
  %v2283 = vlaneseq
  %v2284 = vshrl.u32 %v2283, 7
  %v2285 = vsub.s32 7, %v2284
  %v2286 = vrot.slane %v2249, %v2285
  %v2287 = vlaneseq
  %v2288 = vshrl.u32 %v2287, 7
  %v2289 = vsub.s32 0, %v2288
  %v2290 = vrot.slane %v2250, %v2289
  %v2291 = vlaneseq
  %v2292 = vshrl.u32 %v2291, 7
  %v2293 = vsub.s32 1, %v2292
  %v2294 = vrot.slane %v2250, %v2293
  %v2295 = vlaneseq
  %v2296 = vshrl.u32 %v2295, 7
  %v2297 = vsub.s32 2, %v2296
  %v2298 = vrot.slane %v2250, %v2297
  %v2299 = vlaneseq
  %v2300 = vshrl.u32 %v2299, 7
  %v2301 = vsub.s32 3, %v2300
  %v2302 = vrot.slane %v2250, %v2301
  %v2303 = vlaneseq
  %v2304 = vshrl.u32 %v2303, 7
  %v2305 = vsub.s32 4, %v2304
  %v2306 = vrot.slane %v2250, %v2305
  %v2307 = vlaneseq
  %v2308 = vshrl.u32 %v2307, 7
  %v2309 = vsub.s32 5, %v2308
  %v2310 = vrot.slane %v2250, %v2309
  %v2311 = vlaneseq
  %v2312 = vshrl.u32 %v2311, 7
  %v2313 = vsub.s32 6, %v2312
  %v2314 = vrot.slane %v2250, %v2313
  %v2315 = vlaneseq
  %v2316 = vshrl.u32 %v2315, 7
  %v2317 = vsub.s32 7, %v2316
  %v2318 = vrot.slane %v2250, %v2317
  %v2319 = vlaneseq
  %v2320 = vshrl.u32 %v2319, 7
  %v2321 = vsub.s32 0, %v2320
  %v2322 = vrot.slane %v2251, %v2321
  %v2323 = vlaneseq
  %v2324 = vshrl.u32 %v2323, 7
  %v2325 = vsub.s32 1, %v2324
  %v2326 = vrot.slane %v2251, %v2325
  %v2327 = vlaneseq
  %v2328 = vshrl.u32 %v2327, 7
  %v2329 = vsub.s32 2, %v2328
  %v2330 = vrot.slane %v2251, %v2329
  %v2331 = vlaneseq
  %v2332 = vshrl.u32 %v2331, 7
  %v2333 = vsub.s32 3, %v2332
  %v2334 = vrot.slane %v2251, %v2333
  %v2335 = vlaneseq
  %v2336 = vshrl.u32 %v2335, 7
  %v2337 = vsub.s32 4, %v2336
  %v2338 = vrot.slane %v2251, %v2337
  %v2339 = vlaneseq
  %v2340 = vshrl.u32 %v2339, 7
  %v2341 = vsub.s32 5, %v2340
  %v2342 = vrot.slane %v2251, %v2341
  %v2343 = vlaneseq
  %v2344 = vshrl.u32 %v2343, 7
  %v2345 = vsub.s32 6, %v2344
  %v2346 = vrot.slane %v2251, %v2345
  %v2347 = vlaneseq
  %v2348 = vshrl.u32 %v2347, 7
  %v2349 = vsub.s32 7, %v2348
  %v2350 = vrot.slane %v2251, %v2349
  %v2423 = vunpack.c.l.b16 %v2201
  %v2424 = vunpack.c.h.b16 %v2201
  %v2425 = vunpack.c.l.b16 %v2202
  %v2426 = vunpack.c.h.b16 %v2202
  %v2427 = vunpack.c.l.b16 %v2203
  %v2428 = vunpack.c.h.b16 %v2203
  %v2429 = vunpack.c.l.b16 %v2204
  %v2430 = vunpack.c.h.b16 %v2204
  %v2431 = vunpack.c.l.b16 %v2205
  %v2432 = vunpack.c.h.b16 %v2205
  %v2433 = vunpack.c.l.b16 %v2206
  %v2434 = vunpack.c.h.b16 %v2206
  %v2435 = vunpack.c.l.b16 %v2207
  %v2436 = vunpack.c.h.b16 %v2207
  %v2437 = vunpack.c.l.b16 %v2208
  %v2438 = vunpack.c.h.b16 %v2208
  %v2439 = vunpack.c.l.b16 %v2209
  %v2440 = vunpack.c.h.b16 %v2209
  %v2441 = vunpack.c.l.b16 %v2210
  %v2442 = vunpack.c.h.b16 %v2210
  %v2443 = vunpack.c.l.b16 %v2211
  %v2444 = vunpack.c.h.b16 %v2211
  %v2445 = vunpack.c.l.b16 %v2212
  %v2446 = vunpack.c.h.b16 %v2212
  %v2447 = vunpack.c.l.b16 %v2213
  %v2448 = vunpack.c.h.b16 %v2213
  %v2449 = vunpack.c.l.b16 %v2214
  %v2450 = vunpack.c.h.b16 %v2214
  %v2451 = vunpack.c.l.b16 %v2215
  %v2452 = vunpack.c.h.b16 %v2215
  %v2453 = vunpack.c.l.b16 %v2216
  %v2454 = vunpack.c.h.b16 %v2216
  %v2455 = vunpack.c.l.b16 %v2217
  %v2456 = vunpack.c.h.b16 %v2217
  %v2457 = vunpack.c.l.b16 %v2218
  %v2458 = vunpack.c.h.b16 %v2218
  %v2459 = vunpack.c.l.b16 %v2219
  %v2460 = vunpack.c.h.b16 %v2219
  %v2461 = vunpack.c.l.b16 %v2220
  %v2462 = vunpack.c.h.b16 %v2220
  %v2463 = vunpack.c.l.b16 %v2221
  %v2464 = vunpack.c.h.b16 %v2221
  %v2465 = vunpack.c.l.b16 %v2222
  %v2466 = vunpack.c.h.b16 %v2222
  %v2467 = vunpack.c.l.b16 %v2223
  %v2468 = vunpack.c.h.b16 %v2223
  %v2469 = vunpack.c.l.b16 %v2224
  %v2470 = vunpack.c.h.b16 %v2224
  %v2471 = vunpack.c.l.b16 %v2225
  %v2472 = vunpack.c.h.b16 %v2225
  %v2473 = vunpack.c.l.b16 %v2226
  %v2474 = vunpack.c.h.b16 %v2226
  %v2475 = vunpack.c.l.b16 %v2227
  %v2476 = vunpack.c.h.b16 %v2227
  %v2477 = vunpack.c.l.b16 %v2228
  %v2478 = vunpack.c.h.b16 %v2228
  %v2479 = vunpack.c.l.b16 %v2229
  %v2480 = vunpack.c.h.b16 %v2229
  %v2481 = vunpack.c.l.b16 %v2230
  %v2482 = vunpack.c.h.b16 %v2230
  %v2483 = vunpack.c.l.b16 %v2231
  %v2484 = vunpack.c.h.b16 %v2231
  %v2485 = vunpack.c.l.b16 %v2232
  %v2486 = vunpack.c.h.b16 %v2232
  %v2487 = vunpack.c.l.b16 %v2233
  %v2488 = vunpack.c.h.b16 %v2233
  %v2489 = vunpack.c.l.b16 %v2234
  %v2490 = vunpack.c.h.b16 %v2234
  %v2491 = vunpack.c.l.b16 %v2235
  %v2492 = vunpack.c.h.b16 %v2235
  %v2493 = vunpack.c.l.b16 %v2236
  %v2494 = vunpack.c.h.b16 %v2236
  %v2495 = vunpack.c.l.b16 %v2237
  %v2496 = vunpack.c.h.b16 %v2237
  %v2497 = vunpack.c.l.b16 %v2238
  %v2498 = vunpack.c.h.b16 %v2238
  %v2499 = vunpack.c.l.b16 %v2239
  %v2500 = vunpack.c.h.b16 %v2239
  %v2501 = vunpack.c.l.b16 %v2240
  %v2502 = vunpack.c.h.b16 %v2240
  %v2503 = vunpack.c.l.b16 %v2241
  %v2504 = vunpack.c.h.b16 %v2241
  %v2505 = vunpack.c.l.b16 %v2242
  %v2506 = vunpack.c.h.b16 %v2242
  %v2507 = vunpack.c.l.b16 %v2243
  %v2508 = vunpack.c.h.b16 %v2243
  %v2509 = vunpack.c.l.b16 %v2244
  %v2510 = vunpack.c.h.b16 %v2244
  %v2511 = vunpack.c.l.b16 %v2245
  %v2512 = vunpack.c.h.b16 %v2245
  %v2513 = vunpack.c.l.b16 %v2246
  %v2514 = vunpack.c.h.b16 %v2246
  %v2515 = vunpack.c.l.b16 %v2247
  %v2516 = vunpack.c.h.b16 %v2247
  %v2517 = vunpack.c.l.b16 %v2248
  %v2518 = vunpack.c.h.b16 %v2248
  %v2519 = vpack.c.b16 %v2447, %v2423
  %v2520 = vpack.c.b16 %v2448, %v2424
  %v2521 = vpack.c.b16 %v2449, %v2425
  %v2522 = vpack.c.b16 %v2450, %v2426
  %v2523 = vpack.c.b16 %v2451, %v2427
  %v2524 = vpack.c.b16 %v2452, %v2428
  %v2525 = vpack.c.b16 %v2453, %v2429
  %v2526 = vpack.c.b16 %v2454, %v2430
  %v2527 = vpack.c.b16 %v2455, %v2431
  %v2528 = vpack.c.b16 %v2456, %v2432
  %v2529 = vpack.c.b16 %v2457, %v2433
  %v2530 = vpack.c.b16 %v2458, %v2434
  %v2531 = vpack.c.b16 %v2459, %v2435
  %v2532 = vpack.c.b16 %v2460, %v2436
  %v2533 = vpack.c.b16 %v2461, %v2437
  %v2534 = vpack.c.b16 %v2462, %v2438
  %v2535 = vpack.c.b16 %v2463, %v2439
  %v2536 = vpack.c.b16 %v2464, %v2440
  %v2537 = vpack.c.b16 %v2465, %v2441
  %v2538 = vpack.c.b16 %v2466, %v2442
  %v2539 = vpack.c.b16 %v2467, %v2443
  %v2540 = vpack.c.b16 %v2468, %v2444
  %v2541 = vpack.c.b16 %v2469, %v2445
  %v2542 = vpack.c.b16 %v2470, %v2446
  %v2543 = vpack.c.b16 %v2495, %v2471
  %v2544 = vpack.c.b16 %v2496, %v2472
  %v2545 = vpack.c.b16 %v2497, %v2473
  %v2546 = vpack.c.b16 %v2498, %v2474
  %v2547 = vpack.c.b16 %v2499, %v2475
  %v2548 = vpack.c.b16 %v2500, %v2476
  %v2549 = vpack.c.b16 %v2501, %v2477
  %v2550 = vpack.c.b16 %v2502, %v2478
  %v2551 = vpack.c.b16 %v2503, %v2479
  %v2552 = vpack.c.b16 %v2504, %v2480
  %v2553 = vpack.c.b16 %v2505, %v2481
  %v2554 = vpack.c.b16 %v2506, %v2482
  %v2555 = vpack.c.b16 %v2507, %v2483
  %v2556 = vpack.c.b16 %v2508, %v2484
  %v2557 = vpack.c.b16 %v2509, %v2485
  %v2558 = vpack.c.b16 %v2510, %v2486
  %v2559 = vpack.c.b16 %v2511, %v2487
  %v2560 = vpack.c.b16 %v2512, %v2488
  %v2561 = vpack.c.b16 %v2513, %v2489
  %v2562 = vpack.c.b16 %v2514, %v2490
  %v2563 = vpack.c.b16 %v2515, %v2491
  %v2564 = vpack.c.b16 %v2516, %v2492
  %v2565 = vpack.c.b16 %v2517, %v2493
  %v2566 = vpack.c.b16 %v2518, %v2494
  %vm2615 = vcmask 261120
  %v2617 = vsel %vm2615, %v2200, 0
  %2619 = vmatprep.subr.bf16.mxu0 0
  %2620 = vmatpush1.bf16.msra.mxu0 0
  %2621 = vmatprep.subr.bf16.mxu0 0
  %2622 = vmatpush1.bf16.msra.mxu0 0
  %2623 = vmatprep.subr.bf16.mxu0 0
  %2624 = vmatpush1.bf16.msra.mxu0 0
  %2625 = vmatprep.subr.bf16.mxu0 0
  %2626 = vmatpush1.bf16.msra.mxu0 0
  %2627 = vmatprep.subr.bf16.mxu0 0
  %2628 = vmatpush1.bf16.msra.mxu0 0
  %2629 = vmatprep.subr.bf16.mxu0 0
  %2630 = vmatpush1.bf16.msra.mxu0 0
  %2631 = vmatprep.subr.bf16.mxu0 %v2544
  %2632 = vmatpush1.bf16.msra.mxu0 %v2543
  %2633 = vmatprep.subr.bf16.mxu0 %v2520
  %2634 = vmatpush1.bf16.msra.mxu0 %v2519
  %2635 = vmatprep.subr.bf16.mxu0 0
  %2636 = vmatpush2.bf16.msra.mxu0 0
  %2637 = vmatprep.subr.bf16.mxu0 0
  %2638 = vmatpush2.bf16.msra.mxu0 0
  %2639 = vmatprep.subr.bf16.mxu0 0
  %2640 = vmatpush2.bf16.msra.mxu0 0
  %2641 = vmatprep.subr.bf16.mxu0 0
  %2642 = vmatpush2.bf16.msra.mxu0 0
  %2643 = vmatprep.subr.bf16.mxu0 0
  %2644 = vmatpush2.bf16.msra.mxu0 0
  %2645 = vmatprep.subr.bf16.mxu0 0
  %2646 = vmatpush2.bf16.msra.mxu0 0
  %2647 = vmatprep.subr.bf16.mxu0 0
  %2648 = vmatpush2.bf16.msra.mxu0 0
  %2649 = vmatprep.subr.bf16.mxu0 0
  %2650 = vmatpush2.bf16.msra.mxu0 0
  %2651 = vmatprep.mubr.bf16.mxu0 0
  %2652 = vmatmul.mubr.bf16.gmra.mxu0 %v2617
  %v2653 = vpop.f32.mrf.mxu0
  %v2654 = vadd.f32 %v2258, %v2653
  %v2655 = vpop.f32.mrf.mxu0
  %v2656 = vadd.f32 %v2262, %v2655
  %v2657 = vpop.f32.mrf.mxu0
  %v2658 = vadd.f32 %v2258, %v2657
  %v2659 = vpop.f32.mrf.mxu0
  %v2660 = vadd.f32 %v2262, %v2659
  %2661 = vdwg.mxu0
  %2662 = vmatprep.subr.bf16.mxu0 0
  %2663 = vmatpush1.bf16.msra.mxu0 0
  %2664 = vmatprep.subr.bf16.mxu0 0
  %2665 = vmatpush1.bf16.msra.mxu0 0
  %2666 = vmatprep.subr.bf16.mxu0 0
  %2667 = vmatpush1.bf16.msra.mxu0 0
  %2668 = vmatprep.subr.bf16.mxu0 0
  %2669 = vmatpush1.bf16.msra.mxu0 0
  %2670 = vmatprep.subr.bf16.mxu0 0
  %2671 = vmatpush1.bf16.msra.mxu0 0
  %2672 = vmatprep.subr.bf16.mxu0 0
  %2673 = vmatpush1.bf16.msra.mxu0 0
  %2674 = vmatprep.subr.bf16.mxu0 %v2546
  %2675 = vmatpush1.bf16.msra.mxu0 %v2545
  %2676 = vmatprep.subr.bf16.mxu0 %v2522
  %2677 = vmatpush1.bf16.msra.mxu0 %v2521
  %2678 = vmatprep.subr.bf16.mxu0 0
  %2679 = vmatpush2.bf16.msra.mxu0 0
  %2680 = vmatprep.subr.bf16.mxu0 0
  %2681 = vmatpush2.bf16.msra.mxu0 0
  %2682 = vmatprep.subr.bf16.mxu0 0
  %2683 = vmatpush2.bf16.msra.mxu0 0
  %2684 = vmatprep.subr.bf16.mxu0 0
  %2685 = vmatpush2.bf16.msra.mxu0 0
  %2686 = vmatprep.subr.bf16.mxu0 0
  %2687 = vmatpush2.bf16.msra.mxu0 0
  %2688 = vmatprep.subr.bf16.mxu0 0
  %2689 = vmatpush2.bf16.msra.mxu0 0
  %2690 = vmatprep.subr.bf16.mxu0 0
  %2691 = vmatpush2.bf16.msra.mxu0 0
  %2692 = vmatprep.subr.bf16.mxu0 0
  %2693 = vmatpush2.bf16.msra.mxu0 0
  %2694 = vmatprep.mubr.bf16.mxu0 0
  %2695 = vmatmul.mubr.bf16.gmra.mxu0 %v2617
  %v2696 = vpop.f32.mrf.mxu0
  %v2697 = vadd.f32 %v2266, %v2696
  %v2698 = vpop.f32.mrf.mxu0
  %v2699 = vadd.f32 %v2270, %v2698
  %v2700 = vpop.f32.mrf.mxu0
  %v2701 = vadd.f32 %v2266, %v2700
  %v2702 = vpop.f32.mrf.mxu0
  %v2703 = vadd.f32 %v2270, %v2702
  %2704 = vdwg.mxu0
  %2705 = vmatprep.subr.bf16.mxu0 0
  %2706 = vmatpush1.bf16.msra.mxu0 0
  %2707 = vmatprep.subr.bf16.mxu0 0
  %2708 = vmatpush1.bf16.msra.mxu0 0
  %2709 = vmatprep.subr.bf16.mxu0 0
  %2710 = vmatpush1.bf16.msra.mxu0 0
  %2711 = vmatprep.subr.bf16.mxu0 0
  %2712 = vmatpush1.bf16.msra.mxu0 0
  %2713 = vmatprep.subr.bf16.mxu0 0
  %2714 = vmatpush1.bf16.msra.mxu0 0
  %2715 = vmatprep.subr.bf16.mxu0 0
  %2716 = vmatpush1.bf16.msra.mxu0 0
  %2717 = vmatprep.subr.bf16.mxu0 %v2548
  %2718 = vmatpush1.bf16.msra.mxu0 %v2547
  %2719 = vmatprep.subr.bf16.mxu0 %v2524
  %2720 = vmatpush1.bf16.msra.mxu0 %v2523
  %2721 = vmatprep.subr.bf16.mxu0 0
  %2722 = vmatpush2.bf16.msra.mxu0 0
  %2723 = vmatprep.subr.bf16.mxu0 0
  %2724 = vmatpush2.bf16.msra.mxu0 0
  %2725 = vmatprep.subr.bf16.mxu0 0
  %2726 = vmatpush2.bf16.msra.mxu0 0
  %2727 = vmatprep.subr.bf16.mxu0 0
  %2728 = vmatpush2.bf16.msra.mxu0 0
  %2729 = vmatprep.subr.bf16.mxu0 0
  %2730 = vmatpush2.bf16.msra.mxu0 0
  %2731 = vmatprep.subr.bf16.mxu0 0
  %2732 = vmatpush2.bf16.msra.mxu0 0
  %2733 = vmatprep.subr.bf16.mxu0 0
  %2734 = vmatpush2.bf16.msra.mxu0 0
  %2735 = vmatprep.subr.bf16.mxu0 0
  %2736 = vmatpush2.bf16.msra.mxu0 0
  %2737 = vmatprep.mubr.bf16.mxu0 0
  %2738 = vmatmul.mubr.bf16.gmra.mxu0 %v2617
  %v2739 = vpop.f32.mrf.mxu0
  %v2740 = vadd.f32 %v2274, %v2739
  %v2741 = vpop.f32.mrf.mxu0
  %v2742 = vadd.f32 %v2278, %v2741
  %v2743 = vpop.f32.mrf.mxu0
  %v2744 = vadd.f32 %v2274, %v2743
  %v2745 = vpop.f32.mrf.mxu0
  %v2746 = vadd.f32 %v2278, %v2745
  %2747 = vdwg.mxu0
  %2748 = vmatprep.subr.bf16.mxu0 0
  %2749 = vmatpush1.bf16.msra.mxu0 0
  %2750 = vmatprep.subr.bf16.mxu0 0
  %2751 = vmatpush1.bf16.msra.mxu0 0
  %2752 = vmatprep.subr.bf16.mxu0 0
  %2753 = vmatpush1.bf16.msra.mxu0 0
  %2754 = vmatprep.subr.bf16.mxu0 0
  %2755 = vmatpush1.bf16.msra.mxu0 0
  %2756 = vmatprep.subr.bf16.mxu0 0
  %2757 = vmatpush1.bf16.msra.mxu0 0
  %2758 = vmatprep.subr.bf16.mxu0 0
  %2759 = vmatpush1.bf16.msra.mxu0 0
  %2760 = vmatprep.subr.bf16.mxu0 %v2550
  %2761 = vmatpush1.bf16.msra.mxu0 %v2549
  %2762 = vmatprep.subr.bf16.mxu0 %v2526
  %2763 = vmatpush1.bf16.msra.mxu0 %v2525
  %2764 = vmatprep.subr.bf16.mxu0 0
  %2765 = vmatpush2.bf16.msra.mxu0 0
  %2766 = vmatprep.subr.bf16.mxu0 0
  %2767 = vmatpush2.bf16.msra.mxu0 0
  %2768 = vmatprep.subr.bf16.mxu0 0
  %2769 = vmatpush2.bf16.msra.mxu0 0
  %2770 = vmatprep.subr.bf16.mxu0 0
  %2771 = vmatpush2.bf16.msra.mxu0 0
  %2772 = vmatprep.subr.bf16.mxu0 0
  %2773 = vmatpush2.bf16.msra.mxu0 0
  %2774 = vmatprep.subr.bf16.mxu0 0
  %2775 = vmatpush2.bf16.msra.mxu0 0
  %2776 = vmatprep.subr.bf16.mxu0 0
  %2777 = vmatpush2.bf16.msra.mxu0 0
  %2778 = vmatprep.subr.bf16.mxu0 0
  %2779 = vmatpush2.bf16.msra.mxu0 0
  %2780 = vmatprep.mubr.bf16.mxu0 0
  %2781 = vmatmul.mubr.bf16.gmra.mxu0 %v2617
  %v2782 = vpop.f32.mrf.mxu0
  %v2783 = vadd.f32 %v2282, %v2782
  %v2784 = vpop.f32.mrf.mxu0
  %v2785 = vadd.f32 %v2286, %v2784
  %v2786 = vpop.f32.mrf.mxu0
  %v2787 = vadd.f32 %v2282, %v2786
  %v2788 = vpop.f32.mrf.mxu0
  %v2789 = vadd.f32 %v2286, %v2788
  %2790 = vdwg.mxu0
  %2791 = vmatprep.subr.bf16.mxu0 0
  %2792 = vmatpush1.bf16.msra.mxu0 0
  %2793 = vmatprep.subr.bf16.mxu0 0
  %2794 = vmatpush1.bf16.msra.mxu0 0
  %2795 = vmatprep.subr.bf16.mxu0 0
  %2796 = vmatpush1.bf16.msra.mxu0 0
  %2797 = vmatprep.subr.bf16.mxu0 0
  %2798 = vmatpush1.bf16.msra.mxu0 0
  %2799 = vmatprep.subr.bf16.mxu0 0
  %2800 = vmatpush1.bf16.msra.mxu0 0
  %2801 = vmatprep.subr.bf16.mxu0 0
  %2802 = vmatpush1.bf16.msra.mxu0 0
  %2803 = vmatprep.subr.bf16.mxu0 %v2552
  %2804 = vmatpush1.bf16.msra.mxu0 %v2551
  %2805 = vmatprep.subr.bf16.mxu0 %v2528
  %2806 = vmatpush1.bf16.msra.mxu0 %v2527
  %2807 = vmatprep.subr.bf16.mxu0 0
  %2808 = vmatpush2.bf16.msra.mxu0 0
  %2809 = vmatprep.subr.bf16.mxu0 0
  %2810 = vmatpush2.bf16.msra.mxu0 0
  %2811 = vmatprep.subr.bf16.mxu0 0
  %2812 = vmatpush2.bf16.msra.mxu0 0
  %2813 = vmatprep.subr.bf16.mxu0 0
  %2814 = vmatpush2.bf16.msra.mxu0 0
  %2815 = vmatprep.subr.bf16.mxu0 0
  %2816 = vmatpush2.bf16.msra.mxu0 0
  %2817 = vmatprep.subr.bf16.mxu0 0
  %2818 = vmatpush2.bf16.msra.mxu0 0
  %2819 = vmatprep.subr.bf16.mxu0 0
  %2820 = vmatpush2.bf16.msra.mxu0 0
  %2821 = vmatprep.subr.bf16.mxu0 0
  %2822 = vmatpush2.bf16.msra.mxu0 0
  %2823 = vmatprep.mubr.bf16.mxu0 0
  %2824 = vmatmul.mubr.bf16.gmra.mxu0 %v2617
  %v2825 = vpop.f32.mrf.mxu0
  %v2826 = vadd.f32 %v2290, %v2825
  %v2827 = vpop.f32.mrf.mxu0
  %v2828 = vadd.f32 %v2294, %v2827
  %v2829 = vpop.f32.mrf.mxu0
  %v2830 = vadd.f32 %v2290, %v2829
  %v2831 = vpop.f32.mrf.mxu0
  %v2832 = vadd.f32 %v2294, %v2831
  %2833 = vdwg.mxu0
  %2834 = vmatprep.subr.bf16.mxu0 0
  %2835 = vmatpush1.bf16.msra.mxu0 0
  %2836 = vmatprep.subr.bf16.mxu0 0
  %2837 = vmatpush1.bf16.msra.mxu0 0
  %2838 = vmatprep.subr.bf16.mxu0 0
  %2839 = vmatpush1.bf16.msra.mxu0 0
  %2840 = vmatprep.subr.bf16.mxu0 0
  %2841 = vmatpush1.bf16.msra.mxu0 0
  %2842 = vmatprep.subr.bf16.mxu0 0
  %2843 = vmatpush1.bf16.msra.mxu0 0
  %2844 = vmatprep.subr.bf16.mxu0 0
  %2845 = vmatpush1.bf16.msra.mxu0 0
  %2846 = vmatprep.subr.bf16.mxu0 %v2554
  %2847 = vmatpush1.bf16.msra.mxu0 %v2553
  %2848 = vmatprep.subr.bf16.mxu0 %v2530
  %2849 = vmatpush1.bf16.msra.mxu0 %v2529
  %2850 = vmatprep.subr.bf16.mxu0 0
  %2851 = vmatpush2.bf16.msra.mxu0 0
  %2852 = vmatprep.subr.bf16.mxu0 0
  %2853 = vmatpush2.bf16.msra.mxu0 0
  %2854 = vmatprep.subr.bf16.mxu0 0
  %2855 = vmatpush2.bf16.msra.mxu0 0
  %2856 = vmatprep.subr.bf16.mxu0 0
  %2857 = vmatpush2.bf16.msra.mxu0 0
  %2858 = vmatprep.subr.bf16.mxu0 0
  %2859 = vmatpush2.bf16.msra.mxu0 0
  %2860 = vmatprep.subr.bf16.mxu0 0
  %2861 = vmatpush2.bf16.msra.mxu0 0
  %2862 = vmatprep.subr.bf16.mxu0 0
  %2863 = vmatpush2.bf16.msra.mxu0 0
  %2864 = vmatprep.subr.bf16.mxu0 0
  %2865 = vmatpush2.bf16.msra.mxu0 0
  %2866 = vmatprep.mubr.bf16.mxu0 0
  %2867 = vmatmul.mubr.bf16.gmra.mxu0 %v2617
  %v2868 = vpop.f32.mrf.mxu0
  %v2869 = vadd.f32 %v2298, %v2868
  %v2870 = vpop.f32.mrf.mxu0
  %v2871 = vadd.f32 %v2302, %v2870
  %v2872 = vpop.f32.mrf.mxu0
  %v2873 = vadd.f32 %v2298, %v2872
  %v2874 = vpop.f32.mrf.mxu0
  %v2875 = vadd.f32 %v2302, %v2874
  %2876 = vdwg.mxu0
  %2877 = vmatprep.subr.bf16.mxu0 0
  %2878 = vmatpush1.bf16.msra.mxu0 0
  %2879 = vmatprep.subr.bf16.mxu0 0
  %2880 = vmatpush1.bf16.msra.mxu0 0
  %2881 = vmatprep.subr.bf16.mxu0 0
  %2882 = vmatpush1.bf16.msra.mxu0 0
  %2883 = vmatprep.subr.bf16.mxu0 0
  %2884 = vmatpush1.bf16.msra.mxu0 0
  %2885 = vmatprep.subr.bf16.mxu0 0
  %2886 = vmatpush1.bf16.msra.mxu0 0
  %2887 = vmatprep.subr.bf16.mxu0 0
  %2888 = vmatpush1.bf16.msra.mxu0 0
  %2889 = vmatprep.subr.bf16.mxu0 %v2556
  %2890 = vmatpush1.bf16.msra.mxu0 %v2555
  %2891 = vmatprep.subr.bf16.mxu0 %v2532
  %2892 = vmatpush1.bf16.msra.mxu0 %v2531
  %2893 = vmatprep.subr.bf16.mxu0 0
  %2894 = vmatpush2.bf16.msra.mxu0 0
  %2895 = vmatprep.subr.bf16.mxu0 0
  %2896 = vmatpush2.bf16.msra.mxu0 0
  %2897 = vmatprep.subr.bf16.mxu0 0
  %2898 = vmatpush2.bf16.msra.mxu0 0
  %2899 = vmatprep.subr.bf16.mxu0 0
  %2900 = vmatpush2.bf16.msra.mxu0 0
  %2901 = vmatprep.subr.bf16.mxu0 0
  %2902 = vmatpush2.bf16.msra.mxu0 0
  %2903 = vmatprep.subr.bf16.mxu0 0
  %2904 = vmatpush2.bf16.msra.mxu0 0
  %2905 = vmatprep.subr.bf16.mxu0 0
  %2906 = vmatpush2.bf16.msra.mxu0 0
  %2907 = vmatprep.subr.bf16.mxu0 0
  %2908 = vmatpush2.bf16.msra.mxu0 0
  %2909 = vmatprep.mubr.bf16.mxu0 0
  %2910 = vmatmul.mubr.bf16.gmra.mxu0 %v2617
  %v2911 = vpop.f32.mrf.mxu0
  %v2912 = vadd.f32 %v2306, %v2911
  %v2913 = vpop.f32.mrf.mxu0
  %v2914 = vadd.f32 %v2310, %v2913
  %v2915 = vpop.f32.mrf.mxu0
  %v2916 = vadd.f32 %v2306, %v2915
  %v2917 = vpop.f32.mrf.mxu0
  %v2918 = vadd.f32 %v2310, %v2917
  %2919 = vdwg.mxu0
  %2920 = vmatprep.subr.bf16.mxu0 0
  %2921 = vmatpush1.bf16.msra.mxu0 0
  %2922 = vmatprep.subr.bf16.mxu0 0
  %2923 = vmatpush1.bf16.msra.mxu0 0
  %2924 = vmatprep.subr.bf16.mxu0 0
  %2925 = vmatpush1.bf16.msra.mxu0 0
  %2926 = vmatprep.subr.bf16.mxu0 0
  %2927 = vmatpush1.bf16.msra.mxu0 0
  %2928 = vmatprep.subr.bf16.mxu0 0
  %2929 = vmatpush1.bf16.msra.mxu0 0
  %2930 = vmatprep.subr.bf16.mxu0 0
  %2931 = vmatpush1.bf16.msra.mxu0 0
  %2932 = vmatprep.subr.bf16.mxu0 %v2558
  %2933 = vmatpush1.bf16.msra.mxu0 %v2557
  %2934 = vmatprep.subr.bf16.mxu0 %v2534
  %2935 = vmatpush1.bf16.msra.mxu0 %v2533
  %2936 = vmatprep.subr.bf16.mxu0 0
  %2937 = vmatpush2.bf16.msra.mxu0 0
  %2938 = vmatprep.subr.bf16.mxu0 0
  %2939 = vmatpush2.bf16.msra.mxu0 0
  %2940 = vmatprep.subr.bf16.mxu0 0
  %2941 = vmatpush2.bf16.msra.mxu0 0
  %2942 = vmatprep.subr.bf16.mxu0 0
  %2943 = vmatpush2.bf16.msra.mxu0 0
  %2944 = vmatprep.subr.bf16.mxu0 0
  %2945 = vmatpush2.bf16.msra.mxu0 0
  %2946 = vmatprep.subr.bf16.mxu0 0
  %2947 = vmatpush2.bf16.msra.mxu0 0
  %2948 = vmatprep.subr.bf16.mxu0 0
  %2949 = vmatpush2.bf16.msra.mxu0 0
  %2950 = vmatprep.subr.bf16.mxu0 0
  %2951 = vmatpush2.bf16.msra.mxu0 0
  %2952 = vmatprep.mubr.bf16.mxu0 0
  %2953 = vmatmul.mubr.bf16.gmra.mxu0 %v2617
  %v2954 = vpop.f32.mrf.mxu0
  %v2955 = vadd.f32 %v2314, %v2954
  %v2956 = vpop.f32.mrf.mxu0
  %v2957 = vadd.f32 %v2318, %v2956
  %v2958 = vpop.f32.mrf.mxu0
  %v2959 = vadd.f32 %v2314, %v2958
  %v2960 = vpop.f32.mrf.mxu0
  %v2961 = vadd.f32 %v2318, %v2960
  %2962 = vdwg.mxu0
  %2963 = vmatprep.subr.bf16.mxu0 0
  %2964 = vmatpush1.bf16.msra.mxu0 0
  %2965 = vmatprep.subr.bf16.mxu0 0
  %2966 = vmatpush1.bf16.msra.mxu0 0
  %2967 = vmatprep.subr.bf16.mxu0 0
  %2968 = vmatpush1.bf16.msra.mxu0 0
  %2969 = vmatprep.subr.bf16.mxu0 0
  %2970 = vmatpush1.bf16.msra.mxu0 0
  %2971 = vmatprep.subr.bf16.mxu0 0
  %2972 = vmatpush1.bf16.msra.mxu0 0
  %2973 = vmatprep.subr.bf16.mxu0 0
  %2974 = vmatpush1.bf16.msra.mxu0 0
  %2975 = vmatprep.subr.bf16.mxu0 %v2560
  %2976 = vmatpush1.bf16.msra.mxu0 %v2559
  %2977 = vmatprep.subr.bf16.mxu0 %v2536
  %2978 = vmatpush1.bf16.msra.mxu0 %v2535
  %2979 = vmatprep.subr.bf16.mxu0 0
  %2980 = vmatpush2.bf16.msra.mxu0 0
  %2981 = vmatprep.subr.bf16.mxu0 0
  %2982 = vmatpush2.bf16.msra.mxu0 0
  %2983 = vmatprep.subr.bf16.mxu0 0
  %2984 = vmatpush2.bf16.msra.mxu0 0
  %2985 = vmatprep.subr.bf16.mxu0 0
  %2986 = vmatpush2.bf16.msra.mxu0 0
  %2987 = vmatprep.subr.bf16.mxu0 0
  %2988 = vmatpush2.bf16.msra.mxu0 0
  %2989 = vmatprep.subr.bf16.mxu0 0
  %2990 = vmatpush2.bf16.msra.mxu0 0
  %2991 = vmatprep.subr.bf16.mxu0 0
  %2992 = vmatpush2.bf16.msra.mxu0 0
  %2993 = vmatprep.subr.bf16.mxu0 0
  %2994 = vmatpush2.bf16.msra.mxu0 0
  %2995 = vmatprep.mubr.bf16.mxu0 0
  %2996 = vmatmul.mubr.bf16.gmra.mxu0 %v2617
  %v2997 = vpop.f32.mrf.mxu0
  %v2998 = vadd.f32 %v2322, %v2997
  %v2999 = vpop.f32.mrf.mxu0
  %v3000 = vadd.f32 %v2326, %v2999
  %v3001 = vpop.f32.mrf.mxu0
  %v3002 = vadd.f32 %v2322, %v3001
  %v3003 = vpop.f32.mrf.mxu0
  %v3004 = vadd.f32 %v2326, %v3003
  %3005 = vdwg.mxu0
  %3006 = vmatprep.subr.bf16.mxu0 0
  %3007 = vmatpush1.bf16.msra.mxu0 0
  %3008 = vmatprep.subr.bf16.mxu0 0
  %3009 = vmatpush1.bf16.msra.mxu0 0
  %3010 = vmatprep.subr.bf16.mxu0 0
  %3011 = vmatpush1.bf16.msra.mxu0 0
  %3012 = vmatprep.subr.bf16.mxu0 0
  %3013 = vmatpush1.bf16.msra.mxu0 0
  %3014 = vmatprep.subr.bf16.mxu0 0
  %3015 = vmatpush1.bf16.msra.mxu0 0
  %3016 = vmatprep.subr.bf16.mxu0 0
  %3017 = vmatpush1.bf16.msra.mxu0 0
  %3018 = vmatprep.subr.bf16.mxu0 %v2562
  %3019 = vmatpush1.bf16.msra.mxu0 %v2561
  %3020 = vmatprep.subr.bf16.mxu0 %v2538
  %3021 = vmatpush1.bf16.msra.mxu0 %v2537
  %3022 = vmatprep.subr.bf16.mxu0 0
  %3023 = vmatpush2.bf16.msra.mxu0 0
  %3024 = vmatprep.subr.bf16.mxu0 0
  %3025 = vmatpush2.bf16.msra.mxu0 0
  %3026 = vmatprep.subr.bf16.mxu0 0
  %3027 = vmatpush2.bf16.msra.mxu0 0
  %3028 = vmatprep.subr.bf16.mxu0 0
  %3029 = vmatpush2.bf16.msra.mxu0 0
  %3030 = vmatprep.subr.bf16.mxu0 0
  %3031 = vmatpush2.bf16.msra.mxu0 0
  %3032 = vmatprep.subr.bf16.mxu0 0
  %3033 = vmatpush2.bf16.msra.mxu0 0
  %3034 = vmatprep.subr.bf16.mxu0 0
  %3035 = vmatpush2.bf16.msra.mxu0 0
  %3036 = vmatprep.subr.bf16.mxu0 0
  %3037 = vmatpush2.bf16.msra.mxu0 0
  %3038 = vmatprep.mubr.bf16.mxu0 0
  %3039 = vmatmul.mubr.bf16.gmra.mxu0 %v2617
  %v3040 = vpop.f32.mrf.mxu0
  %v3041 = vadd.f32 %v2330, %v3040
  %v3042 = vpop.f32.mrf.mxu0
  %v3043 = vadd.f32 %v2334, %v3042
  %v3044 = vpop.f32.mrf.mxu0
  %v3045 = vadd.f32 %v2330, %v3044
  %v3046 = vpop.f32.mrf.mxu0
  %v3047 = vadd.f32 %v2334, %v3046
  %3048 = vdwg.mxu0
  %3049 = vmatprep.subr.bf16.mxu0 0
  %3050 = vmatpush1.bf16.msra.mxu0 0
  %3051 = vmatprep.subr.bf16.mxu0 0
  %3052 = vmatpush1.bf16.msra.mxu0 0
  %3053 = vmatprep.subr.bf16.mxu0 0
  %3054 = vmatpush1.bf16.msra.mxu0 0
  %3055 = vmatprep.subr.bf16.mxu0 0
  %3056 = vmatpush1.bf16.msra.mxu0 0
  %3057 = vmatprep.subr.bf16.mxu0 0
  %3058 = vmatpush1.bf16.msra.mxu0 0
  %3059 = vmatprep.subr.bf16.mxu0 0
  %3060 = vmatpush1.bf16.msra.mxu0 0
  %3061 = vmatprep.subr.bf16.mxu0 %v2564
  %3062 = vmatpush1.bf16.msra.mxu0 %v2563
  %3063 = vmatprep.subr.bf16.mxu0 %v2540
  %3064 = vmatpush1.bf16.msra.mxu0 %v2539
  %3065 = vmatprep.subr.bf16.mxu0 0
  %3066 = vmatpush2.bf16.msra.mxu0 0
  %3067 = vmatprep.subr.bf16.mxu0 0
  %3068 = vmatpush2.bf16.msra.mxu0 0
  %3069 = vmatprep.subr.bf16.mxu0 0
  %3070 = vmatpush2.bf16.msra.mxu0 0
  %3071 = vmatprep.subr.bf16.mxu0 0
  %3072 = vmatpush2.bf16.msra.mxu0 0
  %3073 = vmatprep.subr.bf16.mxu0 0
  %3074 = vmatpush2.bf16.msra.mxu0 0
  %3075 = vmatprep.subr.bf16.mxu0 0
  %3076 = vmatpush2.bf16.msra.mxu0 0
  %3077 = vmatprep.subr.bf16.mxu0 0
  %3078 = vmatpush2.bf16.msra.mxu0 0
  %3079 = vmatprep.subr.bf16.mxu0 0
  %3080 = vmatpush2.bf16.msra.mxu0 0
  %3081 = vmatprep.mubr.bf16.mxu0 0
  %3082 = vmatmul.mubr.bf16.gmra.mxu0 %v2617
  %v3083 = vpop.f32.mrf.mxu0
  %v3084 = vadd.f32 %v2338, %v3083
  %v3085 = vpop.f32.mrf.mxu0
  %v3086 = vadd.f32 %v2342, %v3085
  %v3087 = vpop.f32.mrf.mxu0
  %v3088 = vadd.f32 %v2338, %v3087
  %v3089 = vpop.f32.mrf.mxu0
  %v3090 = vadd.f32 %v2342, %v3089
  %3091 = vdwg.mxu0
  %3092 = vmatprep.subr.bf16.mxu0 0
  %3093 = vmatpush1.bf16.msra.mxu0 0
  %3094 = vmatprep.subr.bf16.mxu0 0
  %3095 = vmatpush1.bf16.msra.mxu0 0
  %3096 = vmatprep.subr.bf16.mxu0 0
  %3097 = vmatpush1.bf16.msra.mxu0 0
  %3098 = vmatprep.subr.bf16.mxu0 0
  %3099 = vmatpush1.bf16.msra.mxu0 0
  %3100 = vmatprep.subr.bf16.mxu0 0
  %3101 = vmatpush1.bf16.msra.mxu0 0
  %3102 = vmatprep.subr.bf16.mxu0 0
  %3103 = vmatpush1.bf16.msra.mxu0 0
  %3104 = vmatprep.subr.bf16.mxu0 %v2566
  %3105 = vmatpush1.bf16.msra.mxu0 %v2565
  %3106 = vmatprep.subr.bf16.mxu0 %v2542
  %3107 = vmatpush1.bf16.msra.mxu0 %v2541
  %3108 = vmatprep.subr.bf16.mxu0 0
  %3109 = vmatpush2.bf16.msra.mxu0 0
  %3110 = vmatprep.subr.bf16.mxu0 0
  %3111 = vmatpush2.bf16.msra.mxu0 0
  %3112 = vmatprep.subr.bf16.mxu0 0
  %3113 = vmatpush2.bf16.msra.mxu0 0
  %3114 = vmatprep.subr.bf16.mxu0 0
  %3115 = vmatpush2.bf16.msra.mxu0 0
  %3116 = vmatprep.subr.bf16.mxu0 0
  %3117 = vmatpush2.bf16.msra.mxu0 0
  %3118 = vmatprep.subr.bf16.mxu0 0
  %3119 = vmatpush2.bf16.msra.mxu0 0
  %3120 = vmatprep.subr.bf16.mxu0 0
  %3121 = vmatpush2.bf16.msra.mxu0 0
  %3122 = vmatprep.subr.bf16.mxu0 0
  %3123 = vmatpush2.bf16.msra.mxu0 0
  %3124 = vmatprep.mubr.bf16.mxu0 0
  %3125 = vmatmul.mubr.bf16.gmra.mxu0 %v2617
  %v3126 = vpop.f32.mrf.mxu0
  %v3127 = vadd.f32 %v2346, %v3126
  %v3128 = vpop.f32.mrf.mxu0
  %v3129 = vadd.f32 %v2350, %v3128
  %v3130 = vpop.f32.mrf.mxu0
  %v3131 = vadd.f32 %v2346, %v3130
  %v3132 = vpop.f32.mrf.mxu0
  %v3133 = vadd.f32 %v2350, %v3132
  %3134 = vdwg.mxu0
  %v3135 = vpack.c.bf16 %v2658, %v2654
  %v3136 = vpack.c.bf16 %v2660, %v2656
  %v3137 = vpack.c.bf16 %v2701, %v2697
  %v3138 = vpack.c.bf16 %v2703, %v2699
  %v3139 = vpack.c.bf16 %v2744, %v2740
  %v3140 = vpack.c.bf16 %v2746, %v2742
  %v3141 = vpack.c.bf16 %v2787, %v2783
  %v3142 = vpack.c.bf16 %v2789, %v2785
  %v3143 = vpack.c.bf16 %v2830, %v2826
  %v3144 = vpack.c.bf16 %v2832, %v2828
  %v3145 = vpack.c.bf16 %v2873, %v2869
  %v3146 = vpack.c.bf16 %v2875, %v2871
  %v3147 = vpack.c.bf16 %v2916, %v2912
  %v3148 = vpack.c.bf16 %v2918, %v2914
  %v3149 = vpack.c.bf16 %v2959, %v2955
  %v3150 = vpack.c.bf16 %v2961, %v2957
  %v3151 = vpack.c.bf16 %v3002, %v2998
  %v3152 = vpack.c.bf16 %v3004, %v3000
  %v3153 = vpack.c.bf16 %v3045, %v3041
  %v3154 = vpack.c.bf16 %v3047, %v3043
  %v3155 = vpack.c.bf16 %v3088, %v3084
  %v3156 = vpack.c.bf16 %v3090, %v3086
  %v3157 = vpack.c.bf16 %v3131, %v3127
  %v3158 = vpack.c.bf16 %v3133, %v3129
  %v3183 = vunpack.c.l.b16 %v3135
  %v3184 = vunpack.c.l.b16 %v3136
  %v3185 = vunpack.c.l.b16 %v3137
  %v3186 = vunpack.c.l.b16 %v3138
  %v3187 = vunpack.c.l.b16 %v3139
  %v3188 = vunpack.c.l.b16 %v3140
  %v3189 = vunpack.c.l.b16 %v3141
  %v3190 = vunpack.c.l.b16 %v3142
  %v3191 = vunpack.c.l.b16 %v3143
  %v3192 = vunpack.c.l.b16 %v3144
  %v3193 = vunpack.c.l.b16 %v3145
  %v3194 = vunpack.c.l.b16 %v3146
  %v3195 = vunpack.c.l.b16 %v3147
  %v3196 = vunpack.c.l.b16 %v3148
  %v3197 = vunpack.c.l.b16 %v3149
  %v3198 = vunpack.c.l.b16 %v3150
  %v3199 = vunpack.c.l.b16 %v3151
  %v3200 = vunpack.c.l.b16 %v3152
  %v3201 = vunpack.c.l.b16 %v3153
  %v3202 = vunpack.c.l.b16 %v3154
  %v3203 = vunpack.c.l.b16 %v3155
  %v3204 = vunpack.c.l.b16 %v3156
  %v3205 = vunpack.c.l.b16 %v3157
  %v3206 = vunpack.c.l.b16 %v3158
  %v3207 = vunpack.c.h.b16 %v3135
  %v3208 = vunpack.c.h.b16 %v3136
  %v3209 = vunpack.c.h.b16 %v3137
  %v3210 = vunpack.c.h.b16 %v3138
  %v3211 = vunpack.c.h.b16 %v3139
  %v3212 = vunpack.c.h.b16 %v3140
  %v3213 = vunpack.c.h.b16 %v3141
  %v3214 = vunpack.c.h.b16 %v3142
  %v3215 = vunpack.c.h.b16 %v3143
  %v3216 = vunpack.c.h.b16 %v3144
  %v3217 = vunpack.c.h.b16 %v3145
  %v3218 = vunpack.c.h.b16 %v3146
  %v3219 = vunpack.c.h.b16 %v3147
  %v3220 = vunpack.c.h.b16 %v3148
  %v3221 = vunpack.c.h.b16 %v3149
  %v3222 = vunpack.c.h.b16 %v3150
  %v3223 = vunpack.c.h.b16 %v3151
  %v3224 = vunpack.c.h.b16 %v3152
  %v3225 = vunpack.c.h.b16 %v3153
  %v3226 = vunpack.c.h.b16 %v3154
  %v3227 = vunpack.c.h.b16 %v3155
  %v3228 = vunpack.c.h.b16 %v3156
  %v3229 = vunpack.c.h.b16 %v3157
  %v3230 = vunpack.c.h.b16 %v3158
  %v3231 = vpack.c.b16 %v3184, %v3183
  %v3232 = vpack.c.b16 %v3186, %v3185
  %v3233 = vpack.c.b16 %v3188, %v3187
  %v3234 = vpack.c.b16 %v3190, %v3189
  %v3235 = vpack.c.b16 %v3192, %v3191
  %v3236 = vpack.c.b16 %v3194, %v3193
  %v3237 = vpack.c.b16 %v3196, %v3195
  %v3238 = vpack.c.b16 %v3198, %v3197
  %v3239 = vpack.c.b16 %v3200, %v3199
  %v3240 = vpack.c.b16 %v3202, %v3201
  %v3241 = vpack.c.b16 %v3204, %v3203
  %v3242 = vpack.c.b16 %v3206, %v3205
  %v3243 = vpack.c.b16 %v3208, %v3207
  %v3244 = vpack.c.b16 %v3210, %v3209
  %v3245 = vpack.c.b16 %v3212, %v3211
  %v3246 = vpack.c.b16 %v3214, %v3213
  %v3247 = vpack.c.b16 %v3216, %v3215
  %v3248 = vpack.c.b16 %v3218, %v3217
  %v3249 = vpack.c.b16 %v3220, %v3219
  %v3250 = vpack.c.b16 %v3222, %v3221
  %v3251 = vpack.c.b16 %v3224, %v3223
  %v3252 = vpack.c.b16 %v3226, %v3225
  %v3253 = vpack.c.b16 %v3228, %v3227
  %v3254 = vpack.c.b16 %v3230, %v3229
  %3279 = vst [vmem:[%s5] sm:$0xff] %v3231
  %3280 = vst [vmem:[%s5 + $0x8] sm:$0xff] %v3232
  %3281 = vst [vmem:[%s5 + $0x10] sm:$0xff] %v3233
  %3282 = vst [vmem:[%s5 + $0x18] sm:$0xff] %v3234
  %3283 = vst [vmem:[%s5 + $0x20] sm:$0xff] %v3235
  %3284 = vst [vmem:[%s5 + $0x28] sm:$0xff] %v3236
  %3285 = vst [vmem:[%s5 + $0x30] sm:$0xff] %v3237
  %3286 = vst [vmem:[%s5 + $0x38] sm:$0xff] %v3238
  %3287 = vst [vmem:[%s5 + $0x40] sm:$0xff] %v3239
  %3288 = vst [vmem:[%s5 + $0x48] sm:$0xff] %v3240
  %3289 = vst [vmem:[%s5 + $0x50] sm:$0xff] %v3241
  %3290 = vst [vmem:[%s5 + $0x58] sm:$0xff] %v3242
  %3291 = vst [vmem:[%s5 + $0x60] sm:$0xff] %v3243
  %3292 = vst [vmem:[%s5 + $0x68] sm:$0xff] %v3244
  %3293 = vst [vmem:[%s5 + $0x70] sm:$0xff] %v3245
  %3294 = vst [vmem:[%s5 + $0x78] sm:$0xff] %v3246
  %3295 = vst [vmem:[%s5 + $0x80] sm:$0xff] %v3247
  %3296 = vst [vmem:[%s5 + $0x88] sm:$0xff] %v3248
  %3297 = vst [vmem:[%s5 + $0x90] sm:$0xff] %v3249
  %3298 = vst [vmem:[%s5 + $0x98] sm:$0xff] %v3250
  %3299 = vst [vmem:[%s5 + $0xa0] sm:$0xff] %v3251
  %3300 = vst [vmem:[%s5 + $0xa8] sm:$0xff] %v3252
  %3301 = vst [vmem:[%s5 + $0xb0] sm:$0xff] %v3253
  %3302 = vst [vmem:[%s5 + $0xb8] sm:$0xff] %v3254
  // Predicated region
  $region22: #{conv_ae_forward.7} parent=0 // pred_check
    _
  $region23: #{conv_ae_forward.7} parent=0 // pred_check_branch
    %3304 = sbr.rel (0) target = $region25
  $region24: #{conv_ae_forward.7} parent=0 // pred_region
    _
  $region25: #{conv_ae_forward.7} parent=0 // pred_fallthru
    _
  // Predicated region
  $region26: #{conv_ae_forward.7} parent=0 // pred_check
    _
  $region27: #{conv_ae_forward.7} parent=0 // pred_check_branch
    %3306 = sbr.rel (0) target = $region29
  $region28: #{conv_ae_forward.7} parent=0 // pred_region
    _
  $region29: #{conv_ae_forward.7} parent=0 // pred_fallthru
    _

// kernel: conv_ae_forward.8
$region0: #{conv_ae_forward.8}
  #allocation0 [shape = 'u32[]', space=smem, size = 0x4, offset = 0x4, fixed_abs, tag = 'smem constant byte address 0x4 - core index']
  #allocation1 [shape = 'u32[144,128]{1,0:T(1,128)}', space=vmem, size = 0x12000, scoped, tag = 'internal scratch']
  %s0 = inlined_call_operand.vmem [shape: bf16[1536,864], index: 0, kind: input, shape index: {}]
  %s1 = inlined_call_operand.vmem [shape: bf16[864,128], index: 1, kind: input, shape index: {}]
  %s2 = inlined_call_operand.vmem [shape: f32[1,128], index: 2, kind: input, shape index: {}]
  %s3 = inlined_call_operand.vmem [shape: bf16[1536,128], index: 3, kind: output, shape index: {}]
  %s4 = sld [smem:[#allocation0]]
  $region45: #{conv_ae_forward.8} parent=0
    _
  %s6 = ssub.s32 1, %s4
  %s7 = scalar_select 0, %s6, %s4
  loop: start=0, step=1, limit=4
  $region2: #{conv_ae_forward.8} parent=0 // loop_pre_header
    _
  $region3: #{conv_ae_forward.8} parent=0 // loop_header
    %s9 = sphi 0, %s13
    %p10 = scmp.ge.s32.totalorder %s9, 4
    %s19 = sphi 0, %s21
    %s22 = sphi 0, %s19
    %s23 = sphi 0, %s22
    %s39 = sphi 0, %s23
    %s43 = sphi 0, %s43
    %s45 = sphi 0, %s43
    %s46 = sphi 0, %s45
    %s60 = sphi 0, %s46
    %s64 = sphi 0, %s64
    %s66 = sphi 0, %s64
    %s67 = sphi 0, %s66
    %s81 = sphi 0, %s67
    %s87 = sphi 0, %s89
    %s90 = sphi 0, %s87
    %s91 = sphi 0, %s90
    %s107 = sphi 0, %s91
  $region4: #{conv_ae_forward.8} parent=0 // loop_header_branch
    %12 = sbr.rel (%p10) target = $region8
  $region5: #{conv_ae_forward.8} parent=0 // loop_body
    %s14 = ssub.s32 %s9, 1
    %s15 = ssub.s32 %s9, 2
    %s16 = sadd.s32 %s9, 1
    %s17 = ssub.s32 %s9, %s16
    %p18 = scmp.eq.s32.totalorder %s17, 0
    %s20 = sadd.s32 %s19, 1
    %s21 = scalar_select %p18, %s19, %s20
    %p24 = pneg %p18
    %p25 = scmp.eq.s32.totalorder %s9, 1
    %p26 = por %p24, %p25
    %p27 = scmp.ne.s32.totalorder %s19, %s22
    %p28 = scmp.eq.s32.totalorder %s9, 0
    %p29 = por %p27, %p28
    %p30 = scmp.ne.s32.totalorder %s19, %s22
    %p31 = scmp.eq.s32.totalorder %s14, 1
    %p32 = por %p30, %p31
    %p33 = scmp.ne.s32.totalorder %s22, %s23
    %p34 = scmp.eq.s32.totalorder %s14, 0
    %p35 = por %p33, %p34
    %p36 = scmp.ne.s32.totalorder %s22, %s23
    %p37 = scmp.eq.s32.totalorder %s15, 1
    %p38 = por %p36, %p37
    %p40 = scmp.ne.s32.totalorder %s23, %s39
    %p41 = scmp.eq.s32.totalorder %s15, 0
    %p42 = por %p40, %p41
    %s44 = sadd.s32 %s43, 1
    %p47 = scmp.eq.s32.totalorder %s9, 1
    %p48 = scmp.ne.s32.totalorder %s43, %s45
    %p49 = scmp.eq.s32.totalorder %s9, 0
    %p50 = por %p48, %p49
    %p51 = scmp.ne.s32.totalorder %s43, %s45
    %p52 = scmp.eq.s32.totalorder %s14, 1
    %p53 = por %p51, %p52
    %p54 = scmp.ne.s32.totalorder %s45, %s46
    %p55 = scmp.eq.s32.totalorder %s14, 0
    %p56 = por %p54, %p55
    %p57 = scmp.ne.s32.totalorder %s45, %s46
    %p58 = scmp.eq.s32.totalorder %s15, 1
    %p59 = por %p57, %p58
    %p61 = scmp.ne.s32.totalorder %s46, %s60
    %p62 = scmp.eq.s32.totalorder %s15, 0
    %p63 = por %p61, %p62
    %s65 = sadd.s32 %s64, 1
    %p68 = scmp.eq.s32.totalorder %s9, 1
    %p69 = scmp.ne.s32.totalorder %s64, %s66
    %p70 = scmp.eq.s32.totalorder %s9, 0
    %p71 = por %p69, %p70
    %p72 = scmp.ne.s32.totalorder %s64, %s66
    %p73 = scmp.eq.s32.totalorder %s14, 1
    %p74 = por %p72, %p73
    %p75 = scmp.ne.s32.totalorder %s66, %s67
    %p76 = scmp.eq.s32.totalorder %s14, 0
    %p77 = por %p75, %p76
    %p78 = scmp.ne.s32.totalorder %s66, %s67
    %p79 = scmp.eq.s32.totalorder %s15, 1
    %p80 = por %p78, %p79
    %p82 = scmp.ne.s32.totalorder %s67, %s81
    %p83 = scmp.eq.s32.totalorder %s15, 0
    %p84 = por %p82, %p83
    %s85 = ssub.s32 %s9, %s16
    %p86 = scmp.eq.s32.totalorder %s85, 0
    %s88 = sadd.s32 %s87, 1
    %s89 = scalar_select %p86, %s87, %s88
    %p92 = pneg %p86
    %p93 = scmp.eq.s32.totalorder %s9, 1
    %p94 = por %p92, %p93
    %p95 = scmp.ne.s32.totalorder %s87, %s90
    %p96 = scmp.eq.s32.totalorder %s9, 0
    %p97 = por %p95, %p96
    %p98 = scmp.ne.s32.totalorder %s87, %s90
    %p99 = scmp.eq.s32.totalorder %s14, 1
    %p100 = por %p98, %p99
    %p101 = scmp.ne.s32.totalorder %s90, %s91
    %p102 = scmp.eq.s32.totalorder %s14, 0
    %p103 = por %p101, %p102
    %p104 = scmp.ne.s32.totalorder %s90, %s91
    %p105 = scmp.eq.s32.totalorder %s15, 1
    %p106 = por %p104, %p105
    %p108 = scmp.ne.s32.totalorder %s91, %s107
    %p109 = scmp.eq.s32.totalorder %s15, 0
    %p110 = por %p108, %p109
    %p111 = scmp.le.s32.totalorder 1, %s9
    %p112 = scmp.lt.s32.totalorder %s9, 3
    %p113 = pnand %p111, %p112
    %p114 = pneg %p113
    // Predicated region
    $region9: #{conv_ae_forward.8} parent=5 // pred_check
      _
    $region10: #{conv_ae_forward.8} parent=5 // pred_check_branch
      %116 = sbr.rel (%p113) target = $region12
    $region11: #{conv_ae_forward.8} parent=5 // pred_region
      %s117 = ssub.s32 %s9, 1
      // Predicated region
      $region13: #{conv_ae_forward.8} parent=11 // pred_check
        %p118 = pneg %p56
      $region14: #{conv_ae_forward.8} parent=11 // pred_check_branch
        %120 = sbr.rel (%p118) target = $region16
      $region15: #{conv_ae_forward.8} parent=11 // pred_region
        _
      $region16: #{conv_ae_forward.8} parent=11 // pred_fallthru
        _
      // Predicated region
      $region17: #{conv_ae_forward.8} parent=11 // pred_check
        %p121 = pneg %p77
      $region18: #{conv_ae_forward.8} parent=11 // pred_check_branch
        %123 = sbr.rel (%p121) target = $region20
      $region19: #{conv_ae_forward.8} parent=11 // pred_region
        _
      $region20: #{conv_ae_forward.8} parent=11 // pred_fallthru
        _
    $region12: #{conv_ae_forward.8} parent=5 // pred_fallthru
      _
    %p124 = scmp.lt.s32.totalorder %s9, 2
    // Predicated region
    $region21: #{conv_ae_forward.8} parent=5 // pred_check
      %p125 = pneg %p124
    $region22: #{conv_ae_forward.8} parent=5 // pred_check_branch
      %127 = sbr.rel (%p125) target = $region24
    $region23: #{conv_ae_forward.8} parent=5 // pred_region
      // Predicated region
      $region25: #{conv_ae_forward.8} parent=23 // pred_check
        %p128 = pneg %p29
      $region26: #{conv_ae_forward.8} parent=23 // pred_check_branch
        %130 = sbr.rel (%p128) target = $region28
      $region27: #{conv_ae_forward.8} parent=23 // pred_region
        %s131 = smul.u32 96, %s9
        %p132 = scmp.lt.s32.totalorder %s131, 191
        %s133 = scalar_select %p132, %s131, 191
        %s134 = smul.addr %s133, 7
        %s135 = smul.addr %s134, 4
        %s136 = scalar_lea.vmem %s0, %s135
        %s137 = smul.u32 96, %s9
      $region28: #{conv_ae_forward.8} parent=23 // pred_fallthru
        _
    $region24: #{conv_ae_forward.8} parent=5 // pred_fallthru
      _
    %p138 = scmp.le.s32.totalorder 1, %s9
    %p139 = scmp.lt.s32.totalorder %s9, 3
    %p140 = pnand %p138, %p139
    %p141 = pneg %p140
    // Predicated region
    $region29: #{conv_ae_forward.8} parent=5 // pred_check
      _
    $region30: #{conv_ae_forward.8} parent=5 // pred_check_branch
      %143 = sbr.rel (%p140) target = $region32
    $region31: #{conv_ae_forward.8} parent=5 // pred_region
      %s144 = ssub.s32 %s9, 1
      %s145 = smul.u32 96, %s14
      %p146 = scmp.lt.s32.totalorder %s145, 191
      %s147 = scalar_select %p146, %s145, 191
      %s148 = smul.addr %s147, 7
      %s149 = smul.addr %s148, 4
      %s150 = scalar_lea.vmem %s0, %s149
      %p151 = pneg %p35
      %p152 = pneg %p32
      %p153 = pneg %p56
      %p154 = pneg %p53
      %p155 = pneg %p77
      %p156 = pneg %p74
      %p157 = pneg %p103
      %p158 = pneg %p100
      %s159 = smul.u32 96, %s14
      %p160 = scmp.lt.s32.totalorder %s159, 191
      %s161 = scalar_select %p160, %s159, 191
      %s162 = smul.addr %s161, 4
      %s163 = scalar_lea.vmem %s3, %s162
      %s164 = smul.u32 96, %s14
      %p165 = scmp.lt.s32.totalorder %s164, 191
      %s166 = scalar_select %p165, %s164, 191
      %s167 = smul.addr %s166, 7
      %s168 = smul.addr %s167, 4
      %s169 = scalar_lea.vmem %s0, %s168
      %s170 = smul.u32 96, %s14
      %s171 = smul.u32 96, %s14
      %p172 = scmp.lt.s32.totalorder %s171, 191
      %s173 = scalar_select %p172, %s171, 191
      %s174 = smul.addr %s173, 4
      %s175 = scalar_lea.vmem %s3, %s174
      %s176 = smul.u32 96, %s14
      %v178 = vld [vmem:[%s169] sm:$0xff]
      %v179 = vld [vmem:[%s169 + $0x8] sm:$0xff]
      %v180 = vld [vmem:[%s169 + $0x10] sm:$0xff]
      %v181 = vld [vmem:[%s169 + $0x18] sm:$0xf]
      %v182 = vld [vmem:[%s169 + $0x1c] sm:$0xff]
      %v183 = vld [vmem:[%s169 + $0x24] sm:$0xff]
      %v184 = vld [vmem:[%s169 + $0x2c] sm:$0xff]
      %v185 = vld [vmem:[%s169 + $0x34] sm:$0xf]
      %v186 = vld [vmem:[%s169 + $0x38] sm:$0xff]
      %v187 = vld [vmem:[%s169 + $0x40] sm:$0xff]
      %v188 = vld [vmem:[%s169 + $0x48] sm:$0xff]
      %v189 = vld [vmem:[%s169 + $0x50] sm:$0xf]
      %v190 = vld [vmem:[%s169 + $0x54] sm:$0xff]
      %v191 = vld [vmem:[%s169 + $0x5c] sm:$0xff]
      %v192 = vld [vmem:[%s169 + $0x64] sm:$0xff]
      %v193 = vld [vmem:[%s169 + $0x6c] sm:$0xf]
      %v194 = vld [vmem:[%s169 + $0x70] sm:$0xff]
      %v195 = vld [vmem:[%s169 + $0x78] sm:$0xff]
      %v196 = vld [vmem:[%s169 + $0x80] sm:$0xff]
      %v197 = vld [vmem:[%s169 + $0x88] sm:$0xf]
      %v198 = vld [vmem:[%s169 + $0x8c] sm:$0xff]
      %v199 = vld [vmem:[%s169 + $0x94] sm:$0xff]
      %v200 = vld [vmem:[%s169 + $0x9c] sm:$0xff]
      %v201 = vld [vmem:[%s169 + $0xa4] sm:$0xf]
      %v202 = vld [vmem:[%s169 + $0xa8] sm:$0xff]
      %v203 = vld [vmem:[%s169 + $0xb0] sm:$0xff]
      %v204 = vld [vmem:[%s169 + $0xb8] sm:$0xff]
      %v205 = vld [vmem:[%s169 + $0xc0] sm:$0xf]
      %v206 = vld [vmem:[%s169 + $0xc4] sm:$0xff]
      %v207 = vld [vmem:[%s169 + $0xcc] sm:$0xff]
      %v208 = vld [vmem:[%s169 + $0xd4] sm:$0xff]
      %v209 = vld [vmem:[%s169 + $0xdc] sm:$0xf]
      %v210 = vld [vmem:[%s169 + $0xe0] sm:$0xff]
      %v211 = vld [vmem:[%s169 + $0xe8] sm:$0xff]
      %v212 = vld [vmem:[%s169 + $0xf0] sm:$0xff]
      %v213 = vld [vmem:[%s169 + $0xf8] sm:$0xf]
      %v214 = vld [vmem:[%s169 + $0xfc] sm:$0xff]
      %v215 = vld [vmem:[%s169 + $0x104] sm:$0xff]
      %v216 = vld [vmem:[%s169 + $0x10c] sm:$0xff]
      %v217 = vld [vmem:[%s169 + $0x114] sm:$0xf]
      %v218 = vld [vmem:[%s169 + $0x118] sm:$0xff]
      %v219 = vld [vmem:[%s169 + $0x120] sm:$0xff]
      %v220 = vld [vmem:[%s169 + $0x128] sm:$0xff]
      %v221 = vld [vmem:[%s169 + $0x130] sm:$0xf]
      %v222 = vld [vmem:[%s169 + $0x134] sm:$0xff]
      %v223 = vld [vmem:[%s169 + $0x13c] sm:$0xff]
      %v224 = vld [vmem:[%s169 + $0x144] sm:$0xff]
      %v225 = vld [vmem:[%s169 + $0x14c] sm:$0xf]
      %v226 = vld [vmem:[%s169 + $0x150] sm:$0xff]
      %v227 = vld [vmem:[%s169 + $0x158] sm:$0xff]
      %v228 = vld [vmem:[%s169 + $0x160] sm:$0xff]
      %v229 = vld [vmem:[%s169 + $0x168] sm:$0xf]
      %v230 = vld [vmem:[%s169 + $0x16c] sm:$0xff]
      %v231 = vld [vmem:[%s169 + $0x174] sm:$0xff]
      %v232 = vld [vmem:[%s169 + $0x17c] sm:$0xff]
      %v233 = vld [vmem:[%s169 + $0x184] sm:$0xf]
      %v234 = vld [vmem:[%s169 + $0x188] sm:$0xff]
      %v235 = vld [vmem:[%s169 + $0x190] sm:$0xff]
      %v236 = vld [vmem:[%s169 + $0x198] sm:$0xff]
      %v237 = vld [vmem:[%s169 + $0x1a0] sm:$0xf]
      %v238 = vld [vmem:[%s169 + $0x1a4] sm:$0xff]
      %v239 = vld [vmem:[%s169 + $0x1ac] sm:$0xff]
      %v240 = vld [vmem:[%s169 + $0x1b4] sm:$0xff]
      %v241 = vld [vmem:[%s169 + $0x1bc] sm:$0xf]
      %v242 = vld [vmem:[%s169 + $0x1c0] sm:$0xff]
      %v243 = vld [vmem:[%s169 + $0x1c8] sm:$0xff]
      %v244 = vld [vmem:[%s169 + $0x1d0] sm:$0xff]
      %v245 = vld [vmem:[%s169 + $0x1d8] sm:$0xf]
      %v246 = vld [vmem:[%s169 + $0x1dc] sm:$0xff]
      %v247 = vld [vmem:[%s169 + $0x1e4] sm:$0xff]
      %v248 = vld [vmem:[%s169 + $0x1ec] sm:$0xff]
      %v249 = vld [vmem:[%s169 + $0x1f4] sm:$0xf]
      %v250 = vld [vmem:[%s169 + $0x1f8] sm:$0xff]
      %v251 = vld [vmem:[%s169 + $0x200] sm:$0xff]
      %v252 = vld [vmem:[%s169 + $0x208] sm:$0xff]
      %v253 = vld [vmem:[%s169 + $0x210] sm:$0xf]
      %v254 = vld [vmem:[%s169 + $0x214] sm:$0xff]
      %v255 = vld [vmem:[%s169 + $0x21c] sm:$0xff]
      %v256 = vld [vmem:[%s169 + $0x224] sm:$0xff]
      %v257 = vld [vmem:[%s169 + $0x22c] sm:$0xf]
      %v258 = vld [vmem:[%s169 + $0x230] sm:$0xff]
      %v259 = vld [vmem:[%s169 + $0x238] sm:$0xff]
      %v260 = vld [vmem:[%s169 + $0x240] sm:$0xff]
      %v261 = vld [vmem:[%s169 + $0x248] sm:$0xf]
      %v262 = vld [vmem:[%s169 + $0x24c] sm:$0xff]
      %v263 = vld [vmem:[%s169 + $0x254] sm:$0xff]
      %v264 = vld [vmem:[%s169 + $0x25c] sm:$0xff]
      %v265 = vld [vmem:[%s169 + $0x264] sm:$0xf]
      %v266 = vld [vmem:[%s169 + $0x268] sm:$0xff]
      %v267 = vld [vmem:[%s169 + $0x270] sm:$0xff]
      %v268 = vld [vmem:[%s169 + $0x278] sm:$0xff]
      %v269 = vld [vmem:[%s169 + $0x280] sm:$0xf]
      %v270 = vld [vmem:[%s169 + $0x284] sm:$0xff]
      %v271 = vld [vmem:[%s169 + $0x28c] sm:$0xff]
      %v272 = vld [vmem:[%s169 + $0x294] sm:$0xff]
      %v273 = vld [vmem:[%s169 + $0x29c] sm:$0xf]
      %v274 = vld [vmem:[%s169 + $0x2a0] sm:$0xff]
      %v275 = vld [vmem:[%s169 + $0x2a8] sm:$0xff]
      %v276 = vld [vmem:[%s169 + $0x2b0] sm:$0xff]
      %v277 = vld [vmem:[%s169 + $0x2b8] sm:$0xf]
      %v278 = vld [vmem:[%s169 + $0x2bc] sm:$0xff]
      %v279 = vld [vmem:[%s169 + $0x2c4] sm:$0xff]
      %v280 = vld [vmem:[%s169 + $0x2cc] sm:$0xff]
      %v281 = vld [vmem:[%s169 + $0x2d4] sm:$0xf]
      %v282 = vld [vmem:[%s169 + $0x2d8] sm:$0xff]
      %v283 = vld [vmem:[%s169 + $0x2e0] sm:$0xff]
      %v284 = vld [vmem:[%s169 + $0x2e8] sm:$0xff]
      %v285 = vld [vmem:[%s169 + $0x2f0] sm:$0xf]
      %v286 = vld [vmem:[%s169 + $0x2f4] sm:$0xff]
      %v287 = vld [vmem:[%s169 + $0x2fc] sm:$0xff]
      %v288 = vld [vmem:[%s169 + $0x304] sm:$0xff]
      %v289 = vld [vmem:[%s169 + $0x30c] sm:$0xf]
      %v290 = vld [vmem:[%s169 + $0x310] sm:$0xff]
      %v291 = vld [vmem:[%s169 + $0x318] sm:$0xff]
      %v292 = vld [vmem:[%s169 + $0x320] sm:$0xff]
      %v293 = vld [vmem:[%s169 + $0x328] sm:$0xf]
      %v294 = vld [vmem:[%s169 + $0x32c] sm:$0xff]
      %v295 = vld [vmem:[%s169 + $0x334] sm:$0xff]
      %v296 = vld [vmem:[%s169 + $0x33c] sm:$0xff]
      %v297 = vld [vmem:[%s169 + $0x344] sm:$0xf]
      %v298 = vld [vmem:[%s169 + $0x348] sm:$0xff]
      %v299 = vld [vmem:[%s169 + $0x350] sm:$0xff]
      %v300 = vld [vmem:[%s169 + $0x358] sm:$0xff]
      %v301 = vld [vmem:[%s169 + $0x360] sm:$0xf]
      %v302 = vld [vmem:[%s169 + $0x364] sm:$0xff]
      %v303 = vld [vmem:[%s169 + $0x36c] sm:$0xff]
      %v304 = vld [vmem:[%s169 + $0x374] sm:$0xff]
      %v305 = vld [vmem:[%s169 + $0x37c] sm:$0xf]
      %v306 = vld [vmem:[%s169 + $0x380] sm:$0xff]
      %v307 = vld [vmem:[%s169 + $0x388] sm:$0xff]
      %v308 = vld [vmem:[%s169 + $0x390] sm:$0xff]
      %v309 = vld [vmem:[%s169 + $0x398] sm:$0xf]
      %v310 = vld [vmem:[%s169 + $0x39c] sm:$0xff]
      %v311 = vld [vmem:[%s169 + $0x3a4] sm:$0xff]
      %v312 = vld [vmem:[%s169 + $0x3ac] sm:$0xff]
      %v313 = vld [vmem:[%s169 + $0x3b4] sm:$0xf]
      %v314 = vld [vmem:[%s169 + $0x3b8] sm:$0xff]
      %v315 = vld [vmem:[%s169 + $0x3c0] sm:$0xff]
      %v316 = vld [vmem:[%s169 + $0x3c8] sm:$0xff]
      %v317 = vld [vmem:[%s169 + $0x3d0] sm:$0xf]
      %v318 = vld [vmem:[%s169 + $0x3d4] sm:$0xff]
      %v319 = vld [vmem:[%s169 + $0x3dc] sm:$0xff]
      %v320 = vld [vmem:[%s169 + $0x3e4] sm:$0xff]
      %v321 = vld [vmem:[%s169 + $0x3ec] sm:$0xf]
      %v322 = vld [vmem:[%s169 + $0x3f0] sm:$0xff]
      %v323 = vld [vmem:[%s169 + $0x3f8] sm:$0xff]
      %v324 = vld [vmem:[%s169 + $0x400] sm:$0xff]
      %v325 = vld [vmem:[%s169 + $0x408] sm:$0xf]
      %v326 = vld [vmem:[%s169 + $0x40c] sm:$0xff]
      %v327 = vld [vmem:[%s169 + $0x414] sm:$0xff]
      %v328 = vld [vmem:[%s169 + $0x41c] sm:$0xff]
      %v329 = vld [vmem:[%s169 + $0x424] sm:$0xf]
      %v330 = vld [vmem:[%s169 + $0x428] sm:$0xff]
      %v331 = vld [vmem:[%s169 + $0x430] sm:$0xff]
      %v332 = vld [vmem:[%s169 + $0x438] sm:$0xff]
      %v333 = vld [vmem:[%s169 + $0x440] sm:$0xf]
      %v334 = vld [vmem:[%s169 + $0x444] sm:$0xff]
      %v335 = vld [vmem:[%s169 + $0x44c] sm:$0xff]
      %v336 = vld [vmem:[%s169 + $0x454] sm:$0xff]
      %v337 = vld [vmem:[%s169 + $0x45c] sm:$0xf]
      %v338 = vld [vmem:[%s169 + $0x460] sm:$0xff]
      %v339 = vld [vmem:[%s169 + $0x468] sm:$0xff]
      %v340 = vld [vmem:[%s169 + $0x470] sm:$0xff]
      %v341 = vld [vmem:[%s169 + $0x478] sm:$0xf]
      %v342 = vld [vmem:[%s169 + $0x47c] sm:$0xff]
      %v343 = vld [vmem:[%s169 + $0x484] sm:$0xff]
      %v344 = vld [vmem:[%s169 + $0x48c] sm:$0xff]
      %v345 = vld [vmem:[%s169 + $0x494] sm:$0xf]
      %v346 = vld [vmem:[%s169 + $0x498] sm:$0xff]
      %v347 = vld [vmem:[%s169 + $0x4a0] sm:$0xff]
      %v348 = vld [vmem:[%s169 + $0x4a8] sm:$0xff]
      %v349 = vld [vmem:[%s169 + $0x4b0] sm:$0xf]
      %v350 = vld [vmem:[%s169 + $0x4b4] sm:$0xff]
      %v351 = vld [vmem:[%s169 + $0x4bc] sm:$0xff]
      %v352 = vld [vmem:[%s169 + $0x4c4] sm:$0xff]
      %v353 = vld [vmem:[%s169 + $0x4cc] sm:$0xf]
      %v354 = vld [vmem:[%s169 + $0x4d0] sm:$0xff]
      %v355 = vld [vmem:[%s169 + $0x4d8] sm:$0xff]
      %v356 = vld [vmem:[%s169 + $0x4e0] sm:$0xff]
      %v357 = vld [vmem:[%s169 + $0x4e8] sm:$0xf]
      %v358 = vld [vmem:[%s169 + $0x4ec] sm:$0xff]
      %v359 = vld [vmem:[%s169 + $0x4f4] sm:$0xff]
      %v360 = vld [vmem:[%s169 + $0x4fc] sm:$0xff]
      %v361 = vld [vmem:[%s169 + $0x504] sm:$0xf]
      %v362 = vld [vmem:[%s169 + $0x508] sm:$0xff]
      %v363 = vld [vmem:[%s169 + $0x510] sm:$0xff]
      %v364 = vld [vmem:[%s169 + $0x518] sm:$0xff]
      %v365 = vld [vmem:[%s169 + $0x520] sm:$0xf]
      %v366 = vld [vmem:[%s169 + $0x524] sm:$0xff]
      %v367 = vld [vmem:[%s169 + $0x52c] sm:$0xff]
      %v368 = vld [vmem:[%s169 + $0x534] sm:$0xff]
      %v369 = vld [vmem:[%s169 + $0x53c] sm:$0xf]
      %v370 = vld [vmem:[%s169 + $0x540] sm:$0xff]
      %v371 = vld [vmem:[%s169 + $0x548] sm:$0xff]
      %v372 = vld [vmem:[%s169 + $0x550] sm:$0xff]
      %v373 = vld [vmem:[%s169 + $0x558] sm:$0xf]
      %v374 = vld [vmem:[%s169 + $0x55c] sm:$0xff]
      %v375 = vld [vmem:[%s169 + $0x564] sm:$0xff]
      %v376 = vld [vmem:[%s169 + $0x56c] sm:$0xff]
      %v377 = vld [vmem:[%s169 + $0x574] sm:$0xf]
      %v378 = vld [vmem:[%s169 + $0x578] sm:$0xff]
      %v379 = vld [vmem:[%s169 + $0x580] sm:$0xff]
      %v380 = vld [vmem:[%s169 + $0x588] sm:$0xff]
      %v381 = vld [vmem:[%s169 + $0x590] sm:$0xf]
      %v382 = vld [vmem:[%s169 + $0x594] sm:$0xff]
      %v383 = vld [vmem:[%s169 + $0x59c] sm:$0xff]
      %v384 = vld [vmem:[%s169 + $0x5a4] sm:$0xff]
      %v385 = vld [vmem:[%s169 + $0x5ac] sm:$0xf]
      %v386 = vld [vmem:[%s169 + $0x5b0] sm:$0xff]
      %v387 = vld [vmem:[%s169 + $0x5b8] sm:$0xff]
      %v388 = vld [vmem:[%s169 + $0x5c0] sm:$0xff]
      %v389 = vld [vmem:[%s169 + $0x5c8] sm:$0xf]
      %v390 = vld [vmem:[%s169 + $0x5cc] sm:$0xff]
      %v391 = vld [vmem:[%s169 + $0x5d4] sm:$0xff]
      %v392 = vld [vmem:[%s169 + $0x5dc] sm:$0xff]
      %v393 = vld [vmem:[%s169 + $0x5e4] sm:$0xf]
      %v394 = vld [vmem:[%s169 + $0x5e8] sm:$0xff]
      %v395 = vld [vmem:[%s169 + $0x5f0] sm:$0xff]
      %v396 = vld [vmem:[%s169 + $0x5f8] sm:$0xff]
      %v397 = vld [vmem:[%s169 + $0x600] sm:$0xf]
      %v398 = vld [vmem:[%s169 + $0x604] sm:$0xff]
      %v399 = vld [vmem:[%s169 + $0x60c] sm:$0xff]
      %v400 = vld [vmem:[%s169 + $0x614] sm:$0xff]
      %v401 = vld [vmem:[%s169 + $0x61c] sm:$0xf]
      %v402 = vld [vmem:[%s169 + $0x620] sm:$0xff]
      %v403 = vld [vmem:[%s169 + $0x628] sm:$0xff]
      %v404 = vld [vmem:[%s169 + $0x630] sm:$0xff]
      %v405 = vld [vmem:[%s169 + $0x638] sm:$0xf]
      %v406 = vld [vmem:[%s169 + $0x63c] sm:$0xff]
      %v407 = vld [vmem:[%s169 + $0x644] sm:$0xff]
      %v408 = vld [vmem:[%s169 + $0x64c] sm:$0xff]
      %v409 = vld [vmem:[%s169 + $0x654] sm:$0xf]
      %v410 = vld [vmem:[%s169 + $0x658] sm:$0xff]
      %v411 = vld [vmem:[%s169 + $0x660] sm:$0xff]
      %v412 = vld [vmem:[%s169 + $0x668] sm:$0xff]
      %v413 = vld [vmem:[%s169 + $0x670] sm:$0xf]
      %v414 = vld [vmem:[%s169 + $0x674] sm:$0xff]
      %v415 = vld [vmem:[%s169 + $0x67c] sm:$0xff]
      %v416 = vld [vmem:[%s169 + $0x684] sm:$0xff]
      %v417 = vld [vmem:[%s169 + $0x68c] sm:$0xf]
      %v418 = vld [vmem:[%s169 + $0x690] sm:$0xff]
      %v419 = vld [vmem:[%s169 + $0x698] sm:$0xff]
      %v420 = vld [vmem:[%s169 + $0x6a0] sm:$0xff]
      %v421 = vld [vmem:[%s169 + $0x6a8] sm:$0xf]
      %v422 = vld [vmem:[%s169 + $0x6ac] sm:$0xff]
      %v423 = vld [vmem:[%s169 + $0x6b4] sm:$0xff]
      %v424 = vld [vmem:[%s169 + $0x6bc] sm:$0xff]
      %v425 = vld [vmem:[%s169 + $0x6c4] sm:$0xf]
      %v426 = vld [vmem:[%s169 + $0x6c8] sm:$0xff]
      %v427 = vld [vmem:[%s169 + $0x6d0] sm:$0xff]
      %v428 = vld [vmem:[%s169 + $0x6d8] sm:$0xff]
      %v429 = vld [vmem:[%s169 + $0x6e0] sm:$0xf]
      %v430 = vld [vmem:[%s169 + $0x6e4] sm:$0xff]
      %v431 = vld [vmem:[%s169 + $0x6ec] sm:$0xff]
      %v432 = vld [vmem:[%s169 + $0x6f4] sm:$0xff]
      %v433 = vld [vmem:[%s169 + $0x6fc] sm:$0xf]
      %v434 = vld [vmem:[%s169 + $0x700] sm:$0xff]
      %v435 = vld [vmem:[%s169 + $0x708] sm:$0xff]
      %v436 = vld [vmem:[%s169 + $0x710] sm:$0xff]
      %v437 = vld [vmem:[%s169 + $0x718] sm:$0xf]
      %v438 = vld [vmem:[%s169 + $0x71c] sm:$0xff]
      %v439 = vld [vmem:[%s169 + $0x724] sm:$0xff]
      %v440 = vld [vmem:[%s169 + $0x72c] sm:$0xff]
      %v441 = vld [vmem:[%s169 + $0x734] sm:$0xf]
      %v442 = vld [vmem:[%s169 + $0x738] sm:$0xff]
      %v443 = vld [vmem:[%s169 + $0x740] sm:$0xff]
      %v444 = vld [vmem:[%s169 + $0x748] sm:$0xff]
      %v445 = vld [vmem:[%s169 + $0x750] sm:$0xf]
      %v446 = vld [vmem:[%s169 + $0x754] sm:$0xff]
      %v447 = vld [vmem:[%s169 + $0x75c] sm:$0xff]
      %v448 = vld [vmem:[%s169 + $0x764] sm:$0xff]
      %v449 = vld [vmem:[%s169 + $0x76c] sm:$0xf]
      %v450 = vld [vmem:[%s169 + $0x770] sm:$0xff]
      %v451 = vld [vmem:[%s169 + $0x778] sm:$0xff]
      %v452 = vld [vmem:[%s169 + $0x780] sm:$0xff]
      %v453 = vld [vmem:[%s169 + $0x788] sm:$0xf]
      %v454 = vld [vmem:[%s169 + $0x78c] sm:$0xff]
      %v455 = vld [vmem:[%s169 + $0x794] sm:$0xff]
      %v456 = vld [vmem:[%s169 + $0x79c] sm:$0xff]
      %v457 = vld [vmem:[%s169 + $0x7a4] sm:$0xf]
      %v458 = vld [vmem:[%s169 + $0x7a8] sm:$0xff]
      %v459 = vld [vmem:[%s169 + $0x7b0] sm:$0xff]
      %v460 = vld [vmem:[%s169 + $0x7b8] sm:$0xff]
      %v461 = vld [vmem:[%s169 + $0x7c0] sm:$0xf]
      %v462 = vld [vmem:[%s169 + $0x7c4] sm:$0xff]
      %v463 = vld [vmem:[%s169 + $0x7cc] sm:$0xff]
      %v464 = vld [vmem:[%s169 + $0x7d4] sm:$0xff]
      %v465 = vld [vmem:[%s169 + $0x7dc] sm:$0xf]
      %v466 = vld [vmem:[%s169 + $0x7e0] sm:$0xff]
      %v467 = vld [vmem:[%s169 + $0x7e8] sm:$0xff]
      %v468 = vld [vmem:[%s169 + $0x7f0] sm:$0xff]
      %v469 = vld [vmem:[%s169 + $0x7f8] sm:$0xf]
      %v470 = vld [vmem:[%s169 + $0x7fc] sm:$0xff]
      %v471 = vld [vmem:[%s169 + $0x804] sm:$0xff]
      %v472 = vld [vmem:[%s169 + $0x80c] sm:$0xff]
      %v473 = vld [vmem:[%s169 + $0x814] sm:$0xf]
      %v474 = vld [vmem:[%s169 + $0x818] sm:$0xff]
      %v475 = vld [vmem:[%s169 + $0x820] sm:$0xff]
      %v476 = vld [vmem:[%s169 + $0x828] sm:$0xff]
      %v477 = vld [vmem:[%s169 + $0x830] sm:$0xf]
      %v478 = vld [vmem:[%s169 + $0x834] sm:$0xff]
      %v479 = vld [vmem:[%s169 + $0x83c] sm:$0xff]
      %v480 = vld [vmem:[%s169 + $0x844] sm:$0xff]
      %v481 = vld [vmem:[%s169 + $0x84c] sm:$0xf]
      %v482 = vld [vmem:[%s169 + $0x850] sm:$0xff]
      %v483 = vld [vmem:[%s169 + $0x858] sm:$0xff]
      %v484 = vld [vmem:[%s169 + $0x860] sm:$0xff]
      %v485 = vld [vmem:[%s169 + $0x868] sm:$0xf]
      %v486 = vld [vmem:[%s169 + $0x86c] sm:$0xff]
      %v487 = vld [vmem:[%s169 + $0x874] sm:$0xff]
      %v488 = vld [vmem:[%s169 + $0x87c] sm:$0xff]
      %v489 = vld [vmem:[%s169 + $0x884] sm:$0xf]
      %v490 = vld [vmem:[%s169 + $0x888] sm:$0xff]
      %v491 = vld [vmem:[%s169 + $0x890] sm:$0xff]
      %v492 = vld [vmem:[%s169 + $0x898] sm:$0xff]
      %v493 = vld [vmem:[%s169 + $0x8a0] sm:$0xf]
      %v494 = vld [vmem:[%s169 + $0x8a4] sm:$0xff]
      %v495 = vld [vmem:[%s169 + $0x8ac] sm:$0xff]
      %v496 = vld [vmem:[%s169 + $0x8b4] sm:$0xff]
      %v497 = vld [vmem:[%s169 + $0x8bc] sm:$0xf]
      %v498 = vld [vmem:[%s169 + $0x8c0] sm:$0xff]
      %v499 = vld [vmem:[%s169 + $0x8c8] sm:$0xff]
      %v500 = vld [vmem:[%s169 + $0x8d0] sm:$0xff]
      %v501 = vld [vmem:[%s169 + $0x8d8] sm:$0xf]
      %v502 = vld [vmem:[%s169 + $0x8dc] sm:$0xff]
      %v503 = vld [vmem:[%s169 + $0x8e4] sm:$0xff]
      %v504 = vld [vmem:[%s169 + $0x8ec] sm:$0xff]
      %v505 = vld [vmem:[%s169 + $0x8f4] sm:$0xf]
      %v506 = vld [vmem:[%s169 + $0x8f8] sm:$0xff]
      %v507 = vld [vmem:[%s169 + $0x900] sm:$0xff]
      %v508 = vld [vmem:[%s169 + $0x908] sm:$0xff]
      %v509 = vld [vmem:[%s169 + $0x910] sm:$0xf]
      %v510 = vld [vmem:[%s169 + $0x914] sm:$0xff]
      %v511 = vld [vmem:[%s169 + $0x91c] sm:$0xff]
      %v512 = vld [vmem:[%s169 + $0x924] sm:$0xff]
      %v513 = vld [vmem:[%s169 + $0x92c] sm:$0xf]
      %v514 = vld [vmem:[%s169 + $0x930] sm:$0xff]
      %v515 = vld [vmem:[%s169 + $0x938] sm:$0xff]
      %v516 = vld [vmem:[%s169 + $0x940] sm:$0xff]
      %v517 = vld [vmem:[%s169 + $0x948] sm:$0xf]
      %v518 = vld [vmem:[%s169 + $0x94c] sm:$0xff]
      %v519 = vld [vmem:[%s169 + $0x954] sm:$0xff]
      %v520 = vld [vmem:[%s169 + $0x95c] sm:$0xff]
      %v521 = vld [vmem:[%s169 + $0x964] sm:$0xf]
      %v522 = vld [vmem:[%s169 + $0x968] sm:$0xff]
      %v523 = vld [vmem:[%s169 + $0x970] sm:$0xff]
      %v524 = vld [vmem:[%s169 + $0x978] sm:$0xff]
      %v525 = vld [vmem:[%s169 + $0x980] sm:$0xf]
      %v526 = vld [vmem:[%s169 + $0x984] sm:$0xff]
      %v527 = vld [vmem:[%s169 + $0x98c] sm:$0xff]
      %v528 = vld [vmem:[%s169 + $0x994] sm:$0xff]
      %v529 = vld [vmem:[%s169 + $0x99c] sm:$0xf]
      %v530 = vld [vmem:[%s169 + $0x9a0] sm:$0xff]
      %v531 = vld [vmem:[%s169 + $0x9a8] sm:$0xff]
      %v532 = vld [vmem:[%s169 + $0x9b0] sm:$0xff]
      %v533 = vld [vmem:[%s169 + $0x9b8] sm:$0xf]
      %v534 = vld [vmem:[%s169 + $0x9bc] sm:$0xff]
      %v535 = vld [vmem:[%s169 + $0x9c4] sm:$0xff]
      %v536 = vld [vmem:[%s169 + $0x9cc] sm:$0xff]
      %v537 = vld [vmem:[%s169 + $0x9d4] sm:$0xf]
      %v538 = vld [vmem:[%s169 + $0x9d8] sm:$0xff]
      %v539 = vld [vmem:[%s169 + $0x9e0] sm:$0xff]
      %v540 = vld [vmem:[%s169 + $0x9e8] sm:$0xff]
      %v541 = vld [vmem:[%s169 + $0x9f0] sm:$0xf]
      %v542 = vld [vmem:[%s169 + $0x9f4] sm:$0xff]
      %v543 = vld [vmem:[%s169 + $0x9fc] sm:$0xff]
      %v544 = vld [vmem:[%s169 + $0xa04] sm:$0xff]
      %v545 = vld [vmem:[%s169 + $0xa0c] sm:$0xf]
      %v546 = vld [vmem:[%s169 + $0xa10] sm:$0xff]
      %v547 = vld [vmem:[%s169 + $0xa18] sm:$0xff]
      %v548 = vld [vmem:[%s169 + $0xa20] sm:$0xff]
      %v549 = vld [vmem:[%s169 + $0xa28] sm:$0xf]
      %v550 = vld [vmem:[%s169 + $0xa2c] sm:$0xff]
      %v551 = vld [vmem:[%s169 + $0xa34] sm:$0xff]
      %v552 = vld [vmem:[%s169 + $0xa3c] sm:$0xff]
      %v553 = vld [vmem:[%s169 + $0xa44] sm:$0xf]
      %v554 = vld [vmem:[%s169 + $0xa48] sm:$0xff]
      %v555 = vld [vmem:[%s169 + $0xa50] sm:$0xff]
      %v556 = vld [vmem:[%s169 + $0xa58] sm:$0xff]
      %v557 = vld [vmem:[%s169 + $0xa60] sm:$0xf]
      %v558 = vld [vmem:[%s169 + $0xa64] sm:$0xff]
      %v559 = vld [vmem:[%s169 + $0xa6c] sm:$0xff]
      %v560 = vld [vmem:[%s169 + $0xa74] sm:$0xff]
      %v561 = vld [vmem:[%s169 + $0xa7c] sm:$0xf]
      %v562 = vld [vmem:[%s1] sm:$0xf]
      %v563 = vld [vmem:[%s1 + $0x4] sm:$0xf]
      %v564 = vld [vmem:[%s1 + $0x8] sm:$0xf]
      %v565 = vld [vmem:[%s1 + $0xc] sm:$0xf]
      %v566 = vld [vmem:[%s1 + $0x10] sm:$0xf]
      %v567 = vld [vmem:[%s1 + $0x14] sm:$0xf]
      %v568 = vld [vmem:[%s1 + $0x18] sm:$0xf]
      %v569 = vld [vmem:[%s1 + $0x1c] sm:$0xf]
      %v570 = vld [vmem:[%s1 + $0x20] sm:$0xf]
      %v571 = vld [vmem:[%s1 + $0x24] sm:$0xf]
      %v572 = vld [vmem:[%s1 + $0x28] sm:$0xf]
      %v573 = vld [vmem:[%s1 + $0x2c] sm:$0xf]
      %v574 = vld [vmem:[%s1 + $0x30] sm:$0xf]
      %v575 = vld [vmem:[%s1 + $0x34] sm:$0xf]
      %v576 = vld [vmem:[%s1 + $0x38] sm:$0xf]
      %v577 = vld [vmem:[%s1 + $0x3c] sm:$0xf]
      %v578 = vld [vmem:[%s1 + $0x40] sm:$0xf]
      %v579 = vld [vmem:[%s1 + $0x44] sm:$0xf]
      %v580 = vld [vmem:[%s1 + $0x48] sm:$0xf]
      %v581 = vld [vmem:[%s1 + $0x4c] sm:$0xf]
      %v582 = vld [vmem:[%s1 + $0x50] sm:$0xf]
      %v583 = vld [vmem:[%s1 + $0x54] sm:$0xf]
      %v584 = vld [vmem:[%s1 + $0x58] sm:$0xf]
      %v585 = vld [vmem:[%s1 + $0x5c] sm:$0xf]
      %v586 = vld [vmem:[%s1 + $0x60] sm:$0xf]
      %v587 = vld [vmem:[%s1 + $0x64] sm:$0xf]
      %v588 = vld [vmem:[%s1 + $0x68] sm:$0xf]
      %v589 = vld [vmem:[%s1 + $0x6c] sm:$0xf]
      %v590 = vld [vmem:[%s1 + $0x70] sm:$0xf]
      %v591 = vld [vmem:[%s1 + $0x74] sm:$0xf]
      %v592 = vld [vmem:[%s1 + $0x78] sm:$0xf]
      %v593 = vld [vmem:[%s1 + $0x7c] sm:$0xf]
      %v594 = vld [vmem:[%s1 + $0x80] sm:$0xf]
      %v595 = vld [vmem:[%s1 + $0x84] sm:$0xf]
      %v596 = vld [vmem:[%s1 + $0x88] sm:$0xf]
      %v597 = vld [vmem:[%s1 + $0x8c] sm:$0xf]
      %v598 = vld [vmem:[%s1 + $0x90] sm:$0xf]
      %v599 = vld [vmem:[%s1 + $0x94] sm:$0xf]
      %v600 = vld [vmem:[%s1 + $0x98] sm:$0xf]
      %v601 = vld [vmem:[%s1 + $0x9c] sm:$0xf]
      %v602 = vld [vmem:[%s1 + $0xa0] sm:$0xf]
      %v603 = vld [vmem:[%s1 + $0xa4] sm:$0xf]
      %v604 = vld [vmem:[%s1 + $0xa8] sm:$0xf]
      %v605 = vld [vmem:[%s1 + $0xac] sm:$0xf]
      %v606 = vld [vmem:[%s1 + $0xb0] sm:$0xf]
      %v607 = vld [vmem:[%s1 + $0xb4] sm:$0xf]
      %v608 = vld [vmem:[%s1 + $0xb8] sm:$0xf]
      %v609 = vld [vmem:[%s1 + $0xbc] sm:$0xf]
      %v610 = vld [vmem:[%s1 + $0xc0] sm:$0xf]
      %v611 = vld [vmem:[%s1 + $0xc4] sm:$0xf]
      %v612 = vld [vmem:[%s1 + $0xc8] sm:$0xf]
      %v613 = vld [vmem:[%s1 + $0xcc] sm:$0xf]
      %v614 = vld [vmem:[%s1 + $0xd0] sm:$0xf]
      %v615 = vld [vmem:[%s1 + $0xd4] sm:$0xf]
      %v616 = vld [vmem:[%s1 + $0xd8] sm:$0xf]
      %v617 = vld [vmem:[%s1 + $0xdc] sm:$0xf]
      %v618 = vld [vmem:[%s1 + $0xe0] sm:$0xf]
      %v619 = vld [vmem:[%s1 + $0xe4] sm:$0xf]
      %v620 = vld [vmem:[%s1 + $0xe8] sm:$0xf]
      %v621 = vld [vmem:[%s1 + $0xec] sm:$0xf]
      %v622 = vld [vmem:[%s1 + $0xf0] sm:$0xf]
      %v623 = vld [vmem:[%s1 + $0xf4] sm:$0xf]
      %v624 = vld [vmem:[%s1 + $0xf8] sm:$0xf]
      %v625 = vld [vmem:[%s1 + $0xfc] sm:$0xf]
      %v626 = vld [vmem:[%s1 + $0x100] sm:$0xf]
      %v627 = vld [vmem:[%s1 + $0x104] sm:$0xf]
      %v628 = vld [vmem:[%s1 + $0x108] sm:$0xf]
      %v629 = vld [vmem:[%s1 + $0x10c] sm:$0xf]
      %v630 = vld [vmem:[%s1 + $0x110] sm:$0xf]
      %v631 = vld [vmem:[%s1 + $0x114] sm:$0xf]
      %v632 = vld [vmem:[%s1 + $0x118] sm:$0xf]
      %v633 = vld [vmem:[%s1 + $0x11c] sm:$0xf]
      %v634 = vld [vmem:[%s1 + $0x120] sm:$0xf]
      %v635 = vld [vmem:[%s1 + $0x124] sm:$0xf]
      %v636 = vld [vmem:[%s1 + $0x128] sm:$0xf]
      %v637 = vld [vmem:[%s1 + $0x12c] sm:$0xf]
      %v638 = vld [vmem:[%s1 + $0x130] sm:$0xf]
      %v639 = vld [vmem:[%s1 + $0x134] sm:$0xf]
      %v640 = vld [vmem:[%s1 + $0x138] sm:$0xf]
      %v641 = vld [vmem:[%s1 + $0x13c] sm:$0xf]
      %v642 = vld [vmem:[%s1 + $0x140] sm:$0xf]
      %v643 = vld [vmem:[%s1 + $0x144] sm:$0xf]
      %v644 = vld [vmem:[%s1 + $0x148] sm:$0xf]
      %v645 = vld [vmem:[%s1 + $0x14c] sm:$0xf]
      %v646 = vld [vmem:[%s1 + $0x150] sm:$0xf]
      %v647 = vld [vmem:[%s1 + $0x154] sm:$0xf]
      %v648 = vld [vmem:[%s1 + $0x158] sm:$0xf]
      %v649 = vld [vmem:[%s1 + $0x15c] sm:$0xf]
      %v650 = vld [vmem:[%s1 + $0x160] sm:$0xf]
      %v651 = vld [vmem:[%s1 + $0x164] sm:$0xf]
      %v652 = vld [vmem:[%s1 + $0x168] sm:$0xf]
      %v653 = vld [vmem:[%s1 + $0x16c] sm:$0xf]
      %v654 = vld [vmem:[%s1 + $0x170] sm:$0xf]
      %v655 = vld [vmem:[%s1 + $0x174] sm:$0xf]
      %v656 = vld [vmem:[%s1 + $0x178] sm:$0xf]
      %v657 = vld [vmem:[%s1 + $0x17c] sm:$0xf]
      %v658 = vld [vmem:[%s1 + $0x180] sm:$0xf]
      %v659 = vld [vmem:[%s1 + $0x184] sm:$0xf]
      %v660 = vld [vmem:[%s1 + $0x188] sm:$0xf]
      %v661 = vld [vmem:[%s1 + $0x18c] sm:$0xf]
      %v662 = vld [vmem:[%s1 + $0x190] sm:$0xf]
      %v663 = vld [vmem:[%s1 + $0x194] sm:$0xf]
      %v664 = vld [vmem:[%s1 + $0x198] sm:$0xf]
      %v665 = vld [vmem:[%s1 + $0x19c] sm:$0xf]
      %v666 = vld [vmem:[%s1 + $0x1a0] sm:$0xf]
      %v667 = vld [vmem:[%s1 + $0x1a4] sm:$0xf]
      %v668 = vld [vmem:[%s1 + $0x1a8] sm:$0xf]
      %v669 = vld [vmem:[%s1 + $0x1ac] sm:$0xf]
      %v670 = vld [vmem:[%s2] sm:$0x1]
      %v672 = vlaneseq
      %v673 = vshrl.u32 %v672, 7
      %v674 = vsub.s32 0, %v673
      %v675 = vrot.slane %v670, %v674
      %v1061 = vunpack.c.l.b16 %v178
      %v1062 = vunpack.c.h.b16 %v178
      %v1063 = vunpack.c.l.b16 %v179
      %v1064 = vunpack.c.h.b16 %v179
      %v1065 = vunpack.c.l.b16 %v180
      %v1066 = vunpack.c.h.b16 %v180
      %v1067 = vunpack.c.l.b16 %v181
      %v1068 = vunpack.c.l.b16 %v182
      %v1069 = vunpack.c.h.b16 %v182
      %v1070 = vunpack.c.l.b16 %v183
      %v1071 = vunpack.c.h.b16 %v183
      %v1072 = vunpack.c.l.b16 %v184
      %v1073 = vunpack.c.h.b16 %v184
      %v1074 = vunpack.c.l.b16 %v185
      %v1075 = vunpack.c.l.b16 %v186
      %v1076 = vunpack.c.h.b16 %v186
      %v1077 = vunpack.c.l.b16 %v187
      %v1078 = vunpack.c.h.b16 %v187
      %v1079 = vunpack.c.l.b16 %v188
      %v1080 = vunpack.c.h.b16 %v188
      %v1081 = vunpack.c.l.b16 %v189
      %v1082 = vunpack.c.l.b16 %v190
      %v1083 = vunpack.c.h.b16 %v190
      %v1084 = vunpack.c.l.b16 %v191
      %v1085 = vunpack.c.h.b16 %v191
      %v1086 = vunpack.c.l.b16 %v192
      %v1087 = vunpack.c.h.b16 %v192
      %v1088 = vunpack.c.l.b16 %v193
      %v1089 = vunpack.c.l.b16 %v194
      %v1090 = vunpack.c.h.b16 %v194
      %v1091 = vunpack.c.l.b16 %v195
      %v1092 = vunpack.c.h.b16 %v195
      %v1093 = vunpack.c.l.b16 %v196
      %v1094 = vunpack.c.h.b16 %v196
      %v1095 = vunpack.c.l.b16 %v197
      %v1096 = vunpack.c.l.b16 %v198
      %v1097 = vunpack.c.h.b16 %v198
      %v1098 = vunpack.c.l.b16 %v199
      %v1099 = vunpack.c.h.b16 %v199
      %v1100 = vunpack.c.l.b16 %v200
      %v1101 = vunpack.c.h.b16 %v200
      %v1102 = vunpack.c.l.b16 %v201
      %v1103 = vunpack.c.l.b16 %v202
      %v1104 = vunpack.c.h.b16 %v202
      %v1105 = vunpack.c.l.b16 %v203
      %v1106 = vunpack.c.h.b16 %v203
      %v1107 = vunpack.c.l.b16 %v204
      %v1108 = vunpack.c.h.b16 %v204
      %v1109 = vunpack.c.l.b16 %v205
      %v1110 = vunpack.c.l.b16 %v206
      %v1111 = vunpack.c.h.b16 %v206
      %v1112 = vunpack.c.l.b16 %v207
      %v1113 = vunpack.c.h.b16 %v207
      %v1114 = vunpack.c.l.b16 %v208
      %v1115 = vunpack.c.h.b16 %v208
      %v1116 = vunpack.c.l.b16 %v209
      %v1117 = vunpack.c.l.b16 %v210
      %v1118 = vunpack.c.h.b16 %v210
      %v1119 = vunpack.c.l.b16 %v211
      %v1120 = vunpack.c.h.b16 %v211
      %v1121 = vunpack.c.l.b16 %v212
      %v1122 = vunpack.c.h.b16 %v212
      %v1123 = vunpack.c.l.b16 %v213
      %v1124 = vunpack.c.l.b16 %v214
      %v1125 = vunpack.c.h.b16 %v214
      %v1126 = vunpack.c.l.b16 %v215
      %v1127 = vunpack.c.h.b16 %v215
      %v1128 = vunpack.c.l.b16 %v216
      %v1129 = vunpack.c.h.b16 %v216
      %v1130 = vunpack.c.l.b16 %v217
      %v1131 = vunpack.c.l.b16 %v218
      %v1132 = vunpack.c.h.b16 %v218
      %v1133 = vunpack.c.l.b16 %v219
      %v1134 = vunpack.c.h.b16 %v219
      %v1135 = vunpack.c.l.b16 %v220
      %v1136 = vunpack.c.h.b16 %v220
      %v1137 = vunpack.c.l.b16 %v221
      %v1138 = vunpack.c.l.b16 %v222
      %v1139 = vunpack.c.h.b16 %v222
      %v1140 = vunpack.c.l.b16 %v223
      %v1141 = vunpack.c.h.b16 %v223
      %v1142 = vunpack.c.l.b16 %v224
      %v1143 = vunpack.c.h.b16 %v224
      %v1144 = vunpack.c.l.b16 %v225
      %v1145 = vunpack.c.l.b16 %v226
      %v1146 = vunpack.c.h.b16 %v226
      %v1147 = vunpack.c.l.b16 %v227
      %v1148 = vunpack.c.h.b16 %v227
      %v1149 = vunpack.c.l.b16 %v228
      %v1150 = vunpack.c.h.b16 %v228
      %v1151 = vunpack.c.l.b16 %v229
      %v1152 = vunpack.c.l.b16 %v230
      %v1153 = vunpack.c.h.b16 %v230
      %v1154 = vunpack.c.l.b16 %v231
      %v1155 = vunpack.c.h.b16 %v231
      %v1156 = vunpack.c.l.b16 %v232
      %v1157 = vunpack.c.h.b16 %v232
      %v1158 = vunpack.c.l.b16 %v233
      %v1159 = vunpack.c.l.b16 %v234
      %v1160 = vunpack.c.h.b16 %v234
      %v1161 = vunpack.c.l.b16 %v235
      %v1162 = vunpack.c.h.b16 %v235
      %v1163 = vunpack.c.l.b16 %v236
      %v1164 = vunpack.c.h.b16 %v236
      %v1165 = vunpack.c.l.b16 %v237
      %v1166 = vunpack.c.l.b16 %v238
      %v1167 = vunpack.c.h.b16 %v238
      %v1168 = vunpack.c.l.b16 %v239
      %v1169 = vunpack.c.h.b16 %v239
      %v1170 = vunpack.c.l.b16 %v240
      %v1171 = vunpack.c.h.b16 %v240
      %v1172 = vunpack.c.l.b16 %v241
      %v1173 = vunpack.c.l.b16 %v242
      %v1174 = vunpack.c.h.b16 %v242
      %v1175 = vunpack.c.l.b16 %v243
      %v1176 = vunpack.c.h.b16 %v243
      %v1177 = vunpack.c.l.b16 %v244
      %v1178 = vunpack.c.h.b16 %v244
      %v1179 = vunpack.c.l.b16 %v245
      %v1180 = vunpack.c.l.b16 %v246
      %v1181 = vunpack.c.h.b16 %v246
      %v1182 = vunpack.c.l.b16 %v247
      %v1183 = vunpack.c.h.b16 %v247
      %v1184 = vunpack.c.l.b16 %v248
      %v1185 = vunpack.c.h.b16 %v248
      %v1186 = vunpack.c.l.b16 %v249
      %v1187 = vunpack.c.l.b16 %v250
      %v1188 = vunpack.c.h.b16 %v250
      %v1189 = vunpack.c.l.b16 %v251
      %v1190 = vunpack.c.h.b16 %v251
      %v1191 = vunpack.c.l.b16 %v252
      %v1192 = vunpack.c.h.b16 %v252
      %v1193 = vunpack.c.l.b16 %v253
      %v1194 = vunpack.c.l.b16 %v254
      %v1195 = vunpack.c.h.b16 %v254
      %v1196 = vunpack.c.l.b16 %v255
      %v1197 = vunpack.c.h.b16 %v255
      %v1198 = vunpack.c.l.b16 %v256
      %v1199 = vunpack.c.h.b16 %v256
      %v1200 = vunpack.c.l.b16 %v257
      %v1201 = vunpack.c.l.b16 %v258
      %v1202 = vunpack.c.h.b16 %v258
      %v1203 = vunpack.c.l.b16 %v259
      %v1204 = vunpack.c.h.b16 %v259
      %v1205 = vunpack.c.l.b16 %v260
      %v1206 = vunpack.c.h.b16 %v260
      %v1207 = vunpack.c.l.b16 %v261
      %v1208 = vunpack.c.l.b16 %v262
      %v1209 = vunpack.c.h.b16 %v262
      %v1210 = vunpack.c.l.b16 %v263
      %v1211 = vunpack.c.h.b16 %v263
      %v1212 = vunpack.c.l.b16 %v264
      %v1213 = vunpack.c.h.b16 %v264
      %v1214 = vunpack.c.l.b16 %v265
      %v1215 = vunpack.c.l.b16 %v266
      %v1216 = vunpack.c.h.b16 %v266
      %v1217 = vunpack.c.l.b16 %v267
      %v1218 = vunpack.c.h.b16 %v267
      %v1219 = vunpack.c.l.b16 %v268
      %v1220 = vunpack.c.h.b16 %v268
      %v1221 = vunpack.c.l.b16 %v269
      %v1222 = vunpack.c.l.b16 %v270
      %v1223 = vunpack.c.h.b16 %v270
      %v1224 = vunpack.c.l.b16 %v271
      %v1225 = vunpack.c.h.b16 %v271
      %v1226 = vunpack.c.l.b16 %v272
      %v1227 = vunpack.c.h.b16 %v272
      %v1228 = vunpack.c.l.b16 %v273
      %v1229 = vunpack.c.l.b16 %v274
      %v1230 = vunpack.c.h.b16 %v274
      %v1231 = vunpack.c.l.b16 %v275
      %v1232 = vunpack.c.h.b16 %v275
      %v1233 = vunpack.c.l.b16 %v276
      %v1234 = vunpack.c.h.b16 %v276
      %v1235 = vunpack.c.l.b16 %v277
      %v1236 = vunpack.c.l.b16 %v278
      %v1237 = vunpack.c.h.b16 %v278
      %v1238 = vunpack.c.l.b16 %v279
      %v1239 = vunpack.c.h.b16 %v279
      %v1240 = vunpack.c.l.b16 %v280
      %v1241 = vunpack.c.h.b16 %v280
      %v1242 = vunpack.c.l.b16 %v281
      %v1243 = vunpack.c.l.b16 %v282
      %v1244 = vunpack.c.h.b16 %v282
      %v1245 = vunpack.c.l.b16 %v283
      %v1246 = vunpack.c.h.b16 %v283
      %v1247 = vunpack.c.l.b16 %v284
      %v1248 = vunpack.c.h.b16 %v284
      %v1249 = vunpack.c.l.b16 %v285
      %v1250 = vunpack.c.l.b16 %v286
      %v1251 = vunpack.c.h.b16 %v286
      %v1252 = vunpack.c.l.b16 %v287
      %v1253 = vunpack.c.h.b16 %v287
      %v1254 = vunpack.c.l.b16 %v288
      %v1255 = vunpack.c.h.b16 %v288
      %v1256 = vunpack.c.l.b16 %v289
      %v1257 = vunpack.c.l.b16 %v290
      %v1258 = vunpack.c.h.b16 %v290
      %v1259 = vunpack.c.l.b16 %v291
      %v1260 = vunpack.c.h.b16 %v291
      %v1261 = vunpack.c.l.b16 %v292
      %v1262 = vunpack.c.h.b16 %v292
      %v1263 = vunpack.c.l.b16 %v293
      %v1264 = vunpack.c.l.b16 %v294
      %v1265 = vunpack.c.h.b16 %v294
      %v1266 = vunpack.c.l.b16 %v295
      %v1267 = vunpack.c.h.b16 %v295
      %v1268 = vunpack.c.l.b16 %v296
      %v1269 = vunpack.c.h.b16 %v296
      %v1270 = vunpack.c.l.b16 %v297
      %v1271 = vunpack.c.l.b16 %v298
      %v1272 = vunpack.c.h.b16 %v298
      %v1273 = vunpack.c.l.b16 %v299
      %v1274 = vunpack.c.h.b16 %v299
      %v1275 = vunpack.c.l.b16 %v300
      %v1276 = vunpack.c.h.b16 %v300
      %v1277 = vunpack.c.l.b16 %v301
      %v1278 = vunpack.c.l.b16 %v302
      %v1279 = vunpack.c.h.b16 %v302
      %v1280 = vunpack.c.l.b16 %v303
      %v1281 = vunpack.c.h.b16 %v303
      %v1282 = vunpack.c.l.b16 %v304
      %v1283 = vunpack.c.h.b16 %v304
      %v1284 = vunpack.c.l.b16 %v305
      %v1285 = vunpack.c.l.b16 %v306
      %v1286 = vunpack.c.h.b16 %v306
      %v1287 = vunpack.c.l.b16 %v307
      %v1288 = vunpack.c.h.b16 %v307
      %v1289 = vunpack.c.l.b16 %v308
      %v1290 = vunpack.c.h.b16 %v308
      %v1291 = vunpack.c.l.b16 %v309
      %v1292 = vunpack.c.l.b16 %v310
      %v1293 = vunpack.c.h.b16 %v310
      %v1294 = vunpack.c.l.b16 %v311
      %v1295 = vunpack.c.h.b16 %v311
      %v1296 = vunpack.c.l.b16 %v312
      %v1297 = vunpack.c.h.b16 %v312
      %v1298 = vunpack.c.l.b16 %v313
      %v1299 = vunpack.c.l.b16 %v314
      %v1300 = vunpack.c.h.b16 %v314
      %v1301 = vunpack.c.l.b16 %v315
      %v1302 = vunpack.c.h.b16 %v315
      %v1303 = vunpack.c.l.b16 %v316
      %v1304 = vunpack.c.h.b16 %v316
      %v1305 = vunpack.c.l.b16 %v317
      %v1306 = vunpack.c.l.b16 %v318
      %v1307 = vunpack.c.h.b16 %v318
      %v1308 = vunpack.c.l.b16 %v319
      %v1309 = vunpack.c.h.b16 %v319
      %v1310 = vunpack.c.l.b16 %v320
      %v1311 = vunpack.c.h.b16 %v320
      %v1312 = vunpack.c.l.b16 %v321
      %v1313 = vunpack.c.l.b16 %v322
      %v1314 = vunpack.c.h.b16 %v322
      %v1315 = vunpack.c.l.b16 %v323
      %v1316 = vunpack.c.h.b16 %v323
      %v1317 = vunpack.c.l.b16 %v324
      %v1318 = vunpack.c.h.b16 %v324
      %v1319 = vunpack.c.l.b16 %v325
      %v1320 = vunpack.c.l.b16 %v326
      %v1321 = vunpack.c.h.b16 %v326
      %v1322 = vunpack.c.l.b16 %v327
      %v1323 = vunpack.c.h.b16 %v327
      %v1324 = vunpack.c.l.b16 %v328
      %v1325 = vunpack.c.h.b16 %v328
      %v1326 = vunpack.c.l.b16 %v329
      %v1327 = vunpack.c.l.b16 %v330
      %v1328 = vunpack.c.h.b16 %v330
      %v1329 = vunpack.c.l.b16 %v331
      %v1330 = vunpack.c.h.b16 %v331
      %v1331 = vunpack.c.l.b16 %v332
      %v1332 = vunpack.c.h.b16 %v332
      %v1333 = vunpack.c.l.b16 %v333
      %v1334 = vunpack.c.l.b16 %v334
      %v1335 = vunpack.c.h.b16 %v334
      %v1336 = vunpack.c.l.b16 %v335
      %v1337 = vunpack.c.h.b16 %v335
      %v1338 = vunpack.c.l.b16 %v336
      %v1339 = vunpack.c.h.b16 %v336
      %v1340 = vunpack.c.l.b16 %v337
      %v1341 = vunpack.c.l.b16 %v338
      %v1342 = vunpack.c.h.b16 %v338
      %v1343 = vunpack.c.l.b16 %v339
      %v1344 = vunpack.c.h.b16 %v339
      %v1345 = vunpack.c.l.b16 %v340
      %v1346 = vunpack.c.h.b16 %v340
      %v1347 = vunpack.c.l.b16 %v341
      %v1348 = vunpack.c.l.b16 %v342
      %v1349 = vunpack.c.h.b16 %v342
      %v1350 = vunpack.c.l.b16 %v343
      %v1351 = vunpack.c.h.b16 %v343
      %v1352 = vunpack.c.l.b16 %v344
      %v1353 = vunpack.c.h.b16 %v344
      %v1354 = vunpack.c.l.b16 %v345
      %v1355 = vunpack.c.l.b16 %v346
      %v1356 = vunpack.c.h.b16 %v346
      %v1357 = vunpack.c.l.b16 %v347
      %v1358 = vunpack.c.h.b16 %v347
      %v1359 = vunpack.c.l.b16 %v348
      %v1360 = vunpack.c.h.b16 %v348
      %v1361 = vunpack.c.l.b16 %v349
      %v1362 = vunpack.c.l.b16 %v350
      %v1363 = vunpack.c.h.b16 %v350
      %v1364 = vunpack.c.l.b16 %v351
      %v1365 = vunpack.c.h.b16 %v351
      %v1366 = vunpack.c.l.b16 %v352
      %v1367 = vunpack.c.h.b16 %v352
      %v1368 = vunpack.c.l.b16 %v353
      %v1369 = vunpack.c.l.b16 %v354
      %v1370 = vunpack.c.h.b16 %v354
      %v1371 = vunpack.c.l.b16 %v355
      %v1372 = vunpack.c.h.b16 %v355
      %v1373 = vunpack.c.l.b16 %v356
      %v1374 = vunpack.c.h.b16 %v356
      %v1375 = vunpack.c.l.b16 %v357
      %v1376 = vunpack.c.l.b16 %v358
      %v1377 = vunpack.c.h.b16 %v358
      %v1378 = vunpack.c.l.b16 %v359
      %v1379 = vunpack.c.h.b16 %v359
      %v1380 = vunpack.c.l.b16 %v360
      %v1381 = vunpack.c.h.b16 %v360
      %v1382 = vunpack.c.l.b16 %v361
      %v1383 = vunpack.c.l.b16 %v362
      %v1384 = vunpack.c.h.b16 %v362
      %v1385 = vunpack.c.l.b16 %v363
      %v1386 = vunpack.c.h.b16 %v363
      %v1387 = vunpack.c.l.b16 %v364
      %v1388 = vunpack.c.h.b16 %v364
      %v1389 = vunpack.c.l.b16 %v365
      %v1390 = vunpack.c.l.b16 %v366
      %v1391 = vunpack.c.h.b16 %v366
      %v1392 = vunpack.c.l.b16 %v367
      %v1393 = vunpack.c.h.b16 %v367
      %v1394 = vunpack.c.l.b16 %v368
      %v1395 = vunpack.c.h.b16 %v368
      %v1396 = vunpack.c.l.b16 %v369
      %v1397 = vunpack.c.l.b16 %v370
      %v1398 = vunpack.c.h.b16 %v370
      %v1399 = vunpack.c.l.b16 %v371
      %v1400 = vunpack.c.h.b16 %v371
      %v1401 = vunpack.c.l.b16 %v372
      %v1402 = vunpack.c.h.b16 %v372
      %v1403 = vunpack.c.l.b16 %v373
      %v1404 = vunpack.c.l.b16 %v374
      %v1405 = vunpack.c.h.b16 %v374
      %v1406 = vunpack.c.l.b16 %v375
      %v1407 = vunpack.c.h.b16 %v375
      %v1408 = vunpack.c.l.b16 %v376
      %v1409 = vunpack.c.h.b16 %v376
      %v1410 = vunpack.c.l.b16 %v377
      %v1411 = vunpack.c.l.b16 %v378
      %v1412 = vunpack.c.h.b16 %v378
      %v1413 = vunpack.c.l.b16 %v379
      %v1414 = vunpack.c.h.b16 %v379
      %v1415 = vunpack.c.l.b16 %v380
      %v1416 = vunpack.c.h.b16 %v380
      %v1417 = vunpack.c.l.b16 %v381
      %v1418 = vunpack.c.l.b16 %v382
      %v1419 = vunpack.c.h.b16 %v382
      %v1420 = vunpack.c.l.b16 %v383
      %v1421 = vunpack.c.h.b16 %v383
      %v1422 = vunpack.c.l.b16 %v384
      %v1423 = vunpack.c.h.b16 %v384
      %v1424 = vunpack.c.l.b16 %v385
      %v1425 = vunpack.c.l.b16 %v386
      %v1426 = vunpack.c.h.b16 %v386
      %v1427 = vunpack.c.l.b16 %v387
      %v1428 = vunpack.c.h.b16 %v387
      %v1429 = vunpack.c.l.b16 %v388
      %v1430 = vunpack.c.h.b16 %v388
      %v1431 = vunpack.c.l.b16 %v389
      %v1432 = vunpack.c.l.b16 %v390
      %v1433 = vunpack.c.h.b16 %v390
      %v1434 = vunpack.c.l.b16 %v391
      %v1435 = vunpack.c.h.b16 %v391
      %v1436 = vunpack.c.l.b16 %v392
      %v1437 = vunpack.c.h.b16 %v392
      %v1438 = vunpack.c.l.b16 %v393
      %v1439 = vunpack.c.l.b16 %v394
      %v1440 = vunpack.c.h.b16 %v394
      %v1441 = vunpack.c.l.b16 %v395
      %v1442 = vunpack.c.h.b16 %v395
      %v1443 = vunpack.c.l.b16 %v396
      %v1444 = vunpack.c.h.b16 %v396
      %v1445 = vunpack.c.l.b16 %v397
      %v1446 = vunpack.c.l.b16 %v398
      %v1447 = vunpack.c.h.b16 %v398
      %v1448 = vunpack.c.l.b16 %v399
      %v1449 = vunpack.c.h.b16 %v399
      %v1450 = vunpack.c.l.b16 %v400
      %v1451 = vunpack.c.h.b16 %v400
      %v1452 = vunpack.c.l.b16 %v401
      %v1453 = vunpack.c.l.b16 %v402
      %v1454 = vunpack.c.h.b16 %v402
      %v1455 = vunpack.c.l.b16 %v403
      %v1456 = vunpack.c.h.b16 %v403
      %v1457 = vunpack.c.l.b16 %v404
      %v1458 = vunpack.c.h.b16 %v404
      %v1459 = vunpack.c.l.b16 %v405
      %v1460 = vunpack.c.l.b16 %v406
      %v1461 = vunpack.c.h.b16 %v406
      %v1462 = vunpack.c.l.b16 %v407
      %v1463 = vunpack.c.h.b16 %v407
      %v1464 = vunpack.c.l.b16 %v408
      %v1465 = vunpack.c.h.b16 %v408
      %v1466 = vunpack.c.l.b16 %v409
      %v1467 = vunpack.c.l.b16 %v410
      %v1468 = vunpack.c.h.b16 %v410
      %v1469 = vunpack.c.l.b16 %v411
      %v1470 = vunpack.c.h.b16 %v411
      %v1471 = vunpack.c.l.b16 %v412
      %v1472 = vunpack.c.h.b16 %v412
      %v1473 = vunpack.c.l.b16 %v413
      %v1474 = vunpack.c.l.b16 %v414
      %v1475 = vunpack.c.h.b16 %v414
      %v1476 = vunpack.c.l.b16 %v415
      %v1477 = vunpack.c.h.b16 %v415
      %v1478 = vunpack.c.l.b16 %v416
      %v1479 = vunpack.c.h.b16 %v416
      %v1480 = vunpack.c.l.b16 %v417
      %v1481 = vunpack.c.l.b16 %v418
      %v1482 = vunpack.c.h.b16 %v418
      %v1483 = vunpack.c.l.b16 %v419
      %v1484 = vunpack.c.h.b16 %v419
      %v1485 = vunpack.c.l.b16 %v420
      %v1486 = vunpack.c.h.b16 %v420
      %v1487 = vunpack.c.l.b16 %v421
      %v1488 = vunpack.c.l.b16 %v422
      %v1489 = vunpack.c.h.b16 %v422
      %v1490 = vunpack.c.l.b16 %v423
      %v1491 = vunpack.c.h.b16 %v423
      %v1492 = vunpack.c.l.b16 %v424
      %v1493 = vunpack.c.h.b16 %v424
      %v1494 = vunpack.c.l.b16 %v425
      %v1495 = vunpack.c.l.b16 %v426
      %v1496 = vunpack.c.h.b16 %v426
      %v1497 = vunpack.c.l.b16 %v427
      %v1498 = vunpack.c.h.b16 %v427
      %v1499 = vunpack.c.l.b16 %v428
      %v1500 = vunpack.c.h.b16 %v428
      %v1501 = vunpack.c.l.b16 %v429
      %v1502 = vunpack.c.l.b16 %v430
      %v1503 = vunpack.c.h.b16 %v430
      %v1504 = vunpack.c.l.b16 %v431
      %v1505 = vunpack.c.h.b16 %v431
      %v1506 = vunpack.c.l.b16 %v432
      %v1507 = vunpack.c.h.b16 %v432
      %v1508 = vunpack.c.l.b16 %v433
      %v1509 = vunpack.c.l.b16 %v434
      %v1510 = vunpack.c.h.b16 %v434
      %v1511 = vunpack.c.l.b16 %v435
      %v1512 = vunpack.c.h.b16 %v435
      %v1513 = vunpack.c.l.b16 %v436
      %v1514 = vunpack.c.h.b16 %v436
      %v1515 = vunpack.c.l.b16 %v437
      %v1516 = vunpack.c.l.b16 %v438
      %v1517 = vunpack.c.h.b16 %v438
      %v1518 = vunpack.c.l.b16 %v439
      %v1519 = vunpack.c.h.b16 %v439
      %v1520 = vunpack.c.l.b16 %v440
      %v1521 = vunpack.c.h.b16 %v440
      %v1522 = vunpack.c.l.b16 %v441
      %v1523 = vunpack.c.l.b16 %v442
      %v1524 = vunpack.c.h.b16 %v442
      %v1525 = vunpack.c.l.b16 %v443
      %v1526 = vunpack.c.h.b16 %v443
      %v1527 = vunpack.c.l.b16 %v444
      %v1528 = vunpack.c.h.b16 %v444
      %v1529 = vunpack.c.l.b16 %v445
      %v1530 = vunpack.c.l.b16 %v446
      %v1531 = vunpack.c.h.b16 %v446
      %v1532 = vunpack.c.l.b16 %v447
      %v1533 = vunpack.c.h.b16 %v447
      %v1534 = vunpack.c.l.b16 %v448
      %v1535 = vunpack.c.h.b16 %v448
      %v1536 = vunpack.c.l.b16 %v449
      %v1537 = vunpack.c.l.b16 %v450
      %v1538 = vunpack.c.h.b16 %v450
      %v1539 = vunpack.c.l.b16 %v451
      %v1540 = vunpack.c.h.b16 %v451
      %v1541 = vunpack.c.l.b16 %v452
      %v1542 = vunpack.c.h.b16 %v452
      %v1543 = vunpack.c.l.b16 %v453
      %v1544 = vunpack.c.l.b16 %v454
      %v1545 = vunpack.c.h.b16 %v454
      %v1546 = vunpack.c.l.b16 %v455
      %v1547 = vunpack.c.h.b16 %v455
      %v1548 = vunpack.c.l.b16 %v456
      %v1549 = vunpack.c.h.b16 %v456
      %v1550 = vunpack.c.l.b16 %v457
      %v1551 = vunpack.c.l.b16 %v458
      %v1552 = vunpack.c.h.b16 %v458
      %v1553 = vunpack.c.l.b16 %v459
      %v1554 = vunpack.c.h.b16 %v459
      %v1555 = vunpack.c.l.b16 %v460
      %v1556 = vunpack.c.h.b16 %v460
      %v1557 = vunpack.c.l.b16 %v461
      %v1558 = vunpack.c.l.b16 %v462
      %v1559 = vunpack.c.h.b16 %v462
      %v1560 = vunpack.c.l.b16 %v463
      %v1561 = vunpack.c.h.b16 %v463
      %v1562 = vunpack.c.l.b16 %v464
      %v1563 = vunpack.c.h.b16 %v464
      %v1564 = vunpack.c.l.b16 %v465
      %v1565 = vunpack.c.l.b16 %v466
      %v1566 = vunpack.c.h.b16 %v466
      %v1567 = vunpack.c.l.b16 %v467
      %v1568 = vunpack.c.h.b16 %v467
      %v1569 = vunpack.c.l.b16 %v468
      %v1570 = vunpack.c.h.b16 %v468
      %v1571 = vunpack.c.l.b16 %v469
      %v1572 = vunpack.c.l.b16 %v470
      %v1573 = vunpack.c.h.b16 %v470
      %v1574 = vunpack.c.l.b16 %v471
      %v1575 = vunpack.c.h.b16 %v471
      %v1576 = vunpack.c.l.b16 %v472
      %v1577 = vunpack.c.h.b16 %v472
      %v1578 = vunpack.c.l.b16 %v473
      %v1579 = vunpack.c.l.b16 %v474
      %v1580 = vunpack.c.h.b16 %v474
      %v1581 = vunpack.c.l.b16 %v475
      %v1582 = vunpack.c.h.b16 %v475
      %v1583 = vunpack.c.l.b16 %v476
      %v1584 = vunpack.c.h.b16 %v476
      %v1585 = vunpack.c.l.b16 %v477
      %v1586 = vunpack.c.l.b16 %v478
      %v1587 = vunpack.c.h.b16 %v478
      %v1588 = vunpack.c.l.b16 %v479
      %v1589 = vunpack.c.h.b16 %v479
      %v1590 = vunpack.c.l.b16 %v480
      %v1591 = vunpack.c.h.b16 %v480
      %v1592 = vunpack.c.l.b16 %v481
      %v1593 = vunpack.c.l.b16 %v482
      %v1594 = vunpack.c.h.b16 %v482
      %v1595 = vunpack.c.l.b16 %v483
      %v1596 = vunpack.c.h.b16 %v483
      %v1597 = vunpack.c.l.b16 %v484
      %v1598 = vunpack.c.h.b16 %v484
      %v1599 = vunpack.c.l.b16 %v485
      %v1600 = vunpack.c.l.b16 %v486
      %v1601 = vunpack.c.h.b16 %v486
      %v1602 = vunpack.c.l.b16 %v487
      %v1603 = vunpack.c.h.b16 %v487
      %v1604 = vunpack.c.l.b16 %v488
      %v1605 = vunpack.c.h.b16 %v488
      %v1606 = vunpack.c.l.b16 %v489
      %v1607 = vunpack.c.l.b16 %v490
      %v1608 = vunpack.c.h.b16 %v490
      %v1609 = vunpack.c.l.b16 %v491
      %v1610 = vunpack.c.h.b16 %v491
      %v1611 = vunpack.c.l.b16 %v492
      %v1612 = vunpack.c.h.b16 %v492
      %v1613 = vunpack.c.l.b16 %v493
      %v1614 = vunpack.c.l.b16 %v494
      %v1615 = vunpack.c.h.b16 %v494
      %v1616 = vunpack.c.l.b16 %v495
      %v1617 = vunpack.c.h.b16 %v495
      %v1618 = vunpack.c.l.b16 %v496
      %v1619 = vunpack.c.h.b16 %v496
      %v1620 = vunpack.c.l.b16 %v497
      %v1621 = vunpack.c.l.b16 %v498
      %v1622 = vunpack.c.h.b16 %v498
      %v1623 = vunpack.c.l.b16 %v499
      %v1624 = vunpack.c.h.b16 %v499
      %v1625 = vunpack.c.l.b16 %v500
      %v1626 = vunpack.c.h.b16 %v500
      %v1627 = vunpack.c.l.b16 %v501
      %v1628 = vunpack.c.l.b16 %v502
      %v1629 = vunpack.c.h.b16 %v502
      %v1630 = vunpack.c.l.b16 %v503
      %v1631 = vunpack.c.h.b16 %v503
      %v1632 = vunpack.c.l.b16 %v504
      %v1633 = vunpack.c.h.b16 %v504
      %v1634 = vunpack.c.l.b16 %v505
      %v1635 = vunpack.c.l.b16 %v506
      %v1636 = vunpack.c.h.b16 %v506
      %v1637 = vunpack.c.l.b16 %v507
      %v1638 = vunpack.c.h.b16 %v507
      %v1639 = vunpack.c.l.b16 %v508
      %v1640 = vunpack.c.h.b16 %v508
      %v1641 = vunpack.c.l.b16 %v509
      %v1642 = vunpack.c.l.b16 %v510
      %v1643 = vunpack.c.h.b16 %v510
      %v1644 = vunpack.c.l.b16 %v511
      %v1645 = vunpack.c.h.b16 %v511
      %v1646 = vunpack.c.l.b16 %v512
      %v1647 = vunpack.c.h.b16 %v512
      %v1648 = vunpack.c.l.b16 %v513
      %v1649 = vunpack.c.l.b16 %v514
      %v1650 = vunpack.c.h.b16 %v514
      %v1651 = vunpack.c.l.b16 %v515
      %v1652 = vunpack.c.h.b16 %v515
      %v1653 = vunpack.c.l.b16 %v516
      %v1654 = vunpack.c.h.b16 %v516
      %v1655 = vunpack.c.l.b16 %v517
      %v1656 = vunpack.c.l.b16 %v518
      %v1657 = vunpack.c.h.b16 %v518
      %v1658 = vunpack.c.l.b16 %v519
      %v1659 = vunpack.c.h.b16 %v519
      %v1660 = vunpack.c.l.b16 %v520
      %v1661 = vunpack.c.h.b16 %v520
      %v1662 = vunpack.c.l.b16 %v521
      %v1663 = vunpack.c.l.b16 %v522
      %v1664 = vunpack.c.h.b16 %v522
      %v1665 = vunpack.c.l.b16 %v523
      %v1666 = vunpack.c.h.b16 %v523
      %v1667 = vunpack.c.l.b16 %v524
      %v1668 = vunpack.c.h.b16 %v524
      %v1669 = vunpack.c.l.b16 %v525
      %v1670 = vunpack.c.l.b16 %v526
      %v1671 = vunpack.c.h.b16 %v526
      %v1672 = vunpack.c.l.b16 %v527
      %v1673 = vunpack.c.h.b16 %v527
      %v1674 = vunpack.c.l.b16 %v528
      %v1675 = vunpack.c.h.b16 %v528
      %v1676 = vunpack.c.l.b16 %v529
      %v1677 = vunpack.c.l.b16 %v530
      %v1678 = vunpack.c.h.b16 %v530
      %v1679 = vunpack.c.l.b16 %v531
      %v1680 = vunpack.c.h.b16 %v531
      %v1681 = vunpack.c.l.b16 %v532
      %v1682 = vunpack.c.h.b16 %v532
      %v1683 = vunpack.c.l.b16 %v533
      %v1684 = vunpack.c.l.b16 %v534
      %v1685 = vunpack.c.h.b16 %v534
      %v1686 = vunpack.c.l.b16 %v535
      %v1687 = vunpack.c.h.b16 %v535
      %v1688 = vunpack.c.l.b16 %v536
      %v1689 = vunpack.c.h.b16 %v536
      %v1690 = vunpack.c.l.b16 %v537
      %v1691 = vunpack.c.l.b16 %v538
      %v1692 = vunpack.c.h.b16 %v538
      %v1693 = vunpack.c.l.b16 %v539
      %v1694 = vunpack.c.h.b16 %v539
      %v1695 = vunpack.c.l.b16 %v540
      %v1696 = vunpack.c.h.b16 %v540
      %v1697 = vunpack.c.l.b16 %v541
      %v1698 = vunpack.c.l.b16 %v542
      %v1699 = vunpack.c.h.b16 %v542
      %v1700 = vunpack.c.l.b16 %v543
      %v1701 = vunpack.c.h.b16 %v543
      %v1702 = vunpack.c.l.b16 %v544
      %v1703 = vunpack.c.h.b16 %v544
      %v1704 = vunpack.c.l.b16 %v545
      %v1705 = vunpack.c.l.b16 %v546
      %v1706 = vunpack.c.h.b16 %v546
      %v1707 = vunpack.c.l.b16 %v547
      %v1708 = vunpack.c.h.b16 %v547
      %v1709 = vunpack.c.l.b16 %v548
      %v1710 = vunpack.c.h.b16 %v548
      %v1711 = vunpack.c.l.b16 %v549
      %v1712 = vunpack.c.l.b16 %v550
      %v1713 = vunpack.c.h.b16 %v550
      %v1714 = vunpack.c.l.b16 %v551
      %v1715 = vunpack.c.h.b16 %v551
      %v1716 = vunpack.c.l.b16 %v552
      %v1717 = vunpack.c.h.b16 %v552
      %v1718 = vunpack.c.l.b16 %v553
      %v1719 = vunpack.c.l.b16 %v554
      %v1720 = vunpack.c.h.b16 %v554
      %v1721 = vunpack.c.l.b16 %v555
      %v1722 = vunpack.c.h.b16 %v555
      %v1723 = vunpack.c.l.b16 %v556
      %v1724 = vunpack.c.h.b16 %v556
      %v1725 = vunpack.c.l.b16 %v557
      %v1726 = vunpack.c.l.b16 %v558
      %v1727 = vunpack.c.h.b16 %v558
      %v1728 = vunpack.c.l.b16 %v559
      %v1729 = vunpack.c.h.b16 %v559
      %v1730 = vunpack.c.l.b16 %v560
      %v1731 = vunpack.c.h.b16 %v560
      %v1732 = vunpack.c.l.b16 %v561
      %v1733 = vpack.c.b16 %v1068, %v1061
      %v1734 = vpack.c.b16 %v1069, %v1062
      %v1735 = vpack.c.b16 %v1070, %v1063
      %v1736 = vpack.c.b16 %v1071, %v1064
      %v1737 = vpack.c.b16 %v1072, %v1065
      %v1738 = vpack.c.b16 %v1073, %v1066
      %v1739 = vpack.c.b16 %v1074, %v1067
      %v1740 = vpack.c.b16 %v1082, %v1075
      %v1741 = vpack.c.b16 %v1083, %v1076
      %v1742 = vpack.c.b16 %v1084, %v1077
      %v1743 = vpack.c.b16 %v1085, %v1078
      %v1744 = vpack.c.b16 %v1086, %v1079
      %v1745 = vpack.c.b16 %v1087, %v1080
      %v1746 = vpack.c.b16 %v1088, %v1081
      %v1747 = vpack.c.b16 %v1096, %v1089
      %v1748 = vpack.c.b16 %v1097, %v1090
      %v1749 = vpack.c.b16 %v1098, %v1091
      %v1750 = vpack.c.b16 %v1099, %v1092
      %v1751 = vpack.c.b16 %v1100, %v1093
      %v1752 = vpack.c.b16 %v1101, %v1094
      %v1753 = vpack.c.b16 %v1102, %v1095
      %v1754 = vpack.c.b16 %v1110, %v1103
      %v1755 = vpack.c.b16 %v1111, %v1104
      %v1756 = vpack.c.b16 %v1112, %v1105
      %v1757 = vpack.c.b16 %v1113, %v1106
      %v1758 = vpack.c.b16 %v1114, %v1107
      %v1759 = vpack.c.b16 %v1115, %v1108
      %v1760 = vpack.c.b16 %v1116, %v1109
      %v1761 = vpack.c.b16 %v1124, %v1117
      %v1762 = vpack.c.b16 %v1125, %v1118
      %v1763 = vpack.c.b16 %v1126, %v1119
      %v1764 = vpack.c.b16 %v1127, %v1120
      %v1765 = vpack.c.b16 %v1128, %v1121
      %v1766 = vpack.c.b16 %v1129, %v1122
      %v1767 = vpack.c.b16 %v1130, %v1123
      %v1768 = vpack.c.b16 %v1138, %v1131
      %v1769 = vpack.c.b16 %v1139, %v1132
      %v1770 = vpack.c.b16 %v1140, %v1133
      %v1771 = vpack.c.b16 %v1141, %v1134
      %v1772 = vpack.c.b16 %v1142, %v1135
      %v1773 = vpack.c.b16 %v1143, %v1136
      %v1774 = vpack.c.b16 %v1144, %v1137
      %v1775 = vpack.c.b16 %v1152, %v1145
      %v1776 = vpack.c.b16 %v1153, %v1146
      %v1777 = vpack.c.b16 %v1154, %v1147
      %v1778 = vpack.c.b16 %v1155, %v1148
      %v1779 = vpack.c.b16 %v1156, %v1149
      %v1780 = vpack.c.b16 %v1157, %v1150
      %v1781 = vpack.c.b16 %v1158, %v1151
      %v1782 = vpack.c.b16 %v1166, %v1159
      %v1783 = vpack.c.b16 %v1167, %v1160
      %v1784 = vpack.c.b16 %v1168, %v1161
      %v1785 = vpack.c.b16 %v1169, %v1162
      %v1786 = vpack.c.b16 %v1170, %v1163
      %v1787 = vpack.c.b16 %v1171, %v1164
      %v1788 = vpack.c.b16 %v1172, %v1165
      %v1789 = vpack.c.b16 %v1180, %v1173
      %v1790 = vpack.c.b16 %v1181, %v1174
      %v1791 = vpack.c.b16 %v1182, %v1175
      %v1792 = vpack.c.b16 %v1183, %v1176
      %v1793 = vpack.c.b16 %v1184, %v1177
      %v1794 = vpack.c.b16 %v1185, %v1178
      %v1795 = vpack.c.b16 %v1186, %v1179
      %v1796 = vpack.c.b16 %v1194, %v1187
      %v1797 = vpack.c.b16 %v1195, %v1188
      %v1798 = vpack.c.b16 %v1196, %v1189
      %v1799 = vpack.c.b16 %v1197, %v1190
      %v1800 = vpack.c.b16 %v1198, %v1191
      %v1801 = vpack.c.b16 %v1199, %v1192
      %v1802 = vpack.c.b16 %v1200, %v1193
      %v1803 = vpack.c.b16 %v1208, %v1201
      %v1804 = vpack.c.b16 %v1209, %v1202
      %v1805 = vpack.c.b16 %v1210, %v1203
      %v1806 = vpack.c.b16 %v1211, %v1204
      %v1807 = vpack.c.b16 %v1212, %v1205
      %v1808 = vpack.c.b16 %v1213, %v1206
      %v1809 = vpack.c.b16 %v1214, %v1207
      %v1810 = vpack.c.b16 %v1222, %v1215
      %v1811 = vpack.c.b16 %v1223, %v1216
      %v1812 = vpack.c.b16 %v1224, %v1217
      %v1813 = vpack.c.b16 %v1225, %v1218
      %v1814 = vpack.c.b16 %v1226, %v1219
      %v1815 = vpack.c.b16 %v1227, %v1220
      %v1816 = vpack.c.b16 %v1228, %v1221
      %v1817 = vpack.c.b16 %v1236, %v1229
      %v1818 = vpack.c.b16 %v1237, %v1230
      %v1819 = vpack.c.b16 %v1238, %v1231
      %v1820 = vpack.c.b16 %v1239, %v1232
      %v1821 = vpack.c.b16 %v1240, %v1233
      %v1822 = vpack.c.b16 %v1241, %v1234
      %v1823 = vpack.c.b16 %v1242, %v1235
      %v1824 = vpack.c.b16 %v1250, %v1243
      %v1825 = vpack.c.b16 %v1251, %v1244
      %v1826 = vpack.c.b16 %v1252, %v1245
      %v1827 = vpack.c.b16 %v1253, %v1246
      %v1828 = vpack.c.b16 %v1254, %v1247
      %v1829 = vpack.c.b16 %v1255, %v1248
      %v1830 = vpack.c.b16 %v1256, %v1249
      %v1831 = vpack.c.b16 %v1264, %v1257
      %v1832 = vpack.c.b16 %v1265, %v1258
      %v1833 = vpack.c.b16 %v1266, %v1259
      %v1834 = vpack.c.b16 %v1267, %v1260
      %v1835 = vpack.c.b16 %v1268, %v1261
      %v1836 = vpack.c.b16 %v1269, %v1262
      %v1837 = vpack.c.b16 %v1270, %v1263
      %v1838 = vpack.c.b16 %v1278, %v1271
      %v1839 = vpack.c.b16 %v1279, %v1272
      %v1840 = vpack.c.b16 %v1280, %v1273
      %v1841 = vpack.c.b16 %v1281, %v1274
      %v1842 = vpack.c.b16 %v1282, %v1275
      %v1843 = vpack.c.b16 %v1283, %v1276
      %v1844 = vpack.c.b16 %v1284, %v1277
      %v1845 = vpack.c.b16 %v1292, %v1285
      %v1846 = vpack.c.b16 %v1293, %v1286
      %v1847 = vpack.c.b16 %v1294, %v1287
      %v1848 = vpack.c.b16 %v1295, %v1288
      %v1849 = vpack.c.b16 %v1296, %v1289
      %v1850 = vpack.c.b16 %v1297, %v1290
      %v1851 = vpack.c.b16 %v1298, %v1291
      %v1852 = vpack.c.b16 %v1306, %v1299
      %v1853 = vpack.c.b16 %v1307, %v1300
      %v1854 = vpack.c.b16 %v1308, %v1301
      %v1855 = vpack.c.b16 %v1309, %v1302
      %v1856 = vpack.c.b16 %v1310, %v1303
      %v1857 = vpack.c.b16 %v1311, %v1304
      %v1858 = vpack.c.b16 %v1312, %v1305
      %v1859 = vpack.c.b16 %v1320, %v1313
      %v1860 = vpack.c.b16 %v1321, %v1314
      %v1861 = vpack.c.b16 %v1322, %v1315
      %v1862 = vpack.c.b16 %v1323, %v1316
      %v1863 = vpack.c.b16 %v1324, %v1317
      %v1864 = vpack.c.b16 %v1325, %v1318
      %v1865 = vpack.c.b16 %v1326, %v1319
      %v1866 = vpack.c.b16 %v1334, %v1327
      %v1867 = vpack.c.b16 %v1335, %v1328
      %v1868 = vpack.c.b16 %v1336, %v1329
      %v1869 = vpack.c.b16 %v1337, %v1330
      %v1870 = vpack.c.b16 %v1338, %v1331
      %v1871 = vpack.c.b16 %v1339, %v1332
      %v1872 = vpack.c.b16 %v1340, %v1333
      %v1873 = vpack.c.b16 %v1348, %v1341
      %v1874 = vpack.c.b16 %v1349, %v1342
      %v1875 = vpack.c.b16 %v1350, %v1343
      %v1876 = vpack.c.b16 %v1351, %v1344
      %v1877 = vpack.c.b16 %v1352, %v1345
      %v1878 = vpack.c.b16 %v1353, %v1346
      %v1879 = vpack.c.b16 %v1354, %v1347
      %v1880 = vpack.c.b16 %v1362, %v1355
      %v1881 = vpack.c.b16 %v1363, %v1356
      %v1882 = vpack.c.b16 %v1364, %v1357
      %v1883 = vpack.c.b16 %v1365, %v1358
      %v1884 = vpack.c.b16 %v1366, %v1359
      %v1885 = vpack.c.b16 %v1367, %v1360
      %v1886 = vpack.c.b16 %v1368, %v1361
      %v1887 = vpack.c.b16 %v1376, %v1369
      %v1888 = vpack.c.b16 %v1377, %v1370
      %v1889 = vpack.c.b16 %v1378, %v1371
      %v1890 = vpack.c.b16 %v1379, %v1372
      %v1891 = vpack.c.b16 %v1380, %v1373
      %v1892 = vpack.c.b16 %v1381, %v1374
      %v1893 = vpack.c.b16 %v1382, %v1375
      %v1894 = vpack.c.b16 %v1390, %v1383
      %v1895 = vpack.c.b16 %v1391, %v1384
      %v1896 = vpack.c.b16 %v1392, %v1385
      %v1897 = vpack.c.b16 %v1393, %v1386
      %v1898 = vpack.c.b16 %v1394, %v1387
      %v1899 = vpack.c.b16 %v1395, %v1388
      %v1900 = vpack.c.b16 %v1396, %v1389
      %v1901 = vpack.c.b16 %v1404, %v1397
      %v1902 = vpack.c.b16 %v1405, %v1398
      %v1903 = vpack.c.b16 %v1406, %v1399
      %v1904 = vpack.c.b16 %v1407, %v1400
      %v1905 = vpack.c.b16 %v1408, %v1401
      %v1906 = vpack.c.b16 %v1409, %v1402
      %v1907 = vpack.c.b16 %v1410, %v1403
      %v1908 = vpack.c.b16 %v1418, %v1411
      %v1909 = vpack.c.b16 %v1419, %v1412
      %v1910 = vpack.c.b16 %v1420, %v1413
      %v1911 = vpack.c.b16 %v1421, %v1414
      %v1912 = vpack.c.b16 %v1422, %v1415
      %v1913 = vpack.c.b16 %v1423, %v1416
      %v1914 = vpack.c.b16 %v1424, %v1417
      %v1915 = vpack.c.b16 %v1432, %v1425
      %v1916 = vpack.c.b16 %v1433, %v1426
      %v1917 = vpack.c.b16 %v1434, %v1427
      %v1918 = vpack.c.b16 %v1435, %v1428
      %v1919 = vpack.c.b16 %v1436, %v1429
      %v1920 = vpack.c.b16 %v1437, %v1430
      %v1921 = vpack.c.b16 %v1438, %v1431
      %v1922 = vpack.c.b16 %v1446, %v1439
      %v1923 = vpack.c.b16 %v1447, %v1440
      %v1924 = vpack.c.b16 %v1448, %v1441
      %v1925 = vpack.c.b16 %v1449, %v1442
      %v1926 = vpack.c.b16 %v1450, %v1443
      %v1927 = vpack.c.b16 %v1451, %v1444
      %v1928 = vpack.c.b16 %v1452, %v1445
      %v1929 = vpack.c.b16 %v1460, %v1453
      %v1930 = vpack.c.b16 %v1461, %v1454
      %v1931 = vpack.c.b16 %v1462, %v1455
      %v1932 = vpack.c.b16 %v1463, %v1456
      %v1933 = vpack.c.b16 %v1464, %v1457
      %v1934 = vpack.c.b16 %v1465, %v1458
      %v1935 = vpack.c.b16 %v1466, %v1459
      %v1936 = vpack.c.b16 %v1474, %v1467
      %v1937 = vpack.c.b16 %v1475, %v1468
      %v1938 = vpack.c.b16 %v1476, %v1469
      %v1939 = vpack.c.b16 %v1477, %v1470
      %v1940 = vpack.c.b16 %v1478, %v1471
      %v1941 = vpack.c.b16 %v1479, %v1472
      %v1942 = vpack.c.b16 %v1480, %v1473
      %v1943 = vpack.c.b16 %v1488, %v1481
      %v1944 = vpack.c.b16 %v1489, %v1482
      %v1945 = vpack.c.b16 %v1490, %v1483
      %v1946 = vpack.c.b16 %v1491, %v1484
      %v1947 = vpack.c.b16 %v1492, %v1485
      %v1948 = vpack.c.b16 %v1493, %v1486
      %v1949 = vpack.c.b16 %v1494, %v1487
      %v1950 = vpack.c.b16 %v1502, %v1495
      %v1951 = vpack.c.b16 %v1503, %v1496
      %v1952 = vpack.c.b16 %v1504, %v1497
      %v1953 = vpack.c.b16 %v1505, %v1498
      %v1954 = vpack.c.b16 %v1506, %v1499
      %v1955 = vpack.c.b16 %v1507, %v1500
      %v1956 = vpack.c.b16 %v1508, %v1501
      %v1957 = vpack.c.b16 %v1516, %v1509
      %v1958 = vpack.c.b16 %v1517, %v1510
      %v1959 = vpack.c.b16 %v1518, %v1511
      %v1960 = vpack.c.b16 %v1519, %v1512
      %v1961 = vpack.c.b16 %v1520, %v1513
      %v1962 = vpack.c.b16 %v1521, %v1514
      %v1963 = vpack.c.b16 %v1522, %v1515
      %v1964 = vpack.c.b16 %v1530, %v1523
      %v1965 = vpack.c.b16 %v1531, %v1524
      %v1966 = vpack.c.b16 %v1532, %v1525
      %v1967 = vpack.c.b16 %v1533, %v1526
      %v1968 = vpack.c.b16 %v1534, %v1527
      %v1969 = vpack.c.b16 %v1535, %v1528
      %v1970 = vpack.c.b16 %v1536, %v1529
      %v1971 = vpack.c.b16 %v1544, %v1537
      %v1972 = vpack.c.b16 %v1545, %v1538
      %v1973 = vpack.c.b16 %v1546, %v1539
      %v1974 = vpack.c.b16 %v1547, %v1540
      %v1975 = vpack.c.b16 %v1548, %v1541
      %v1976 = vpack.c.b16 %v1549, %v1542
      %v1977 = vpack.c.b16 %v1550, %v1543
      %v1978 = vpack.c.b16 %v1558, %v1551
      %v1979 = vpack.c.b16 %v1559, %v1552
      %v1980 = vpack.c.b16 %v1560, %v1553
      %v1981 = vpack.c.b16 %v1561, %v1554
      %v1982 = vpack.c.b16 %v1562, %v1555
      %v1983 = vpack.c.b16 %v1563, %v1556
      %v1984 = vpack.c.b16 %v1564, %v1557
      %v1985 = vpack.c.b16 %v1572, %v1565
      %v1986 = vpack.c.b16 %v1573, %v1566
      %v1987 = vpack.c.b16 %v1574, %v1567
      %v1988 = vpack.c.b16 %v1575, %v1568
      %v1989 = vpack.c.b16 %v1576, %v1569
      %v1990 = vpack.c.b16 %v1577, %v1570
      %v1991 = vpack.c.b16 %v1578, %v1571
      %v1992 = vpack.c.b16 %v1586, %v1579
      %v1993 = vpack.c.b16 %v1587, %v1580
      %v1994 = vpack.c.b16 %v1588, %v1581
      %v1995 = vpack.c.b16 %v1589, %v1582
      %v1996 = vpack.c.b16 %v1590, %v1583
      %v1997 = vpack.c.b16 %v1591, %v1584
      %v1998 = vpack.c.b16 %v1592, %v1585
      %v1999 = vpack.c.b16 %v1600, %v1593
      %v2000 = vpack.c.b16 %v1601, %v1594
      %v2001 = vpack.c.b16 %v1602, %v1595
      %v2002 = vpack.c.b16 %v1603, %v1596
      %v2003 = vpack.c.b16 %v1604, %v1597
      %v2004 = vpack.c.b16 %v1605, %v1598
      %v2005 = vpack.c.b16 %v1606, %v1599
      %v2006 = vpack.c.b16 %v1614, %v1607
      %v2007 = vpack.c.b16 %v1615, %v1608
      %v2008 = vpack.c.b16 %v1616, %v1609
      %v2009 = vpack.c.b16 %v1617, %v1610
      %v2010 = vpack.c.b16 %v1618, %v1611
      %v2011 = vpack.c.b16 %v1619, %v1612
      %v2012 = vpack.c.b16 %v1620, %v1613
      %v2013 = vpack.c.b16 %v1628, %v1621
      %v2014 = vpack.c.b16 %v1629, %v1622
      %v2015 = vpack.c.b16 %v1630, %v1623
      %v2016 = vpack.c.b16 %v1631, %v1624
      %v2017 = vpack.c.b16 %v1632, %v1625
      %v2018 = vpack.c.b16 %v1633, %v1626
      %v2019 = vpack.c.b16 %v1634, %v1627
      %v2020 = vpack.c.b16 %v1642, %v1635
      %v2021 = vpack.c.b16 %v1643, %v1636
      %v2022 = vpack.c.b16 %v1644, %v1637
      %v2023 = vpack.c.b16 %v1645, %v1638
      %v2024 = vpack.c.b16 %v1646, %v1639
      %v2025 = vpack.c.b16 %v1647, %v1640
      %v2026 = vpack.c.b16 %v1648, %v1641
      %v2027 = vpack.c.b16 %v1656, %v1649
      %v2028 = vpack.c.b16 %v1657, %v1650
      %v2029 = vpack.c.b16 %v1658, %v1651
      %v2030 = vpack.c.b16 %v1659, %v1652
      %v2031 = vpack.c.b16 %v1660, %v1653
      %v2032 = vpack.c.b16 %v1661, %v1654
      %v2033 = vpack.c.b16 %v1662, %v1655
      %v2034 = vpack.c.b16 %v1670, %v1663
      %v2035 = vpack.c.b16 %v1671, %v1664
      %v2036 = vpack.c.b16 %v1672, %v1665
      %v2037 = vpack.c.b16 %v1673, %v1666
      %v2038 = vpack.c.b16 %v1674, %v1667
      %v2039 = vpack.c.b16 %v1675, %v1668
      %v2040 = vpack.c.b16 %v1676, %v1669
      %v2041 = vpack.c.b16 %v1684, %v1677
      %v2042 = vpack.c.b16 %v1685, %v1678
      %v2043 = vpack.c.b16 %v1686, %v1679
      %v2044 = vpack.c.b16 %v1687, %v1680
      %v2045 = vpack.c.b16 %v1688, %v1681
      %v2046 = vpack.c.b16 %v1689, %v1682
      %v2047 = vpack.c.b16 %v1690, %v1683
      %v2048 = vpack.c.b16 %v1698, %v1691
      %v2049 = vpack.c.b16 %v1699, %v1692
      %v2050 = vpack.c.b16 %v1700, %v1693
      %v2051 = vpack.c.b16 %v1701, %v1694
      %v2052 = vpack.c.b16 %v1702, %v1695
      %v2053 = vpack.c.b16 %v1703, %v1696
      %v2054 = vpack.c.b16 %v1704, %v1697
      %v2055 = vpack.c.b16 %v1712, %v1705
      %v2056 = vpack.c.b16 %v1713, %v1706
      %v2057 = vpack.c.b16 %v1714, %v1707
      %v2058 = vpack.c.b16 %v1715, %v1708
      %v2059 = vpack.c.b16 %v1716, %v1709
      %v2060 = vpack.c.b16 %v1717, %v1710
      %v2061 = vpack.c.b16 %v1718, %v1711
      %v2062 = vpack.c.b16 %v1726, %v1719
      %v2063 = vpack.c.b16 %v1727, %v1720
      %v2064 = vpack.c.b16 %v1728, %v1721
      %v2065 = vpack.c.b16 %v1729, %v1722
      %v2066 = vpack.c.b16 %v1730, %v1723
      %v2067 = vpack.c.b16 %v1731, %v1724
      %v2068 = vpack.c.b16 %v1732, %v1725
      %v2465 = vunpack.c.l.b16 %v562
      %v2466 = vunpack.c.l.b16 %v563
      %v2467 = vunpack.c.l.b16 %v564
      %v2468 = vunpack.c.l.b16 %v565
      %v2469 = vunpack.c.l.b16 %v566
      %v2470 = vunpack.c.l.b16 %v567
      %v2471 = vunpack.c.l.b16 %v568
      %v2472 = vunpack.c.l.b16 %v569
      %v2473 = vunpack.c.l.b16 %v570
      %v2474 = vunpack.c.l.b16 %v571
      %v2475 = vunpack.c.l.b16 %v572
      %v2476 = vunpack.c.l.b16 %v573
      %v2477 = vunpack.c.l.b16 %v574
      %v2478 = vunpack.c.l.b16 %v575
      %v2479 = vunpack.c.l.b16 %v576
      %v2480 = vunpack.c.l.b16 %v577
      %v2481 = vunpack.c.l.b16 %v578
      %v2482 = vunpack.c.l.b16 %v579
      %v2483 = vunpack.c.l.b16 %v580
      %v2484 = vunpack.c.l.b16 %v581
      %v2485 = vunpack.c.l.b16 %v582
      %v2486 = vunpack.c.l.b16 %v583
      %v2487 = vunpack.c.l.b16 %v584
      %v2488 = vunpack.c.l.b16 %v585
      %v2489 = vunpack.c.l.b16 %v586
      %v2490 = vunpack.c.l.b16 %v587
      %v2491 = vunpack.c.l.b16 %v588
      %v2492 = vunpack.c.l.b16 %v589
      %v2493 = vunpack.c.l.b16 %v590
      %v2494 = vunpack.c.l.b16 %v591
      %v2495 = vunpack.c.l.b16 %v592
      %v2496 = vunpack.c.l.b16 %v593
      %v2497 = vunpack.c.l.b16 %v594
      %v2498 = vunpack.c.l.b16 %v595
      %v2499 = vunpack.c.l.b16 %v596
      %v2500 = vunpack.c.l.b16 %v597
      %v2501 = vunpack.c.l.b16 %v598
      %v2502 = vunpack.c.l.b16 %v599
      %v2503 = vunpack.c.l.b16 %v600
      %v2504 = vunpack.c.l.b16 %v601
      %v2505 = vunpack.c.l.b16 %v602
      %v2506 = vunpack.c.l.b16 %v603
      %v2507 = vunpack.c.l.b16 %v604
      %v2508 = vunpack.c.l.b16 %v605
      %v2509 = vunpack.c.l.b16 %v606
      %v2510 = vunpack.c.l.b16 %v607
      %v2511 = vunpack.c.l.b16 %v608
      %v2512 = vunpack.c.l.b16 %v609
      %v2513 = vunpack.c.l.b16 %v610
      %v2514 = vunpack.c.l.b16 %v611
      %v2515 = vunpack.c.l.b16 %v612
      %v2516 = vunpack.c.l.b16 %v613
      %v2517 = vunpack.c.l.b16 %v614
      %v2518 = vunpack.c.l.b16 %v615
      %v2519 = vunpack.c.l.b16 %v616
      %v2520 = vunpack.c.l.b16 %v617
      %v2521 = vunpack.c.l.b16 %v618
      %v2522 = vunpack.c.l.b16 %v619
      %v2523 = vunpack.c.l.b16 %v620
      %v2524 = vunpack.c.l.b16 %v621
      %v2525 = vunpack.c.l.b16 %v622
      %v2526 = vunpack.c.l.b16 %v623
      %v2527 = vunpack.c.l.b16 %v624
      %v2528 = vunpack.c.l.b16 %v625
      %v2529 = vunpack.c.l.b16 %v626
      %v2530 = vunpack.c.l.b16 %v627
      %v2531 = vunpack.c.l.b16 %v628
      %v2532 = vunpack.c.l.b16 %v629
      %v2533 = vunpack.c.l.b16 %v630
      %v2534 = vunpack.c.l.b16 %v631
      %v2535 = vunpack.c.l.b16 %v632
      %v2536 = vunpack.c.l.b16 %v633
      %v2537 = vunpack.c.l.b16 %v634
      %v2538 = vunpack.c.l.b16 %v635
      %v2539 = vunpack.c.l.b16 %v636
      %v2540 = vunpack.c.l.b16 %v637
      %v2541 = vunpack.c.l.b16 %v638
      %v2542 = vunpack.c.l.b16 %v639
      %v2543 = vunpack.c.l.b16 %v640
      %v2544 = vunpack.c.l.b16 %v641
      %v2545 = vunpack.c.l.b16 %v642
      %v2546 = vunpack.c.l.b16 %v643
      %v2547 = vunpack.c.l.b16 %v644
      %v2548 = vunpack.c.l.b16 %v645
      %v2549 = vunpack.c.l.b16 %v646
      %v2550 = vunpack.c.l.b16 %v647
      %v2551 = vunpack.c.l.b16 %v648
      %v2552 = vunpack.c.l.b16 %v649
      %v2553 = vunpack.c.l.b16 %v650
      %v2554 = vunpack.c.l.b16 %v651
      %v2555 = vunpack.c.l.b16 %v652
      %v2556 = vunpack.c.l.b16 %v653
      %v2557 = vunpack.c.l.b16 %v654
      %v2558 = vunpack.c.l.b16 %v655
      %v2559 = vunpack.c.l.b16 %v656
      %v2560 = vunpack.c.l.b16 %v657
      %v2561 = vunpack.c.l.b16 %v658
      %v2562 = vunpack.c.l.b16 %v659
      %v2563 = vunpack.c.l.b16 %v660
      %v2564 = vunpack.c.l.b16 %v661
      %v2565 = vunpack.c.l.b16 %v662
      %v2566 = vunpack.c.l.b16 %v663
      %v2567 = vunpack.c.l.b16 %v664
      %v2568 = vunpack.c.l.b16 %v665
      %v2569 = vunpack.c.l.b16 %v666
      %v2570 = vunpack.c.l.b16 %v667
      %v2571 = vunpack.c.l.b16 %v668
      %v2572 = vunpack.c.l.b16 %v669
      %v2573 = vpack.c.b16 %v2466, %v2465
      %v2574 = vpack.c.b16 %v2468, %v2467
      %v2575 = vpack.c.b16 %v2470, %v2469
      %v2576 = vpack.c.b16 %v2472, %v2471
      %v2577 = vpack.c.b16 %v2474, %v2473
      %v2578 = vpack.c.b16 %v2476, %v2475
      %v2579 = vpack.c.b16 %v2478, %v2477
      %v2580 = vpack.c.b16 %v2480, %v2479
      %v2581 = vpack.c.b16 %v2482, %v2481
      %v2582 = vpack.c.b16 %v2484, %v2483
      %v2583 = vpack.c.b16 %v2486, %v2485
      %v2584 = vpack.c.b16 %v2488, %v2487
      %v2585 = vpack.c.b16 %v2490, %v2489
      %v2586 = vpack.c.b16 %v2492, %v2491
      %v2587 = vpack.c.b16 %v2494, %v2493
      %v2588 = vpack.c.b16 %v2496, %v2495
      %v2589 = vpack.c.b16 %v2498, %v2497
      %v2590 = vpack.c.b16 %v2500, %v2499
      %v2591 = vpack.c.b16 %v2502, %v2501
      %v2592 = vpack.c.b16 %v2504, %v2503
      %v2593 = vpack.c.b16 %v2506, %v2505
      %v2594 = vpack.c.b16 %v2508, %v2507
      %v2595 = vpack.c.b16 %v2510, %v2509
      %v2596 = vpack.c.b16 %v2512, %v2511
      %v2597 = vpack.c.b16 %v2514, %v2513
      %v2598 = vpack.c.b16 %v2516, %v2515
      %v2599 = vpack.c.b16 %v2518, %v2517
      %v2600 = vpack.c.b16 %v2520, %v2519
      %v2601 = vpack.c.b16 %v2522, %v2521
      %v2602 = vpack.c.b16 %v2524, %v2523
      %v2603 = vpack.c.b16 %v2526, %v2525
      %v2604 = vpack.c.b16 %v2528, %v2527
      %v2605 = vpack.c.b16 %v2530, %v2529
      %v2606 = vpack.c.b16 %v2532, %v2531
      %v2607 = vpack.c.b16 %v2534, %v2533
      %v2608 = vpack.c.b16 %v2536, %v2535
      %v2609 = vpack.c.b16 %v2538, %v2537
      %v2610 = vpack.c.b16 %v2540, %v2539
      %v2611 = vpack.c.b16 %v2542, %v2541
      %v2612 = vpack.c.b16 %v2544, %v2543
      %v2613 = vpack.c.b16 %v2546, %v2545
      %v2614 = vpack.c.b16 %v2548, %v2547
      %v2615 = vpack.c.b16 %v2550, %v2549
      %v2616 = vpack.c.b16 %v2552, %v2551
      %v2617 = vpack.c.b16 %v2554, %v2553
      %v2618 = vpack.c.b16 %v2556, %v2555
      %v2619 = vpack.c.b16 %v2558, %v2557
      %v2620 = vpack.c.b16 %v2560, %v2559
      %v2621 = vpack.c.b16 %v2562, %v2561
      %v2622 = vpack.c.b16 %v2564, %v2563
      %v2623 = vpack.c.b16 %v2566, %v2565
      %v2624 = vpack.c.b16 %v2568, %v2567
      %v2625 = vpack.c.b16 %v2570, %v2569
      %v2626 = vpack.c.b16 %v2572, %v2571
      %vm2681 = vcmask 785408
      %v2683 = vsel %vm2681, %v1739, 0
      %v2686 = vsel %vm2681, %v1746, 0
      %v2689 = vsel %vm2681, %v1753, 0
      %v2692 = vsel %vm2681, %v1760, 0
      %v2695 = vsel %vm2681, %v1767, 0
      %v2698 = vsel %vm2681, %v1774, 0
      %v2701 = vsel %vm2681, %v1781, 0
      %v2704 = vsel %vm2681, %v1788, 0
      %v2707 = vsel %vm2681, %v1795, 0
      %v2710 = vsel %vm2681, %v1802, 0
      %v2713 = vsel %vm2681, %v1809, 0
      %v2716 = vsel %vm2681, %v1816, 0
      %v2719 = vsel %vm2681, %v1823, 0
      %v2722 = vsel %vm2681, %v1830, 0
      %v2725 = vsel %vm2681, %v1837, 0
      %v2728 = vsel %vm2681, %v1844, 0
      %v2731 = vsel %vm2681, %v1851, 0
      %v2734 = vsel %vm2681, %v1858, 0
      %v2737 = vsel %vm2681, %v1865, 0
      %v2740 = vsel %vm2681, %v1872, 0
      %v2743 = vsel %vm2681, %v1879, 0
      %v2746 = vsel %vm2681, %v1886, 0
      %v2749 = vsel %vm2681, %v1893, 0
      %v2752 = vsel %vm2681, %v1900, 0
      %v2755 = vsel %vm2681, %v1907, 0
      %v2758 = vsel %vm2681, %v1914, 0
      %v2761 = vsel %vm2681, %v1921, 0
      %v2764 = vsel %vm2681, %v1928, 0
      %v2767 = vsel %vm2681, %v1935, 0
      %v2770 = vsel %vm2681, %v1942, 0
      %v2773 = vsel %vm2681, %v1949, 0
      %v2776 = vsel %vm2681, %v1956, 0
      %v2779 = vsel %vm2681, %v1963, 0
      %v2782 = vsel %vm2681, %v1970, 0
      %v2785 = vsel %vm2681, %v1977, 0
      %v2788 = vsel %vm2681, %v1984, 0
      %v2791 = vsel %vm2681, %v1991, 0
      %v2794 = vsel %vm2681, %v1998, 0
      %v2797 = vsel %vm2681, %v2005, 0
      %v2800 = vsel %vm2681, %v2012, 0
      %v2803 = vsel %vm2681, %v2019, 0
      %v2806 = vsel %vm2681, %v2026, 0
      %v2809 = vsel %vm2681, %v2033, 0
      %v2812 = vsel %vm2681, %v2040, 0
      %v2815 = vsel %vm2681, %v2047, 0
      %v2818 = vsel %vm2681, %v2054, 0
      %v2821 = vsel %vm2681, %v2061, 0
      %v2824 = vsel %vm2681, %v2068, 0
      %2826 = vmatprep.subr.bf16.mxu0 0
      %2827 = vmatpush1.bf16.msra.mxu0 %v2580
      %2828 = vmatprep.subr.bf16.mxu0 0
      %2829 = vmatpush1.bf16.msra.mxu0 %v2579
      %2830 = vmatprep.subr.bf16.mxu0 0
      %2831 = vmatpush1.bf16.msra.mxu0 %v2578
      %2832 = vmatprep.subr.bf16.mxu0 0
      %2833 = vmatpush1.bf16.msra.mxu0 %v2577
      %2834 = vmatprep.subr.bf16.mxu0 0
      %2835 = vmatpush1.bf16.msra.mxu0 %v2576
      %2836 = vmatprep.subr.bf16.mxu0 0
      %2837 = vmatpush1.bf16.msra.mxu0 %v2575
      %2838 = vmatprep.subr.bf16.mxu0 0
      %2839 = vmatpush1.bf16.msra.mxu0 %v2574
      %2840 = vmatprep.subr.bf16.mxu0 0
      %2841 = vmatpush1.bf16.msra.mxu0 %v2573
      %2842 = vmatprep.subr.bf16.mxu0 0
      %2843 = vmatpush2.bf16.msra.mxu0 %v2588
      %2844 = vmatprep.subr.bf16.mxu0 0
      %2845 = vmatpush2.bf16.msra.mxu0 %v2587
      %2846 = vmatprep.subr.bf16.mxu0 0
      %2847 = vmatpush2.bf16.msra.mxu0 %v2586
      %2848 = vmatprep.subr.bf16.mxu0 0
      %2849 = vmatpush2.bf16.msra.mxu0 %v2585
      %2850 = vmatprep.subr.bf16.mxu0 0
      %2851 = vmatpush2.bf16.msra.mxu0 %v2584
      %2852 = vmatprep.subr.bf16.mxu0 0
      %2853 = vmatpush2.bf16.msra.mxu0 %v2583
      %2854 = vmatprep.subr.bf16.mxu0 0
      %2855 = vmatpush2.bf16.msra.mxu0 %v2582
      %2856 = vmatprep.subr.bf16.mxu0 0
      %2857 = vmatpush2.bf16.msra.mxu0 %v2581
      %2858 = vmatprep.mubr.bf16.mxu0 %v1734
      %2859 = vmatmul.mubr.bf16.gmra.mxu0 %v1733
      %v2860 = vpop.f32.mrf.mxu0
      %v2861 = vadd.f32 %v675, %v2860
      %v2862 = vpop.f32.mrf.mxu0
      %v2863 = vpop.f32.mrf.mxu0
      %v2864 = vadd.f32 %v675, %v2863
      %v2865 = vpop.f32.mrf.mxu0
      %2866 = vmatprep.mubr.bf16.mxu0 %v1741
      %2867 = vmatmul.mubr.bf16.gmra.mxu0 %v1740
      %v2868 = vpop.f32.mrf.mxu0
      %v2869 = vadd.f32 %v675, %v2868
      %v2870 = vpop.f32.mrf.mxu0
      %v2871 = vpop.f32.mrf.mxu0
      %v2872 = vadd.f32 %v675, %v2871
      %v2873 = vpop.f32.mrf.mxu0
      %2874 = vmatprep.mubr.bf16.mxu0 %v1748
      %2875 = vmatmul.mubr.bf16.gmra.mxu0 %v1747
      %v2876 = vpop.f32.mrf.mxu0
      %v2877 = vadd.f32 %v675, %v2876
      %v2878 = vpop.f32.mrf.mxu0
      %v2879 = vpop.f32.mrf.mxu0
      %v2880 = vadd.f32 %v675, %v2879
      %v2881 = vpop.f32.mrf.mxu0
      %2882 = vmatprep.mubr.bf16.mxu0 %v1755
      %2883 = vmatmul.mubr.bf16.gmra.mxu0 %v1754
      %v2884 = vpop.f32.mrf.mxu0
      %v2885 = vadd.f32 %v675, %v2884
      %v2886 = vpop.f32.mrf.mxu0
      %v2887 = vpop.f32.mrf.mxu0
      %v2888 = vadd.f32 %v675, %v2887
      %v2889 = vpop.f32.mrf.mxu0
      %2890 = vmatprep.mubr.bf16.mxu0 %v1762
      %2891 = vmatmul.mubr.bf16.gmra.mxu0 %v1761
      %v2892 = vpop.f32.mrf.mxu0
      %v2893 = vadd.f32 %v675, %v2892
      %v2894 = vpop.f32.mrf.mxu0
      %v2895 = vpop.f32.mrf.mxu0
      %v2896 = vadd.f32 %v675, %v2895
      %v2897 = vpop.f32.mrf.mxu0
      %2898 = vmatprep.mubr.bf16.mxu0 %v1769
      %2899 = vmatmul.mubr.bf16.gmra.mxu0 %v1768
      %v2900 = vpop.f32.mrf.mxu0
      %v2901 = vadd.f32 %v675, %v2900
      %v2902 = vpop.f32.mrf.mxu0
      %v2903 = vpop.f32.mrf.mxu0
      %v2904 = vadd.f32 %v675, %v2903
      %v2905 = vpop.f32.mrf.mxu0
      %2906 = vmatprep.mubr.bf16.mxu0 %v1776
      %2907 = vmatmul.mubr.bf16.gmra.mxu0 %v1775
      %v2908 = vpop.f32.mrf.mxu0
      %v2909 = vadd.f32 %v675, %v2908
      %v2910 = vpop.f32.mrf.mxu0
      %v2911 = vpop.f32.mrf.mxu0
      %v2912 = vadd.f32 %v675, %v2911
      %v2913 = vpop.f32.mrf.mxu0
      %2914 = vmatprep.mubr.bf16.mxu0 %v1783
      %2915 = vmatmul.mubr.bf16.gmra.mxu0 %v1782
      %v2916 = vpop.f32.mrf.mxu0
      %v2917 = vadd.f32 %v675, %v2916
      %v2918 = vpop.f32.mrf.mxu0
      %v2919 = vpop.f32.mrf.mxu0
      %v2920 = vadd.f32 %v675, %v2919
      %v2921 = vpop.f32.mrf.mxu0
      %2922 = vmatprep.mubr.bf16.mxu0 %v1790
      %2923 = vmatmul.mubr.bf16.gmra.mxu0 %v1789
      %v2924 = vpop.f32.mrf.mxu0
      %v2925 = vadd.f32 %v675, %v2924
      %v2926 = vpop.f32.mrf.mxu0
      %v2927 = vpop.f32.mrf.mxu0
      %v2928 = vadd.f32 %v675, %v2927
      %v2929 = vpop.f32.mrf.mxu0
      %2930 = vmatprep.mubr.bf16.mxu0 %v1797
      %2931 = vmatmul.mubr.bf16.gmra.mxu0 %v1796
      %v2932 = vpop.f32.mrf.mxu0
      %v2933 = vadd.f32 %v675, %v2932
      %v2934 = vpop.f32.mrf.mxu0
      %v2935 = vpop.f32.mrf.mxu0
      %v2936 = vadd.f32 %v675, %v2935
      %v2937 = vpop.f32.mrf.mxu0
      %2938 = vmatprep.mubr.bf16.mxu0 %v1804
      %2939 = vmatmul.mubr.bf16.gmra.mxu0 %v1803
      %v2940 = vpop.f32.mrf.mxu0
      %v2941 = vadd.f32 %v675, %v2940
      %v2942 = vpop.f32.mrf.mxu0
      %v2943 = vpop.f32.mrf.mxu0
      %v2944 = vadd.f32 %v675, %v2943
      %v2945 = vpop.f32.mrf.mxu0
      %2946 = vmatprep.mubr.bf16.mxu0 %v1811
      %2947 = vmatmul.mubr.bf16.gmra.mxu0 %v1810
      %v2948 = vpop.f32.mrf.mxu0
      %v2949 = vadd.f32 %v675, %v2948
      %v2950 = vpop.f32.mrf.mxu0
      %v2951 = vpop.f32.mrf.mxu0
      %v2952 = vadd.f32 %v675, %v2951
      %v2953 = vpop.f32.mrf.mxu0
      %2954 = vmatprep.mubr.bf16.mxu0 %v1818
      %2955 = vmatmul.mubr.bf16.gmra.mxu0 %v1817
      %v2956 = vpop.f32.mrf.mxu0
      %v2957 = vadd.f32 %v675, %v2956
      %v2958 = vpop.f32.mrf.mxu0
      %v2959 = vpop.f32.mrf.mxu0
      %v2960 = vadd.f32 %v675, %v2959
      %v2961 = vpop.f32.mrf.mxu0
      %2962 = vmatprep.mubr.bf16.mxu0 %v1825
      %2963 = vmatmul.mubr.bf16.gmra.mxu0 %v1824
      %v2964 = vpop.f32.mrf.mxu0
      %v2965 = vadd.f32 %v675, %v2964
      %v2966 = vpop.f32.mrf.mxu0
      %v2967 = vpop.f32.mrf.mxu0
      %v2968 = vadd.f32 %v675, %v2967
      %v2969 = vpop.f32.mrf.mxu0
      %2970 = vmatprep.mubr.bf16.mxu0 %v1832
      %2971 = vmatmul.mubr.bf16.gmra.mxu0 %v1831
      %v2972 = vpop.f32.mrf.mxu0
      %v2973 = vadd.f32 %v675, %v2972
      %v2974 = vpop.f32.mrf.mxu0
      %v2975 = vpop.f32.mrf.mxu0
      %v2976 = vadd.f32 %v675, %v2975
      %v2977 = vpop.f32.mrf.mxu0
      %2978 = vmatprep.mubr.bf16.mxu0 %v1839
      %2979 = vmatmul.mubr.bf16.gmra.mxu0 %v1838
      %v2980 = vpop.f32.mrf.mxu0
      %v2981 = vadd.f32 %v675, %v2980
      %v2982 = vpop.f32.mrf.mxu0
      %v2983 = vpop.f32.mrf.mxu0
      %v2984 = vadd.f32 %v675, %v2983
      %v2985 = vpop.f32.mrf.mxu0
      %2986 = vmatprep.mubr.bf16.mxu0 %v1846
      %2987 = vmatmul.mubr.bf16.gmra.mxu0 %v1845
      %v2988 = vpop.f32.mrf.mxu0
      %v2989 = vadd.f32 %v675, %v2988
      %v2990 = vpop.f32.mrf.mxu0
      %v2991 = vpop.f32.mrf.mxu0
      %v2992 = vadd.f32 %v675, %v2991
      %v2993 = vpop.f32.mrf.mxu0
      %2994 = vmatprep.mubr.bf16.mxu0 %v1853
      %2995 = vmatmul.mubr.bf16.gmra.mxu0 %v1852
      %v2996 = vpop.f32.mrf.mxu0
      %v2997 = vadd.f32 %v675, %v2996
      %v2998 = vpop.f32.mrf.mxu0
      %v2999 = vpop.f32.mrf.mxu0
      %v3000 = vadd.f32 %v675, %v2999
      %v3001 = vpop.f32.mrf.mxu0
      %3002 = vmatprep.mubr.bf16.mxu0 %v1860
      %3003 = vmatmul.mubr.bf16.gmra.mxu0 %v1859
      %v3004 = vpop.f32.mrf.mxu0
      %v3005 = vadd.f32 %v675, %v3004
      %v3006 = vpop.f32.mrf.mxu0
      %v3007 = vpop.f32.mrf.mxu0
      %v3008 = vadd.f32 %v675, %v3007
      %v3009 = vpop.f32.mrf.mxu0
      %3010 = vmatprep.mubr.bf16.mxu0 %v1867
      %3011 = vmatmul.mubr.bf16.gmra.mxu0 %v1866
      %v3012 = vpop.f32.mrf.mxu0
      %v3013 = vadd.f32 %v675, %v3012
      %v3014 = vpop.f32.mrf.mxu0
      %v3015 = vpop.f32.mrf.mxu0
      %v3016 = vadd.f32 %v675, %v3015
      %v3017 = vpop.f32.mrf.mxu0
      %3018 = vmatprep.mubr.bf16.mxu0 %v1874
      %3019 = vmatmul.mubr.bf16.gmra.mxu0 %v1873
      %v3020 = vpop.f32.mrf.mxu0
      %v3021 = vadd.f32 %v675, %v3020
      %v3022 = vpop.f32.mrf.mxu0
      %v3023 = vpop.f32.mrf.mxu0
      %v3024 = vadd.f32 %v675, %v3023
      %v3025 = vpop.f32.mrf.mxu0
      %3026 = vmatprep.mubr.bf16.mxu0 %v1881
      %3027 = vmatmul.mubr.bf16.gmra.mxu0 %v1880
      %v3028 = vpop.f32.mrf.mxu0
      %v3029 = vadd.f32 %v675, %v3028
      %v3030 = vpop.f32.mrf.mxu0
      %v3031 = vpop.f32.mrf.mxu0
      %v3032 = vadd.f32 %v675, %v3031
      %v3033 = vpop.f32.mrf.mxu0
      %3034 = vmatprep.mubr.bf16.mxu0 %v1888
      %3035 = vmatmul.mubr.bf16.gmra.mxu0 %v1887
      %v3036 = vpop.f32.mrf.mxu0
      %v3037 = vadd.f32 %v675, %v3036
      %v3038 = vpop.f32.mrf.mxu0
      %v3039 = vpop.f32.mrf.mxu0
      %v3040 = vadd.f32 %v675, %v3039
      %v3041 = vpop.f32.mrf.mxu0
      %3042 = vmatprep.mubr.bf16.mxu0 %v1895
      %3043 = vmatmul.mubr.bf16.gmra.mxu0 %v1894
      %v3044 = vpop.f32.mrf.mxu0
      %v3045 = vadd.f32 %v675, %v3044
      %v3046 = vpop.f32.mrf.mxu0
      %v3047 = vpop.f32.mrf.mxu0
      %v3048 = vadd.f32 %v675, %v3047
      %v3049 = vpop.f32.mrf.mxu0
      %3050 = vmatprep.mubr.bf16.mxu0 %v1902
      %3051 = vmatmul.mubr.bf16.gmra.mxu0 %v1901
      %v3052 = vpop.f32.mrf.mxu0
      %v3053 = vadd.f32 %v675, %v3052
      %v3054 = vpop.f32.mrf.mxu0
      %v3055 = vpop.f32.mrf.mxu0
      %v3056 = vadd.f32 %v675, %v3055
      %v3057 = vpop.f32.mrf.mxu0
      %3058 = vmatprep.mubr.bf16.mxu0 %v1909
      %3059 = vmatmul.mubr.bf16.gmra.mxu0 %v1908
      %v3060 = vpop.f32.mrf.mxu0
      %v3061 = vadd.f32 %v675, %v3060
      %v3062 = vpop.f32.mrf.mxu0
      %v3063 = vpop.f32.mrf.mxu0
      %v3064 = vadd.f32 %v675, %v3063
      %v3065 = vpop.f32.mrf.mxu0
      %3066 = vmatprep.mubr.bf16.mxu0 %v1916
      %3067 = vmatmul.mubr.bf16.gmra.mxu0 %v1915
      %v3068 = vpop.f32.mrf.mxu0
      %v3069 = vadd.f32 %v675, %v3068
      %v3070 = vpop.f32.mrf.mxu0
      %v3071 = vpop.f32.mrf.mxu0
      %v3072 = vadd.f32 %v675, %v3071
      %v3073 = vpop.f32.mrf.mxu0
      %3074 = vmatprep.mubr.bf16.mxu0 %v1923
      %3075 = vmatmul.mubr.bf16.gmra.mxu0 %v1922
      %v3076 = vpop.f32.mrf.mxu0
      %v3077 = vadd.f32 %v675, %v3076
      %v3078 = vpop.f32.mrf.mxu0
      %v3079 = vpop.f32.mrf.mxu0
      %v3080 = vadd.f32 %v675, %v3079
      %v3081 = vpop.f32.mrf.mxu0
      %3082 = vmatprep.mubr.bf16.mxu0 %v1930
      %3083 = vmatmul.mubr.bf16.gmra.mxu0 %v1929
      %v3084 = vpop.f32.mrf.mxu0
      %v3085 = vadd.f32 %v675, %v3084
      %v3086 = vpop.f32.mrf.mxu0
      %v3087 = vpop.f32.mrf.mxu0
      %v3088 = vadd.f32 %v675, %v3087
      %v3089 = vpop.f32.mrf.mxu0
      %3090 = vmatprep.mubr.bf16.mxu0 %v1937
      %3091 = vmatmul.mubr.bf16.gmra.mxu0 %v1936
      %v3092 = vpop.f32.mrf.mxu0
      %v3093 = vadd.f32 %v675, %v3092
      %v3094 = vpop.f32.mrf.mxu0
      %v3095 = vpop.f32.mrf.mxu0
      %v3096 = vadd.f32 %v675, %v3095
      %v3097 = vpop.f32.mrf.mxu0
      %3098 = vmatprep.mubr.bf16.mxu0 %v1944
      %3099 = vmatmul.mubr.bf16.gmra.mxu0 %v1943
      %v3100 = vpop.f32.mrf.mxu0
      %v3101 = vadd.f32 %v675, %v3100
      %v3102 = vpop.f32.mrf.mxu0
      %v3103 = vpop.f32.mrf.mxu0
      %v3104 = vadd.f32 %v675, %v3103
      %v3105 = vpop.f32.mrf.mxu0
      %3106 = vmatprep.mubr.bf16.mxu0 %v1951
      %3107 = vmatmul.mubr.bf16.gmra.mxu0 %v1950
      %v3108 = vpop.f32.mrf.mxu0
      %v3109 = vadd.f32 %v675, %v3108
      %v3110 = vpop.f32.mrf.mxu0
      %v3111 = vpop.f32.mrf.mxu0
      %v3112 = vadd.f32 %v675, %v3111
      %v3113 = vpop.f32.mrf.mxu0
      %3114 = vmatprep.mubr.bf16.mxu0 %v1958
      %3115 = vmatmul.mubr.bf16.gmra.mxu0 %v1957
      %v3116 = vpop.f32.mrf.mxu0
      %v3117 = vadd.f32 %v675, %v3116
      %v3118 = vpop.f32.mrf.mxu0
      %v3119 = vpop.f32.mrf.mxu0
      %v3120 = vadd.f32 %v675, %v3119
      %v3121 = vpop.f32.mrf.mxu0
      %3122 = vmatprep.mubr.bf16.mxu0 %v1965
      %3123 = vmatmul.mubr.bf16.gmra.mxu0 %v1964
      %v3124 = vpop.f32.mrf.mxu0
      %v3125 = vadd.f32 %v675, %v3124
      %v3126 = vpop.f32.mrf.mxu0
      %v3127 = vpop.f32.mrf.mxu0
      %v3128 = vadd.f32 %v675, %v3127
      %v3129 = vpop.f32.mrf.mxu0
      %3130 = vmatprep.mubr.bf16.mxu0 %v1972
      %3131 = vmatmul.mubr.bf16.gmra.mxu0 %v1971
      %v3132 = vpop.f32.mrf.mxu0
      %v3133 = vadd.f32 %v675, %v3132
      %v3134 = vpop.f32.mrf.mxu0
      %v3135 = vpop.f32.mrf.mxu0
      %v3136 = vadd.f32 %v675, %v3135
      %v3137 = vpop.f32.mrf.mxu0
      %3138 = vmatprep.mubr.bf16.mxu0 %v1979
      %3139 = vmatmul.mubr.bf16.gmra.mxu0 %v1978
      %v3140 = vpop.f32.mrf.mxu0
      %v3141 = vadd.f32 %v675, %v3140
      %v3142 = vpop.f32.mrf.mxu0
      %v3143 = vpop.f32.mrf.mxu0
      %v3144 = vadd.f32 %v675, %v3143
      %v3145 = vpop.f32.mrf.mxu0
      %3146 = vmatprep.mubr.bf16.mxu0 %v1986
      %3147 = vmatmul.mubr.bf16.gmra.mxu0 %v1985
      %v3148 = vpop.f32.mrf.mxu0
      %v3149 = vadd.f32 %v675, %v3148
      %v3150 = vpop.f32.mrf.mxu0
      %v3151 = vpop.f32.mrf.mxu0
      %v3152 = vadd.f32 %v675, %v3151
      %v3153 = vpop.f32.mrf.mxu0
      %3154 = vmatprep.mubr.bf16.mxu0 %v1993
      %3155 = vmatmul.mubr.bf16.gmra.mxu0 %v1992
      %v3156 = vpop.f32.mrf.mxu0
      %v3157 = vadd.f32 %v675, %v3156
      %v3158 = vpop.f32.mrf.mxu0
      %v3159 = vpop.f32.mrf.mxu0
      %v3160 = vadd.f32 %v675, %v3159
      %v3161 = vpop.f32.mrf.mxu0
      %3162 = vmatprep.mubr.bf16.mxu0 %v2000
      %3163 = vmatmul.mubr.bf16.gmra.mxu0 %v1999
      %v3164 = vpop.f32.mrf.mxu0
      %v3165 = vadd.f32 %v675, %v3164
      %v3166 = vpop.f32.mrf.mxu0
      %v3167 = vpop.f32.mrf.mxu0
      %v3168 = vadd.f32 %v675, %v3167
      %v3169 = vpop.f32.mrf.mxu0
      %3170 = vmatprep.mubr.bf16.mxu0 %v2007
      %3171 = vmatmul.mubr.bf16.gmra.mxu0 %v2006
      %v3172 = vpop.f32.mrf.mxu0
      %v3173 = vadd.f32 %v675, %v3172
      %v3174 = vpop.f32.mrf.mxu0
      %v3175 = vpop.f32.mrf.mxu0
      %v3176 = vadd.f32 %v675, %v3175
      %v3177 = vpop.f32.mrf.mxu0
      %3178 = vmatprep.mubr.bf16.mxu0 %v2014
      %3179 = vmatmul.mubr.bf16.gmra.mxu0 %v2013
      %v3180 = vpop.f32.mrf.mxu0
      %v3181 = vadd.f32 %v675, %v3180
      %v3182 = vpop.f32.mrf.mxu0
      %v3183 = vpop.f32.mrf.mxu0
      %v3184 = vadd.f32 %v675, %v3183
      %v3185 = vpop.f32.mrf.mxu0
      %3186 = vmatprep.mubr.bf16.mxu0 %v2021
      %3187 = vmatmul.mubr.bf16.gmra.mxu0 %v2020
      %v3188 = vpop.f32.mrf.mxu0
      %v3189 = vadd.f32 %v675, %v3188
      %v3190 = vpop.f32.mrf.mxu0
      %v3191 = vpop.f32.mrf.mxu0
      %v3192 = vadd.f32 %v675, %v3191
      %v3193 = vpop.f32.mrf.mxu0
      %3194 = vmatprep.mubr.bf16.mxu0 %v2028
      %3195 = vmatmul.mubr.bf16.gmra.mxu0 %v2027
      %v3196 = vpop.f32.mrf.mxu0
      %v3197 = vadd.f32 %v675, %v3196
      %v3198 = vpop.f32.mrf.mxu0
      %v3199 = vpop.f32.mrf.mxu0
      %v3200 = vadd.f32 %v675, %v3199
      %v3201 = vpop.f32.mrf.mxu0
      %3202 = vmatprep.mubr.bf16.mxu0 %v2035
      %3203 = vmatmul.mubr.bf16.gmra.mxu0 %v2034
      %v3204 = vpop.f32.mrf.mxu0
      %v3205 = vadd.f32 %v675, %v3204
      %v3206 = vpop.f32.mrf.mxu0
      %v3207 = vpop.f32.mrf.mxu0
      %v3208 = vadd.f32 %v675, %v3207
      %v3209 = vpop.f32.mrf.mxu0
      %3210 = vmatprep.mubr.bf16.mxu0 %v2042
      %3211 = vmatmul.mubr.bf16.gmra.mxu0 %v2041
      %v3212 = vpop.f32.mrf.mxu0
      %v3213 = vadd.f32 %v675, %v3212
      %v3214 = vpop.f32.mrf.mxu0
      %v3215 = vpop.f32.mrf.mxu0
      %v3216 = vadd.f32 %v675, %v3215
      %v3217 = vpop.f32.mrf.mxu0
      %3218 = vmatprep.mubr.bf16.mxu0 %v2049
      %3219 = vmatmul.mubr.bf16.gmra.mxu0 %v2048
      %v3220 = vpop.f32.mrf.mxu0
      %v3221 = vadd.f32 %v675, %v3220
      %v3222 = vpop.f32.mrf.mxu0
      %v3223 = vpop.f32.mrf.mxu0
      %v3224 = vadd.f32 %v675, %v3223
      %v3225 = vpop.f32.mrf.mxu0
      %3226 = vmatprep.mubr.bf16.mxu0 %v2056
      %3227 = vmatmul.mubr.bf16.gmra.mxu0 %v2055
      %v3228 = vpop.f32.mrf.mxu0
      %v3229 = vadd.f32 %v675, %v3228
      %v3230 = vpop.f32.mrf.mxu0
      %v3231 = vpop.f32.mrf.mxu0
      %v3232 = vadd.f32 %v675, %v3231
      %v3233 = vpop.f32.mrf.mxu0
      %3234 = vmatprep.mubr.bf16.mxu0 %v2063
      %3235 = vmatmul.mubr.bf16.gmra.mxu0 %v2062
      %v3236 = vpop.f32.mrf.mxu0
      %v3237 = vadd.f32 %v675, %v3236
      %v3238 = vpop.f32.mrf.mxu0
      %v3239 = vpop.f32.mrf.mxu0
      %v3240 = vadd.f32 %v675, %v3239
      %v3241 = vpop.f32.mrf.mxu0
      %3242 = vdwg.mxu0
      %3243 = vmatprep.subr.bf16.mxu0 0
      %3244 = vmatpush1.bf16.msra.mxu0 %v2596
      %3245 = vmatprep.subr.bf16.mxu0 0
      %3246 = vmatpush1.bf16.msra.mxu0 %v2595
      %3247 = vmatprep.subr.bf16.mxu0 0
      %3248 = vmatpush1.bf16.msra.mxu0 %v2594
      %3249 = vmatprep.subr.bf16.mxu0 0
      %3250 = vmatpush1.bf16.msra.mxu0 %v2593
      %3251 = vmatprep.subr.bf16.mxu0 0
      %3252 = vmatpush1.bf16.msra.mxu0 %v2592
      %3253 = vmatprep.subr.bf16.mxu0 0
      %3254 = vmatpush1.bf16.msra.mxu0 %v2591
      %3255 = vmatprep.subr.bf16.mxu0 0
      %3256 = vmatpush1.bf16.msra.mxu0 %v2590
      %3257 = vmatprep.subr.bf16.mxu0 0
      %3258 = vmatpush1.bf16.msra.mxu0 %v2589
      %3259 = vmatprep.subr.bf16.mxu0 0
      %3260 = vmatpush2.bf16.msra.mxu0 %v2604
      %3261 = vmatprep.subr.bf16.mxu0 0
      %3262 = vmatpush2.bf16.msra.mxu0 %v2603
      %3263 = vmatprep.subr.bf16.mxu0 0
      %3264 = vmatpush2.bf16.msra.mxu0 %v2602
      %3265 = vmatprep.subr.bf16.mxu0 0
      %3266 = vmatpush2.bf16.msra.mxu0 %v2601
      %3267 = vmatprep.subr.bf16.mxu0 0
      %3268 = vmatpush2.bf16.msra.mxu0 %v2600
      %3269 = vmatprep.subr.bf16.mxu0 0
      %3270 = vmatpush2.bf16.msra.mxu0 %v2599
      %3271 = vmatprep.subr.bf16.mxu0 0
      %3272 = vmatpush2.bf16.msra.mxu0 %v2598
      %3273 = vmatprep.subr.bf16.mxu0 0
      %3274 = vmatpush2.bf16.msra.mxu0 %v2597
      %3275 = vmatprep.mubr.bf16.mxu0 %v1736
      %3276 = vmatmul.mubr.bf16.gmra.mxu0 %v1735
      %v3277 = vpop.f32.mrf.mxu0
      %v3278 = vadd.f32 %v2861, %v3277
      %v3279 = vpop.f32.mrf.mxu0
      %v3280 = vpop.f32.mrf.mxu0
      %v3281 = vadd.f32 %v2864, %v3280
      %v3282 = vpop.f32.mrf.mxu0
      %3283 = vmatprep.mubr.bf16.mxu0 %v1743
      %3284 = vmatmul.mubr.bf16.gmra.mxu0 %v1742
      %v3285 = vpop.f32.mrf.mxu0
      %v3286 = vadd.f32 %v2869, %v3285
      %v3287 = vpop.f32.mrf.mxu0
      %v3288 = vpop.f32.mrf.mxu0
      %v3289 = vadd.f32 %v2872, %v3288
      %v3290 = vpop.f32.mrf.mxu0
      %3291 = vmatprep.mubr.bf16.mxu0 %v1750
      %3292 = vmatmul.mubr.bf16.gmra.mxu0 %v1749
      %v3293 = vpop.f32.mrf.mxu0
      %v3294 = vadd.f32 %v2877, %v3293
      %v3295 = vpop.f32.mrf.mxu0
      %v3296 = vpop.f32.mrf.mxu0
      %v3297 = vadd.f32 %v2880, %v3296
      %v3298 = vpop.f32.mrf.mxu0
      %3299 = vmatprep.mubr.bf16.mxu0 %v1757
      %3300 = vmatmul.mubr.bf16.gmra.mxu0 %v1756
      %v3301 = vpop.f32.mrf.mxu0
      %v3302 = vadd.f32 %v2885, %v3301
      %v3303 = vpop.f32.mrf.mxu0
      %v3304 = vpop.f32.mrf.mxu0
      %v3305 = vadd.f32 %v2888, %v3304
      %v3306 = vpop.f32.mrf.mxu0
      %3307 = vmatprep.mubr.bf16.mxu0 %v1764
      %3308 = vmatmul.mubr.bf16.gmra.mxu0 %v1763
      %v3309 = vpop.f32.mrf.mxu0
      %v3310 = vadd.f32 %v2893, %v3309
      %v3311 = vpop.f32.mrf.mxu0
      %v3312 = vpop.f32.mrf.mxu0
      %v3313 = vadd.f32 %v2896, %v3312
      %v3314 = vpop.f32.mrf.mxu0
      %3315 = vmatprep.mubr.bf16.mxu0 %v1771
      %3316 = vmatmul.mubr.bf16.gmra.mxu0 %v1770
      %v3317 = vpop.f32.mrf.mxu0
      %v3318 = vadd.f32 %v2901, %v3317
      %v3319 = vpop.f32.mrf.mxu0
      %v3320 = vpop.f32.mrf.mxu0
      %v3321 = vadd.f32 %v2904, %v3320
      %v3322 = vpop.f32.mrf.mxu0
      %3323 = vmatprep.mubr.bf16.mxu0 %v1778
      %3324 = vmatmul.mubr.bf16.gmra.mxu0 %v1777
      %v3325 = vpop.f32.mrf.mxu0
      %v3326 = vadd.f32 %v2909, %v3325
      %v3327 = vpop.f32.mrf.mxu0
      %v3328 = vpop.f32.mrf.mxu0
      %v3329 = vadd.f32 %v2912, %v3328
      %v3330 = vpop.f32.mrf.mxu0
      %3331 = vmatprep.mubr.bf16.mxu0 %v1785
      %3332 = vmatmul.mubr.bf16.gmra.mxu0 %v1784
      %v3333 = vpop.f32.mrf.mxu0
      %v3334 = vadd.f32 %v2917, %v3333
      %v3335 = vpop.f32.mrf.mxu0
      %v3336 = vpop.f32.mrf.mxu0
      %v3337 = vadd.f32 %v2920, %v3336
      %v3338 = vpop.f32.mrf.mxu0
      %3339 = vmatprep.mubr.bf16.mxu0 %v1792
      %3340 = vmatmul.mubr.bf16.gmra.mxu0 %v1791
      %v3341 = vpop.f32.mrf.mxu0
      %v3342 = vadd.f32 %v2925, %v3341
      %v3343 = vpop.f32.mrf.mxu0
      %v3344 = vpop.f32.mrf.mxu0
      %v3345 = vadd.f32 %v2928, %v3344
      %v3346 = vpop.f32.mrf.mxu0
      %3347 = vmatprep.mubr.bf16.mxu0 %v1799
      %3348 = vmatmul.mubr.bf16.gmra.mxu0 %v1798
      %v3349 = vpop.f32.mrf.mxu0
      %v3350 = vadd.f32 %v2933, %v3349
      %v3351 = vpop.f32.mrf.mxu0
      %v3352 = vpop.f32.mrf.mxu0
      %v3353 = vadd.f32 %v2936, %v3352
      %v3354 = vpop.f32.mrf.mxu0
      %3355 = vmatprep.mubr.bf16.mxu0 %v1806
      %3356 = vmatmul.mubr.bf16.gmra.mxu0 %v1805
      %v3357 = vpop.f32.mrf.mxu0
      %v3358 = vadd.f32 %v2941, %v3357
      %v3359 = vpop.f32.mrf.mxu0
      %v3360 = vpop.f32.mrf.mxu0
      %v3361 = vadd.f32 %v2944, %v3360
      %v3362 = vpop.f32.mrf.mxu0
      %3363 = vmatprep.mubr.bf16.mxu0 %v1813
      %3364 = vmatmul.mubr.bf16.gmra.mxu0 %v1812
      %v3365 = vpop.f32.mrf.mxu0
      %v3366 = vadd.f32 %v2949, %v3365
      %v3367 = vpop.f32.mrf.mxu0
      %v3368 = vpop.f32.mrf.mxu0
      %v3369 = vadd.f32 %v2952, %v3368
      %v3370 = vpop.f32.mrf.mxu0
      %3371 = vmatprep.mubr.bf16.mxu0 %v1820
      %3372 = vmatmul.mubr.bf16.gmra.mxu0 %v1819
      %v3373 = vpop.f32.mrf.mxu0
      %v3374 = vadd.f32 %v2957, %v3373
      %v3375 = vpop.f32.mrf.mxu0
      %v3376 = vpop.f32.mrf.mxu0
      %v3377 = vadd.f32 %v2960, %v3376
      %v3378 = vpop.f32.mrf.mxu0
      %3379 = vmatprep.mubr.bf16.mxu0 %v1827
      %3380 = vmatmul.mubr.bf16.gmra.mxu0 %v1826
      %v3381 = vpop.f32.mrf.mxu0
      %v3382 = vadd.f32 %v2965, %v3381
      %v3383 = vpop.f32.mrf.mxu0
      %v3384 = vpop.f32.mrf.mxu0
      %v3385 = vadd.f32 %v2968, %v3384
      %v3386 = vpop.f32.mrf.mxu0
      %3387 = vmatprep.mubr.bf16.mxu0 %v1834
      %3388 = vmatmul.mubr.bf16.gmra.mxu0 %v1833
      %v3389 = vpop.f32.mrf.mxu0
      %v3390 = vadd.f32 %v2973, %v3389
      %v3391 = vpop.f32.mrf.mxu0
      %v3392 = vpop.f32.mrf.mxu0
      %v3393 = vadd.f32 %v2976, %v3392
      %v3394 = vpop.f32.mrf.mxu0
      %3395 = vmatprep.mubr.bf16.mxu0 %v1841
      %3396 = vmatmul.mubr.bf16.gmra.mxu0 %v1840
      %v3397 = vpop.f32.mrf.mxu0
      %v3398 = vadd.f32 %v2981, %v3397
      %v3399 = vpop.f32.mrf.mxu0
      %v3400 = vpop.f32.mrf.mxu0
      %v3401 = vadd.f32 %v2984, %v3400
      %v3402 = vpop.f32.mrf.mxu0
      %3403 = vmatprep.mubr.bf16.mxu0 %v1848
      %3404 = vmatmul.mubr.bf16.gmra.mxu0 %v1847
      %v3405 = vpop.f32.mrf.mxu0
      %v3406 = vadd.f32 %v2989, %v3405
      %v3407 = vpop.f32.mrf.mxu0
      %v3408 = vpop.f32.mrf.mxu0
      %v3409 = vadd.f32 %v2992, %v3408
      %v3410 = vpop.f32.mrf.mxu0
      %3411 = vmatprep.mubr.bf16.mxu0 %v1855
      %3412 = vmatmul.mubr.bf16.gmra.mxu0 %v1854
      %v3413 = vpop.f32.mrf.mxu0
      %v3414 = vadd.f32 %v2997, %v3413
      %v3415 = vpop.f32.mrf.mxu0
      %v3416 = vpop.f32.mrf.mxu0
      %v3417 = vadd.f32 %v3000, %v3416
      %v3418 = vpop.f32.mrf.mxu0
      %3419 = vmatprep.mubr.bf16.mxu0 %v1862
      %3420 = vmatmul.mubr.bf16.gmra.mxu0 %v1861
      %v3421 = vpop.f32.mrf.mxu0
      %v3422 = vadd.f32 %v3005, %v3421
      %v3423 = vpop.f32.mrf.mxu0
      %v3424 = vpop.f32.mrf.mxu0
      %v3425 = vadd.f32 %v3008, %v3424
      %v3426 = vpop.f32.mrf.mxu0
      %3427 = vmatprep.mubr.bf16.mxu0 %v1869
      %3428 = vmatmul.mubr.bf16.gmra.mxu0 %v1868
      %v3429 = vpop.f32.mrf.mxu0
      %v3430 = vadd.f32 %v3013, %v3429
      %v3431 = vpop.f32.mrf.mxu0
      %v3432 = vpop.f32.mrf.mxu0
      %v3433 = vadd.f32 %v3016, %v3432
      %v3434 = vpop.f32.mrf.mxu0
      %3435 = vmatprep.mubr.bf16.mxu0 %v1876
      %3436 = vmatmul.mubr.bf16.gmra.mxu0 %v1875
      %v3437 = vpop.f32.mrf.mxu0
      %v3438 = vadd.f32 %v3021, %v3437
      %v3439 = vpop.f32.mrf.mxu0
      %v3440 = vpop.f32.mrf.mxu0
      %v3441 = vadd.f32 %v3024, %v3440
      %v3442 = vpop.f32.mrf.mxu0
      %3443 = vmatprep.mubr.bf16.mxu0 %v1883
      %3444 = vmatmul.mubr.bf16.gmra.mxu0 %v1882
      %v3445 = vpop.f32.mrf.mxu0
      %v3446 = vadd.f32 %v3029, %v3445
      %v3447 = vpop.f32.mrf.mxu0
      %v3448 = vpop.f32.mrf.mxu0
      %v3449 = vadd.f32 %v3032, %v3448
      %v3450 = vpop.f32.mrf.mxu0
      %3451 = vmatprep.mubr.bf16.mxu0 %v1890
      %3452 = vmatmul.mubr.bf16.gmra.mxu0 %v1889
      %v3453 = vpop.f32.mrf.mxu0
      %v3454 = vadd.f32 %v3037, %v3453
      %v3455 = vpop.f32.mrf.mxu0
      %v3456 = vpop.f32.mrf.mxu0
      %v3457 = vadd.f32 %v3040, %v3456
      %v3458 = vpop.f32.mrf.mxu0
      %3459 = vmatprep.mubr.bf16.mxu0 %v1897
      %3460 = vmatmul.mubr.bf16.gmra.mxu0 %v1896
      %v3461 = vpop.f32.mrf.mxu0
      %v3462 = vadd.f32 %v3045, %v3461
      %v3463 = vpop.f32.mrf.mxu0
      %v3464 = vpop.f32.mrf.mxu0
      %v3465 = vadd.f32 %v3048, %v3464
      %v3466 = vpop.f32.mrf.mxu0
      %3467 = vmatprep.mubr.bf16.mxu0 %v1904
      %3468 = vmatmul.mubr.bf16.gmra.mxu0 %v1903
      %v3469 = vpop.f32.mrf.mxu0
      %v3470 = vadd.f32 %v3053, %v3469
      %v3471 = vpop.f32.mrf.mxu0
      %v3472 = vpop.f32.mrf.mxu0
      %v3473 = vadd.f32 %v3056, %v3472
      %v3474 = vpop.f32.mrf.mxu0
      %3475 = vmatprep.mubr.bf16.mxu0 %v1911
      %3476 = vmatmul.mubr.bf16.gmra.mxu0 %v1910
      %v3477 = vpop.f32.mrf.mxu0
      %v3478 = vadd.f32 %v3061, %v3477
      %v3479 = vpop.f32.mrf.mxu0
      %v3480 = vpop.f32.mrf.mxu0
      %v3481 = vadd.f32 %v3064, %v3480
      %v3482 = vpop.f32.mrf.mxu0
      %3483 = vmatprep.mubr.bf16.mxu0 %v1918
      %3484 = vmatmul.mubr.bf16.gmra.mxu0 %v1917
      %v3485 = vpop.f32.mrf.mxu0
      %v3486 = vadd.f32 %v3069, %v3485
      %v3487 = vpop.f32.mrf.mxu0
      %v3488 = vpop.f32.mrf.mxu0
      %v3489 = vadd.f32 %v3072, %v3488
      %v3490 = vpop.f32.mrf.mxu0
      %3491 = vmatprep.mubr.bf16.mxu0 %v1925
      %3492 = vmatmul.mubr.bf16.gmra.mxu0 %v1924
      %v3493 = vpop.f32.mrf.mxu0
      %v3494 = vadd.f32 %v3077, %v3493
      %v3495 = vpop.f32.mrf.mxu0
      %v3496 = vpop.f32.mrf.mxu0
      %v3497 = vadd.f32 %v3080, %v3496
      %v3498 = vpop.f32.mrf.mxu0
      %3499 = vmatprep.mubr.bf16.mxu0 %v1932
      %3500 = vmatmul.mubr.bf16.gmra.mxu0 %v1931
      %v3501 = vpop.f32.mrf.mxu0
      %v3502 = vadd.f32 %v3085, %v3501
      %v3503 = vpop.f32.mrf.mxu0
      %v3504 = vpop.f32.mrf.mxu0
      %v3505 = vadd.f32 %v3088, %v3504
      %v3506 = vpop.f32.mrf.mxu0
      %3507 = vmatprep.mubr.bf16.mxu0 %v1939
      %3508 = vmatmul.mubr.bf16.gmra.mxu0 %v1938
      %v3509 = vpop.f32.mrf.mxu0
      %v3510 = vadd.f32 %v3093, %v3509
      %v3511 = vpop.f32.mrf.mxu0
      %v3512 = vpop.f32.mrf.mxu0
      %v3513 = vadd.f32 %v3096, %v3512
      %v3514 = vpop.f32.mrf.mxu0
      %3515 = vmatprep.mubr.bf16.mxu0 %v1946
      %3516 = vmatmul.mubr.bf16.gmra.mxu0 %v1945
      %v3517 = vpop.f32.mrf.mxu0
      %v3518 = vadd.f32 %v3101, %v3517
      %v3519 = vpop.f32.mrf.mxu0
      %v3520 = vpop.f32.mrf.mxu0
      %v3521 = vadd.f32 %v3104, %v3520
      %v3522 = vpop.f32.mrf.mxu0
      %3523 = vmatprep.mubr.bf16.mxu0 %v1953
      %3524 = vmatmul.mubr.bf16.gmra.mxu0 %v1952
      %v3525 = vpop.f32.mrf.mxu0
      %v3526 = vadd.f32 %v3109, %v3525
      %v3527 = vpop.f32.mrf.mxu0
      %v3528 = vpop.f32.mrf.mxu0
      %v3529 = vadd.f32 %v3112, %v3528
      %v3530 = vpop.f32.mrf.mxu0
      %3531 = vmatprep.mubr.bf16.mxu0 %v1960
      %3532 = vmatmul.mubr.bf16.gmra.mxu0 %v1959
      %v3533 = vpop.f32.mrf.mxu0
      %v3534 = vadd.f32 %v3117, %v3533
      %v3535 = vpop.f32.mrf.mxu0
      %v3536 = vpop.f32.mrf.mxu0
      %v3537 = vadd.f32 %v3120, %v3536
      %v3538 = vpop.f32.mrf.mxu0
      %3539 = vmatprep.mubr.bf16.mxu0 %v1967
      %3540 = vmatmul.mubr.bf16.gmra.mxu0 %v1966
      %v3541 = vpop.f32.mrf.mxu0
      %v3542 = vadd.f32 %v3125, %v3541
      %v3543 = vpop.f32.mrf.mxu0
      %v3544 = vpop.f32.mrf.mxu0
      %v3545 = vadd.f32 %v3128, %v3544
      %v3546 = vpop.f32.mrf.mxu0
      %3547 = vmatprep.mubr.bf16.mxu0 %v1974
      %3548 = vmatmul.mubr.bf16.gmra.mxu0 %v1973
      %v3549 = vpop.f32.mrf.mxu0
      %v3550 = vadd.f32 %v3133, %v3549
      %v3551 = vpop.f32.mrf.mxu0
      %v3552 = vpop.f32.mrf.mxu0
      %v3553 = vadd.f32 %v3136, %v3552
      %v3554 = vpop.f32.mrf.mxu0
      %3555 = vmatprep.mubr.bf16.mxu0 %v1981
      %3556 = vmatmul.mubr.bf16.gmra.mxu0 %v1980
      %v3557 = vpop.f32.mrf.mxu0
      %v3558 = vadd.f32 %v3141, %v3557
      %v3559 = vpop.f32.mrf.mxu0
      %v3560 = vpop.f32.mrf.mxu0
      %v3561 = vadd.f32 %v3144, %v3560
      %v3562 = vpop.f32.mrf.mxu0
      %3563 = vmatprep.mubr.bf16.mxu0 %v1988
      %3564 = vmatmul.mubr.bf16.gmra.mxu0 %v1987
      %v3565 = vpop.f32.mrf.mxu0
      %v3566 = vadd.f32 %v3149, %v3565
      %v3567 = vpop.f32.mrf.mxu0
      %v3568 = vpop.f32.mrf.mxu0
      %v3569 = vadd.f32 %v3152, %v3568
      %v3570 = vpop.f32.mrf.mxu0
      %3571 = vmatprep.mubr.bf16.mxu0 %v1995
      %3572 = vmatmul.mubr.bf16.gmra.mxu0 %v1994
      %v3573 = vpop.f32.mrf.mxu0
      %v3574 = vadd.f32 %v3157, %v3573
      %v3575 = vpop.f32.mrf.mxu0
      %v3576 = vpop.f32.mrf.mxu0
      %v3577 = vadd.f32 %v3160, %v3576
      %v3578 = vpop.f32.mrf.mxu0
      %3579 = vmatprep.mubr.bf16.mxu0 %v2002
      %3580 = vmatmul.mubr.bf16.gmra.mxu0 %v2001
      %v3581 = vpop.f32.mrf.mxu0
      %v3582 = vadd.f32 %v3165, %v3581
      %v3583 = vpop.f32.mrf.mxu0
      %v3584 = vpop.f32.mrf.mxu0
      %v3585 = vadd.f32 %v3168, %v3584
      %v3586 = vpop.f32.mrf.mxu0
      %3587 = vmatprep.mubr.bf16.mxu0 %v2009
      %3588 = vmatmul.mubr.bf16.gmra.mxu0 %v2008
      %v3589 = vpop.f32.mrf.mxu0
      %v3590 = vadd.f32 %v3173, %v3589
      %v3591 = vpop.f32.mrf.mxu0
      %v3592 = vpop.f32.mrf.mxu0
      %v3593 = vadd.f32 %v3176, %v3592
      %v3594 = vpop.f32.mrf.mxu0
      %3595 = vmatprep.mubr.bf16.mxu0 %v2016
      %3596 = vmatmul.mubr.bf16.gmra.mxu0 %v2015
      %v3597 = vpop.f32.mrf.mxu0
      %v3598 = vadd.f32 %v3181, %v3597
      %v3599 = vpop.f32.mrf.mxu0
      %v3600 = vpop.f32.mrf.mxu0
      %v3601 = vadd.f32 %v3184, %v3600
      %v3602 = vpop.f32.mrf.mxu0
      %3603 = vmatprep.mubr.bf16.mxu0 %v2023
      %3604 = vmatmul.mubr.bf16.gmra.mxu0 %v2022
      %v3605 = vpop.f32.mrf.mxu0
      %v3606 = vadd.f32 %v3189, %v3605
      %v3607 = vpop.f32.mrf.mxu0
      %v3608 = vpop.f32.mrf.mxu0
      %v3609 = vadd.f32 %v3192, %v3608
      %v3610 = vpop.f32.mrf.mxu0
      %3611 = vmatprep.mubr.bf16.mxu0 %v2030
      %3612 = vmatmul.mubr.bf16.gmra.mxu0 %v2029
      %v3613 = vpop.f32.mrf.mxu0
      %v3614 = vadd.f32 %v3197, %v3613
      %v3615 = vpop.f32.mrf.mxu0
      %v3616 = vpop.f32.mrf.mxu0
      %v3617 = vadd.f32 %v3200, %v3616
      %v3618 = vpop.f32.mrf.mxu0
      %3619 = vmatprep.mubr.bf16.mxu0 %v2037
      %3620 = vmatmul.mubr.bf16.gmra.mxu0 %v2036
      %v3621 = vpop.f32.mrf.mxu0
      %v3622 = vadd.f32 %v3205, %v3621
      %v3623 = vpop.f32.mrf.mxu0
      %v3624 = vpop.f32.mrf.mxu0
      %v3625 = vadd.f32 %v3208, %v3624
      %v3626 = vpop.f32.mrf.mxu0
      %3627 = vmatprep.mubr.bf16.mxu0 %v2044
      %3628 = vmatmul.mubr.bf16.gmra.mxu0 %v2043
      %v3629 = vpop.f32.mrf.mxu0
      %v3630 = vadd.f32 %v3213, %v3629
      %v3631 = vpop.f32.mrf.mxu0
      %v3632 = vpop.f32.mrf.mxu0
      %v3633 = vadd.f32 %v3216, %v3632
      %v3634 = vpop.f32.mrf.mxu0
      %3635 = vmatprep.mubr.bf16.mxu0 %v2051
      %3636 = vmatmul.mubr.bf16.gmra.mxu0 %v2050
      %v3637 = vpop.f32.mrf.mxu0
      %v3638 = vadd.f32 %v3221, %v3637
      %v3639 = vpop.f32.mrf.mxu0
      %v3640 = vpop.f32.mrf.mxu0
      %v3641 = vadd.f32 %v3224, %v3640
      %v3642 = vpop.f32.mrf.mxu0
      %3643 = vmatprep.mubr.bf16.mxu0 %v2058
      %3644 = vmatmul.mubr.bf16.gmra.mxu0 %v2057
      %v3645 = vpop.f32.mrf.mxu0
      %v3646 = vadd.f32 %v3229, %v3645
      %v3647 = vpop.f32.mrf.mxu0
      %v3648 = vpop.f32.mrf.mxu0
      %v3649 = vadd.f32 %v3232, %v3648
      %v3650 = vpop.f32.mrf.mxu0
      %3651 = vmatprep.mubr.bf16.mxu0 %v2065
      %3652 = vmatmul.mubr.bf16.gmra.mxu0 %v2064
      %v3653 = vpop.f32.mrf.mxu0
      %v3654 = vadd.f32 %v3237, %v3653
      %v3655 = vpop.f32.mrf.mxu0
      %v3656 = vpop.f32.mrf.mxu0
      %v3657 = vadd.f32 %v3240, %v3656
      %v3658 = vpop.f32.mrf.mxu0
      %3659 = vdwg.mxu0
      %3660 = vmatprep.subr.bf16.mxu0 0
      %3661 = vmatpush1.bf16.msra.mxu0 %v2612
      %3662 = vmatprep.subr.bf16.mxu0 0
      %3663 = vmatpush1.bf16.msra.mxu0 %v2611
      %3664 = vmatprep.subr.bf16.mxu0 0
      %3665 = vmatpush1.bf16.msra.mxu0 %v2610
      %3666 = vmatprep.subr.bf16.mxu0 0
      %3667 = vmatpush1.bf16.msra.mxu0 %v2609
      %3668 = vmatprep.subr.bf16.mxu0 0
      %3669 = vmatpush1.bf16.msra.mxu0 %v2608
      %3670 = vmatprep.subr.bf16.mxu0 0
      %3671 = vmatpush1.bf16.msra.mxu0 %v2607
      %3672 = vmatprep.subr.bf16.mxu0 0
      %3673 = vmatpush1.bf16.msra.mxu0 %v2606
      %3674 = vmatprep.subr.bf16.mxu0 0
      %3675 = vmatpush1.bf16.msra.mxu0 %v2605
      %3676 = vmatprep.subr.bf16.mxu0 0
      %3677 = vmatpush2.bf16.msra.mxu0 %v2620
      %3678 = vmatprep.subr.bf16.mxu0 0
      %3679 = vmatpush2.bf16.msra.mxu0 %v2619
      %3680 = vmatprep.subr.bf16.mxu0 0
      %3681 = vmatpush2.bf16.msra.mxu0 %v2618
      %3682 = vmatprep.subr.bf16.mxu0 0
      %3683 = vmatpush2.bf16.msra.mxu0 %v2617
      %3684 = vmatprep.subr.bf16.mxu0 0
      %3685 = vmatpush2.bf16.msra.mxu0 %v2616
      %3686 = vmatprep.subr.bf16.mxu0 0
      %3687 = vmatpush2.bf16.msra.mxu0 %v2615
      %3688 = vmatprep.subr.bf16.mxu0 0
      %3689 = vmatpush2.bf16.msra.mxu0 %v2614
      %3690 = vmatprep.subr.bf16.mxu0 0
      %3691 = vmatpush2.bf16.msra.mxu0 %v2613
      %3692 = vmatprep.mubr.bf16.mxu0 %v1738
      %3693 = vmatmul.mubr.bf16.gmra.mxu0 %v1737
      %v3694 = vpop.f32.mrf.mxu0
      %v3695 = vadd.f32 %v3278, %v3694
      %v3696 = vpop.f32.mrf.mxu0
      %v3697 = vpop.f32.mrf.mxu0
      %v3698 = vadd.f32 %v3281, %v3697
      %v3699 = vpop.f32.mrf.mxu0
      %3700 = vmatprep.mubr.bf16.mxu0 %v1745
      %3701 = vmatmul.mubr.bf16.gmra.mxu0 %v1744
      %v3702 = vpop.f32.mrf.mxu0
      %v3703 = vadd.f32 %v3286, %v3702
      %v3704 = vpop.f32.mrf.mxu0
      %v3705 = vpop.f32.mrf.mxu0
      %v3706 = vadd.f32 %v3289, %v3705
      %v3707 = vpop.f32.mrf.mxu0
      %3708 = vmatprep.mubr.bf16.mxu0 %v1752
      %3709 = vmatmul.mubr.bf16.gmra.mxu0 %v1751
      %v3710 = vpop.f32.mrf.mxu0
      %v3711 = vadd.f32 %v3294, %v3710
      %v3712 = vpop.f32.mrf.mxu0
      %v3713 = vpop.f32.mrf.mxu0
      %v3714 = vadd.f32 %v3297, %v3713
      %v3715 = vpop.f32.mrf.mxu0
      %3716 = vmatprep.mubr.bf16.mxu0 %v1759
      %3717 = vmatmul.mubr.bf16.gmra.mxu0 %v1758
      %v3718 = vpop.f32.mrf.mxu0
      %v3719 = vadd.f32 %v3302, %v3718
      %v3720 = vpop.f32.mrf.mxu0
      %v3721 = vpop.f32.mrf.mxu0
      %v3722 = vadd.f32 %v3305, %v3721
      %v3723 = vpop.f32.mrf.mxu0
      %3724 = vmatprep.mubr.bf16.mxu0 %v1766
      %3725 = vmatmul.mubr.bf16.gmra.mxu0 %v1765
      %v3726 = vpop.f32.mrf.mxu0
      %v3727 = vadd.f32 %v3310, %v3726
      %v3728 = vpop.f32.mrf.mxu0
      %v3729 = vpop.f32.mrf.mxu0
      %v3730 = vadd.f32 %v3313, %v3729
      %v3731 = vpop.f32.mrf.mxu0
      %3732 = vmatprep.mubr.bf16.mxu0 %v1773
      %3733 = vmatmul.mubr.bf16.gmra.mxu0 %v1772
      %v3734 = vpop.f32.mrf.mxu0
      %v3735 = vadd.f32 %v3318, %v3734
      %v3736 = vpop.f32.mrf.mxu0
      %v3737 = vpop.f32.mrf.mxu0
      %v3738 = vadd.f32 %v3321, %v3737
      %v3739 = vpop.f32.mrf.mxu0
      %3740 = vmatprep.mubr.bf16.mxu0 %v1780
      %3741 = vmatmul.mubr.bf16.gmra.mxu0 %v1779
      %v3742 = vpop.f32.mrf.mxu0
      %v3743 = vadd.f32 %v3326, %v3742
      %v3744 = vpop.f32.mrf.mxu0
      %v3745 = vpop.f32.mrf.mxu0
      %v3746 = vadd.f32 %v3329, %v3745
      %v3747 = vpop.f32.mrf.mxu0
      %3748 = vmatprep.mubr.bf16.mxu0 %v1787
      %3749 = vmatmul.mubr.bf16.gmra.mxu0 %v1786
      %v3750 = vpop.f32.mrf.mxu0
      %v3751 = vadd.f32 %v3334, %v3750
      %v3752 = vpop.f32.mrf.mxu0
      %v3753 = vpop.f32.mrf.mxu0
      %v3754 = vadd.f32 %v3337, %v3753
      %v3755 = vpop.f32.mrf.mxu0
      %3756 = vmatprep.mubr.bf16.mxu0 %v1794
      %3757 = vmatmul.mubr.bf16.gmra.mxu0 %v1793
      %v3758 = vpop.f32.mrf.mxu0
      %v3759 = vadd.f32 %v3342, %v3758
      %v3760 = vpop.f32.mrf.mxu0
      %v3761 = vpop.f32.mrf.mxu0
      %v3762 = vadd.f32 %v3345, %v3761
      %v3763 = vpop.f32.mrf.mxu0
      %3764 = vmatprep.mubr.bf16.mxu0 %v1801
      %3765 = vmatmul.mubr.bf16.gmra.mxu0 %v1800
      %v3766 = vpop.f32.mrf.mxu0
      %v3767 = vadd.f32 %v3350, %v3766
      %v3768 = vpop.f32.mrf.mxu0
      %v3769 = vpop.f32.mrf.mxu0
      %v3770 = vadd.f32 %v3353, %v3769
      %v3771 = vpop.f32.mrf.mxu0
      %3772 = vmatprep.mubr.bf16.mxu0 %v1808
      %3773 = vmatmul.mubr.bf16.gmra.mxu0 %v1807
      %v3774 = vpop.f32.mrf.mxu0
      %v3775 = vadd.f32 %v3358, %v3774
      %v3776 = vpop.f32.mrf.mxu0
      %v3777 = vpop.f32.mrf.mxu0
      %v3778 = vadd.f32 %v3361, %v3777
      %v3779 = vpop.f32.mrf.mxu0
      %3780 = vmatprep.mubr.bf16.mxu0 %v1815
      %3781 = vmatmul.mubr.bf16.gmra.mxu0 %v1814
      %v3782 = vpop.f32.mrf.mxu0
      %v3783 = vadd.f32 %v3366, %v3782
      %v3784 = vpop.f32.mrf.mxu0
      %v3785 = vpop.f32.mrf.mxu0
      %v3786 = vadd.f32 %v3369, %v3785
      %v3787 = vpop.f32.mrf.mxu0
      %3788 = vmatprep.mubr.bf16.mxu0 %v1822
      %3789 = vmatmul.mubr.bf16.gmra.mxu0 %v1821
      %v3790 = vpop.f32.mrf.mxu0
      %v3791 = vadd.f32 %v3374, %v3790
      %v3792 = vpop.f32.mrf.mxu0
      %v3793 = vpop.f32.mrf.mxu0
      %v3794 = vadd.f32 %v3377, %v3793
      %v3795 = vpop.f32.mrf.mxu0
      %3796 = vmatprep.mubr.bf16.mxu0 %v1829
      %3797 = vmatmul.mubr.bf16.gmra.mxu0 %v1828
      %v3798 = vpop.f32.mrf.mxu0
      %v3799 = vadd.f32 %v3382, %v3798
      %v3800 = vpop.f32.mrf.mxu0
      %v3801 = vpop.f32.mrf.mxu0
      %v3802 = vadd.f32 %v3385, %v3801
      %v3803 = vpop.f32.mrf.mxu0
      %3804 = vmatprep.mubr.bf16.mxu0 %v1836
      %3805 = vmatmul.mubr.bf16.gmra.mxu0 %v1835
      %v3806 = vpop.f32.mrf.mxu0
      %v3807 = vadd.f32 %v3390, %v3806
      %v3808 = vpop.f32.mrf.mxu0
      %v3809 = vpop.f32.mrf.mxu0
      %v3810 = vadd.f32 %v3393, %v3809
      %v3811 = vpop.f32.mrf.mxu0
      %3812 = vmatprep.mubr.bf16.mxu0 %v1843
      %3813 = vmatmul.mubr.bf16.gmra.mxu0 %v1842
      %v3814 = vpop.f32.mrf.mxu0
      %v3815 = vadd.f32 %v3398, %v3814
      %v3816 = vpop.f32.mrf.mxu0
      %v3817 = vpop.f32.mrf.mxu0
      %v3818 = vadd.f32 %v3401, %v3817
      %v3819 = vpop.f32.mrf.mxu0
      %3820 = vmatprep.mubr.bf16.mxu0 %v1850
      %3821 = vmatmul.mubr.bf16.gmra.mxu0 %v1849
      %v3822 = vpop.f32.mrf.mxu0
      %v3823 = vadd.f32 %v3406, %v3822
      %v3824 = vpop.f32.mrf.mxu0
      %v3825 = vpop.f32.mrf.mxu0
      %v3826 = vadd.f32 %v3409, %v3825
      %v3827 = vpop.f32.mrf.mxu0
      %3828 = vmatprep.mubr.bf16.mxu0 %v1857
      %3829 = vmatmul.mubr.bf16.gmra.mxu0 %v1856
      %v3830 = vpop.f32.mrf.mxu0
      %v3831 = vadd.f32 %v3414, %v3830
      %v3832 = vpop.f32.mrf.mxu0
      %v3833 = vpop.f32.mrf.mxu0
      %v3834 = vadd.f32 %v3417, %v3833
      %v3835 = vpop.f32.mrf.mxu0
      %3836 = vmatprep.mubr.bf16.mxu0 %v1864
      %3837 = vmatmul.mubr.bf16.gmra.mxu0 %v1863
      %v3838 = vpop.f32.mrf.mxu0
      %v3839 = vadd.f32 %v3422, %v3838
      %v3840 = vpop.f32.mrf.mxu0
      %v3841 = vpop.f32.mrf.mxu0
      %v3842 = vadd.f32 %v3425, %v3841
      %v3843 = vpop.f32.mrf.mxu0
      %3844 = vmatprep.mubr.bf16.mxu0 %v1871
      %3845 = vmatmul.mubr.bf16.gmra.mxu0 %v1870
      %v3846 = vpop.f32.mrf.mxu0
      %v3847 = vadd.f32 %v3430, %v3846
      %v3848 = vpop.f32.mrf.mxu0
      %v3849 = vpop.f32.mrf.mxu0
      %v3850 = vadd.f32 %v3433, %v3849
      %v3851 = vpop.f32.mrf.mxu0
      %3852 = vmatprep.mubr.bf16.mxu0 %v1878
      %3853 = vmatmul.mubr.bf16.gmra.mxu0 %v1877
      %v3854 = vpop.f32.mrf.mxu0
      %v3855 = vadd.f32 %v3438, %v3854
      %v3856 = vpop.f32.mrf.mxu0
      %v3857 = vpop.f32.mrf.mxu0
      %v3858 = vadd.f32 %v3441, %v3857
      %v3859 = vpop.f32.mrf.mxu0
      %3860 = vmatprep.mubr.bf16.mxu0 %v1885
      %3861 = vmatmul.mubr.bf16.gmra.mxu0 %v1884
      %v3862 = vpop.f32.mrf.mxu0
      %v3863 = vadd.f32 %v3446, %v3862
      %v3864 = vpop.f32.mrf.mxu0
      %v3865 = vpop.f32.mrf.mxu0
      %v3866 = vadd.f32 %v3449, %v3865
      %v3867 = vpop.f32.mrf.mxu0
      %3868 = vmatprep.mubr.bf16.mxu0 %v1892
      %3869 = vmatmul.mubr.bf16.gmra.mxu0 %v1891
      %v3870 = vpop.f32.mrf.mxu0
      %v3871 = vadd.f32 %v3454, %v3870
      %v3872 = vpop.f32.mrf.mxu0
      %v3873 = vpop.f32.mrf.mxu0
      %v3874 = vadd.f32 %v3457, %v3873
      %v3875 = vpop.f32.mrf.mxu0
      %3876 = vmatprep.mubr.bf16.mxu0 %v1899
      %3877 = vmatmul.mubr.bf16.gmra.mxu0 %v1898
      %v3878 = vpop.f32.mrf.mxu0
      %v3879 = vadd.f32 %v3462, %v3878
      %v3880 = vpop.f32.mrf.mxu0
      %v3881 = vpop.f32.mrf.mxu0
      %v3882 = vadd.f32 %v3465, %v3881
      %v3883 = vpop.f32.mrf.mxu0
      %3884 = vmatprep.mubr.bf16.mxu0 %v1906
      %3885 = vmatmul.mubr.bf16.gmra.mxu0 %v1905
      %v3886 = vpop.f32.mrf.mxu0
      %v3887 = vadd.f32 %v3470, %v3886
      %v3888 = vpop.f32.mrf.mxu0
      %v3889 = vpop.f32.mrf.mxu0
      %v3890 = vadd.f32 %v3473, %v3889
      %v3891 = vpop.f32.mrf.mxu0
      %3892 = vmatprep.mubr.bf16.mxu0 %v1913
      %3893 = vmatmul.mubr.bf16.gmra.mxu0 %v1912
      %v3894 = vpop.f32.mrf.mxu0
      %v3895 = vadd.f32 %v3478, %v3894
      %v3896 = vpop.f32.mrf.mxu0
      %v3897 = vpop.f32.mrf.mxu0
      %v3898 = vadd.f32 %v3481, %v3897
      %v3899 = vpop.f32.mrf.mxu0
      %3900 = vmatprep.mubr.bf16.mxu0 %v1920
      %3901 = vmatmul.mubr.bf16.gmra.mxu0 %v1919
      %v3902 = vpop.f32.mrf.mxu0
      %v3903 = vadd.f32 %v3486, %v3902
      %v3904 = vpop.f32.mrf.mxu0
      %v3905 = vpop.f32.mrf.mxu0
      %v3906 = vadd.f32 %v3489, %v3905
      %v3907 = vpop.f32.mrf.mxu0
      %3908 = vmatprep.mubr.bf16.mxu0 %v1927
      %3909 = vmatmul.mubr.bf16.gmra.mxu0 %v1926
      %v3910 = vpop.f32.mrf.mxu0
      %v3911 = vadd.f32 %v3494, %v3910
      %v3912 = vpop.f32.mrf.mxu0
      %v3913 = vpop.f32.mrf.mxu0
      %v3914 = vadd.f32 %v3497, %v3913
      %v3915 = vpop.f32.mrf.mxu0
      %3916 = vmatprep.mubr.bf16.mxu0 %v1934
      %3917 = vmatmul.mubr.bf16.gmra.mxu0 %v1933
      %v3918 = vpop.f32.mrf.mxu0
      %v3919 = vadd.f32 %v3502, %v3918
      %v3920 = vpop.f32.mrf.mxu0
      %v3921 = vpop.f32.mrf.mxu0
      %v3922 = vadd.f32 %v3505, %v3921
      %v3923 = vpop.f32.mrf.mxu0
      %3924 = vmatprep.mubr.bf16.mxu0 %v1941
      %3925 = vmatmul.mubr.bf16.gmra.mxu0 %v1940
      %v3926 = vpop.f32.mrf.mxu0
      %v3927 = vadd.f32 %v3510, %v3926
      %v3928 = vpop.f32.mrf.mxu0
      %v3929 = vpop.f32.mrf.mxu0
      %v3930 = vadd.f32 %v3513, %v3929
      %v3931 = vpop.f32.mrf.mxu0
      %3932 = vmatprep.mubr.bf16.mxu0 %v1948
      %3933 = vmatmul.mubr.bf16.gmra.mxu0 %v1947
      %v3934 = vpop.f32.mrf.mxu0
      %v3935 = vadd.f32 %v3518, %v3934
      %v3936 = vpop.f32.mrf.mxu0
      %v3937 = vpop.f32.mrf.mxu0
      %v3938 = vadd.f32 %v3521, %v3937
      %v3939 = vpop.f32.mrf.mxu0
      %3940 = vmatprep.mubr.bf16.mxu0 %v1955
      %3941 = vmatmul.mubr.bf16.gmra.mxu0 %v1954
      %v3942 = vpop.f32.mrf.mxu0
      %v3943 = vadd.f32 %v3526, %v3942
      %v3944 = vpop.f32.mrf.mxu0
      %v3945 = vpop.f32.mrf.mxu0
      %v3946 = vadd.f32 %v3529, %v3945
      %v3947 = vpop.f32.mrf.mxu0
      %3948 = vmatprep.mubr.bf16.mxu0 %v1962
      %3949 = vmatmul.mubr.bf16.gmra.mxu0 %v1961
      %v3950 = vpop.f32.mrf.mxu0
      %v3951 = vadd.f32 %v3534, %v3950
      %v3952 = vpop.f32.mrf.mxu0
      %v3953 = vpop.f32.mrf.mxu0
      %v3954 = vadd.f32 %v3537, %v3953
      %v3955 = vpop.f32.mrf.mxu0
      %3956 = vmatprep.mubr.bf16.mxu0 %v1969
      %3957 = vmatmul.mubr.bf16.gmra.mxu0 %v1968
      %v3958 = vpop.f32.mrf.mxu0
      %v3959 = vadd.f32 %v3542, %v3958
      %v3960 = vpop.f32.mrf.mxu0
      %v3961 = vpop.f32.mrf.mxu0
      %v3962 = vadd.f32 %v3545, %v3961
      %v3963 = vpop.f32.mrf.mxu0
      %3964 = vmatprep.mubr.bf16.mxu0 %v1976
      %3965 = vmatmul.mubr.bf16.gmra.mxu0 %v1975
      %v3966 = vpop.f32.mrf.mxu0
      %v3967 = vadd.f32 %v3550, %v3966
      %v3968 = vpop.f32.mrf.mxu0
      %v3969 = vpop.f32.mrf.mxu0
      %v3970 = vadd.f32 %v3553, %v3969
      %v3971 = vpop.f32.mrf.mxu0
      %3972 = vmatprep.mubr.bf16.mxu0 %v1983
      %3973 = vmatmul.mubr.bf16.gmra.mxu0 %v1982
      %v3974 = vpop.f32.mrf.mxu0
      %v3975 = vadd.f32 %v3558, %v3974
      %v3976 = vpop.f32.mrf.mxu0
      %v3977 = vpop.f32.mrf.mxu0
      %v3978 = vadd.f32 %v3561, %v3977
      %v3979 = vpop.f32.mrf.mxu0
      %3980 = vmatprep.mubr.bf16.mxu0 %v1990
      %3981 = vmatmul.mubr.bf16.gmra.mxu0 %v1989
      %v3982 = vpop.f32.mrf.mxu0
      %v3983 = vadd.f32 %v3566, %v3982
      %v3984 = vpop.f32.mrf.mxu0
      %v3985 = vpop.f32.mrf.mxu0
      %v3986 = vadd.f32 %v3569, %v3985
      %v3987 = vpop.f32.mrf.mxu0
      %3988 = vmatprep.mubr.bf16.mxu0 %v1997
      %3989 = vmatmul.mubr.bf16.gmra.mxu0 %v1996
      %v3990 = vpop.f32.mrf.mxu0
      %v3991 = vadd.f32 %v3574, %v3990
      %v3992 = vpop.f32.mrf.mxu0
      %v3993 = vpop.f32.mrf.mxu0
      %v3994 = vadd.f32 %v3577, %v3993
      %v3995 = vpop.f32.mrf.mxu0
      %3996 = vmatprep.mubr.bf16.mxu0 %v2004
      %3997 = vmatmul.mubr.bf16.gmra.mxu0 %v2003
      %v3998 = vpop.f32.mrf.mxu0
      %v3999 = vadd.f32 %v3582, %v3998
      %v4000 = vpop.f32.mrf.mxu0
      %v4001 = vpop.f32.mrf.mxu0
      %v4002 = vadd.f32 %v3585, %v4001
      %v4003 = vpop.f32.mrf.mxu0
      %4004 = vmatprep.mubr.bf16.mxu0 %v2011
      %4005 = vmatmul.mubr.bf16.gmra.mxu0 %v2010
      %v4006 = vpop.f32.mrf.mxu0
      %v4007 = vadd.f32 %v3590, %v4006
      %v4008 = vpop.f32.mrf.mxu0
      %v4009 = vpop.f32.mrf.mxu0
      %v4010 = vadd.f32 %v3593, %v4009
      %v4011 = vpop.f32.mrf.mxu0
      %4012 = vmatprep.mubr.bf16.mxu0 %v2018
      %4013 = vmatmul.mubr.bf16.gmra.mxu0 %v2017
      %v4014 = vpop.f32.mrf.mxu0
      %v4015 = vadd.f32 %v3598, %v4014
      %v4016 = vpop.f32.mrf.mxu0
      %v4017 = vpop.f32.mrf.mxu0
      %v4018 = vadd.f32 %v3601, %v4017
      %v4019 = vpop.f32.mrf.mxu0
      %4020 = vmatprep.mubr.bf16.mxu0 %v2025
      %4021 = vmatmul.mubr.bf16.gmra.mxu0 %v2024
      %v4022 = vpop.f32.mrf.mxu0
      %v4023 = vadd.f32 %v3606, %v4022
      %v4024 = vpop.f32.mrf.mxu0
      %v4025 = vpop.f32.mrf.mxu0
      %v4026 = vadd.f32 %v3609, %v4025
      %v4027 = vpop.f32.mrf.mxu0
      %4028 = vmatprep.mubr.bf16.mxu0 %v2032
      %4029 = vmatmul.mubr.bf16.gmra.mxu0 %v2031
      %v4030 = vpop.f32.mrf.mxu0
      %v4031 = vadd.f32 %v3614, %v4030
      %v4032 = vpop.f32.mrf.mxu0
      %v4033 = vpop.f32.mrf.mxu0
      %v4034 = vadd.f32 %v3617, %v4033
      %v4035 = vpop.f32.mrf.mxu0
      %4036 = vmatprep.mubr.bf16.mxu0 %v2039
      %4037 = vmatmul.mubr.bf16.gmra.mxu0 %v2038
      %v4038 = vpop.f32.mrf.mxu0
      %v4039 = vadd.f32 %v3622, %v4038
      %v4040 = vpop.f32.mrf.mxu0
      %v4041 = vpop.f32.mrf.mxu0
      %v4042 = vadd.f32 %v3625, %v4041
      %v4043 = vpop.f32.mrf.mxu0
      %4044 = vmatprep.mubr.bf16.mxu0 %v2046
      %4045 = vmatmul.mubr.bf16.gmra.mxu0 %v2045
      %v4046 = vpop.f32.mrf.mxu0
      %v4047 = vadd.f32 %v3630, %v4046
      %v4048 = vpop.f32.mrf.mxu0
      %v4049 = vpop.f32.mrf.mxu0
      %v4050 = vadd.f32 %v3633, %v4049
      %v4051 = vpop.f32.mrf.mxu0
      %4052 = vmatprep.mubr.bf16.mxu0 %v2053
      %4053 = vmatmul.mubr.bf16.gmra.mxu0 %v2052
      %v4054 = vpop.f32.mrf.mxu0
      %v4055 = vadd.f32 %v3638, %v4054
      %v4056 = vpop.f32.mrf.mxu0
      %v4057 = vpop.f32.mrf.mxu0
      %v4058 = vadd.f32 %v3641, %v4057
      %v4059 = vpop.f32.mrf.mxu0
      %4060 = vmatprep.mubr.bf16.mxu0 %v2060
      %4061 = vmatmul.mubr.bf16.gmra.mxu0 %v2059
      %v4062 = vpop.f32.mrf.mxu0
      %v4063 = vadd.f32 %v3646, %v4062
      %v4064 = vpop.f32.mrf.mxu0
      %v4065 = vpop.f32.mrf.mxu0
      %v4066 = vadd.f32 %v3649, %v4065
      %v4067 = vpop.f32.mrf.mxu0
      %4068 = vmatprep.mubr.bf16.mxu0 %v2067
      %4069 = vmatmul.mubr.bf16.gmra.mxu0 %v2066
      %v4070 = vpop.f32.mrf.mxu0
      %v4071 = vadd.f32 %v3654, %v4070
      %v4072 = vpop.f32.mrf.mxu0
      %v4073 = vpop.f32.mrf.mxu0
      %v4074 = vadd.f32 %v3657, %v4073
      %v4075 = vpop.f32.mrf.mxu0
      %4076 = vdwg.mxu0
      %4077 = vmatprep.subr.bf16.mxu0 0
      %4078 = vmatpush1.bf16.msra.mxu0 0
      %4079 = vmatprep.subr.bf16.mxu0 0
      %4080 = vmatpush1.bf16.msra.mxu0 0
      %4081 = vmatprep.subr.bf16.mxu0 0
      %4082 = vmatpush1.bf16.msra.mxu0 %v2626
      %4083 = vmatprep.subr.bf16.mxu0 0
      %4084 = vmatpush1.bf16.msra.mxu0 %v2625
      %4085 = vmatprep.subr.bf16.mxu0 0
      %4086 = vmatpush1.bf16.msra.mxu0 %v2624
      %4087 = vmatprep.subr.bf16.mxu0 0
      %4088 = vmatpush1.bf16.msra.mxu0 %v2623
      %4089 = vmatprep.subr.bf16.mxu0 0
      %4090 = vmatpush1.bf16.msra.mxu0 %v2622
      %4091 = vmatprep.subr.bf16.mxu0 0
      %4092 = vmatpush1.bf16.msra.mxu0 %v2621
      %4093 = vmatprep.subr.bf16.mxu0 0
      %4094 = vmatpush2.bf16.msra.mxu0 0
      %4095 = vmatprep.subr.bf16.mxu0 0
      %4096 = vmatpush2.bf16.msra.mxu0 0
      %4097 = vmatprep.subr.bf16.mxu0 0
      %4098 = vmatpush2.bf16.msra.mxu0 0
      %4099 = vmatprep.subr.bf16.mxu0 0
      %4100 = vmatpush2.bf16.msra.mxu0 0
      %4101 = vmatprep.subr.bf16.mxu0 0
      %4102 = vmatpush2.bf16.msra.mxu0 0
      %4103 = vmatprep.subr.bf16.mxu0 0
      %4104 = vmatpush2.bf16.msra.mxu0 0
      %4105 = vmatprep.subr.bf16.mxu0 0
      %4106 = vmatpush2.bf16.msra.mxu0 0
      %4107 = vmatprep.subr.bf16.mxu0 0
      %4108 = vmatpush2.bf16.msra.mxu0 0
      %4109 = vmatprep.mubr.bf16.mxu0 0
      %4110 = vmatmul.mubr.bf16.gmra.mxu0 %v2683
      %v4111 = vpop.f32.mrf.mxu0
      %v4112 = vadd.f32 %v3695, %v4111
      %v4113 = vpop.f32.mrf.mxu0
      %v4114 = vpop.f32.mrf.mxu0
      %v4115 = vadd.f32 %v3698, %v4114
      %v4116 = vpop.f32.mrf.mxu0
      %4117 = vmatprep.mubr.bf16.mxu0 0
      %4118 = vmatmul.mubr.bf16.gmra.mxu0 %v2686
      %v4119 = vpop.f32.mrf.mxu0
      %v4120 = vadd.f32 %v3703, %v4119
      %v4121 = vpop.f32.mrf.mxu0
      %v4122 = vpop.f32.mrf.mxu0
      %v4123 = vadd.f32 %v3706, %v4122
      %v4124 = vpop.f32.mrf.mxu0
      %4125 = vmatprep.mubr.bf16.mxu0 0
      %4126 = vmatmul.mubr.bf16.gmra.mxu0 %v2689
      %v4127 = vpop.f32.mrf.mxu0
      %v4128 = vadd.f32 %v3711, %v4127
      %v4129 = vpop.f32.mrf.mxu0
      %v4130 = vpop.f32.mrf.mxu0
      %v4131 = vadd.f32 %v3714, %v4130
      %v4132 = vpop.f32.mrf.mxu0
      %4133 = vmatprep.mubr.bf16.mxu0 0
      %4134 = vmatmul.mubr.bf16.gmra.mxu0 %v2692
      %v4135 = vpop.f32.mrf.mxu0
      %v4136 = vadd.f32 %v3719, %v4135
      %v4137 = vpop.f32.mrf.mxu0
      %v4138 = vpop.f32.mrf.mxu0
      %v4139 = vadd.f32 %v3722, %v4138
      %v4140 = vpop.f32.mrf.mxu0
      %4141 = vmatprep.mubr.bf16.mxu0 0
      %4142 = vmatmul.mubr.bf16.gmra.mxu0 %v2695
      %v4143 = vpop.f32.mrf.mxu0
      %v4144 = vadd.f32 %v3727, %v4143
      %v4145 = vpop.f32.mrf.mxu0
      %v4146 = vpop.f32.mrf.mxu0
      %v4147 = vadd.f32 %v3730, %v4146
      %v4148 = vpop.f32.mrf.mxu0
      %4149 = vmatprep.mubr.bf16.mxu0 0
      %4150 = vmatmul.mubr.bf16.gmra.mxu0 %v2698
      %v4151 = vpop.f32.mrf.mxu0
      %v4152 = vadd.f32 %v3735, %v4151
      %v4153 = vpop.f32.mrf.mxu0
      %v4154 = vpop.f32.mrf.mxu0
      %v4155 = vadd.f32 %v3738, %v4154
      %v4156 = vpop.f32.mrf.mxu0
      %4157 = vmatprep.mubr.bf16.mxu0 0
      %4158 = vmatmul.mubr.bf16.gmra.mxu0 %v2701
      %v4159 = vpop.f32.mrf.mxu0
      %v4160 = vadd.f32 %v3743, %v4159
      %v4161 = vpop.f32.mrf.mxu0
      %v4162 = vpop.f32.mrf.mxu0
      %v4163 = vadd.f32 %v3746, %v4162
      %v4164 = vpop.f32.mrf.mxu0
      %4165 = vmatprep.mubr.bf16.mxu0 0
      %4166 = vmatmul.mubr.bf16.gmra.mxu0 %v2704
      %v4167 = vpop.f32.mrf.mxu0
      %v4168 = vadd.f32 %v3751, %v4167
      %v4169 = vpop.f32.mrf.mxu0
      %v4170 = vpop.f32.mrf.mxu0
      %v4171 = vadd.f32 %v3754, %v4170
      %v4172 = vpop.f32.mrf.mxu0
      %4173 = vmatprep.mubr.bf16.mxu0 0
      %4174 = vmatmul.mubr.bf16.gmra.mxu0 %v2707
      %v4175 = vpop.f32.mrf.mxu0
      %v4176 = vadd.f32 %v3759, %v4175
      %v4177 = vpop.f32.mrf.mxu0
      %v4178 = vpop.f32.mrf.mxu0
      %v4179 = vadd.f32 %v3762, %v4178
      %v4180 = vpop.f32.mrf.mxu0
      %4181 = vmatprep.mubr.bf16.mxu0 0
      %4182 = vmatmul.mubr.bf16.gmra.mxu0 %v2710
      %v4183 = vpop.f32.mrf.mxu0
      %v4184 = vadd.f32 %v3767, %v4183
      %v4185 = vpop.f32.mrf.mxu0
      %v4186 = vpop.f32.mrf.mxu0
      %v4187 = vadd.f32 %v3770, %v4186
      %v4188 = vpop.f32.mrf.mxu0
      %4189 = vmatprep.mubr.bf16.mxu0 0
      %4190 = vmatmul.mubr.bf16.gmra.mxu0 %v2713
      %v4191 = vpop.f32.mrf.mxu0
      %v4192 = vadd.f32 %v3775, %v4191
      %v4193 = vpop.f32.mrf.mxu0
      %v4194 = vpop.f32.mrf.mxu0
      %v4195 = vadd.f32 %v3778, %v4194
      %v4196 = vpop.f32.mrf.mxu0
      %4197 = vmatprep.mubr.bf16.mxu0 0
      %4198 = vmatmul.mubr.bf16.gmra.mxu0 %v2716
      %v4199 = vpop.f32.mrf.mxu0
      %v4200 = vadd.f32 %v3783, %v4199
      %v4201 = vpop.f32.mrf.mxu0
      %v4202 = vpop.f32.mrf.mxu0
      %v4203 = vadd.f32 %v3786, %v4202
      %v4204 = vpop.f32.mrf.mxu0
      %4205 = vmatprep.mubr.bf16.mxu0 0
      %4206 = vmatmul.mubr.bf16.gmra.mxu0 %v2719
      %v4207 = vpop.f32.mrf.mxu0
      %v4208 = vadd.f32 %v3791, %v4207
      %v4209 = vpop.f32.mrf.mxu0
      %v4210 = vpop.f32.mrf.mxu0
      %v4211 = vadd.f32 %v3794, %v4210
      %v4212 = vpop.f32.mrf.mxu0
      %4213 = vmatprep.mubr.bf16.mxu0 0
      %4214 = vmatmul.mubr.bf16.gmra.mxu0 %v2722
      %v4215 = vpop.f32.mrf.mxu0
      %v4216 = vadd.f32 %v3799, %v4215
      %v4217 = vpop.f32.mrf.mxu0
      %v4218 = vpop.f32.mrf.mxu0
      %v4219 = vadd.f32 %v3802, %v4218
      %v4220 = vpop.f32.mrf.mxu0
      %4221 = vmatprep.mubr.bf16.mxu0 0
      %4222 = vmatmul.mubr.bf16.gmra.mxu0 %v2725
      %v4223 = vpop.f32.mrf.mxu0
      %v4224 = vadd.f32 %v3807, %v4223
      %v4225 = vpop.f32.mrf.mxu0
      %v4226 = vpop.f32.mrf.mxu0
      %v4227 = vadd.f32 %v3810, %v4226
      %v4228 = vpop.f32.mrf.mxu0
      %4229 = vmatprep.mubr.bf16.mxu0 0
      %4230 = vmatmul.mubr.bf16.gmra.mxu0 %v2728
      %v4231 = vpop.f32.mrf.mxu0
      %v4232 = vadd.f32 %v3815, %v4231
      %v4233 = vpop.f32.mrf.mxu0
      %v4234 = vpop.f32.mrf.mxu0
      %v4235 = vadd.f32 %v3818, %v4234
      %v4236 = vpop.f32.mrf.mxu0
      %4237 = vmatprep.mubr.bf16.mxu0 0
      %4238 = vmatmul.mubr.bf16.gmra.mxu0 %v2731
      %v4239 = vpop.f32.mrf.mxu0
      %v4240 = vadd.f32 %v3823, %v4239
      %v4241 = vpop.f32.mrf.mxu0
      %v4242 = vpop.f32.mrf.mxu0
      %v4243 = vadd.f32 %v3826, %v4242
      %v4244 = vpop.f32.mrf.mxu0
      %4245 = vmatprep.mubr.bf16.mxu0 0
      %4246 = vmatmul.mubr.bf16.gmra.mxu0 %v2734
      %v4247 = vpop.f32.mrf.mxu0
      %v4248 = vadd.f32 %v3831, %v4247
      %v4249 = vpop.f32.mrf.mxu0
      %v4250 = vpop.f32.mrf.mxu0
      %v4251 = vadd.f32 %v3834, %v4250
      %v4252 = vpop.f32.mrf.mxu0
      %4253 = vmatprep.mubr.bf16.mxu0 0
      %4254 = vmatmul.mubr.bf16.gmra.mxu0 %v2737
      %v4255 = vpop.f32.mrf.mxu0
      %v4256 = vadd.f32 %v3839, %v4255
      %v4257 = vpop.f32.mrf.mxu0
      %v4258 = vpop.f32.mrf.mxu0
      %v4259 = vadd.f32 %v3842, %v4258
      %v4260 = vpop.f32.mrf.mxu0
      %4261 = vmatprep.mubr.bf16.mxu0 0
      %4262 = vmatmul.mubr.bf16.gmra.mxu0 %v2740
      %v4263 = vpop.f32.mrf.mxu0
      %v4264 = vadd.f32 %v3847, %v4263
      %v4265 = vpop.f32.mrf.mxu0
      %v4266 = vpop.f32.mrf.mxu0
      %v4267 = vadd.f32 %v3850, %v4266
      %v4268 = vpop.f32.mrf.mxu0
      %4269 = vmatprep.mubr.bf16.mxu0 0
      %4270 = vmatmul.mubr.bf16.gmra.mxu0 %v2743
      %v4271 = vpop.f32.mrf.mxu0
      %v4272 = vadd.f32 %v3855, %v4271
      %v4273 = vpop.f32.mrf.mxu0
      %v4274 = vpop.f32.mrf.mxu0
      %v4275 = vadd.f32 %v3858, %v4274
      %v4276 = vpop.f32.mrf.mxu0
      %4277 = vmatprep.mubr.bf16.mxu0 0
      %4278 = vmatmul.mubr.bf16.gmra.mxu0 %v2746
      %v4279 = vpop.f32.mrf.mxu0
      %v4280 = vadd.f32 %v3863, %v4279
      %v4281 = vpop.f32.mrf.mxu0
      %v4282 = vpop.f32.mrf.mxu0
      %v4283 = vadd.f32 %v3866, %v4282
      %v4284 = vpop.f32.mrf.mxu0
      %4285 = vmatprep.mubr.bf16.mxu0 0
      %4286 = vmatmul.mubr.bf16.gmra.mxu0 %v2749
      %v4287 = vpop.f32.mrf.mxu0
      %v4288 = vadd.f32 %v3871, %v4287
      %v4289 = vpop.f32.mrf.mxu0
      %v4290 = vpop.f32.mrf.mxu0
      %v4291 = vadd.f32 %v3874, %v4290
      %v4292 = vpop.f32.mrf.mxu0
      %4293 = vmatprep.mubr.bf16.mxu0 0
      %4294 = vmatmul.mubr.bf16.gmra.mxu0 %v2752
      %v4295 = vpop.f32.mrf.mxu0
      %v4296 = vadd.f32 %v3879, %v4295
      %v4297 = vpop.f32.mrf.mxu0
      %v4298 = vpop.f32.mrf.mxu0
      %v4299 = vadd.f32 %v3882, %v4298
      %v4300 = vpop.f32.mrf.mxu0
      %4301 = vmatprep.mubr.bf16.mxu0 0
      %4302 = vmatmul.mubr.bf16.gmra.mxu0 %v2755
      %v4303 = vpop.f32.mrf.mxu0
      %v4304 = vadd.f32 %v3887, %v4303
      %v4305 = vpop.f32.mrf.mxu0
      %v4306 = vpop.f32.mrf.mxu0
      %v4307 = vadd.f32 %v3890, %v4306
      %v4308 = vpop.f32.mrf.mxu0
      %4309 = vmatprep.mubr.bf16.mxu0 0
      %4310 = vmatmul.mubr.bf16.gmra.mxu0 %v2758
      %v4311 = vpop.f32.mrf.mxu0
      %v4312 = vadd.f32 %v3895, %v4311
      %v4313 = vpop.f32.mrf.mxu0
      %v4314 = vpop.f32.mrf.mxu0
      %v4315 = vadd.f32 %v3898, %v4314
      %v4316 = vpop.f32.mrf.mxu0
      %4317 = vmatprep.mubr.bf16.mxu0 0
      %4318 = vmatmul.mubr.bf16.gmra.mxu0 %v2761
      %v4319 = vpop.f32.mrf.mxu0
      %v4320 = vadd.f32 %v3903, %v4319
      %v4321 = vpop.f32.mrf.mxu0
      %v4322 = vpop.f32.mrf.mxu0
      %v4323 = vadd.f32 %v3906, %v4322
      %v4324 = vpop.f32.mrf.mxu0
      %4325 = vmatprep.mubr.bf16.mxu0 0
      %4326 = vmatmul.mubr.bf16.gmra.mxu0 %v2764
      %v4327 = vpop.f32.mrf.mxu0
      %v4328 = vadd.f32 %v3911, %v4327
      %v4329 = vpop.f32.mrf.mxu0
      %v4330 = vpop.f32.mrf.mxu0
      %v4331 = vadd.f32 %v3914, %v4330
      %v4332 = vpop.f32.mrf.mxu0
      %4333 = vmatprep.mubr.bf16.mxu0 0
      %4334 = vmatmul.mubr.bf16.gmra.mxu0 %v2767
      %v4335 = vpop.f32.mrf.mxu0
      %v4336 = vadd.f32 %v3919, %v4335
      %v4337 = vpop.f32.mrf.mxu0
      %v4338 = vpop.f32.mrf.mxu0
      %v4339 = vadd.f32 %v3922, %v4338
      %v4340 = vpop.f32.mrf.mxu0
      %4341 = vmatprep.mubr.bf16.mxu0 0
      %4342 = vmatmul.mubr.bf16.gmra.mxu0 %v2770
      %v4343 = vpop.f32.mrf.mxu0
      %v4344 = vadd.f32 %v3927, %v4343
      %v4345 = vpop.f32.mrf.mxu0
      %v4346 = vpop.f32.mrf.mxu0
      %v4347 = vadd.f32 %v3930, %v4346
      %v4348 = vpop.f32.mrf.mxu0
      %4349 = vmatprep.mubr.bf16.mxu0 0
      %4350 = vmatmul.mubr.bf16.gmra.mxu0 %v2773
      %v4351 = vpop.f32.mrf.mxu0
      %v4352 = vadd.f32 %v3935, %v4351
      %v4353 = vpop.f32.mrf.mxu0
      %v4354 = vpop.f32.mrf.mxu0
      %v4355 = vadd.f32 %v3938, %v4354
      %v4356 = vpop.f32.mrf.mxu0
      %4357 = vmatprep.mubr.bf16.mxu0 0
      %4358 = vmatmul.mubr.bf16.gmra.mxu0 %v2776
      %v4359 = vpop.f32.mrf.mxu0
      %v4360 = vadd.f32 %v3943, %v4359
      %v4361 = vpop.f32.mrf.mxu0
      %v4362 = vpop.f32.mrf.mxu0
      %v4363 = vadd.f32 %v3946, %v4362
      %v4364 = vpop.f32.mrf.mxu0
      %4365 = vmatprep.mubr.bf16.mxu0 0
      %4366 = vmatmul.mubr.bf16.gmra.mxu0 %v2779
      %v4367 = vpop.f32.mrf.mxu0
      %v4368 = vadd.f32 %v3951, %v4367
      %v4369 = vpop.f32.mrf.mxu0
      %v4370 = vpop.f32.mrf.mxu0
      %v4371 = vadd.f32 %v3954, %v4370
      %v4372 = vpop.f32.mrf.mxu0
      %4373 = vmatprep.mubr.bf16.mxu0 0
      %4374 = vmatmul.mubr.bf16.gmra.mxu0 %v2782
      %v4375 = vpop.f32.mrf.mxu0
      %v4376 = vadd.f32 %v3959, %v4375
      %v4377 = vpop.f32.mrf.mxu0
      %v4378 = vpop.f32.mrf.mxu0
      %v4379 = vadd.f32 %v3962, %v4378
      %v4380 = vpop.f32.mrf.mxu0
      %4381 = vmatprep.mubr.bf16.mxu0 0
      %4382 = vmatmul.mubr.bf16.gmra.mxu0 %v2785
      %v4383 = vpop.f32.mrf.mxu0
      %v4384 = vadd.f32 %v3967, %v4383
      %v4385 = vpop.f32.mrf.mxu0
      %v4386 = vpop.f32.mrf.mxu0
      %v4387 = vadd.f32 %v3970, %v4386
      %v4388 = vpop.f32.mrf.mxu0
      %4389 = vmatprep.mubr.bf16.mxu0 0
      %4390 = vmatmul.mubr.bf16.gmra.mxu0 %v2788
      %v4391 = vpop.f32.mrf.mxu0
      %v4392 = vadd.f32 %v3975, %v4391
      %v4393 = vpop.f32.mrf.mxu0
      %v4394 = vpop.f32.mrf.mxu0
      %v4395 = vadd.f32 %v3978, %v4394
      %v4396 = vpop.f32.mrf.mxu0
      %4397 = vmatprep.mubr.bf16.mxu0 0
      %4398 = vmatmul.mubr.bf16.gmra.mxu0 %v2791
      %v4399 = vpop.f32.mrf.mxu0
      %v4400 = vadd.f32 %v3983, %v4399
      %v4401 = vpop.f32.mrf.mxu0
      %v4402 = vpop.f32.mrf.mxu0
      %v4403 = vadd.f32 %v3986, %v4402
      %v4404 = vpop.f32.mrf.mxu0
      %4405 = vmatprep.mubr.bf16.mxu0 0
      %4406 = vmatmul.mubr.bf16.gmra.mxu0 %v2794
      %v4407 = vpop.f32.mrf.mxu0
      %v4408 = vadd.f32 %v3991, %v4407
      %v4409 = vpop.f32.mrf.mxu0
      %v4410 = vpop.f32.mrf.mxu0
      %v4411 = vadd.f32 %v3994, %v4410
      %v4412 = vpop.f32.mrf.mxu0
      %4413 = vmatprep.mubr.bf16.mxu0 0
      %4414 = vmatmul.mubr.bf16.gmra.mxu0 %v2797
      %v4415 = vpop.f32.mrf.mxu0
      %v4416 = vadd.f32 %v3999, %v4415
      %v4417 = vpop.f32.mrf.mxu0
      %v4418 = vpop.f32.mrf.mxu0
      %v4419 = vadd.f32 %v4002, %v4418
      %v4420 = vpop.f32.mrf.mxu0
      %4421 = vmatprep.mubr.bf16.mxu0 0
      %4422 = vmatmul.mubr.bf16.gmra.mxu0 %v2800
      %v4423 = vpop.f32.mrf.mxu0
      %v4424 = vadd.f32 %v4007, %v4423
      %v4425 = vpop.f32.mrf.mxu0
      %v4426 = vpop.f32.mrf.mxu0
      %v4427 = vadd.f32 %v4010, %v4426
      %v4428 = vpop.f32.mrf.mxu0
      %4429 = vmatprep.mubr.bf16.mxu0 0
      %4430 = vmatmul.mubr.bf16.gmra.mxu0 %v2803
      %v4431 = vpop.f32.mrf.mxu0
      %v4432 = vadd.f32 %v4015, %v4431
      %v4433 = vpop.f32.mrf.mxu0
      %v4434 = vpop.f32.mrf.mxu0
      %v4435 = vadd.f32 %v4018, %v4434
      %v4436 = vpop.f32.mrf.mxu0
      %4437 = vmatprep.mubr.bf16.mxu0 0
      %4438 = vmatmul.mubr.bf16.gmra.mxu0 %v2806
      %v4439 = vpop.f32.mrf.mxu0
      %v4440 = vadd.f32 %v4023, %v4439
      %v4441 = vpop.f32.mrf.mxu0
      %v4442 = vpop.f32.mrf.mxu0
      %v4443 = vadd.f32 %v4026, %v4442
      %v4444 = vpop.f32.mrf.mxu0
      %4445 = vmatprep.mubr.bf16.mxu0 0
      %4446 = vmatmul.mubr.bf16.gmra.mxu0 %v2809
      %v4447 = vpop.f32.mrf.mxu0
      %v4448 = vadd.f32 %v4031, %v4447
      %v4449 = vpop.f32.mrf.mxu0
      %v4450 = vpop.f32.mrf.mxu0
      %v4451 = vadd.f32 %v4034, %v4450
      %v4452 = vpop.f32.mrf.mxu0
      %4453 = vmatprep.mubr.bf16.mxu0 0
      %4454 = vmatmul.mubr.bf16.gmra.mxu0 %v2812
      %v4455 = vpop.f32.mrf.mxu0
      %v4456 = vadd.f32 %v4039, %v4455
      %v4457 = vpop.f32.mrf.mxu0
      %v4458 = vpop.f32.mrf.mxu0
      %v4459 = vadd.f32 %v4042, %v4458
      %v4460 = vpop.f32.mrf.mxu0
      %4461 = vmatprep.mubr.bf16.mxu0 0
      %4462 = vmatmul.mubr.bf16.gmra.mxu0 %v2815
      %v4463 = vpop.f32.mrf.mxu0
      %v4464 = vadd.f32 %v4047, %v4463
      %v4465 = vpop.f32.mrf.mxu0
      %v4466 = vpop.f32.mrf.mxu0
      %v4467 = vadd.f32 %v4050, %v4466
      %v4468 = vpop.f32.mrf.mxu0
      %4469 = vmatprep.mubr.bf16.mxu0 0
      %4470 = vmatmul.mubr.bf16.gmra.mxu0 %v2818
      %v4471 = vpop.f32.mrf.mxu0
      %v4472 = vadd.f32 %v4055, %v4471
      %v4473 = vpop.f32.mrf.mxu0
      %v4474 = vpop.f32.mrf.mxu0
      %v4475 = vadd.f32 %v4058, %v4474
      %v4476 = vpop.f32.mrf.mxu0
      %4477 = vmatprep.mubr.bf16.mxu0 0
      %4478 = vmatmul.mubr.bf16.gmra.mxu0 %v2821
      %v4479 = vpop.f32.mrf.mxu0
      %v4480 = vadd.f32 %v4063, %v4479
      %v4481 = vpop.f32.mrf.mxu0
      %v4482 = vpop.f32.mrf.mxu0
      %v4483 = vadd.f32 %v4066, %v4482
      %v4484 = vpop.f32.mrf.mxu0
      %4485 = vmatprep.mubr.bf16.mxu0 0
      %4486 = vmatmul.mubr.bf16.gmra.mxu0 %v2824
      %v4487 = vpop.f32.mrf.mxu0
      %v4488 = vadd.f32 %v4071, %v4487
      %v4489 = vpop.f32.mrf.mxu0
      %v4490 = vpop.f32.mrf.mxu0
      %v4491 = vadd.f32 %v4074, %v4490
      %v4492 = vpop.f32.mrf.mxu0
      %4493 = vdwg.mxu0
      %v4494 = vmax.f32 %v4112, 0.0
      %v4495 = vmax.f32 %v4115, 0.0
      %v4496 = vmax.f32 %v4120, 0.0
      %v4497 = vmax.f32 %v4123, 0.0
      %v4498 = vmax.f32 %v4128, 0.0
      %v4499 = vmax.f32 %v4131, 0.0
      %v4500 = vmax.f32 %v4136, 0.0
      %v4501 = vmax.f32 %v4139, 0.0
      %v4502 = vmax.f32 %v4144, 0.0
      %v4503 = vmax.f32 %v4147, 0.0
      %v4504 = vmax.f32 %v4152, 0.0
      %v4505 = vmax.f32 %v4155, 0.0
      %v4506 = vmax.f32 %v4160, 0.0
      %v4507 = vmax.f32 %v4163, 0.0
      %v4508 = vmax.f32 %v4168, 0.0
      %v4509 = vmax.f32 %v4171, 0.0
      %v4510 = vmax.f32 %v4176, 0.0
      %v4511 = vmax.f32 %v4179, 0.0
      %v4512 = vmax.f32 %v4184, 0.0
      %v4513 = vmax.f32 %v4187, 0.0
      %v4514 = vmax.f32 %v4192, 0.0
      %v4515 = vmax.f32 %v4195, 0.0
      %v4516 = vmax.f32 %v4200, 0.0
      %v4517 = vmax.f32 %v4203, 0.0
      %v4518 = vmax.f32 %v4208, 0.0
      %v4519 = vmax.f32 %v4211, 0.0
      %v4520 = vmax.f32 %v4216, 0.0
      %v4521 = vmax.f32 %v4219, 0.0
      %v4522 = vmax.f32 %v4224, 0.0
      %v4523 = vmax.f32 %v4227, 0.0
      %v4524 = vmax.f32 %v4232, 0.0
      %v4525 = vmax.f32 %v4235, 0.0
      %v4526 = vmax.f32 %v4240, 0.0
      %v4527 = vmax.f32 %v4243, 0.0
      %v4528 = vmax.f32 %v4248, 0.0
      %v4529 = vmax.f32 %v4251, 0.0
      %v4530 = vmax.f32 %v4256, 0.0
      %v4531 = vmax.f32 %v4259, 0.0
      %v4532 = vmax.f32 %v4264, 0.0
      %v4533 = vmax.f32 %v4267, 0.0
      %v4534 = vmax.f32 %v4272, 0.0
      %v4535 = vmax.f32 %v4275, 0.0
      %v4536 = vmax.f32 %v4280, 0.0
      %v4537 = vmax.f32 %v4283, 0.0
      %v4538 = vmax.f32 %v4288, 0.0
      %v4539 = vmax.f32 %v4291, 0.0
      %v4540 = vmax.f32 %v4296, 0.0
      %v4541 = vmax.f32 %v4299, 0.0
      %v4542 = vmax.f32 %v4304, 0.0
      %v4543 = vmax.f32 %v4307, 0.0
      %v4544 = vmax.f32 %v4312, 0.0
      %v4545 = vmax.f32 %v4315, 0.0
      %v4546 = vmax.f32 %v4320, 0.0
      %v4547 = vmax.f32 %v4323, 0.0
      %v4548 = vmax.f32 %v4328, 0.0
      %v4549 = vmax.f32 %v4331, 0.0
      %v4550 = vmax.f32 %v4336, 0.0
      %v4551 = vmax.f32 %v4339, 0.0
      %v4552 = vmax.f32 %v4344, 0.0
      %v4553 = vmax.f32 %v4347, 0.0
      %v4554 = vmax.f32 %v4352, 0.0
      %v4555 = vmax.f32 %v4355, 0.0
      %v4556 = vmax.f32 %v4360, 0.0
      %v4557 = vmax.f32 %v4363, 0.0
      %v4558 = vmax.f32 %v4368, 0.0
      %v4559 = vmax.f32 %v4371, 0.0
      %v4560 = vmax.f32 %v4376, 0.0
      %v4561 = vmax.f32 %v4379, 0.0
      %v4562 = vmax.f32 %v4384, 0.0
      %v4563 = vmax.f32 %v4387, 0.0
      %v4564 = vmax.f32 %v4392, 0.0
      %v4565 = vmax.f32 %v4395, 0.0
      %v4566 = vmax.f32 %v4400, 0.0
      %v4567 = vmax.f32 %v4403, 0.0
      %v4568 = vmax.f32 %v4408, 0.0
      %v4569 = vmax.f32 %v4411, 0.0
      %v4570 = vmax.f32 %v4416, 0.0
      %v4571 = vmax.f32 %v4419, 0.0
      %v4572 = vmax.f32 %v4424, 0.0
      %v4573 = vmax.f32 %v4427, 0.0
      %v4574 = vmax.f32 %v4432, 0.0
      %v4575 = vmax.f32 %v4435, 0.0
      %v4576 = vmax.f32 %v4440, 0.0
      %v4577 = vmax.f32 %v4443, 0.0
      %v4578 = vmax.f32 %v4448, 0.0
      %v4579 = vmax.f32 %v4451, 0.0
      %v4580 = vmax.f32 %v4456, 0.0
      %v4581 = vmax.f32 %v4459, 0.0
      %v4582 = vmax.f32 %v4464, 0.0
      %v4583 = vmax.f32 %v4467, 0.0
      %v4584 = vmax.f32 %v4472, 0.0
      %v4585 = vmax.f32 %v4475, 0.0
      %v4586 = vmax.f32 %v4480, 0.0
      %v4587 = vmax.f32 %v4483, 0.0
      %v4588 = vmax.f32 %v4488, 0.0
      %v4589 = vmax.f32 %v4491, 0.0
      %v4590 = vpack.c.bf16 %v4495, %v4494
      %v4591 = vpack.c.bf16 %v4497, %v4496
      %v4592 = vpack.c.bf16 %v4499, %v4498
      %v4593 = vpack.c.bf16 %v4501, %v4500
      %v4594 = vpack.c.bf16 %v4503, %v4502
      %v4595 = vpack.c.bf16 %v4505, %v4504
      %v4596 = vpack.c.bf16 %v4507, %v4506
      %v4597 = vpack.c.bf16 %v4509, %v4508
      %v4598 = vpack.c.bf16 %v4511, %v4510
      %v4599 = vpack.c.bf16 %v4513, %v4512
      %v4600 = vpack.c.bf16 %v4515, %v4514
      %v4601 = vpack.c.bf16 %v4517, %v4516
      %v4602 = vpack.c.bf16 %v4519, %v4518
      %v4603 = vpack.c.bf16 %v4521, %v4520
      %v4604 = vpack.c.bf16 %v4523, %v4522
      %v4605 = vpack.c.bf16 %v4525, %v4524
      %v4606 = vpack.c.bf16 %v4527, %v4526
      %v4607 = vpack.c.bf16 %v4529, %v4528
      %v4608 = vpack.c.bf16 %v4531, %v4530
      %v4609 = vpack.c.bf16 %v4533, %v4532
      %v4610 = vpack.c.bf16 %v4535, %v4534
      %v4611 = vpack.c.bf16 %v4537, %v4536
      %v4612 = vpack.c.bf16 %v4539, %v4538
      %v4613 = vpack.c.bf16 %v4541, %v4540
      %v4614 = vpack.c.bf16 %v4543, %v4542
      %v4615 = vpack.c.bf16 %v4545, %v4544
      %v4616 = vpack.c.bf16 %v4547, %v4546
      %v4617 = vpack.c.bf16 %v4549, %v4548
      %v4618 = vpack.c.bf16 %v4551, %v4550
      %v4619 = vpack.c.bf16 %v4553, %v4552
      %v4620 = vpack.c.bf16 %v4555, %v4554
      %v4621 = vpack.c.bf16 %v4557, %v4556
      %v4622 = vpack.c.bf16 %v4559, %v4558
      %v4623 = vpack.c.bf16 %v4561, %v4560
      %v4624 = vpack.c.bf16 %v4563, %v4562
      %v4625 = vpack.c.bf16 %v4565, %v4564
      %v4626 = vpack.c.bf16 %v4567, %v4566
      %v4627 = vpack.c.bf16 %v4569, %v4568
      %v4628 = vpack.c.bf16 %v4571, %v4570
      %v4629 = vpack.c.bf16 %v4573, %v4572
      %v4630 = vpack.c.bf16 %v4575, %v4574
      %v4631 = vpack.c.bf16 %v4577, %v4576
      %v4632 = vpack.c.bf16 %v4579, %v4578
      %v4633 = vpack.c.bf16 %v4581, %v4580
      %v4634 = vpack.c.bf16 %v4583, %v4582
      %v4635 = vpack.c.bf16 %v4585, %v4584
      %v4636 = vpack.c.bf16 %v4587, %v4586
      %v4637 = vpack.c.bf16 %v4589, %v4588
      %v4686 = vunpack.c.l.b16 %v4590
      %v4687 = vunpack.c.h.b16 %v4590
      %v4688 = vunpack.c.l.b16 %v4591
      %v4689 = vunpack.c.h.b16 %v4591
      %v4690 = vunpack.c.l.b16 %v4592
      %v4691 = vunpack.c.h.b16 %v4592
      %v4692 = vunpack.c.l.b16 %v4593
      %v4693 = vunpack.c.h.b16 %v4593
      %v4694 = vunpack.c.l.b16 %v4594
      %v4695 = vunpack.c.h.b16 %v4594
      %v4696 = vunpack.c.l.b16 %v4595
      %v4697 = vunpack.c.h.b16 %v4595
      %v4698 = vunpack.c.l.b16 %v4596
      %v4699 = vunpack.c.h.b16 %v4596
      %v4700 = vunpack.c.l.b16 %v4597
      %v4701 = vunpack.c.h.b16 %v4597
      %v4702 = vunpack.c.l.b16 %v4598
      %v4703 = vunpack.c.h.b16 %v4598
      %v4704 = vunpack.c.l.b16 %v4599
      %v4705 = vunpack.c.h.b16 %v4599
      %v4706 = vunpack.c.l.b16 %v4600
      %v4707 = vunpack.c.h.b16 %v4600
      %v4708 = vunpack.c.l.b16 %v4601
      %v4709 = vunpack.c.h.b16 %v4601
      %v4710 = vunpack.c.l.b16 %v4602
      %v4711 = vunpack.c.h.b16 %v4602
      %v4712 = vunpack.c.l.b16 %v4603
      %v4713 = vunpack.c.h.b16 %v4603
      %v4714 = vunpack.c.l.b16 %v4604
      %v4715 = vunpack.c.h.b16 %v4604
      %v4716 = vunpack.c.l.b16 %v4605
      %v4717 = vunpack.c.h.b16 %v4605
      %v4718 = vunpack.c.l.b16 %v4606
      %v4719 = vunpack.c.h.b16 %v4606
      %v4720 = vunpack.c.l.b16 %v4607
      %v4721 = vunpack.c.h.b16 %v4607
      %v4722 = vunpack.c.l.b16 %v4608
      %v4723 = vunpack.c.h.b16 %v4608
      %v4724 = vunpack.c.l.b16 %v4609
      %v4725 = vunpack.c.h.b16 %v4609
      %v4726 = vunpack.c.l.b16 %v4610
      %v4727 = vunpack.c.h.b16 %v4610
      %v4728 = vunpack.c.l.b16 %v4611
      %v4729 = vunpack.c.h.b16 %v4611
      %v4730 = vunpack.c.l.b16 %v4612
      %v4731 = vunpack.c.h.b16 %v4612
      %v4732 = vunpack.c.l.b16 %v4613
      %v4733 = vunpack.c.h.b16 %v4613
      %v4734 = vunpack.c.l.b16 %v4614
      %v4735 = vunpack.c.h.b16 %v4614
      %v4736 = vunpack.c.l.b16 %v4615
      %v4737 = vunpack.c.h.b16 %v4615
      %v4738 = vunpack.c.l.b16 %v4616
      %v4739 = vunpack.c.h.b16 %v4616
      %v4740 = vunpack.c.l.b16 %v4617
      %v4741 = vunpack.c.h.b16 %v4617
      %v4742 = vunpack.c.l.b16 %v4618
      %v4743 = vunpack.c.h.b16 %v4618
      %v4744 = vunpack.c.l.b16 %v4619
      %v4745 = vunpack.c.h.b16 %v4619
      %v4746 = vunpack.c.l.b16 %v4620
      %v4747 = vunpack.c.h.b16 %v4620
      %v4748 = vunpack.c.l.b16 %v4621
      %v4749 = vunpack.c.h.b16 %v4621
      %v4750 = vunpack.c.l.b16 %v4622
      %v4751 = vunpack.c.h.b16 %v4622
      %v4752 = vunpack.c.l.b16 %v4623
      %v4753 = vunpack.c.h.b16 %v4623
      %v4754 = vunpack.c.l.b16 %v4624
      %v4755 = vunpack.c.h.b16 %v4624
      %v4756 = vunpack.c.l.b16 %v4625
      %v4757 = vunpack.c.h.b16 %v4625
      %v4758 = vunpack.c.l.b16 %v4626
      %v4759 = vunpack.c.h.b16 %v4626
      %v4760 = vunpack.c.l.b16 %v4627
      %v4761 = vunpack.c.h.b16 %v4627
      %v4762 = vunpack.c.l.b16 %v4628
      %v4763 = vunpack.c.h.b16 %v4628
      %v4764 = vunpack.c.l.b16 %v4629
      %v4765 = vunpack.c.h.b16 %v4629
      %v4766 = vunpack.c.l.b16 %v4630
      %v4767 = vunpack.c.h.b16 %v4630
      %v4768 = vunpack.c.l.b16 %v4631
      %v4769 = vunpack.c.h.b16 %v4631
      %v4770 = vunpack.c.l.b16 %v4632
      %v4771 = vunpack.c.h.b16 %v4632
      %v4772 = vunpack.c.l.b16 %v4633
      %v4773 = vunpack.c.h.b16 %v4633
      %v4774 = vunpack.c.l.b16 %v4634
      %v4775 = vunpack.c.h.b16 %v4634
      %v4776 = vunpack.c.l.b16 %v4635
      %v4777 = vunpack.c.h.b16 %v4635
      %v4778 = vunpack.c.l.b16 %v4636
      %v4779 = vunpack.c.h.b16 %v4636
      %v4780 = vunpack.c.l.b16 %v4637
      %v4781 = vunpack.c.h.b16 %v4637
      %v4782 = vpack.c.b16 %v4686, %v4686
      %v4783 = vpack.c.b16 %v4687, %v4687
      %v4784 = vpack.c.b16 %v4688, %v4688
      %v4785 = vpack.c.b16 %v4689, %v4689
      %v4786 = vpack.c.b16 %v4690, %v4690
      %v4787 = vpack.c.b16 %v4691, %v4691
      %v4788 = vpack.c.b16 %v4692, %v4692
      %v4789 = vpack.c.b16 %v4693, %v4693
      %v4790 = vpack.c.b16 %v4694, %v4694
      %v4791 = vpack.c.b16 %v4695, %v4695
      %v4792 = vpack.c.b16 %v4696, %v4696
      %v4793 = vpack.c.b16 %v4697, %v4697
      %v4794 = vpack.c.b16 %v4698, %v4698
      %v4795 = vpack.c.b16 %v4699, %v4699
      %v4796 = vpack.c.b16 %v4700, %v4700
      %v4797 = vpack.c.b16 %v4701, %v4701
      %v4798 = vpack.c.b16 %v4702, %v4702
      %v4799 = vpack.c.b16 %v4703, %v4703
      %v4800 = vpack.c.b16 %v4704, %v4704
      %v4801 = vpack.c.b16 %v4705, %v4705
      %v4802 = vpack.c.b16 %v4706, %v4706
      %v4803 = vpack.c.b16 %v4707, %v4707
      %v4804 = vpack.c.b16 %v4708, %v4708
      %v4805 = vpack.c.b16 %v4709, %v4709
      %v4806 = vpack.c.b16 %v4710, %v4710
      %v4807 = vpack.c.b16 %v4711, %v4711
      %v4808 = vpack.c.b16 %v4712, %v4712
      %v4809 = vpack.c.b16 %v4713, %v4713
      %v4810 = vpack.c.b16 %v4714, %v4714
      %v4811 = vpack.c.b16 %v4715, %v4715
      %v4812 = vpack.c.b16 %v4716, %v4716
      %v4813 = vpack.c.b16 %v4717, %v4717
      %v4814 = vpack.c.b16 %v4718, %v4718
      %v4815 = vpack.c.b16 %v4719, %v4719
      %v4816 = vpack.c.b16 %v4720, %v4720
      %v4817 = vpack.c.b16 %v4721, %v4721
      %v4818 = vpack.c.b16 %v4722, %v4722
      %v4819 = vpack.c.b16 %v4723, %v4723
      %v4820 = vpack.c.b16 %v4724, %v4724
      %v4821 = vpack.c.b16 %v4725, %v4725
      %v4822 = vpack.c.b16 %v4726, %v4726
      %v4823 = vpack.c.b16 %v4727, %v4727
      %v4824 = vpack.c.b16 %v4728, %v4728
      %v4825 = vpack.c.b16 %v4729, %v4729
      %v4826 = vpack.c.b16 %v4730, %v4730
      %v4827 = vpack.c.b16 %v4731, %v4731
      %v4828 = vpack.c.b16 %v4732, %v4732
      %v4829 = vpack.c.b16 %v4733, %v4733
      %v4830 = vpack.c.b16 %v4734, %v4734
      %v4831 = vpack.c.b16 %v4735, %v4735
      %v4832 = vpack.c.b16 %v4736, %v4736
      %v4833 = vpack.c.b16 %v4737, %v4737
      %v4834 = vpack.c.b16 %v4738, %v4738
      %v4835 = vpack.c.b16 %v4739, %v4739
      %v4836 = vpack.c.b16 %v4740, %v4740
      %v4837 = vpack.c.b16 %v4741, %v4741
      %v4838 = vpack.c.b16 %v4742, %v4742
      %v4839 = vpack.c.b16 %v4743, %v4743
      %v4840 = vpack.c.b16 %v4744, %v4744
      %v4841 = vpack.c.b16 %v4745, %v4745
      %v4842 = vpack.c.b16 %v4746, %v4746
      %v4843 = vpack.c.b16 %v4747, %v4747
      %v4844 = vpack.c.b16 %v4748, %v4748
      %v4845 = vpack.c.b16 %v4749, %v4749
      %v4846 = vpack.c.b16 %v4750, %v4750
      %v4847 = vpack.c.b16 %v4751, %v4751
      %v4848 = vpack.c.b16 %v4752, %v4752
      %v4849 = vpack.c.b16 %v4753, %v4753
      %v4850 = vpack.c.b16 %v4754, %v4754
      %v4851 = vpack.c.b16 %v4755, %v4755
      %v4852 = vpack.c.b16 %v4756, %v4756
      %v4853 = vpack.c.b16 %v4757, %v4757
      %v4854 = vpack.c.b16 %v4758, %v4758
      %v4855 = vpack.c.b16 %v4759, %v4759
      %v4856 = vpack.c.b16 %v4760, %v4760
      %v4857 = vpack.c.b16 %v4761, %v4761
      %v4858 = vpack.c.b16 %v4762, %v4762
      %v4859 = vpack.c.b16 %v4763, %v4763
      %v4860 = vpack.c.b16 %v4764, %v4764
      %v4861 = vpack.c.b16 %v4765, %v4765
      %v4862 = vpack.c.b16 %v4766, %v4766
      %v4863 = vpack.c.b16 %v4767, %v4767
      %v4864 = vpack.c.b16 %v4768, %v4768
      %v4865 = vpack.c.b16 %v4769, %v4769
      %v4866 = vpack.c.b16 %v4770, %v4770
      %v4867 = vpack.c.b16 %v4771, %v4771
      %v4868 = vpack.c.b16 %v4772, %v4772
      %v4869 = vpack.c.b16 %v4773, %v4773
      %v4870 = vpack.c.b16 %v4774, %v4774
      %v4871 = vpack.c.b16 %v4775, %v4775
      %v4872 = vpack.c.b16 %v4776, %v4776
      %v4873 = vpack.c.b16 %v4777, %v4777
      %v4874 = vpack.c.b16 %v4778, %v4778
      %v4875 = vpack.c.b16 %v4779, %v4779
      %v4876 = vpack.c.b16 %v4780, %v4780
      %v4877 = vpack.c.b16 %v4781, %v4781
      %4974 = vst [vmem:[%s175] sm:$0xf] %v4782
      %4975 = vst [vmem:[%s175 + $0x4] sm:$0xf] %v4783
      %4976 = vst [vmem:[%s175 + $0x8] sm:$0xf] %v4784
      %4977 = vst [vmem:[%s175 + $0xc] sm:$0xf] %v4785
      %4978 = vst [vmem:[%s175 + $0x10] sm:$0xf] %v4786
      %4979 = vst [vmem:[%s175 + $0x14] sm:$0xf] %v4787
      %4980 = vst [vmem:[%s175 + $0x18] sm:$0xf] %v4788
      %4981 = vst [vmem:[%s175 + $0x1c] sm:$0xf] %v4789
      %4982 = vst [vmem:[%s175 + $0x20] sm:$0xf] %v4790
      %4983 = vst [vmem:[%s175 + $0x24] sm:$0xf] %v4791
      %4984 = vst [vmem:[%s175 + $0x28] sm:$0xf] %v4792
      %4985 = vst [vmem:[%s175 + $0x2c] sm:$0xf] %v4793
      %4986 = vst [vmem:[%s175 + $0x30] sm:$0xf] %v4794
      %4987 = vst [vmem:[%s175 + $0x34] sm:$0xf] %v4795
      %4988 = vst [vmem:[%s175 + $0x38] sm:$0xf] %v4796
      %4989 = vst [vmem:[%s175 + $0x3c] sm:$0xf] %v4797
      %4990 = vst [vmem:[%s175 + $0x40] sm:$0xf] %v4798
      %4991 = vst [vmem:[%s175 + $0x44] sm:$0xf] %v4799
      %4992 = vst [vmem:[%s175 + $0x48] sm:$0xf] %v4800
      %4993 = vst [vmem:[%s175 + $0x4c] sm:$0xf] %v4801
      %4994 = vst [vmem:[%s175 + $0x50] sm:$0xf] %v4802
      %4995 = vst [vmem:[%s175 + $0x54] sm:$0xf] %v4803
      %4996 = vst [vmem:[%s175 + $0x58] sm:$0xf] %v4804
      %4997 = vst [vmem:[%s175 + $0x5c] sm:$0xf] %v4805
      %4998 = vst [vmem:[%s175 + $0x60] sm:$0xf] %v4806
      %4999 = vst [vmem:[%s175 + $0x64] sm:$0xf] %v4807
      %5000 = vst [vmem:[%s175 + $0x68] sm:$0xf] %v4808
      %5001 = vst [vmem:[%s175 + $0x6c] sm:$0xf] %v4809
      %5002 = vst [vmem:[%s175 + $0x70] sm:$0xf] %v4810
      %5003 = vst [vmem:[%s175 + $0x74] sm:$0xf] %v4811
      %5004 = vst [vmem:[%s175 + $0x78] sm:$0xf] %v4812
      %5005 = vst [vmem:[%s175 + $0x7c] sm:$0xf] %v4813
      %5006 = vst [vmem:[%s175 + $0x80] sm:$0xf] %v4814
      %5007 = vst [vmem:[%s175 + $0x84] sm:$0xf] %v4815
      %5008 = vst [vmem:[%s175 + $0x88] sm:$0xf] %v4816
      %5009 = vst [vmem:[%s175 + $0x8c] sm:$0xf] %v4817
      %5010 = vst [vmem:[%s175 + $0x90] sm:$0xf] %v4818
      %5011 = vst [vmem:[%s175 + $0x94] sm:$0xf] %v4819
      %5012 = vst [vmem:[%s175 + $0x98] sm:$0xf] %v4820
      %5013 = vst [vmem:[%s175 + $0x9c] sm:$0xf] %v4821
      %5014 = vst [vmem:[%s175 + $0xa0] sm:$0xf] %v4822
      %5015 = vst [vmem:[%s175 + $0xa4] sm:$0xf] %v4823
      %5016 = vst [vmem:[%s175 + $0xa8] sm:$0xf] %v4824
      %5017 = vst [vmem:[%s175 + $0xac] sm:$0xf] %v4825
      %5018 = vst [vmem:[%s175 + $0xb0] sm:$0xf] %v4826
      %5019 = vst [vmem:[%s175 + $0xb4] sm:$0xf] %v4827
      %5020 = vst [vmem:[%s175 + $0xb8] sm:$0xf] %v4828
      %5021 = vst [vmem:[%s175 + $0xbc] sm:$0xf] %v4829
      %5022 = vst [vmem:[%s175 + $0xc0] sm:$0xf] %v4830
      %5023 = vst [vmem:[%s175 + $0xc4] sm:$0xf] %v4831
      %5024 = vst [vmem:[%s175 + $0xc8] sm:$0xf] %v4832
      %5025 = vst [vmem:[%s175 + $0xcc] sm:$0xf] %v4833
      %5026 = vst [vmem:[%s175 + $0xd0] sm:$0xf] %v4834
      %5027 = vst [vmem:[%s175 + $0xd4] sm:$0xf] %v4835
      %5028 = vst [vmem:[%s175 + $0xd8] sm:$0xf] %v4836
      %5029 = vst [vmem:[%s175 + $0xdc] sm:$0xf] %v4837
      %5030 = vst [vmem:[%s175 + $0xe0] sm:$0xf] %v4838
      %5031 = vst [vmem:[%s175 + $0xe4] sm:$0xf] %v4839
      %5032 = vst [vmem:[%s175 + $0xe8] sm:$0xf] %v4840
      %5033 = vst [vmem:[%s175 + $0xec] sm:$0xf] %v4841
      %5034 = vst [vmem:[%s175 + $0xf0] sm:$0xf] %v4842
      %5035 = vst [vmem:[%s175 + $0xf4] sm:$0xf] %v4843
      %5036 = vst [vmem:[%s175 + $0xf8] sm:$0xf] %v4844
      %5037 = vst [vmem:[%s175 + $0xfc] sm:$0xf] %v4845
      %5038 = vst [vmem:[%s175 + $0x100] sm:$0xf] %v4846
      %5039 = vst [vmem:[%s175 + $0x104] sm:$0xf] %v4847
      %5040 = vst [vmem:[%s175 + $0x108] sm:$0xf] %v4848
      %5041 = vst [vmem:[%s175 + $0x10c] sm:$0xf] %v4849
      %5042 = vst [vmem:[%s175 + $0x110] sm:$0xf] %v4850
      %5043 = vst [vmem:[%s175 + $0x114] sm:$0xf] %v4851
      %5044 = vst [vmem:[%s175 + $0x118] sm:$0xf] %v4852
      %5045 = vst [vmem:[%s175 + $0x11c] sm:$0xf] %v4853
      %5046 = vst [vmem:[%s175 + $0x120] sm:$0xf] %v4854
      %5047 = vst [vmem:[%s175 + $0x124] sm:$0xf] %v4855
      %5048 = vst [vmem:[%s175 + $0x128] sm:$0xf] %v4856
      %5049 = vst [vmem:[%s175 + $0x12c] sm:$0xf] %v4857
      %5050 = vst [vmem:[%s175 + $0x130] sm:$0xf] %v4858
      %5051 = vst [vmem:[%s175 + $0x134] sm:$0xf] %v4859
      %5052 = vst [vmem:[%s175 + $0x138] sm:$0xf] %v4860
      %5053 = vst [vmem:[%s175 + $0x13c] sm:$0xf] %v4861
      %5054 = vst [vmem:[%s175 + $0x140] sm:$0xf] %v4862
      %5055 = vst [vmem:[%s175 + $0x144] sm:$0xf] %v4863
      %5056 = vst [vmem:[%s175 + $0x148] sm:$0xf] %v4864
      %5057 = vst [vmem:[%s175 + $0x14c] sm:$0xf] %v4865
      %5058 = vst [vmem:[%s175 + $0x150] sm:$0xf] %v4866
      %5059 = vst [vmem:[%s175 + $0x154] sm:$0xf] %v4867
      %5060 = vst [vmem:[%s175 + $0x158] sm:$0xf] %v4868
      %5061 = vst [vmem:[%s175 + $0x15c] sm:$0xf] %v4869
      %5062 = vst [vmem:[%s175 + $0x160] sm:$0xf] %v4870
      %5063 = vst [vmem:[%s175 + $0x164] sm:$0xf] %v4871
      %5064 = vst [vmem:[%s175 + $0x168] sm:$0xf] %v4872
      %5065 = vst [vmem:[%s175 + $0x16c] sm:$0xf] %v4873
      %5066 = vst [vmem:[%s175 + $0x170] sm:$0xf] %v4874
      %5067 = vst [vmem:[%s175 + $0x174] sm:$0xf] %v4875
      %5068 = vst [vmem:[%s175 + $0x178] sm:$0xf] %v4876
      %5069 = vst [vmem:[%s175 + $0x17c] sm:$0xf] %v4877
      %s5070 = smul.u32 96, %s14
      %p5071 = scmp.lt.s32.totalorder %s5070, 191
      %s5072 = scalar_select %p5071, %s5070, 191
      %s5073 = smul.addr %s5072, 4
      %s5074 = scalar_lea.vmem %s3, %s5073
      // Predicated region
      $region33: #{conv_ae_forward.8} parent=31 // pred_check
        %p5075 = pneg %p100
      $region34: #{conv_ae_forward.8} parent=31 // pred_check_branch
        %5077 = sbr.rel (%p5075) target = $region36
      $region35: #{conv_ae_forward.8} parent=31 // pred_region
        %s5078 = smul.u32 96, %s14
      $region36: #{conv_ae_forward.8} parent=31 // pred_fallthru
        _
    $region32: #{conv_ae_forward.8} parent=5 // pred_fallthru
      _
    %p5079 = scmp.le.s32.totalorder 2, %s9
    // Predicated region
    $region37: #{conv_ae_forward.8} parent=5 // pred_check
      %p5080 = pneg %p5079
    $region38: #{conv_ae_forward.8} parent=5 // pred_check_branch
      %5082 = sbr.rel (%p5080) target = $region40
    $region39: #{conv_ae_forward.8} parent=5 // pred_region
      %s5083 = ssub.s32 %s9, 2
      // Predicated region
      $region41: #{conv_ae_forward.8} parent=39 // pred_check
        %p5084 = pneg %p106
      $region42: #{conv_ae_forward.8} parent=39 // pred_check_branch
        %5086 = sbr.rel (%p5084) target = $region44
      $region43: #{conv_ae_forward.8} parent=39 // pred_region
        %s5087 = smul.u32 96, %s15
        %p5088 = scmp.lt.s32.totalorder %s5087, 191
        %s5089 = scalar_select %p5088, %s5087, 191
        %s5090 = smul.addr %s5089, 4
        %s5091 = scalar_lea.vmem %s3, %s5090
      $region44: #{conv_ae_forward.8} parent=39 // pred_fallthru
        _
    $region40: #{conv_ae_forward.8} parent=5 // pred_fallthru
      _
  $region6: #{conv_ae_forward.8} parent=0 // loop_footer
    %s13 = sadd.s32 1, %s9
  $region7: #{conv_ae_forward.8} parent=0 // loop_footer_branch
    %8 = sbr.rel target = $region3
  $region8: #{conv_ae_forward.8} parent=0 // loop_exit
    _

// kernel: conv_ae_forward.9
$region0: #{conv_ae_forward.9}
  #allocation0 [shape = 'u32[]', space=smem, size = 0x4, offset = 0x4, fixed_abs, tag = 'smem constant byte address 0x4 - core index']
  #allocation1 [shape = 'u32[144,128]{1,0:T(1,128)}', space=vmem, size = 0x12000, scoped, tag = 'internal scratch']
  %s0 = inlined_call_operand.vmem [shape: bf16[10800,432], index: 0, kind: input, shape index: {}]
  %s1 = inlined_call_operand.vmem [shape: bf16[432,128], index: 1, kind: input, shape index: {}]
  %s2 = inlined_call_operand.vmem [shape: f32[1,128], index: 2, kind: input, shape index: {}]
  %s3 = inlined_call_operand.vmem [shape: f32[10800,128], index: 3, kind: output, shape index: {}]
  %s4 = sld [smem:[#allocation0]]
  $region45: #{conv_ae_forward.9} parent=0
    _
  %s6 = ssub.s32 1, %s4
  %s7 = scalar_select 0, %s6, %s4
  loop: start=0, step=1, limit=17
  $region2: #{conv_ae_forward.9} parent=0 // loop_pre_header
    _
  $region3: #{conv_ae_forward.9} parent=0 // loop_header
    %s9 = sphi 0, %s13
    %p10 = scmp.ge.s32.totalorder %s9, 17
    %s19 = sphi 0, %s21
    %s22 = sphi 0, %s19
    %s23 = sphi 0, %s22
    %s39 = sphi 0, %s23
    %s43 = sphi 0, %s43
    %s45 = sphi 0, %s43
    %s46 = sphi 0, %s45
    %s60 = sphi 0, %s46
    %s64 = sphi 0, %s64
    %s66 = sphi 0, %s64
    %s67 = sphi 0, %s66
    %s81 = sphi 0, %s67
    %s87 = sphi 0, %s89
    %s90 = sphi 0, %s87
    %s91 = sphi 0, %s90
    %s107 = sphi 0, %s91
  $region4: #{conv_ae_forward.9} parent=0 // loop_header_branch
    %12 = sbr.rel (%p10) target = $region8
  $region5: #{conv_ae_forward.9} parent=0 // loop_body
    %s14 = ssub.s32 %s9, 1
    %s15 = ssub.s32 %s9, 2
    %s16 = sadd.s32 %s9, 1
    %s17 = ssub.s32 %s9, %s16
    %p18 = scmp.eq.s32.totalorder %s17, 0
    %s20 = sadd.s32 %s19, 1
    %s21 = scalar_select %p18, %s19, %s20
    %p24 = pneg %p18
    %p25 = scmp.eq.s32.totalorder %s9, 14
    %p26 = por %p24, %p25
    %p27 = scmp.ne.s32.totalorder %s19, %s22
    %p28 = scmp.eq.s32.totalorder %s9, 0
    %p29 = por %p27, %p28
    %p30 = scmp.ne.s32.totalorder %s19, %s22
    %p31 = scmp.eq.s32.totalorder %s14, 14
    %p32 = por %p30, %p31
    %p33 = scmp.ne.s32.totalorder %s22, %s23
    %p34 = scmp.eq.s32.totalorder %s14, 0
    %p35 = por %p33, %p34
    %p36 = scmp.ne.s32.totalorder %s22, %s23
    %p37 = scmp.eq.s32.totalorder %s15, 14
    %p38 = por %p36, %p37
    %p40 = scmp.ne.s32.totalorder %s23, %s39
    %p41 = scmp.eq.s32.totalorder %s15, 0
    %p42 = por %p40, %p41
    %s44 = sadd.s32 %s43, 1
    %p47 = scmp.eq.s32.totalorder %s9, 14
    %p48 = scmp.ne.s32.totalorder %s43, %s45
    %p49 = scmp.eq.s32.totalorder %s9, 0
    %p50 = por %p48, %p49
    %p51 = scmp.ne.s32.totalorder %s43, %s45
    %p52 = scmp.eq.s32.totalorder %s14, 14
    %p53 = por %p51, %p52
    %p54 = scmp.ne.s32.totalorder %s45, %s46
    %p55 = scmp.eq.s32.totalorder %s14, 0
    %p56 = por %p54, %p55
    %p57 = scmp.ne.s32.totalorder %s45, %s46
    %p58 = scmp.eq.s32.totalorder %s15, 14
    %p59 = por %p57, %p58
    %p61 = scmp.ne.s32.totalorder %s46, %s60
    %p62 = scmp.eq.s32.totalorder %s15, 0
    %p63 = por %p61, %p62
    %s65 = sadd.s32 %s64, 1
    %p68 = scmp.eq.s32.totalorder %s9, 14
    %p69 = scmp.ne.s32.totalorder %s64, %s66
    %p70 = scmp.eq.s32.totalorder %s9, 0
    %p71 = por %p69, %p70
    %p72 = scmp.ne.s32.totalorder %s64, %s66
    %p73 = scmp.eq.s32.totalorder %s14, 14
    %p74 = por %p72, %p73
    %p75 = scmp.ne.s32.totalorder %s66, %s67
    %p76 = scmp.eq.s32.totalorder %s14, 0
    %p77 = por %p75, %p76
    %p78 = scmp.ne.s32.totalorder %s66, %s67
    %p79 = scmp.eq.s32.totalorder %s15, 14
    %p80 = por %p78, %p79
    %p82 = scmp.ne.s32.totalorder %s67, %s81
    %p83 = scmp.eq.s32.totalorder %s15, 0
    %p84 = por %p82, %p83
    %s85 = ssub.s32 %s9, %s16
    %p86 = scmp.eq.s32.totalorder %s85, 0
    %s88 = sadd.s32 %s87, 1
    %s89 = scalar_select %p86, %s87, %s88
    %p92 = pneg %p86
    %p93 = scmp.eq.s32.totalorder %s9, 14
    %p94 = por %p92, %p93
    %p95 = scmp.ne.s32.totalorder %s87, %s90
    %p96 = scmp.eq.s32.totalorder %s9, 0
    %p97 = por %p95, %p96
    %p98 = scmp.ne.s32.totalorder %s87, %s90
    %p99 = scmp.eq.s32.totalorder %s14, 14
    %p100 = por %p98, %p99
    %p101 = scmp.ne.s32.totalorder %s90, %s91
    %p102 = scmp.eq.s32.totalorder %s14, 0
    %p103 = por %p101, %p102
    %p104 = scmp.ne.s32.totalorder %s90, %s91
    %p105 = scmp.eq.s32.totalorder %s15, 14
    %p106 = por %p104, %p105
    %p108 = scmp.ne.s32.totalorder %s91, %s107
    %p109 = scmp.eq.s32.totalorder %s15, 0
    %p110 = por %p108, %p109
    %p111 = scmp.le.s32.totalorder 1, %s9
    %p112 = scmp.lt.s32.totalorder %s9, 16
    %p113 = pnand %p111, %p112
    %p114 = pneg %p113
    // Predicated region
    $region9: #{conv_ae_forward.9} parent=5 // pred_check
      _
    $region10: #{conv_ae_forward.9} parent=5 // pred_check_branch
      %116 = sbr.rel (%p113) target = $region12
    $region11: #{conv_ae_forward.9} parent=5 // pred_region
      %s117 = ssub.s32 %s9, 1
      // Predicated region
      $region13: #{conv_ae_forward.9} parent=11 // pred_check
        %p118 = pneg %p56
      $region14: #{conv_ae_forward.9} parent=11 // pred_check_branch
        %120 = sbr.rel (%p118) target = $region16
      $region15: #{conv_ae_forward.9} parent=11 // pred_region
        _
      $region16: #{conv_ae_forward.9} parent=11 // pred_fallthru
        _
      // Predicated region
      $region17: #{conv_ae_forward.9} parent=11 // pred_check
        %p121 = pneg %p77
      $region18: #{conv_ae_forward.9} parent=11 // pred_check_branch
        %123 = sbr.rel (%p121) target = $region20
      $region19: #{conv_ae_forward.9} parent=11 // pred_region
        _
      $region20: #{conv_ae_forward.9} parent=11 // pred_fallthru
        _
    $region12: #{conv_ae_forward.9} parent=5 // pred_fallthru
      _
    %p124 = scmp.lt.s32.totalorder %s9, 15
    // Predicated region
    $region21: #{conv_ae_forward.9} parent=5 // pred_check
      %p125 = pneg %p124
    $region22: #{conv_ae_forward.9} parent=5 // pred_check_branch
      %127 = sbr.rel (%p125) target = $region24
    $region23: #{conv_ae_forward.9} parent=5 // pred_region
      // Predicated region
      $region25: #{conv_ae_forward.9} parent=23 // pred_check
        %p128 = pneg %p29
      $region26: #{conv_ae_forward.9} parent=23 // pred_check_branch
        %130 = sbr.rel (%p128) target = $region28
      $region27: #{conv_ae_forward.9} parent=23 // pred_region
        %s131 = smul.u32 90, %s9
        %p132 = scmp.lt.s32.totalorder %s131, 1349
        %s133 = scalar_select %p132, %s131, 1349
        %s134 = smul.addr %s133, 4
        %s135 = smul.addr %s134, 4
        %s136 = scalar_lea.vmem %s0, %s135
        %s137 = smul.u32 90, %s9
      $region28: #{conv_ae_forward.9} parent=23 // pred_fallthru
        _
    $region24: #{conv_ae_forward.9} parent=5 // pred_fallthru
      _
    %p138 = scmp.le.s32.totalorder 1, %s9
    %p139 = scmp.lt.s32.totalorder %s9, 16
    %p140 = pnand %p138, %p139
    %p141 = pneg %p140
    // Predicated region
    $region29: #{conv_ae_forward.9} parent=5 // pred_check
      _
    $region30: #{conv_ae_forward.9} parent=5 // pred_check_branch
      %143 = sbr.rel (%p140) target = $region32
    $region31: #{conv_ae_forward.9} parent=5 // pred_region
      %s144 = ssub.s32 %s9, 1
      %s145 = smul.u32 90, %s14
      %p146 = scmp.lt.s32.totalorder %s145, 1349
      %s147 = scalar_select %p146, %s145, 1349
      %s148 = smul.addr %s147, 4
      %s149 = smul.addr %s148, 4
      %s150 = scalar_lea.vmem %s0, %s149
      %p151 = pneg %p35
      %p152 = pneg %p32
      %p153 = pneg %p56
      %p154 = pneg %p53
      %p155 = pneg %p77
      %p156 = pneg %p74
      %p157 = pneg %p103
      %p158 = pneg %p100
      %s159 = smul.u32 90, %s14
      %p160 = scmp.lt.s32.totalorder %s159, 1349
      %s161 = scalar_select %p160, %s159, 1349
      %s162 = smul.addr %s161, 8
      %s163 = scalar_lea.vmem %s3, %s162
      %s164 = smul.u32 90, %s14
      %p165 = scmp.lt.s32.totalorder %s164, 1349
      %s166 = scalar_select %p165, %s164, 1349
      %s167 = smul.addr %s166, 4
      %s168 = smul.addr %s167, 4
      %s169 = scalar_lea.vmem %s0, %s168
      %s170 = smul.u32 90, %s14
      %s171 = smul.u32 90, %s14
      %p172 = scmp.lt.s32.totalorder %s171, 1349
      %s173 = scalar_select %p172, %s171, 1349
      %s174 = smul.addr %s173, 8
      %s175 = scalar_lea.vmem %s3, %s174
      %s176 = smul.u32 90, %s14
      %v178 = vld [vmem:[%s169] sm:$0xff]
      %v179 = vld [vmem:[%s169 + $0x8] sm:$0xff]
      %v180 = vld [vmem:[%s169 + $0x10] sm:$0xff]
      %v181 = vld [vmem:[%s169 + $0x18] sm:$0xff]
      %v182 = vld [vmem:[%s169 + $0x20] sm:$0xff]
      %v183 = vld [vmem:[%s169 + $0x28] sm:$0xff]
      %v184 = vld [vmem:[%s169 + $0x30] sm:$0xff]
      %v185 = vld [vmem:[%s169 + $0x38] sm:$0xff]
      %v186 = vld [vmem:[%s169 + $0x40] sm:$0xff]
      %v187 = vld [vmem:[%s169 + $0x48] sm:$0xff]
      %v188 = vld [vmem:[%s169 + $0x50] sm:$0xff]
      %v189 = vld [vmem:[%s169 + $0x58] sm:$0xff]
      %v190 = vld [vmem:[%s169 + $0x60] sm:$0xff]
      %v191 = vld [vmem:[%s169 + $0x68] sm:$0xff]
      %v192 = vld [vmem:[%s169 + $0x70] sm:$0xff]
      %v193 = vld [vmem:[%s169 + $0x78] sm:$0xff]
      %v194 = vld [vmem:[%s169 + $0x80] sm:$0xff]
      %v195 = vld [vmem:[%s169 + $0x88] sm:$0xff]
      %v196 = vld [vmem:[%s169 + $0x90] sm:$0xff]
      %v197 = vld [vmem:[%s169 + $0x98] sm:$0xff]
      %v198 = vld [vmem:[%s169 + $0xa0] sm:$0xff]
      %v199 = vld [vmem:[%s169 + $0xa8] sm:$0xff]
      %v200 = vld [vmem:[%s169 + $0xb0] sm:$0xff]
      %v201 = vld [vmem:[%s169 + $0xb8] sm:$0xff]
      %v202 = vld [vmem:[%s169 + $0xc0] sm:$0xff]
      %v203 = vld [vmem:[%s169 + $0xc8] sm:$0xff]
      %v204 = vld [vmem:[%s169 + $0xd0] sm:$0xff]
      %v205 = vld [vmem:[%s169 + $0xd8] sm:$0xff]
      %v206 = vld [vmem:[%s169 + $0xe0] sm:$0xff]
      %v207 = vld [vmem:[%s169 + $0xe8] sm:$0xff]
      %v208 = vld [vmem:[%s169 + $0xf0] sm:$0xff]
      %v209 = vld [vmem:[%s169 + $0xf8] sm:$0xff]
      %v210 = vld [vmem:[%s169 + $0x100] sm:$0xff]
      %v211 = vld [vmem:[%s169 + $0x108] sm:$0xff]
      %v212 = vld [vmem:[%s169 + $0x110] sm:$0xff]
      %v213 = vld [vmem:[%s169 + $0x118] sm:$0xff]
      %v214 = vld [vmem:[%s169 + $0x120] sm:$0xff]
      %v215 = vld [vmem:[%s169 + $0x128] sm:$0xff]
      %v216 = vld [vmem:[%s169 + $0x130] sm:$0xff]
      %v217 = vld [vmem:[%s169 + $0x138] sm:$0xff]
      %v218 = vld [vmem:[%s169 + $0x140] sm:$0xff]
      %v219 = vld [vmem:[%s169 + $0x148] sm:$0xff]
      %v220 = vld [vmem:[%s169 + $0x150] sm:$0xff]
      %v221 = vld [vmem:[%s169 + $0x158] sm:$0xff]
      %v222 = vld [vmem:[%s169 + $0x160] sm:$0xff]
      %v223 = vld [vmem:[%s169 + $0x168] sm:$0xff]
      %v224 = vld [vmem:[%s169 + $0x170] sm:$0xff]
      %v225 = vld [vmem:[%s169 + $0x178] sm:$0xff]
      %v226 = vld [vmem:[%s169 + $0x180] sm:$0xff]
      %v227 = vld [vmem:[%s169 + $0x188] sm:$0xff]
      %v228 = vld [vmem:[%s169 + $0x190] sm:$0xff]
      %v229 = vld [vmem:[%s169 + $0x198] sm:$0xff]
      %v230 = vld [vmem:[%s169 + $0x1a0] sm:$0xff]
      %v231 = vld [vmem:[%s169 + $0x1a8] sm:$0xff]
      %v232 = vld [vmem:[%s169 + $0x1b0] sm:$0xff]
      %v233 = vld [vmem:[%s169 + $0x1b8] sm:$0xff]
      %v234 = vld [vmem:[%s169 + $0x1c0] sm:$0xff]
      %v235 = vld [vmem:[%s169 + $0x1c8] sm:$0xff]
      %v236 = vld [vmem:[%s169 + $0x1d0] sm:$0xff]
      %v237 = vld [vmem:[%s169 + $0x1d8] sm:$0xff]
      %v238 = vld [vmem:[%s169 + $0x1e0] sm:$0xff]
      %v239 = vld [vmem:[%s169 + $0x1e8] sm:$0xff]
      %v240 = vld [vmem:[%s169 + $0x1f0] sm:$0xff]
      %v241 = vld [vmem:[%s169 + $0x1f8] sm:$0xff]
      %v242 = vld [vmem:[%s169 + $0x200] sm:$0xff]
      %v243 = vld [vmem:[%s169 + $0x208] sm:$0xff]
      %v244 = vld [vmem:[%s169 + $0x210] sm:$0xff]
      %v245 = vld [vmem:[%s169 + $0x218] sm:$0xff]
      %v246 = vld [vmem:[%s169 + $0x220] sm:$0xff]
      %v247 = vld [vmem:[%s169 + $0x228] sm:$0xff]
      %v248 = vld [vmem:[%s169 + $0x230] sm:$0xff]
      %v249 = vld [vmem:[%s169 + $0x238] sm:$0xff]
      %v250 = vld [vmem:[%s169 + $0x240] sm:$0xff]
      %v251 = vld [vmem:[%s169 + $0x248] sm:$0xff]
      %v252 = vld [vmem:[%s169 + $0x250] sm:$0xff]
      %v253 = vld [vmem:[%s169 + $0x258] sm:$0xff]
      %v254 = vld [vmem:[%s169 + $0x260] sm:$0xff]
      %v255 = vld [vmem:[%s169 + $0x268] sm:$0xff]
      %v256 = vld [vmem:[%s169 + $0x270] sm:$0xff]
      %v257 = vld [vmem:[%s169 + $0x278] sm:$0xff]
      %v258 = vld [vmem:[%s169 + $0x280] sm:$0xff]
      %v259 = vld [vmem:[%s169 + $0x288] sm:$0xff]
      %v260 = vld [vmem:[%s169 + $0x290] sm:$0xff]
      %v261 = vld [vmem:[%s169 + $0x298] sm:$0xff]
      %v262 = vld [vmem:[%s169 + $0x2a0] sm:$0xff]
      %v263 = vld [vmem:[%s169 + $0x2a8] sm:$0xff]
      %v264 = vld [vmem:[%s169 + $0x2b0] sm:$0xff]
      %v265 = vld [vmem:[%s169 + $0x2b8] sm:$0xff]
      %v266 = vld [vmem:[%s169 + $0x2c0] sm:$0xff]
      %v267 = vld [vmem:[%s169 + $0x2c8] sm:$0xff]
      %v268 = vld [vmem:[%s169 + $0x2d0] sm:$0xff]
      %v269 = vld [vmem:[%s169 + $0x2d8] sm:$0xff]
      %v270 = vld [vmem:[%s169 + $0x2e0] sm:$0xff]
      %v271 = vld [vmem:[%s169 + $0x2e8] sm:$0xff]
      %v272 = vld [vmem:[%s169 + $0x2f0] sm:$0xff]
      %v273 = vld [vmem:[%s169 + $0x2f8] sm:$0xff]
      %v274 = vld [vmem:[%s169 + $0x300] sm:$0xff]
      %v275 = vld [vmem:[%s169 + $0x308] sm:$0xff]
      %v276 = vld [vmem:[%s169 + $0x310] sm:$0xff]
      %v277 = vld [vmem:[%s169 + $0x318] sm:$0xff]
      %v278 = vld [vmem:[%s169 + $0x320] sm:$0xff]
      %v279 = vld [vmem:[%s169 + $0x328] sm:$0xff]
      %v280 = vld [vmem:[%s169 + $0x330] sm:$0xff]
      %v281 = vld [vmem:[%s169 + $0x338] sm:$0xff]
      %v282 = vld [vmem:[%s169 + $0x340] sm:$0xff]
      %v283 = vld [vmem:[%s169 + $0x348] sm:$0xff]
      %v284 = vld [vmem:[%s169 + $0x350] sm:$0xff]
      %v285 = vld [vmem:[%s169 + $0x358] sm:$0xff]
      %v286 = vld [vmem:[%s169 + $0x360] sm:$0xff]
      %v287 = vld [vmem:[%s169 + $0x368] sm:$0xff]
      %v288 = vld [vmem:[%s169 + $0x370] sm:$0xff]
      %v289 = vld [vmem:[%s169 + $0x378] sm:$0xff]
      %v290 = vld [vmem:[%s169 + $0x380] sm:$0xff]
      %v291 = vld [vmem:[%s169 + $0x388] sm:$0xff]
      %v292 = vld [vmem:[%s169 + $0x390] sm:$0xff]
      %v293 = vld [vmem:[%s169 + $0x398] sm:$0xff]
      %v294 = vld [vmem:[%s169 + $0x3a0] sm:$0xff]
      %v295 = vld [vmem:[%s169 + $0x3a8] sm:$0xff]
      %v296 = vld [vmem:[%s169 + $0x3b0] sm:$0xff]
      %v297 = vld [vmem:[%s169 + $0x3b8] sm:$0xff]
      %v298 = vld [vmem:[%s169 + $0x3c0] sm:$0xff]
      %v299 = vld [vmem:[%s169 + $0x3c8] sm:$0xff]
      %v300 = vld [vmem:[%s169 + $0x3d0] sm:$0xff]
      %v301 = vld [vmem:[%s169 + $0x3d8] sm:$0xff]
      %v302 = vld [vmem:[%s169 + $0x3e0] sm:$0xff]
      %v303 = vld [vmem:[%s169 + $0x3e8] sm:$0xff]
      %v304 = vld [vmem:[%s169 + $0x3f0] sm:$0xff]
      %v305 = vld [vmem:[%s169 + $0x3f8] sm:$0xff]
      %v306 = vld [vmem:[%s169 + $0x400] sm:$0xff]
      %v307 = vld [vmem:[%s169 + $0x408] sm:$0xff]
      %v308 = vld [vmem:[%s169 + $0x410] sm:$0xff]
      %v309 = vld [vmem:[%s169 + $0x418] sm:$0xff]
      %v310 = vld [vmem:[%s169 + $0x420] sm:$0xff]
      %v311 = vld [vmem:[%s169 + $0x428] sm:$0xff]
      %v312 = vld [vmem:[%s169 + $0x430] sm:$0xff]
      %v313 = vld [vmem:[%s169 + $0x438] sm:$0xff]
      %v314 = vld [vmem:[%s169 + $0x440] sm:$0xff]
      %v315 = vld [vmem:[%s169 + $0x448] sm:$0xff]
      %v316 = vld [vmem:[%s169 + $0x450] sm:$0xff]
      %v317 = vld [vmem:[%s169 + $0x458] sm:$0xff]
      %v318 = vld [vmem:[%s169 + $0x460] sm:$0xff]
      %v319 = vld [vmem:[%s169 + $0x468] sm:$0xff]
      %v320 = vld [vmem:[%s169 + $0x470] sm:$0xff]
      %v321 = vld [vmem:[%s169 + $0x478] sm:$0xff]
      %v322 = vld [vmem:[%s169 + $0x480] sm:$0xff]
      %v323 = vld [vmem:[%s169 + $0x488] sm:$0xff]
      %v324 = vld [vmem:[%s169 + $0x490] sm:$0xff]
      %v325 = vld [vmem:[%s169 + $0x498] sm:$0xff]
      %v326 = vld [vmem:[%s169 + $0x4a0] sm:$0xff]
      %v327 = vld [vmem:[%s169 + $0x4a8] sm:$0xff]
      %v328 = vld [vmem:[%s169 + $0x4b0] sm:$0xff]
      %v329 = vld [vmem:[%s169 + $0x4b8] sm:$0xff]
      %v330 = vld [vmem:[%s169 + $0x4c0] sm:$0xff]
      %v331 = vld [vmem:[%s169 + $0x4c8] sm:$0xff]
      %v332 = vld [vmem:[%s169 + $0x4d0] sm:$0xff]
      %v333 = vld [vmem:[%s169 + $0x4d8] sm:$0xff]
      %v334 = vld [vmem:[%s169 + $0x4e0] sm:$0xff]
      %v335 = vld [vmem:[%s169 + $0x4e8] sm:$0xff]
      %v336 = vld [vmem:[%s169 + $0x4f0] sm:$0xff]
      %v337 = vld [vmem:[%s169 + $0x4f8] sm:$0xff]
      %v338 = vld [vmem:[%s169 + $0x500] sm:$0xff]
      %v339 = vld [vmem:[%s169 + $0x508] sm:$0xff]
      %v340 = vld [vmem:[%s169 + $0x510] sm:$0xff]
      %v341 = vld [vmem:[%s169 + $0x518] sm:$0xff]
      %v342 = vld [vmem:[%s169 + $0x520] sm:$0xff]
      %v343 = vld [vmem:[%s169 + $0x528] sm:$0xff]
      %v344 = vld [vmem:[%s169 + $0x530] sm:$0xff]
      %v345 = vld [vmem:[%s169 + $0x538] sm:$0xff]
      %v346 = vld [vmem:[%s169 + $0x540] sm:$0xff]
      %v347 = vld [vmem:[%s169 + $0x548] sm:$0xff]
      %v348 = vld [vmem:[%s169 + $0x550] sm:$0xff]
      %v349 = vld [vmem:[%s169 + $0x558] sm:$0xff]
      %v350 = vld [vmem:[%s169 + $0x560] sm:$0xff]
      %v351 = vld [vmem:[%s169 + $0x568] sm:$0xff]
      %v352 = vld [vmem:[%s169 + $0x570] sm:$0xff]
      %v353 = vld [vmem:[%s169 + $0x578] sm:$0xff]
      %v354 = vld [vmem:[%s169 + $0x580] sm:$0xff]
      %v355 = vld [vmem:[%s169 + $0x588] sm:$0xff]
      %v356 = vld [vmem:[%s169 + $0x590] sm:$0xff]
      %v357 = vld [vmem:[%s169 + $0x598] sm:$0xff]
      %v358 = vld [vmem:[%s1] sm:$0xf]
      %v359 = vld [vmem:[%s1 + $0x4] sm:$0xf]
      %v360 = vld [vmem:[%s1 + $0x8] sm:$0xf]
      %v361 = vld [vmem:[%s1 + $0xc] sm:$0xf]
      %v362 = vld [vmem:[%s1 + $0x10] sm:$0xf]
      %v363 = vld [vmem:[%s1 + $0x14] sm:$0xf]
      %v364 = vld [vmem:[%s1 + $0x18] sm:$0xf]
      %v365 = vld [vmem:[%s1 + $0x1c] sm:$0xf]
      %v366 = vld [vmem:[%s1 + $0x20] sm:$0xf]
      %v367 = vld [vmem:[%s1 + $0x24] sm:$0xf]
      %v368 = vld [vmem:[%s1 + $0x28] sm:$0xf]
      %v369 = vld [vmem:[%s1 + $0x2c] sm:$0xf]
      %v370 = vld [vmem:[%s1 + $0x30] sm:$0xf]
      %v371 = vld [vmem:[%s1 + $0x34] sm:$0xf]
      %v372 = vld [vmem:[%s1 + $0x38] sm:$0xf]
      %v373 = vld [vmem:[%s1 + $0x3c] sm:$0xf]
      %v374 = vld [vmem:[%s1 + $0x40] sm:$0xf]
      %v375 = vld [vmem:[%s1 + $0x44] sm:$0xf]
      %v376 = vld [vmem:[%s1 + $0x48] sm:$0xf]
      %v377 = vld [vmem:[%s1 + $0x4c] sm:$0xf]
      %v378 = vld [vmem:[%s1 + $0x50] sm:$0xf]
      %v379 = vld [vmem:[%s1 + $0x54] sm:$0xf]
      %v380 = vld [vmem:[%s1 + $0x58] sm:$0xf]
      %v381 = vld [vmem:[%s1 + $0x5c] sm:$0xf]
      %v382 = vld [vmem:[%s1 + $0x60] sm:$0xf]
      %v383 = vld [vmem:[%s1 + $0x64] sm:$0xf]
      %v384 = vld [vmem:[%s1 + $0x68] sm:$0xf]
      %v385 = vld [vmem:[%s1 + $0x6c] sm:$0xf]
      %v386 = vld [vmem:[%s1 + $0x70] sm:$0xf]
      %v387 = vld [vmem:[%s1 + $0x74] sm:$0xf]
      %v388 = vld [vmem:[%s1 + $0x78] sm:$0xf]
      %v389 = vld [vmem:[%s1 + $0x7c] sm:$0xf]
      %v390 = vld [vmem:[%s1 + $0x80] sm:$0xf]
      %v391 = vld [vmem:[%s1 + $0x84] sm:$0xf]
      %v392 = vld [vmem:[%s1 + $0x88] sm:$0xf]
      %v393 = vld [vmem:[%s1 + $0x8c] sm:$0xf]
      %v394 = vld [vmem:[%s1 + $0x90] sm:$0xf]
      %v395 = vld [vmem:[%s1 + $0x94] sm:$0xf]
      %v396 = vld [vmem:[%s1 + $0x98] sm:$0xf]
      %v397 = vld [vmem:[%s1 + $0x9c] sm:$0xf]
      %v398 = vld [vmem:[%s1 + $0xa0] sm:$0xf]
      %v399 = vld [vmem:[%s1 + $0xa4] sm:$0xf]
      %v400 = vld [vmem:[%s1 + $0xa8] sm:$0xf]
      %v401 = vld [vmem:[%s1 + $0xac] sm:$0xf]
      %v402 = vld [vmem:[%s1 + $0xb0] sm:$0xf]
      %v403 = vld [vmem:[%s1 + $0xb4] sm:$0xf]
      %v404 = vld [vmem:[%s1 + $0xb8] sm:$0xf]
      %v405 = vld [vmem:[%s1 + $0xbc] sm:$0xf]
      %v406 = vld [vmem:[%s1 + $0xc0] sm:$0xf]
      %v407 = vld [vmem:[%s1 + $0xc4] sm:$0xf]
      %v408 = vld [vmem:[%s1 + $0xc8] sm:$0xf]
      %v409 = vld [vmem:[%s1 + $0xcc] sm:$0xf]
      %v410 = vld [vmem:[%s1 + $0xd0] sm:$0xf]
      %v411 = vld [vmem:[%s1 + $0xd4] sm:$0xf]
      %v412 = vld [vmem:[%s2] sm:$0x1]
      %v414 = vlaneseq
      %v415 = vshrl.u32 %v414, 7
      %v416 = vsub.s32 0, %v415
      %v417 = vrot.slane %v412, %v416
      %v599 = vunpack.c.l.b16 %v178
      %v600 = vunpack.c.h.b16 %v178
      %v601 = vunpack.c.l.b16 %v179
      %v602 = vunpack.c.h.b16 %v179
      %v603 = vunpack.c.l.b16 %v180
      %v604 = vunpack.c.h.b16 %v180
      %v605 = vunpack.c.l.b16 %v181
      %v606 = vunpack.c.h.b16 %v181
      %v607 = vunpack.c.l.b16 %v182
      %v608 = vunpack.c.h.b16 %v182
      %v609 = vunpack.c.l.b16 %v183
      %v610 = vunpack.c.h.b16 %v183
      %v611 = vunpack.c.l.b16 %v184
      %v612 = vunpack.c.h.b16 %v184
      %v613 = vunpack.c.l.b16 %v185
      %v614 = vunpack.c.h.b16 %v185
      %v615 = vunpack.c.l.b16 %v186
      %v616 = vunpack.c.h.b16 %v186
      %v617 = vunpack.c.l.b16 %v187
      %v618 = vunpack.c.h.b16 %v187
      %v619 = vunpack.c.l.b16 %v188
      %v620 = vunpack.c.h.b16 %v188
      %v621 = vunpack.c.l.b16 %v189
      %v622 = vunpack.c.h.b16 %v189
      %v623 = vunpack.c.l.b16 %v190
      %v624 = vunpack.c.h.b16 %v190
      %v625 = vunpack.c.l.b16 %v191
      %v626 = vunpack.c.h.b16 %v191
      %v627 = vunpack.c.l.b16 %v192
      %v628 = vunpack.c.h.b16 %v192
      %v629 = vunpack.c.l.b16 %v193
      %v630 = vunpack.c.h.b16 %v193
      %v631 = vunpack.c.l.b16 %v194
      %v632 = vunpack.c.h.b16 %v194
      %v633 = vunpack.c.l.b16 %v195
      %v634 = vunpack.c.h.b16 %v195
      %v635 = vunpack.c.l.b16 %v196
      %v636 = vunpack.c.h.b16 %v196
      %v637 = vunpack.c.l.b16 %v197
      %v638 = vunpack.c.h.b16 %v197
      %v639 = vunpack.c.l.b16 %v198
      %v640 = vunpack.c.h.b16 %v198
      %v641 = vunpack.c.l.b16 %v199
      %v642 = vunpack.c.h.b16 %v199
      %v643 = vunpack.c.l.b16 %v200
      %v644 = vunpack.c.h.b16 %v200
      %v645 = vunpack.c.l.b16 %v201
      %v646 = vunpack.c.h.b16 %v201
      %v647 = vunpack.c.l.b16 %v202
      %v648 = vunpack.c.h.b16 %v202
      %v649 = vunpack.c.l.b16 %v203
      %v650 = vunpack.c.h.b16 %v203
      %v651 = vunpack.c.l.b16 %v204
      %v652 = vunpack.c.h.b16 %v204
      %v653 = vunpack.c.l.b16 %v205
      %v654 = vunpack.c.h.b16 %v205
      %v655 = vunpack.c.l.b16 %v206
      %v656 = vunpack.c.h.b16 %v206
      %v657 = vunpack.c.l.b16 %v207
      %v658 = vunpack.c.h.b16 %v207
      %v659 = vunpack.c.l.b16 %v208
      %v660 = vunpack.c.h.b16 %v208
      %v661 = vunpack.c.l.b16 %v209
      %v662 = vunpack.c.h.b16 %v209
      %v663 = vunpack.c.l.b16 %v210
      %v664 = vunpack.c.h.b16 %v210
      %v665 = vunpack.c.l.b16 %v211
      %v666 = vunpack.c.h.b16 %v211
      %v667 = vunpack.c.l.b16 %v212
      %v668 = vunpack.c.h.b16 %v212
      %v669 = vunpack.c.l.b16 %v213
      %v670 = vunpack.c.h.b16 %v213
      %v671 = vunpack.c.l.b16 %v214
      %v672 = vunpack.c.h.b16 %v214
      %v673 = vunpack.c.l.b16 %v215
      %v674 = vunpack.c.h.b16 %v215
      %v675 = vunpack.c.l.b16 %v216
      %v676 = vunpack.c.h.b16 %v216
      %v677 = vunpack.c.l.b16 %v217
      %v678 = vunpack.c.h.b16 %v217
      %v679 = vunpack.c.l.b16 %v218
      %v680 = vunpack.c.h.b16 %v218
      %v681 = vunpack.c.l.b16 %v219
      %v682 = vunpack.c.h.b16 %v219
      %v683 = vunpack.c.l.b16 %v220
      %v684 = vunpack.c.h.b16 %v220
      %v685 = vunpack.c.l.b16 %v221
      %v686 = vunpack.c.h.b16 %v221
      %v687 = vunpack.c.l.b16 %v222
      %v688 = vunpack.c.h.b16 %v222
      %v689 = vunpack.c.l.b16 %v223
      %v690 = vunpack.c.h.b16 %v223
      %v691 = vunpack.c.l.b16 %v224
      %v692 = vunpack.c.h.b16 %v224
      %v693 = vunpack.c.l.b16 %v225
      %v694 = vunpack.c.h.b16 %v225
      %v695 = vunpack.c.l.b16 %v226
      %v696 = vunpack.c.h.b16 %v226
      %v697 = vunpack.c.l.b16 %v227
      %v698 = vunpack.c.h.b16 %v227
      %v699 = vunpack.c.l.b16 %v228
      %v700 = vunpack.c.h.b16 %v228
      %v701 = vunpack.c.l.b16 %v229
      %v702 = vunpack.c.h.b16 %v229
      %v703 = vunpack.c.l.b16 %v230
      %v704 = vunpack.c.h.b16 %v230
      %v705 = vunpack.c.l.b16 %v231
      %v706 = vunpack.c.h.b16 %v231
      %v707 = vunpack.c.l.b16 %v232
      %v708 = vunpack.c.h.b16 %v232
      %v709 = vunpack.c.l.b16 %v233
      %v710 = vunpack.c.h.b16 %v233
      %v711 = vunpack.c.l.b16 %v234
      %v712 = vunpack.c.h.b16 %v234
      %v713 = vunpack.c.l.b16 %v235
      %v714 = vunpack.c.h.b16 %v235
      %v715 = vunpack.c.l.b16 %v236
      %v716 = vunpack.c.h.b16 %v236
      %v717 = vunpack.c.l.b16 %v237
      %v718 = vunpack.c.h.b16 %v237
      %v719 = vunpack.c.l.b16 %v238
      %v720 = vunpack.c.h.b16 %v238
      %v721 = vunpack.c.l.b16 %v239
      %v722 = vunpack.c.h.b16 %v239
      %v723 = vunpack.c.l.b16 %v240
      %v724 = vunpack.c.h.b16 %v240
      %v725 = vunpack.c.l.b16 %v241
      %v726 = vunpack.c.h.b16 %v241
      %v727 = vunpack.c.l.b16 %v242
      %v728 = vunpack.c.h.b16 %v242
      %v729 = vunpack.c.l.b16 %v243
      %v730 = vunpack.c.h.b16 %v243
      %v731 = vunpack.c.l.b16 %v244
      %v732 = vunpack.c.h.b16 %v244
      %v733 = vunpack.c.l.b16 %v245
      %v734 = vunpack.c.h.b16 %v245
      %v735 = vunpack.c.l.b16 %v246
      %v736 = vunpack.c.h.b16 %v246
      %v737 = vunpack.c.l.b16 %v247
      %v738 = vunpack.c.h.b16 %v247
      %v739 = vunpack.c.l.b16 %v248
      %v740 = vunpack.c.h.b16 %v248
      %v741 = vunpack.c.l.b16 %v249
      %v742 = vunpack.c.h.b16 %v249
      %v743 = vunpack.c.l.b16 %v250
      %v744 = vunpack.c.h.b16 %v250
      %v745 = vunpack.c.l.b16 %v251
      %v746 = vunpack.c.h.b16 %v251
      %v747 = vunpack.c.l.b16 %v252
      %v748 = vunpack.c.h.b16 %v252
      %v749 = vunpack.c.l.b16 %v253
      %v750 = vunpack.c.h.b16 %v253
      %v751 = vunpack.c.l.b16 %v254
      %v752 = vunpack.c.h.b16 %v254
      %v753 = vunpack.c.l.b16 %v255
      %v754 = vunpack.c.h.b16 %v255
      %v755 = vunpack.c.l.b16 %v256
      %v756 = vunpack.c.h.b16 %v256
      %v757 = vunpack.c.l.b16 %v257
      %v758 = vunpack.c.h.b16 %v257
      %v759 = vunpack.c.l.b16 %v258
      %v760 = vunpack.c.h.b16 %v258
      %v761 = vunpack.c.l.b16 %v259
      %v762 = vunpack.c.h.b16 %v259
      %v763 = vunpack.c.l.b16 %v260
      %v764 = vunpack.c.h.b16 %v260
      %v765 = vunpack.c.l.b16 %v261
      %v766 = vunpack.c.h.b16 %v261
      %v767 = vunpack.c.l.b16 %v262
      %v768 = vunpack.c.h.b16 %v262
      %v769 = vunpack.c.l.b16 %v263
      %v770 = vunpack.c.h.b16 %v263
      %v771 = vunpack.c.l.b16 %v264
      %v772 = vunpack.c.h.b16 %v264
      %v773 = vunpack.c.l.b16 %v265
      %v774 = vunpack.c.h.b16 %v265
      %v775 = vunpack.c.l.b16 %v266
      %v776 = vunpack.c.h.b16 %v266
      %v777 = vunpack.c.l.b16 %v267
      %v778 = vunpack.c.h.b16 %v267
      %v779 = vunpack.c.l.b16 %v268
      %v780 = vunpack.c.h.b16 %v268
      %v781 = vunpack.c.l.b16 %v269
      %v782 = vunpack.c.h.b16 %v269
      %v783 = vunpack.c.l.b16 %v270
      %v784 = vunpack.c.h.b16 %v270
      %v785 = vunpack.c.l.b16 %v271
      %v786 = vunpack.c.h.b16 %v271
      %v787 = vunpack.c.l.b16 %v272
      %v788 = vunpack.c.h.b16 %v272
      %v789 = vunpack.c.l.b16 %v273
      %v790 = vunpack.c.h.b16 %v273
      %v791 = vunpack.c.l.b16 %v274
      %v792 = vunpack.c.h.b16 %v274
      %v793 = vunpack.c.l.b16 %v275
      %v794 = vunpack.c.h.b16 %v275
      %v795 = vunpack.c.l.b16 %v276
      %v796 = vunpack.c.h.b16 %v276
      %v797 = vunpack.c.l.b16 %v277
      %v798 = vunpack.c.h.b16 %v277
      %v799 = vunpack.c.l.b16 %v278
      %v800 = vunpack.c.h.b16 %v278
      %v801 = vunpack.c.l.b16 %v279
      %v802 = vunpack.c.h.b16 %v279
      %v803 = vunpack.c.l.b16 %v280
      %v804 = vunpack.c.h.b16 %v280
      %v805 = vunpack.c.l.b16 %v281
      %v806 = vunpack.c.h.b16 %v281
      %v807 = vunpack.c.l.b16 %v282
      %v808 = vunpack.c.h.b16 %v282
      %v809 = vunpack.c.l.b16 %v283
      %v810 = vunpack.c.h.b16 %v283
      %v811 = vunpack.c.l.b16 %v284
      %v812 = vunpack.c.h.b16 %v284
      %v813 = vunpack.c.l.b16 %v285
      %v814 = vunpack.c.h.b16 %v285
      %v815 = vunpack.c.l.b16 %v286
      %v816 = vunpack.c.h.b16 %v286
      %v817 = vunpack.c.l.b16 %v287
      %v818 = vunpack.c.h.b16 %v287
      %v819 = vunpack.c.l.b16 %v288
      %v820 = vunpack.c.h.b16 %v288
      %v821 = vunpack.c.l.b16 %v289
      %v822 = vunpack.c.h.b16 %v289
      %v823 = vunpack.c.l.b16 %v290
      %v824 = vunpack.c.h.b16 %v290
      %v825 = vunpack.c.l.b16 %v291
      %v826 = vunpack.c.h.b16 %v291
      %v827 = vunpack.c.l.b16 %v292
      %v828 = vunpack.c.h.b16 %v292
      %v829 = vunpack.c.l.b16 %v293
      %v830 = vunpack.c.h.b16 %v293
      %v831 = vunpack.c.l.b16 %v294
      %v832 = vunpack.c.h.b16 %v294
      %v833 = vunpack.c.l.b16 %v295
      %v834 = vunpack.c.h.b16 %v295
      %v835 = vunpack.c.l.b16 %v296
      %v836 = vunpack.c.h.b16 %v296
      %v837 = vunpack.c.l.b16 %v297
      %v838 = vunpack.c.h.b16 %v297
      %v839 = vunpack.c.l.b16 %v298
      %v840 = vunpack.c.h.b16 %v298
      %v841 = vunpack.c.l.b16 %v299
      %v842 = vunpack.c.h.b16 %v299
      %v843 = vunpack.c.l.b16 %v300
      %v844 = vunpack.c.h.b16 %v300
      %v845 = vunpack.c.l.b16 %v301
      %v846 = vunpack.c.h.b16 %v301
      %v847 = vunpack.c.l.b16 %v302
      %v848 = vunpack.c.h.b16 %v302
      %v849 = vunpack.c.l.b16 %v303
      %v850 = vunpack.c.h.b16 %v303
      %v851 = vunpack.c.l.b16 %v304
      %v852 = vunpack.c.h.b16 %v304
      %v853 = vunpack.c.l.b16 %v305
      %v854 = vunpack.c.h.b16 %v305
      %v855 = vunpack.c.l.b16 %v306
      %v856 = vunpack.c.h.b16 %v306
      %v857 = vunpack.c.l.b16 %v307
      %v858 = vunpack.c.h.b16 %v307
      %v859 = vunpack.c.l.b16 %v308
      %v860 = vunpack.c.h.b16 %v308
      %v861 = vunpack.c.l.b16 %v309
      %v862 = vunpack.c.h.b16 %v309
      %v863 = vunpack.c.l.b16 %v310
      %v864 = vunpack.c.h.b16 %v310
      %v865 = vunpack.c.l.b16 %v311
      %v866 = vunpack.c.h.b16 %v311
      %v867 = vunpack.c.l.b16 %v312
      %v868 = vunpack.c.h.b16 %v312
      %v869 = vunpack.c.l.b16 %v313
      %v870 = vunpack.c.h.b16 %v313
      %v871 = vunpack.c.l.b16 %v314
      %v872 = vunpack.c.h.b16 %v314
      %v873 = vunpack.c.l.b16 %v315
      %v874 = vunpack.c.h.b16 %v315
      %v875 = vunpack.c.l.b16 %v316
      %v876 = vunpack.c.h.b16 %v316
      %v877 = vunpack.c.l.b16 %v317
      %v878 = vunpack.c.h.b16 %v317
      %v879 = vunpack.c.l.b16 %v318
      %v880 = vunpack.c.h.b16 %v318
      %v881 = vunpack.c.l.b16 %v319
      %v882 = vunpack.c.h.b16 %v319
      %v883 = vunpack.c.l.b16 %v320
      %v884 = vunpack.c.h.b16 %v320
      %v885 = vunpack.c.l.b16 %v321
      %v886 = vunpack.c.h.b16 %v321
      %v887 = vunpack.c.l.b16 %v322
      %v888 = vunpack.c.h.b16 %v322
      %v889 = vunpack.c.l.b16 %v323
      %v890 = vunpack.c.h.b16 %v323
      %v891 = vunpack.c.l.b16 %v324
      %v892 = vunpack.c.h.b16 %v324
      %v893 = vunpack.c.l.b16 %v325
      %v894 = vunpack.c.h.b16 %v325
      %v895 = vunpack.c.l.b16 %v326
      %v896 = vunpack.c.h.b16 %v326
      %v897 = vunpack.c.l.b16 %v327
      %v898 = vunpack.c.h.b16 %v327
      %v899 = vunpack.c.l.b16 %v328
      %v900 = vunpack.c.h.b16 %v328
      %v901 = vunpack.c.l.b16 %v329
      %v902 = vunpack.c.h.b16 %v329
      %v903 = vunpack.c.l.b16 %v330
      %v904 = vunpack.c.h.b16 %v330
      %v905 = vunpack.c.l.b16 %v331
      %v906 = vunpack.c.h.b16 %v331
      %v907 = vunpack.c.l.b16 %v332
      %v908 = vunpack.c.h.b16 %v332
      %v909 = vunpack.c.l.b16 %v333
      %v910 = vunpack.c.h.b16 %v333
      %v911 = vunpack.c.l.b16 %v334
      %v912 = vunpack.c.h.b16 %v334
      %v913 = vunpack.c.l.b16 %v335
      %v914 = vunpack.c.h.b16 %v335
      %v915 = vunpack.c.l.b16 %v336
      %v916 = vunpack.c.h.b16 %v336
      %v917 = vunpack.c.l.b16 %v337
      %v918 = vunpack.c.h.b16 %v337
      %v919 = vunpack.c.l.b16 %v338
      %v920 = vunpack.c.h.b16 %v338
      %v921 = vunpack.c.l.b16 %v339
      %v922 = vunpack.c.h.b16 %v339
      %v923 = vunpack.c.l.b16 %v340
      %v924 = vunpack.c.h.b16 %v340
      %v925 = vunpack.c.l.b16 %v341
      %v926 = vunpack.c.h.b16 %v341
      %v927 = vunpack.c.l.b16 %v342
      %v928 = vunpack.c.h.b16 %v342
      %v929 = vunpack.c.l.b16 %v343
      %v930 = vunpack.c.h.b16 %v343
      %v931 = vunpack.c.l.b16 %v344
      %v932 = vunpack.c.h.b16 %v344
      %v933 = vunpack.c.l.b16 %v345
      %v934 = vunpack.c.h.b16 %v345
      %v935 = vunpack.c.l.b16 %v346
      %v936 = vunpack.c.h.b16 %v346
      %v937 = vunpack.c.l.b16 %v347
      %v938 = vunpack.c.h.b16 %v347
      %v939 = vunpack.c.l.b16 %v348
      %v940 = vunpack.c.h.b16 %v348
      %v941 = vunpack.c.l.b16 %v349
      %v942 = vunpack.c.h.b16 %v349
      %v943 = vunpack.c.l.b16 %v350
      %v944 = vunpack.c.h.b16 %v350
      %v945 = vunpack.c.l.b16 %v351
      %v946 = vunpack.c.h.b16 %v351
      %v947 = vunpack.c.l.b16 %v352
      %v948 = vunpack.c.h.b16 %v352
      %v949 = vunpack.c.l.b16 %v353
      %v950 = vunpack.c.h.b16 %v353
      %v951 = vunpack.c.l.b16 %v354
      %v952 = vunpack.c.h.b16 %v354
      %v953 = vunpack.c.l.b16 %v355
      %v954 = vunpack.c.h.b16 %v355
      %v955 = vunpack.c.l.b16 %v356
      %v956 = vunpack.c.h.b16 %v356
      %v957 = vunpack.c.l.b16 %v357
      %v958 = vunpack.c.h.b16 %v357
      %v959 = vpack.c.b16 %v603, %v599
      %v960 = vpack.c.b16 %v604, %v600
      %v961 = vpack.c.b16 %v605, %v601
      %v962 = vpack.c.b16 %v606, %v602
      %v963 = vpack.c.b16 %v611, %v607
      %v964 = vpack.c.b16 %v612, %v608
      %v965 = vpack.c.b16 %v613, %v609
      %v966 = vpack.c.b16 %v614, %v610
      %v967 = vpack.c.b16 %v619, %v615
      %v968 = vpack.c.b16 %v620, %v616
      %v969 = vpack.c.b16 %v621, %v617
      %v970 = vpack.c.b16 %v622, %v618
      %v971 = vpack.c.b16 %v627, %v623
      %v972 = vpack.c.b16 %v628, %v624
      %v973 = vpack.c.b16 %v629, %v625
      %v974 = vpack.c.b16 %v630, %v626
      %v975 = vpack.c.b16 %v635, %v631
      %v976 = vpack.c.b16 %v636, %v632
      %v977 = vpack.c.b16 %v637, %v633
      %v978 = vpack.c.b16 %v638, %v634
      %v979 = vpack.c.b16 %v643, %v639
      %v980 = vpack.c.b16 %v644, %v640
      %v981 = vpack.c.b16 %v645, %v641
      %v982 = vpack.c.b16 %v646, %v642
      %v983 = vpack.c.b16 %v651, %v647
      %v984 = vpack.c.b16 %v652, %v648
      %v985 = vpack.c.b16 %v653, %v649
      %v986 = vpack.c.b16 %v654, %v650
      %v987 = vpack.c.b16 %v659, %v655
      %v988 = vpack.c.b16 %v660, %v656
      %v989 = vpack.c.b16 %v661, %v657
      %v990 = vpack.c.b16 %v662, %v658
      %v991 = vpack.c.b16 %v667, %v663
      %v992 = vpack.c.b16 %v668, %v664
      %v993 = vpack.c.b16 %v669, %v665
      %v994 = vpack.c.b16 %v670, %v666
      %v995 = vpack.c.b16 %v675, %v671
      %v996 = vpack.c.b16 %v676, %v672
      %v997 = vpack.c.b16 %v677, %v673
      %v998 = vpack.c.b16 %v678, %v674
      %v999 = vpack.c.b16 %v683, %v679
      %v1000 = vpack.c.b16 %v684, %v680
      %v1001 = vpack.c.b16 %v685, %v681
      %v1002 = vpack.c.b16 %v686, %v682
      %v1003 = vpack.c.b16 %v691, %v687
      %v1004 = vpack.c.b16 %v692, %v688
      %v1005 = vpack.c.b16 %v693, %v689
      %v1006 = vpack.c.b16 %v694, %v690
      %v1007 = vpack.c.b16 %v699, %v695
      %v1008 = vpack.c.b16 %v700, %v696
      %v1009 = vpack.c.b16 %v701, %v697
      %v1010 = vpack.c.b16 %v702, %v698
      %v1011 = vpack.c.b16 %v707, %v703
      %v1012 = vpack.c.b16 %v708, %v704
      %v1013 = vpack.c.b16 %v709, %v705
      %v1014 = vpack.c.b16 %v710, %v706
      %v1015 = vpack.c.b16 %v715, %v711
      %v1016 = vpack.c.b16 %v716, %v712
      %v1017 = vpack.c.b16 %v717, %v713
      %v1018 = vpack.c.b16 %v718, %v714
      %v1019 = vpack.c.b16 %v723, %v719
      %v1020 = vpack.c.b16 %v724, %v720
      %v1021 = vpack.c.b16 %v725, %v721
      %v1022 = vpack.c.b16 %v726, %v722
      %v1023 = vpack.c.b16 %v731, %v727
      %v1024 = vpack.c.b16 %v732, %v728
      %v1025 = vpack.c.b16 %v733, %v729
      %v1026 = vpack.c.b16 %v734, %v730
      %v1027 = vpack.c.b16 %v739, %v735
      %v1028 = vpack.c.b16 %v740, %v736
      %v1029 = vpack.c.b16 %v741, %v737
      %v1030 = vpack.c.b16 %v742, %v738
      %v1031 = vpack.c.b16 %v747, %v743
      %v1032 = vpack.c.b16 %v748, %v744
      %v1033 = vpack.c.b16 %v749, %v745
      %v1034 = vpack.c.b16 %v750, %v746
      %v1035 = vpack.c.b16 %v755, %v751
      %v1036 = vpack.c.b16 %v756, %v752
      %v1037 = vpack.c.b16 %v757, %v753
      %v1038 = vpack.c.b16 %v758, %v754
      %v1039 = vpack.c.b16 %v763, %v759
      %v1040 = vpack.c.b16 %v764, %v760
      %v1041 = vpack.c.b16 %v765, %v761
      %v1042 = vpack.c.b16 %v766, %v762
      %v1043 = vpack.c.b16 %v771, %v767
      %v1044 = vpack.c.b16 %v772, %v768
      %v1045 = vpack.c.b16 %v773, %v769
      %v1046 = vpack.c.b16 %v774, %v770
      %v1047 = vpack.c.b16 %v779, %v775
      %v1048 = vpack.c.b16 %v780, %v776
      %v1049 = vpack.c.b16 %v781, %v777
      %v1050 = vpack.c.b16 %v782, %v778
      %v1051 = vpack.c.b16 %v787, %v783
      %v1052 = vpack.c.b16 %v788, %v784
      %v1053 = vpack.c.b16 %v789, %v785
      %v1054 = vpack.c.b16 %v790, %v786
      %v1055 = vpack.c.b16 %v795, %v791
      %v1056 = vpack.c.b16 %v796, %v792
      %v1057 = vpack.c.b16 %v797, %v793
      %v1058 = vpack.c.b16 %v798, %v794
      %v1059 = vpack.c.b16 %v803, %v799
      %v1060 = vpack.c.b16 %v804, %v800
      %v1061 = vpack.c.b16 %v805, %v801
      %v1062 = vpack.c.b16 %v806, %v802
      %v1063 = vpack.c.b16 %v811, %v807
      %v1064 = vpack.c.b16 %v812, %v808
      %v1065 = vpack.c.b16 %v813, %v809
      %v1066 = vpack.c.b16 %v814, %v810
      %v1067 = vpack.c.b16 %v819, %v815
      %v1068 = vpack.c.b16 %v820, %v816
      %v1069 = vpack.c.b16 %v821, %v817
      %v1070 = vpack.c.b16 %v822, %v818
      %v1071 = vpack.c.b16 %v827, %v823
      %v1072 = vpack.c.b16 %v828, %v824
      %v1073 = vpack.c.b16 %v829, %v825
      %v1074 = vpack.c.b16 %v830, %v826
      %v1075 = vpack.c.b16 %v835, %v831
      %v1076 = vpack.c.b16 %v836, %v832
      %v1077 = vpack.c.b16 %v837, %v833
      %v1078 = vpack.c.b16 %v838, %v834
      %v1079 = vpack.c.b16 %v843, %v839
      %v1080 = vpack.c.b16 %v844, %v840
      %v1081 = vpack.c.b16 %v845, %v841
      %v1082 = vpack.c.b16 %v846, %v842
      %v1083 = vpack.c.b16 %v851, %v847
      %v1084 = vpack.c.b16 %v852, %v848
      %v1085 = vpack.c.b16 %v853, %v849
      %v1086 = vpack.c.b16 %v854, %v850
      %v1087 = vpack.c.b16 %v859, %v855
      %v1088 = vpack.c.b16 %v860, %v856
      %v1089 = vpack.c.b16 %v861, %v857
      %v1090 = vpack.c.b16 %v862, %v858
      %v1091 = vpack.c.b16 %v867, %v863
      %v1092 = vpack.c.b16 %v868, %v864
      %v1093 = vpack.c.b16 %v869, %v865
      %v1094 = vpack.c.b16 %v870, %v866
      %v1095 = vpack.c.b16 %v875, %v871
      %v1096 = vpack.c.b16 %v876, %v872
      %v1097 = vpack.c.b16 %v877, %v873
      %v1098 = vpack.c.b16 %v878, %v874
      %v1099 = vpack.c.b16 %v883, %v879
      %v1100 = vpack.c.b16 %v884, %v880
      %v1101 = vpack.c.b16 %v885, %v881
      %v1102 = vpack.c.b16 %v886, %v882
      %v1103 = vpack.c.b16 %v891, %v887
      %v1104 = vpack.c.b16 %v892, %v888
      %v1105 = vpack.c.b16 %v893, %v889
      %v1106 = vpack.c.b16 %v894, %v890
      %v1107 = vpack.c.b16 %v899, %v895
      %v1108 = vpack.c.b16 %v900, %v896
      %v1109 = vpack.c.b16 %v901, %v897
      %v1110 = vpack.c.b16 %v902, %v898
      %v1111 = vpack.c.b16 %v907, %v903
      %v1112 = vpack.c.b16 %v908, %v904
      %v1113 = vpack.c.b16 %v909, %v905
      %v1114 = vpack.c.b16 %v910, %v906
      %v1115 = vpack.c.b16 %v915, %v911
      %v1116 = vpack.c.b16 %v916, %v912
      %v1117 = vpack.c.b16 %v917, %v913
      %v1118 = vpack.c.b16 %v918, %v914
      %v1119 = vpack.c.b16 %v923, %v919
      %v1120 = vpack.c.b16 %v924, %v920
      %v1121 = vpack.c.b16 %v925, %v921
      %v1122 = vpack.c.b16 %v926, %v922
      %v1123 = vpack.c.b16 %v931, %v927
      %v1124 = vpack.c.b16 %v932, %v928
      %v1125 = vpack.c.b16 %v933, %v929
      %v1126 = vpack.c.b16 %v934, %v930
      %v1127 = vpack.c.b16 %v939, %v935
      %v1128 = vpack.c.b16 %v940, %v936
      %v1129 = vpack.c.b16 %v941, %v937
      %v1130 = vpack.c.b16 %v942, %v938
      %v1131 = vpack.c.b16 %v947, %v943
      %v1132 = vpack.c.b16 %v948, %v944
      %v1133 = vpack.c.b16 %v949, %v945
      %v1134 = vpack.c.b16 %v950, %v946
      %v1135 = vpack.c.b16 %v955, %v951
      %v1136 = vpack.c.b16 %v956, %v952
      %v1137 = vpack.c.b16 %v957, %v953
      %v1138 = vpack.c.b16 %v958, %v954
      %v1328 = vunpack.c.l.b16 %v358
      %v1329 = vunpack.c.l.b16 %v359
      %v1330 = vunpack.c.l.b16 %v360
      %v1331 = vunpack.c.l.b16 %v361
      %v1332 = vunpack.c.l.b16 %v362
      %v1333 = vunpack.c.l.b16 %v363
      %v1334 = vunpack.c.l.b16 %v364
      %v1335 = vunpack.c.l.b16 %v365
      %v1336 = vunpack.c.l.b16 %v366
      %v1337 = vunpack.c.l.b16 %v367
      %v1338 = vunpack.c.l.b16 %v368
      %v1339 = vunpack.c.l.b16 %v369
      %v1340 = vunpack.c.l.b16 %v370
      %v1341 = vunpack.c.l.b16 %v371
      %v1342 = vunpack.c.l.b16 %v372
      %v1343 = vunpack.c.l.b16 %v373
      %v1344 = vunpack.c.l.b16 %v374
      %v1345 = vunpack.c.l.b16 %v375
      %v1346 = vunpack.c.l.b16 %v376
      %v1347 = vunpack.c.l.b16 %v377
      %v1348 = vunpack.c.l.b16 %v378
      %v1349 = vunpack.c.l.b16 %v379
      %v1350 = vunpack.c.l.b16 %v380
      %v1351 = vunpack.c.l.b16 %v381
      %v1352 = vunpack.c.l.b16 %v382
      %v1353 = vunpack.c.l.b16 %v383
      %v1354 = vunpack.c.l.b16 %v384
      %v1355 = vunpack.c.l.b16 %v385
      %v1356 = vunpack.c.l.b16 %v386
      %v1357 = vunpack.c.l.b16 %v387
      %v1358 = vunpack.c.l.b16 %v388
      %v1359 = vunpack.c.l.b16 %v389
      %v1360 = vunpack.c.l.b16 %v390
      %v1361 = vunpack.c.l.b16 %v391
      %v1362 = vunpack.c.l.b16 %v392
      %v1363 = vunpack.c.l.b16 %v393
      %v1364 = vunpack.c.l.b16 %v394
      %v1365 = vunpack.c.l.b16 %v395
      %v1366 = vunpack.c.l.b16 %v396
      %v1367 = vunpack.c.l.b16 %v397
      %v1368 = vunpack.c.l.b16 %v398
      %v1369 = vunpack.c.l.b16 %v399
      %v1370 = vunpack.c.l.b16 %v400
      %v1371 = vunpack.c.l.b16 %v401
      %v1372 = vunpack.c.l.b16 %v402
      %v1373 = vunpack.c.l.b16 %v403
      %v1374 = vunpack.c.l.b16 %v404
      %v1375 = vunpack.c.l.b16 %v405
      %v1376 = vunpack.c.l.b16 %v406
      %v1377 = vunpack.c.l.b16 %v407
      %v1378 = vunpack.c.l.b16 %v408
      %v1379 = vunpack.c.l.b16 %v409
      %v1380 = vunpack.c.l.b16 %v410
      %v1381 = vunpack.c.l.b16 %v411
      %v1382 = vpack.c.b16 %v1329, %v1328
      %v1383 = vpack.c.b16 %v1331, %v1330
      %v1384 = vpack.c.b16 %v1333, %v1332
      %v1385 = vpack.c.b16 %v1335, %v1334
      %v1386 = vpack.c.b16 %v1337, %v1336
      %v1387 = vpack.c.b16 %v1339, %v1338
      %v1388 = vpack.c.b16 %v1341, %v1340
      %v1389 = vpack.c.b16 %v1343, %v1342
      %v1390 = vpack.c.b16 %v1345, %v1344
      %v1391 = vpack.c.b16 %v1347, %v1346
      %v1392 = vpack.c.b16 %v1349, %v1348
      %v1393 = vpack.c.b16 %v1351, %v1350
      %v1394 = vpack.c.b16 %v1353, %v1352
      %v1395 = vpack.c.b16 %v1355, %v1354
      %v1396 = vpack.c.b16 %v1357, %v1356
      %v1397 = vpack.c.b16 %v1359, %v1358
      %v1398 = vpack.c.b16 %v1361, %v1360
      %v1399 = vpack.c.b16 %v1363, %v1362
      %v1400 = vpack.c.b16 %v1365, %v1364
      %v1401 = vpack.c.b16 %v1367, %v1366
      %v1402 = vpack.c.b16 %v1369, %v1368
      %v1403 = vpack.c.b16 %v1371, %v1370
      %v1404 = vpack.c.b16 %v1373, %v1372
      %v1405 = vpack.c.b16 %v1375, %v1374
      %v1406 = vpack.c.b16 %v1377, %v1376
      %v1407 = vpack.c.b16 %v1379, %v1378
      %v1408 = vpack.c.b16 %v1381, %v1380
      %vm1436 = vcmask 392192
      %v1438 = vsel %vm1436, %v962, 0
      %v1441 = vsel %vm1436, %v966, 0
      %v1444 = vsel %vm1436, %v970, 0
      %v1447 = vsel %vm1436, %v974, 0
      %v1450 = vsel %vm1436, %v978, 0
      %v1453 = vsel %vm1436, %v982, 0
      %v1456 = vsel %vm1436, %v986, 0
      %v1459 = vsel %vm1436, %v990, 0
      %v1462 = vsel %vm1436, %v994, 0
      %v1465 = vsel %vm1436, %v998, 0
      %v1468 = vsel %vm1436, %v1002, 0
      %v1471 = vsel %vm1436, %v1006, 0
      %v1474 = vsel %vm1436, %v1010, 0
      %v1477 = vsel %vm1436, %v1014, 0
      %v1480 = vsel %vm1436, %v1018, 0
      %v1483 = vsel %vm1436, %v1022, 0
      %v1486 = vsel %vm1436, %v1026, 0
      %v1489 = vsel %vm1436, %v1030, 0
      %v1492 = vsel %vm1436, %v1034, 0
      %v1495 = vsel %vm1436, %v1038, 0
      %v1498 = vsel %vm1436, %v1042, 0
      %v1501 = vsel %vm1436, %v1046, 0
      %v1504 = vsel %vm1436, %v1050, 0
      %v1507 = vsel %vm1436, %v1054, 0
      %v1510 = vsel %vm1436, %v1058, 0
      %v1513 = vsel %vm1436, %v1062, 0
      %v1516 = vsel %vm1436, %v1066, 0
      %v1519 = vsel %vm1436, %v1070, 0
      %v1522 = vsel %vm1436, %v1074, 0
      %v1525 = vsel %vm1436, %v1078, 0
      %v1528 = vsel %vm1436, %v1082, 0
      %v1531 = vsel %vm1436, %v1086, 0
      %v1534 = vsel %vm1436, %v1090, 0
      %v1537 = vsel %vm1436, %v1094, 0
      %v1540 = vsel %vm1436, %v1098, 0
      %v1543 = vsel %vm1436, %v1102, 0
      %v1546 = vsel %vm1436, %v1106, 0
      %v1549 = vsel %vm1436, %v1110, 0
      %v1552 = vsel %vm1436, %v1114, 0
      %v1555 = vsel %vm1436, %v1118, 0
      %v1558 = vsel %vm1436, %v1122, 0
      %v1561 = vsel %vm1436, %v1126, 0
      %v1564 = vsel %vm1436, %v1130, 0
      %v1567 = vsel %vm1436, %v1134, 0
      %v1570 = vsel %vm1436, %v1138, 0
      %1572 = vmatprep.subr.bf16.mxu0 0
      %1573 = vmatpush1.bf16.msra.mxu0 %v1389
      %1574 = vmatprep.subr.bf16.mxu0 0
      %1575 = vmatpush1.bf16.msra.mxu0 %v1388
      %1576 = vmatprep.subr.bf16.mxu0 0
      %1577 = vmatpush1.bf16.msra.mxu0 %v1387
      %1578 = vmatprep.subr.bf16.mxu0 0
      %1579 = vmatpush1.bf16.msra.mxu0 %v1386
      %1580 = vmatprep.subr.bf16.mxu0 0
      %1581 = vmatpush1.bf16.msra.mxu0 %v1385
      %1582 = vmatprep.subr.bf16.mxu0 0
      %1583 = vmatpush1.bf16.msra.mxu0 %v1384
      %1584 = vmatprep.subr.bf16.mxu0 0
      %1585 = vmatpush1.bf16.msra.mxu0 %v1383
      %1586 = vmatprep.subr.bf16.mxu0 0
      %1587 = vmatpush1.bf16.msra.mxu0 %v1382
      %1588 = vmatprep.subr.bf16.mxu0 0
      %1589 = vmatpush2.bf16.msra.mxu0 %v1397
      %1590 = vmatprep.subr.bf16.mxu0 0
      %1591 = vmatpush2.bf16.msra.mxu0 %v1396
      %1592 = vmatprep.subr.bf16.mxu0 0
      %1593 = vmatpush2.bf16.msra.mxu0 %v1395
      %1594 = vmatprep.subr.bf16.mxu0 0
      %1595 = vmatpush2.bf16.msra.mxu0 %v1394
      %1596 = vmatprep.subr.bf16.mxu0 0
      %1597 = vmatpush2.bf16.msra.mxu0 %v1393
      %1598 = vmatprep.subr.bf16.mxu0 0
      %1599 = vmatpush2.bf16.msra.mxu0 %v1392
      %1600 = vmatprep.subr.bf16.mxu0 0
      %1601 = vmatpush2.bf16.msra.mxu0 %v1391
      %1602 = vmatprep.subr.bf16.mxu0 0
      %1603 = vmatpush2.bf16.msra.mxu0 %v1390
      %1604 = vmatprep.mubr.bf16.mxu0 %v960
      %1605 = vmatmul.mubr.bf16.gmra.mxu0 %v959
      %v1606 = vpop.f32.mrf.mxu0
      %v1607 = vadd.f32 %v417, %v1606
      %v1608 = vpop.f32.mrf.mxu0
      %v1609 = vpop.f32.mrf.mxu0
      %v1610 = vadd.f32 %v417, %v1609
      %v1611 = vpop.f32.mrf.mxu0
      %1612 = vmatprep.mubr.bf16.mxu0 %v964
      %1613 = vmatmul.mubr.bf16.gmra.mxu0 %v963
      %v1614 = vpop.f32.mrf.mxu0
      %v1615 = vadd.f32 %v417, %v1614
      %v1616 = vpop.f32.mrf.mxu0
      %v1617 = vpop.f32.mrf.mxu0
      %v1618 = vadd.f32 %v417, %v1617
      %v1619 = vpop.f32.mrf.mxu0
      %1620 = vmatprep.mubr.bf16.mxu0 %v968
      %1621 = vmatmul.mubr.bf16.gmra.mxu0 %v967
      %v1622 = vpop.f32.mrf.mxu0
      %v1623 = vadd.f32 %v417, %v1622
      %v1624 = vpop.f32.mrf.mxu0
      %v1625 = vpop.f32.mrf.mxu0
      %v1626 = vadd.f32 %v417, %v1625
      %v1627 = vpop.f32.mrf.mxu0
      %1628 = vmatprep.mubr.bf16.mxu0 %v972
      %1629 = vmatmul.mubr.bf16.gmra.mxu0 %v971
      %v1630 = vpop.f32.mrf.mxu0
      %v1631 = vadd.f32 %v417, %v1630
      %v1632 = vpop.f32.mrf.mxu0
      %v1633 = vpop.f32.mrf.mxu0
      %v1634 = vadd.f32 %v417, %v1633
      %v1635 = vpop.f32.mrf.mxu0
      %1636 = vmatprep.mubr.bf16.mxu0 %v976
      %1637 = vmatmul.mubr.bf16.gmra.mxu0 %v975
      %v1638 = vpop.f32.mrf.mxu0
      %v1639 = vadd.f32 %v417, %v1638
      %v1640 = vpop.f32.mrf.mxu0
      %v1641 = vpop.f32.mrf.mxu0
      %v1642 = vadd.f32 %v417, %v1641
      %v1643 = vpop.f32.mrf.mxu0
      %1644 = vmatprep.mubr.bf16.mxu0 %v980
      %1645 = vmatmul.mubr.bf16.gmra.mxu0 %v979
      %v1646 = vpop.f32.mrf.mxu0
      %v1647 = vadd.f32 %v417, %v1646
      %v1648 = vpop.f32.mrf.mxu0
      %v1649 = vpop.f32.mrf.mxu0
      %v1650 = vadd.f32 %v417, %v1649
      %v1651 = vpop.f32.mrf.mxu0
      %1652 = vmatprep.mubr.bf16.mxu0 %v984
      %1653 = vmatmul.mubr.bf16.gmra.mxu0 %v983
      %v1654 = vpop.f32.mrf.mxu0
      %v1655 = vadd.f32 %v417, %v1654
      %v1656 = vpop.f32.mrf.mxu0
      %v1657 = vpop.f32.mrf.mxu0
      %v1658 = vadd.f32 %v417, %v1657
      %v1659 = vpop.f32.mrf.mxu0
      %1660 = vmatprep.mubr.bf16.mxu0 %v988
      %1661 = vmatmul.mubr.bf16.gmra.mxu0 %v987
      %v1662 = vpop.f32.mrf.mxu0
      %v1663 = vadd.f32 %v417, %v1662
      %v1664 = vpop.f32.mrf.mxu0
      %v1665 = vpop.f32.mrf.mxu0
      %v1666 = vadd.f32 %v417, %v1665
      %v1667 = vpop.f32.mrf.mxu0
      %1668 = vmatprep.mubr.bf16.mxu0 %v992
      %1669 = vmatmul.mubr.bf16.gmra.mxu0 %v991
      %v1670 = vpop.f32.mrf.mxu0
      %v1671 = vadd.f32 %v417, %v1670
      %v1672 = vpop.f32.mrf.mxu0
      %v1673 = vpop.f32.mrf.mxu0
      %v1674 = vadd.f32 %v417, %v1673
      %v1675 = vpop.f32.mrf.mxu0
      %1676 = vmatprep.mubr.bf16.mxu0 %v996
      %1677 = vmatmul.mubr.bf16.gmra.mxu0 %v995
      %v1678 = vpop.f32.mrf.mxu0
      %v1679 = vadd.f32 %v417, %v1678
      %v1680 = vpop.f32.mrf.mxu0
      %v1681 = vpop.f32.mrf.mxu0
      %v1682 = vadd.f32 %v417, %v1681
      %v1683 = vpop.f32.mrf.mxu0
      %1684 = vmatprep.mubr.bf16.mxu0 %v1000
      %1685 = vmatmul.mubr.bf16.gmra.mxu0 %v999
      %v1686 = vpop.f32.mrf.mxu0
      %v1687 = vadd.f32 %v417, %v1686
      %v1688 = vpop.f32.mrf.mxu0
      %v1689 = vpop.f32.mrf.mxu0
      %v1690 = vadd.f32 %v417, %v1689
      %v1691 = vpop.f32.mrf.mxu0
      %1692 = vmatprep.mubr.bf16.mxu0 %v1004
      %1693 = vmatmul.mubr.bf16.gmra.mxu0 %v1003
      %v1694 = vpop.f32.mrf.mxu0
      %v1695 = vadd.f32 %v417, %v1694
      %v1696 = vpop.f32.mrf.mxu0
      %v1697 = vpop.f32.mrf.mxu0
      %v1698 = vadd.f32 %v417, %v1697
      %v1699 = vpop.f32.mrf.mxu0
      %1700 = vmatprep.mubr.bf16.mxu0 %v1008
      %1701 = vmatmul.mubr.bf16.gmra.mxu0 %v1007
      %v1702 = vpop.f32.mrf.mxu0
      %v1703 = vadd.f32 %v417, %v1702
      %v1704 = vpop.f32.mrf.mxu0
      %v1705 = vpop.f32.mrf.mxu0
      %v1706 = vadd.f32 %v417, %v1705
      %v1707 = vpop.f32.mrf.mxu0
      %1708 = vmatprep.mubr.bf16.mxu0 %v1012
      %1709 = vmatmul.mubr.bf16.gmra.mxu0 %v1011
      %v1710 = vpop.f32.mrf.mxu0
      %v1711 = vadd.f32 %v417, %v1710
      %v1712 = vpop.f32.mrf.mxu0
      %v1713 = vpop.f32.mrf.mxu0
      %v1714 = vadd.f32 %v417, %v1713
      %v1715 = vpop.f32.mrf.mxu0
      %1716 = vmatprep.mubr.bf16.mxu0 %v1016
      %1717 = vmatmul.mubr.bf16.gmra.mxu0 %v1015
      %v1718 = vpop.f32.mrf.mxu0
      %v1719 = vadd.f32 %v417, %v1718
      %v1720 = vpop.f32.mrf.mxu0
      %v1721 = vpop.f32.mrf.mxu0
      %v1722 = vadd.f32 %v417, %v1721
      %v1723 = vpop.f32.mrf.mxu0
      %1724 = vmatprep.mubr.bf16.mxu0 %v1020
      %1725 = vmatmul.mubr.bf16.gmra.mxu0 %v1019
      %v1726 = vpop.f32.mrf.mxu0
      %v1727 = vadd.f32 %v417, %v1726
      %v1728 = vpop.f32.mrf.mxu0
      %v1729 = vpop.f32.mrf.mxu0
      %v1730 = vadd.f32 %v417, %v1729
      %v1731 = vpop.f32.mrf.mxu0
      %1732 = vmatprep.mubr.bf16.mxu0 %v1024
      %1733 = vmatmul.mubr.bf16.gmra.mxu0 %v1023
      %v1734 = vpop.f32.mrf.mxu0
      %v1735 = vadd.f32 %v417, %v1734
      %v1736 = vpop.f32.mrf.mxu0
      %v1737 = vpop.f32.mrf.mxu0
      %v1738 = vadd.f32 %v417, %v1737
      %v1739 = vpop.f32.mrf.mxu0
      %1740 = vmatprep.mubr.bf16.mxu0 %v1028
      %1741 = vmatmul.mubr.bf16.gmra.mxu0 %v1027
      %v1742 = vpop.f32.mrf.mxu0
      %v1743 = vadd.f32 %v417, %v1742
      %v1744 = vpop.f32.mrf.mxu0
      %v1745 = vpop.f32.mrf.mxu0
      %v1746 = vadd.f32 %v417, %v1745
      %v1747 = vpop.f32.mrf.mxu0
      %1748 = vmatprep.mubr.bf16.mxu0 %v1032
      %1749 = vmatmul.mubr.bf16.gmra.mxu0 %v1031
      %v1750 = vpop.f32.mrf.mxu0
      %v1751 = vadd.f32 %v417, %v1750
      %v1752 = vpop.f32.mrf.mxu0
      %v1753 = vpop.f32.mrf.mxu0
      %v1754 = vadd.f32 %v417, %v1753
      %v1755 = vpop.f32.mrf.mxu0
      %1756 = vmatprep.mubr.bf16.mxu0 %v1036
      %1757 = vmatmul.mubr.bf16.gmra.mxu0 %v1035
      %v1758 = vpop.f32.mrf.mxu0
      %v1759 = vadd.f32 %v417, %v1758
      %v1760 = vpop.f32.mrf.mxu0
      %v1761 = vpop.f32.mrf.mxu0
      %v1762 = vadd.f32 %v417, %v1761
      %v1763 = vpop.f32.mrf.mxu0
      %1764 = vmatprep.mubr.bf16.mxu0 %v1040
      %1765 = vmatmul.mubr.bf16.gmra.mxu0 %v1039
      %v1766 = vpop.f32.mrf.mxu0
      %v1767 = vadd.f32 %v417, %v1766
      %v1768 = vpop.f32.mrf.mxu0
      %v1769 = vpop.f32.mrf.mxu0
      %v1770 = vadd.f32 %v417, %v1769
      %v1771 = vpop.f32.mrf.mxu0
      %1772 = vmatprep.mubr.bf16.mxu0 %v1044
      %1773 = vmatmul.mubr.bf16.gmra.mxu0 %v1043
      %v1774 = vpop.f32.mrf.mxu0
      %v1775 = vadd.f32 %v417, %v1774
      %v1776 = vpop.f32.mrf.mxu0
      %v1777 = vpop.f32.mrf.mxu0
      %v1778 = vadd.f32 %v417, %v1777
      %v1779 = vpop.f32.mrf.mxu0
      %1780 = vmatprep.mubr.bf16.mxu0 %v1048
      %1781 = vmatmul.mubr.bf16.gmra.mxu0 %v1047
      %v1782 = vpop.f32.mrf.mxu0
      %v1783 = vadd.f32 %v417, %v1782
      %v1784 = vpop.f32.mrf.mxu0
      %v1785 = vpop.f32.mrf.mxu0
      %v1786 = vadd.f32 %v417, %v1785
      %v1787 = vpop.f32.mrf.mxu0
      %1788 = vmatprep.mubr.bf16.mxu0 %v1052
      %1789 = vmatmul.mubr.bf16.gmra.mxu0 %v1051
      %v1790 = vpop.f32.mrf.mxu0
      %v1791 = vadd.f32 %v417, %v1790
      %v1792 = vpop.f32.mrf.mxu0
      %v1793 = vpop.f32.mrf.mxu0
      %v1794 = vadd.f32 %v417, %v1793
      %v1795 = vpop.f32.mrf.mxu0
      %1796 = vmatprep.mubr.bf16.mxu0 %v1056
      %1797 = vmatmul.mubr.bf16.gmra.mxu0 %v1055
      %v1798 = vpop.f32.mrf.mxu0
      %v1799 = vadd.f32 %v417, %v1798
      %v1800 = vpop.f32.mrf.mxu0
      %v1801 = vpop.f32.mrf.mxu0
      %v1802 = vadd.f32 %v417, %v1801
      %v1803 = vpop.f32.mrf.mxu0
      %1804 = vmatprep.mubr.bf16.mxu0 %v1060
      %1805 = vmatmul.mubr.bf16.gmra.mxu0 %v1059
      %v1806 = vpop.f32.mrf.mxu0
      %v1807 = vadd.f32 %v417, %v1806
      %v1808 = vpop.f32.mrf.mxu0
      %v1809 = vpop.f32.mrf.mxu0
      %v1810 = vadd.f32 %v417, %v1809
      %v1811 = vpop.f32.mrf.mxu0
      %1812 = vmatprep.mubr.bf16.mxu0 %v1064
      %1813 = vmatmul.mubr.bf16.gmra.mxu0 %v1063
      %v1814 = vpop.f32.mrf.mxu0
      %v1815 = vadd.f32 %v417, %v1814
      %v1816 = vpop.f32.mrf.mxu0
      %v1817 = vpop.f32.mrf.mxu0
      %v1818 = vadd.f32 %v417, %v1817
      %v1819 = vpop.f32.mrf.mxu0
      %1820 = vmatprep.mubr.bf16.mxu0 %v1068
      %1821 = vmatmul.mubr.bf16.gmra.mxu0 %v1067
      %v1822 = vpop.f32.mrf.mxu0
      %v1823 = vadd.f32 %v417, %v1822
      %v1824 = vpop.f32.mrf.mxu0
      %v1825 = vpop.f32.mrf.mxu0
      %v1826 = vadd.f32 %v417, %v1825
      %v1827 = vpop.f32.mrf.mxu0
      %1828 = vmatprep.mubr.bf16.mxu0 %v1072
      %1829 = vmatmul.mubr.bf16.gmra.mxu0 %v1071
      %v1830 = vpop.f32.mrf.mxu0
      %v1831 = vadd.f32 %v417, %v1830
      %v1832 = vpop.f32.mrf.mxu0
      %v1833 = vpop.f32.mrf.mxu0
      %v1834 = vadd.f32 %v417, %v1833
      %v1835 = vpop.f32.mrf.mxu0
      %1836 = vmatprep.mubr.bf16.mxu0 %v1076
      %1837 = vmatmul.mubr.bf16.gmra.mxu0 %v1075
      %v1838 = vpop.f32.mrf.mxu0
      %v1839 = vadd.f32 %v417, %v1838
      %v1840 = vpop.f32.mrf.mxu0
      %v1841 = vpop.f32.mrf.mxu0
      %v1842 = vadd.f32 %v417, %v1841
      %v1843 = vpop.f32.mrf.mxu0
      %1844 = vmatprep.mubr.bf16.mxu0 %v1080
      %1845 = vmatmul.mubr.bf16.gmra.mxu0 %v1079
      %v1846 = vpop.f32.mrf.mxu0
      %v1847 = vadd.f32 %v417, %v1846
      %v1848 = vpop.f32.mrf.mxu0
      %v1849 = vpop.f32.mrf.mxu0
      %v1850 = vadd.f32 %v417, %v1849
      %v1851 = vpop.f32.mrf.mxu0
      %1852 = vmatprep.mubr.bf16.mxu0 %v1084
      %1853 = vmatmul.mubr.bf16.gmra.mxu0 %v1083
      %v1854 = vpop.f32.mrf.mxu0
      %v1855 = vadd.f32 %v417, %v1854
      %v1856 = vpop.f32.mrf.mxu0
      %v1857 = vpop.f32.mrf.mxu0
      %v1858 = vadd.f32 %v417, %v1857
      %v1859 = vpop.f32.mrf.mxu0
      %1860 = vmatprep.mubr.bf16.mxu0 %v1088
      %1861 = vmatmul.mubr.bf16.gmra.mxu0 %v1087
      %v1862 = vpop.f32.mrf.mxu0
      %v1863 = vadd.f32 %v417, %v1862
      %v1864 = vpop.f32.mrf.mxu0
      %v1865 = vpop.f32.mrf.mxu0
      %v1866 = vadd.f32 %v417, %v1865
      %v1867 = vpop.f32.mrf.mxu0
      %1868 = vmatprep.mubr.bf16.mxu0 %v1092
      %1869 = vmatmul.mubr.bf16.gmra.mxu0 %v1091
      %v1870 = vpop.f32.mrf.mxu0
      %v1871 = vadd.f32 %v417, %v1870
      %v1872 = vpop.f32.mrf.mxu0
      %v1873 = vpop.f32.mrf.mxu0
      %v1874 = vadd.f32 %v417, %v1873
      %v1875 = vpop.f32.mrf.mxu0
      %1876 = vmatprep.mubr.bf16.mxu0 %v1096
      %1877 = vmatmul.mubr.bf16.gmra.mxu0 %v1095
      %v1878 = vpop.f32.mrf.mxu0
      %v1879 = vadd.f32 %v417, %v1878
      %v1880 = vpop.f32.mrf.mxu0
      %v1881 = vpop.f32.mrf.mxu0
      %v1882 = vadd.f32 %v417, %v1881
      %v1883 = vpop.f32.mrf.mxu0
      %1884 = vmatprep.mubr.bf16.mxu0 %v1100
      %1885 = vmatmul.mubr.bf16.gmra.mxu0 %v1099
      %v1886 = vpop.f32.mrf.mxu0
      %v1887 = vadd.f32 %v417, %v1886
      %v1888 = vpop.f32.mrf.mxu0
      %v1889 = vpop.f32.mrf.mxu0
      %v1890 = vadd.f32 %v417, %v1889
      %v1891 = vpop.f32.mrf.mxu0
      %1892 = vmatprep.mubr.bf16.mxu0 %v1104
      %1893 = vmatmul.mubr.bf16.gmra.mxu0 %v1103
      %v1894 = vpop.f32.mrf.mxu0
      %v1895 = vadd.f32 %v417, %v1894
      %v1896 = vpop.f32.mrf.mxu0
      %v1897 = vpop.f32.mrf.mxu0
      %v1898 = vadd.f32 %v417, %v1897
      %v1899 = vpop.f32.mrf.mxu0
      %1900 = vmatprep.mubr.bf16.mxu0 %v1108
      %1901 = vmatmul.mubr.bf16.gmra.mxu0 %v1107
      %v1902 = vpop.f32.mrf.mxu0
      %v1903 = vadd.f32 %v417, %v1902
      %v1904 = vpop.f32.mrf.mxu0
      %v1905 = vpop.f32.mrf.mxu0
      %v1906 = vadd.f32 %v417, %v1905
      %v1907 = vpop.f32.mrf.mxu0
      %1908 = vmatprep.mubr.bf16.mxu0 %v1112
      %1909 = vmatmul.mubr.bf16.gmra.mxu0 %v1111
      %v1910 = vpop.f32.mrf.mxu0
      %v1911 = vadd.f32 %v417, %v1910
      %v1912 = vpop.f32.mrf.mxu0
      %v1913 = vpop.f32.mrf.mxu0
      %v1914 = vadd.f32 %v417, %v1913
      %v1915 = vpop.f32.mrf.mxu0
      %1916 = vmatprep.mubr.bf16.mxu0 %v1116
      %1917 = vmatmul.mubr.bf16.gmra.mxu0 %v1115
      %v1918 = vpop.f32.mrf.mxu0
      %v1919 = vadd.f32 %v417, %v1918
      %v1920 = vpop.f32.mrf.mxu0
      %v1921 = vpop.f32.mrf.mxu0
      %v1922 = vadd.f32 %v417, %v1921
      %v1923 = vpop.f32.mrf.mxu0
      %1924 = vmatprep.mubr.bf16.mxu0 %v1120
      %1925 = vmatmul.mubr.bf16.gmra.mxu0 %v1119
      %v1926 = vpop.f32.mrf.mxu0
      %v1927 = vadd.f32 %v417, %v1926
      %v1928 = vpop.f32.mrf.mxu0
      %v1929 = vpop.f32.mrf.mxu0
      %v1930 = vadd.f32 %v417, %v1929
      %v1931 = vpop.f32.mrf.mxu0
      %1932 = vmatprep.mubr.bf16.mxu0 %v1124
      %1933 = vmatmul.mubr.bf16.gmra.mxu0 %v1123
      %v1934 = vpop.f32.mrf.mxu0
      %v1935 = vadd.f32 %v417, %v1934
      %v1936 = vpop.f32.mrf.mxu0
      %v1937 = vpop.f32.mrf.mxu0
      %v1938 = vadd.f32 %v417, %v1937
      %v1939 = vpop.f32.mrf.mxu0
      %1940 = vmatprep.mubr.bf16.mxu0 %v1128
      %1941 = vmatmul.mubr.bf16.gmra.mxu0 %v1127
      %v1942 = vpop.f32.mrf.mxu0
      %v1943 = vadd.f32 %v417, %v1942
      %v1944 = vpop.f32.mrf.mxu0
      %v1945 = vpop.f32.mrf.mxu0
      %v1946 = vadd.f32 %v417, %v1945
      %v1947 = vpop.f32.mrf.mxu0
      %1948 = vmatprep.mubr.bf16.mxu0 %v1132
      %1949 = vmatmul.mubr.bf16.gmra.mxu0 %v1131
      %v1950 = vpop.f32.mrf.mxu0
      %v1951 = vadd.f32 %v417, %v1950
      %v1952 = vpop.f32.mrf.mxu0
      %v1953 = vpop.f32.mrf.mxu0
      %v1954 = vadd.f32 %v417, %v1953
      %v1955 = vpop.f32.mrf.mxu0
      %1956 = vmatprep.mubr.bf16.mxu0 %v1136
      %1957 = vmatmul.mubr.bf16.gmra.mxu0 %v1135
      %v1958 = vpop.f32.mrf.mxu0
      %v1959 = vadd.f32 %v417, %v1958
      %v1960 = vpop.f32.mrf.mxu0
      %v1961 = vpop.f32.mrf.mxu0
      %v1962 = vadd.f32 %v417, %v1961
      %v1963 = vpop.f32.mrf.mxu0
      %1964 = vdwg.mxu0
      %1965 = vmatprep.subr.bf16.mxu0 0
      %1966 = vmatpush1.bf16.msra.mxu0 %v1405
      %1967 = vmatprep.subr.bf16.mxu0 0
      %1968 = vmatpush1.bf16.msra.mxu0 %v1404
      %1969 = vmatprep.subr.bf16.mxu0 0
      %1970 = vmatpush1.bf16.msra.mxu0 %v1403
      %1971 = vmatprep.subr.bf16.mxu0 0
      %1972 = vmatpush1.bf16.msra.mxu0 %v1402
      %1973 = vmatprep.subr.bf16.mxu0 0
      %1974 = vmatpush1.bf16.msra.mxu0 %v1401
      %1975 = vmatprep.subr.bf16.mxu0 0
      %1976 = vmatpush1.bf16.msra.mxu0 %v1400
      %1977 = vmatprep.subr.bf16.mxu0 0
      %1978 = vmatpush1.bf16.msra.mxu0 %v1399
      %1979 = vmatprep.subr.bf16.mxu0 0
      %1980 = vmatpush1.bf16.msra.mxu0 %v1398
      %1981 = vmatprep.subr.bf16.mxu0 0
      %1982 = vmatpush2.bf16.msra.mxu0 0
      %1983 = vmatprep.subr.bf16.mxu0 0
      %1984 = vmatpush2.bf16.msra.mxu0 0
      %1985 = vmatprep.subr.bf16.mxu0 0
      %1986 = vmatpush2.bf16.msra.mxu0 0
      %1987 = vmatprep.subr.bf16.mxu0 0
      %1988 = vmatpush2.bf16.msra.mxu0 0
      %1989 = vmatprep.subr.bf16.mxu0 0
      %1990 = vmatpush2.bf16.msra.mxu0 0
      %1991 = vmatprep.subr.bf16.mxu0 0
      %1992 = vmatpush2.bf16.msra.mxu0 %v1408
      %1993 = vmatprep.subr.bf16.mxu0 0
      %1994 = vmatpush2.bf16.msra.mxu0 %v1407
      %1995 = vmatprep.subr.bf16.mxu0 0
      %1996 = vmatpush2.bf16.msra.mxu0 %v1406
      %1997 = vmatprep.mubr.bf16.mxu0 %v1438
      %1998 = vmatmul.mubr.bf16.gmra.mxu0 %v961
      %v1999 = vpop.f32.mrf.mxu0
      %v2000 = vadd.f32 %v1607, %v1999
      %v2001 = vpop.f32.mrf.mxu0
      %v2002 = vpop.f32.mrf.mxu0
      %v2003 = vadd.f32 %v1610, %v2002
      %v2004 = vpop.f32.mrf.mxu0
      %2005 = vmatprep.mubr.bf16.mxu0 %v1441
      %2006 = vmatmul.mubr.bf16.gmra.mxu0 %v965
      %v2007 = vpop.f32.mrf.mxu0
      %v2008 = vadd.f32 %v1615, %v2007
      %v2009 = vpop.f32.mrf.mxu0
      %v2010 = vpop.f32.mrf.mxu0
      %v2011 = vadd.f32 %v1618, %v2010
      %v2012 = vpop.f32.mrf.mxu0
      %2013 = vmatprep.mubr.bf16.mxu0 %v1444
      %2014 = vmatmul.mubr.bf16.gmra.mxu0 %v969
      %v2015 = vpop.f32.mrf.mxu0
      %v2016 = vadd.f32 %v1623, %v2015
      %v2017 = vpop.f32.mrf.mxu0
      %v2018 = vpop.f32.mrf.mxu0
      %v2019 = vadd.f32 %v1626, %v2018
      %v2020 = vpop.f32.mrf.mxu0
      %2021 = vmatprep.mubr.bf16.mxu0 %v1447
      %2022 = vmatmul.mubr.bf16.gmra.mxu0 %v973
      %v2023 = vpop.f32.mrf.mxu0
      %v2024 = vadd.f32 %v1631, %v2023
      %v2025 = vpop.f32.mrf.mxu0
      %v2026 = vpop.f32.mrf.mxu0
      %v2027 = vadd.f32 %v1634, %v2026
      %v2028 = vpop.f32.mrf.mxu0
      %2029 = vmatprep.mubr.bf16.mxu0 %v1450
      %2030 = vmatmul.mubr.bf16.gmra.mxu0 %v977
      %v2031 = vpop.f32.mrf.mxu0
      %v2032 = vadd.f32 %v1639, %v2031
      %v2033 = vpop.f32.mrf.mxu0
      %v2034 = vpop.f32.mrf.mxu0
      %v2035 = vadd.f32 %v1642, %v2034
      %v2036 = vpop.f32.mrf.mxu0
      %2037 = vmatprep.mubr.bf16.mxu0 %v1453
      %2038 = vmatmul.mubr.bf16.gmra.mxu0 %v981
      %v2039 = vpop.f32.mrf.mxu0
      %v2040 = vadd.f32 %v1647, %v2039
      %v2041 = vpop.f32.mrf.mxu0
      %v2042 = vpop.f32.mrf.mxu0
      %v2043 = vadd.f32 %v1650, %v2042
      %v2044 = vpop.f32.mrf.mxu0
      %2045 = vmatprep.mubr.bf16.mxu0 %v1456
      %2046 = vmatmul.mubr.bf16.gmra.mxu0 %v985
      %v2047 = vpop.f32.mrf.mxu0
      %v2048 = vadd.f32 %v1655, %v2047
      %v2049 = vpop.f32.mrf.mxu0
      %v2050 = vpop.f32.mrf.mxu0
      %v2051 = vadd.f32 %v1658, %v2050
      %v2052 = vpop.f32.mrf.mxu0
      %2053 = vmatprep.mubr.bf16.mxu0 %v1459
      %2054 = vmatmul.mubr.bf16.gmra.mxu0 %v989
      %v2055 = vpop.f32.mrf.mxu0
      %v2056 = vadd.f32 %v1663, %v2055
      %v2057 = vpop.f32.mrf.mxu0
      %v2058 = vpop.f32.mrf.mxu0
      %v2059 = vadd.f32 %v1666, %v2058
      %v2060 = vpop.f32.mrf.mxu0
      %2061 = vmatprep.mubr.bf16.mxu0 %v1462
      %2062 = vmatmul.mubr.bf16.gmra.mxu0 %v993
      %v2063 = vpop.f32.mrf.mxu0
      %v2064 = vadd.f32 %v1671, %v2063
      %v2065 = vpop.f32.mrf.mxu0
      %v2066 = vpop.f32.mrf.mxu0
      %v2067 = vadd.f32 %v1674, %v2066
      %v2068 = vpop.f32.mrf.mxu0
      %2069 = vmatprep.mubr.bf16.mxu0 %v1465
      %2070 = vmatmul.mubr.bf16.gmra.mxu0 %v997
      %v2071 = vpop.f32.mrf.mxu0
      %v2072 = vadd.f32 %v1679, %v2071
      %v2073 = vpop.f32.mrf.mxu0
      %v2074 = vpop.f32.mrf.mxu0
      %v2075 = vadd.f32 %v1682, %v2074
      %v2076 = vpop.f32.mrf.mxu0
      %2077 = vmatprep.mubr.bf16.mxu0 %v1468
      %2078 = vmatmul.mubr.bf16.gmra.mxu0 %v1001
      %v2079 = vpop.f32.mrf.mxu0
      %v2080 = vadd.f32 %v1687, %v2079
      %v2081 = vpop.f32.mrf.mxu0
      %v2082 = vpop.f32.mrf.mxu0
      %v2083 = vadd.f32 %v1690, %v2082
      %v2084 = vpop.f32.mrf.mxu0
      %2085 = vmatprep.mubr.bf16.mxu0 %v1471
      %2086 = vmatmul.mubr.bf16.gmra.mxu0 %v1005
      %v2087 = vpop.f32.mrf.mxu0
      %v2088 = vadd.f32 %v1695, %v2087
      %v2089 = vpop.f32.mrf.mxu0
      %v2090 = vpop.f32.mrf.mxu0
      %v2091 = vadd.f32 %v1698, %v2090
      %v2092 = vpop.f32.mrf.mxu0
      %2093 = vmatprep.mubr.bf16.mxu0 %v1474
      %2094 = vmatmul.mubr.bf16.gmra.mxu0 %v1009
      %v2095 = vpop.f32.mrf.mxu0
      %v2096 = vadd.f32 %v1703, %v2095
      %v2097 = vpop.f32.mrf.mxu0
      %v2098 = vpop.f32.mrf.mxu0
      %v2099 = vadd.f32 %v1706, %v2098
      %v2100 = vpop.f32.mrf.mxu0
      %2101 = vmatprep.mubr.bf16.mxu0 %v1477
      %2102 = vmatmul.mubr.bf16.gmra.mxu0 %v1013
      %v2103 = vpop.f32.mrf.mxu0
      %v2104 = vadd.f32 %v1711, %v2103
      %v2105 = vpop.f32.mrf.mxu0
      %v2106 = vpop.f32.mrf.mxu0
      %v2107 = vadd.f32 %v1714, %v2106
      %v2108 = vpop.f32.mrf.mxu0
      %2109 = vmatprep.mubr.bf16.mxu0 %v1480
      %2110 = vmatmul.mubr.bf16.gmra.mxu0 %v1017
      %v2111 = vpop.f32.mrf.mxu0
      %v2112 = vadd.f32 %v1719, %v2111
      %v2113 = vpop.f32.mrf.mxu0
      %v2114 = vpop.f32.mrf.mxu0
      %v2115 = vadd.f32 %v1722, %v2114
      %v2116 = vpop.f32.mrf.mxu0
      %2117 = vmatprep.mubr.bf16.mxu0 %v1483
      %2118 = vmatmul.mubr.bf16.gmra.mxu0 %v1021
      %v2119 = vpop.f32.mrf.mxu0
      %v2120 = vadd.f32 %v1727, %v2119
      %v2121 = vpop.f32.mrf.mxu0
      %v2122 = vpop.f32.mrf.mxu0
      %v2123 = vadd.f32 %v1730, %v2122
      %v2124 = vpop.f32.mrf.mxu0
      %2125 = vmatprep.mubr.bf16.mxu0 %v1486
      %2126 = vmatmul.mubr.bf16.gmra.mxu0 %v1025
      %v2127 = vpop.f32.mrf.mxu0
      %v2128 = vadd.f32 %v1735, %v2127
      %v2129 = vpop.f32.mrf.mxu0
      %v2130 = vpop.f32.mrf.mxu0
      %v2131 = vadd.f32 %v1738, %v2130
      %v2132 = vpop.f32.mrf.mxu0
      %2133 = vmatprep.mubr.bf16.mxu0 %v1489
      %2134 = vmatmul.mubr.bf16.gmra.mxu0 %v1029
      %v2135 = vpop.f32.mrf.mxu0
      %v2136 = vadd.f32 %v1743, %v2135
      %v2137 = vpop.f32.mrf.mxu0
      %v2138 = vpop.f32.mrf.mxu0
      %v2139 = vadd.f32 %v1746, %v2138
      %v2140 = vpop.f32.mrf.mxu0
      %2141 = vmatprep.mubr.bf16.mxu0 %v1492
      %2142 = vmatmul.mubr.bf16.gmra.mxu0 %v1033
      %v2143 = vpop.f32.mrf.mxu0
      %v2144 = vadd.f32 %v1751, %v2143
      %v2145 = vpop.f32.mrf.mxu0
      %v2146 = vpop.f32.mrf.mxu0
      %v2147 = vadd.f32 %v1754, %v2146
      %v2148 = vpop.f32.mrf.mxu0
      %2149 = vmatprep.mubr.bf16.mxu0 %v1495
      %2150 = vmatmul.mubr.bf16.gmra.mxu0 %v1037
      %v2151 = vpop.f32.mrf.mxu0
      %v2152 = vadd.f32 %v1759, %v2151
      %v2153 = vpop.f32.mrf.mxu0
      %v2154 = vpop.f32.mrf.mxu0
      %v2155 = vadd.f32 %v1762, %v2154
      %v2156 = vpop.f32.mrf.mxu0
      %2157 = vmatprep.mubr.bf16.mxu0 %v1498
      %2158 = vmatmul.mubr.bf16.gmra.mxu0 %v1041
      %v2159 = vpop.f32.mrf.mxu0
      %v2160 = vadd.f32 %v1767, %v2159
      %v2161 = vpop.f32.mrf.mxu0
      %v2162 = vpop.f32.mrf.mxu0
      %v2163 = vadd.f32 %v1770, %v2162
      %v2164 = vpop.f32.mrf.mxu0
      %2165 = vmatprep.mubr.bf16.mxu0 %v1501
      %2166 = vmatmul.mubr.bf16.gmra.mxu0 %v1045
      %v2167 = vpop.f32.mrf.mxu0
      %v2168 = vadd.f32 %v1775, %v2167
      %v2169 = vpop.f32.mrf.mxu0
      %v2170 = vpop.f32.mrf.mxu0
      %v2171 = vadd.f32 %v1778, %v2170
      %v2172 = vpop.f32.mrf.mxu0
      %2173 = vmatprep.mubr.bf16.mxu0 %v1504
      %2174 = vmatmul.mubr.bf16.gmra.mxu0 %v1049
      %v2175 = vpop.f32.mrf.mxu0
      %v2176 = vadd.f32 %v1783, %v2175
      %v2177 = vpop.f32.mrf.mxu0
      %v2178 = vpop.f32.mrf.mxu0
      %v2179 = vadd.f32 %v1786, %v2178
      %v2180 = vpop.f32.mrf.mxu0
      %2181 = vmatprep.mubr.bf16.mxu0 %v1507
      %2182 = vmatmul.mubr.bf16.gmra.mxu0 %v1053
      %v2183 = vpop.f32.mrf.mxu0
      %v2184 = vadd.f32 %v1791, %v2183
      %v2185 = vpop.f32.mrf.mxu0
      %v2186 = vpop.f32.mrf.mxu0
      %v2187 = vadd.f32 %v1794, %v2186
      %v2188 = vpop.f32.mrf.mxu0
      %2189 = vmatprep.mubr.bf16.mxu0 %v1510
      %2190 = vmatmul.mubr.bf16.gmra.mxu0 %v1057
      %v2191 = vpop.f32.mrf.mxu0
      %v2192 = vadd.f32 %v1799, %v2191
      %v2193 = vpop.f32.mrf.mxu0
      %v2194 = vpop.f32.mrf.mxu0
      %v2195 = vadd.f32 %v1802, %v2194
      %v2196 = vpop.f32.mrf.mxu0
      %2197 = vmatprep.mubr.bf16.mxu0 %v1513
      %2198 = vmatmul.mubr.bf16.gmra.mxu0 %v1061
      %v2199 = vpop.f32.mrf.mxu0
      %v2200 = vadd.f32 %v1807, %v2199
      %v2201 = vpop.f32.mrf.mxu0
      %v2202 = vpop.f32.mrf.mxu0
      %v2203 = vadd.f32 %v1810, %v2202
      %v2204 = vpop.f32.mrf.mxu0
      %2205 = vmatprep.mubr.bf16.mxu0 %v1516
      %2206 = vmatmul.mubr.bf16.gmra.mxu0 %v1065
      %v2207 = vpop.f32.mrf.mxu0
      %v2208 = vadd.f32 %v1815, %v2207
      %v2209 = vpop.f32.mrf.mxu0
      %v2210 = vpop.f32.mrf.mxu0
      %v2211 = vadd.f32 %v1818, %v2210
      %v2212 = vpop.f32.mrf.mxu0
      %2213 = vmatprep.mubr.bf16.mxu0 %v1519
      %2214 = vmatmul.mubr.bf16.gmra.mxu0 %v1069
      %v2215 = vpop.f32.mrf.mxu0
      %v2216 = vadd.f32 %v1823, %v2215
      %v2217 = vpop.f32.mrf.mxu0
      %v2218 = vpop.f32.mrf.mxu0
      %v2219 = vadd.f32 %v1826, %v2218
      %v2220 = vpop.f32.mrf.mxu0
      %2221 = vmatprep.mubr.bf16.mxu0 %v1522
      %2222 = vmatmul.mubr.bf16.gmra.mxu0 %v1073
      %v2223 = vpop.f32.mrf.mxu0
      %v2224 = vadd.f32 %v1831, %v2223
      %v2225 = vpop.f32.mrf.mxu0
      %v2226 = vpop.f32.mrf.mxu0
      %v2227 = vadd.f32 %v1834, %v2226
      %v2228 = vpop.f32.mrf.mxu0
      %2229 = vmatprep.mubr.bf16.mxu0 %v1525
      %2230 = vmatmul.mubr.bf16.gmra.mxu0 %v1077
      %v2231 = vpop.f32.mrf.mxu0
      %v2232 = vadd.f32 %v1839, %v2231
      %v2233 = vpop.f32.mrf.mxu0
      %v2234 = vpop.f32.mrf.mxu0
      %v2235 = vadd.f32 %v1842, %v2234
      %v2236 = vpop.f32.mrf.mxu0
      %2237 = vmatprep.mubr.bf16.mxu0 %v1528
      %2238 = vmatmul.mubr.bf16.gmra.mxu0 %v1081
      %v2239 = vpop.f32.mrf.mxu0
      %v2240 = vadd.f32 %v1847, %v2239
      %v2241 = vpop.f32.mrf.mxu0
      %v2242 = vpop.f32.mrf.mxu0
      %v2243 = vadd.f32 %v1850, %v2242
      %v2244 = vpop.f32.mrf.mxu0
      %2245 = vmatprep.mubr.bf16.mxu0 %v1531
      %2246 = vmatmul.mubr.bf16.gmra.mxu0 %v1085
      %v2247 = vpop.f32.mrf.mxu0
      %v2248 = vadd.f32 %v1855, %v2247
      %v2249 = vpop.f32.mrf.mxu0
      %v2250 = vpop.f32.mrf.mxu0
      %v2251 = vadd.f32 %v1858, %v2250
      %v2252 = vpop.f32.mrf.mxu0
      %2253 = vmatprep.mubr.bf16.mxu0 %v1534
      %2254 = vmatmul.mubr.bf16.gmra.mxu0 %v1089
      %v2255 = vpop.f32.mrf.mxu0
      %v2256 = vadd.f32 %v1863, %v2255
      %v2257 = vpop.f32.mrf.mxu0
      %v2258 = vpop.f32.mrf.mxu0
      %v2259 = vadd.f32 %v1866, %v2258
      %v2260 = vpop.f32.mrf.mxu0
      %2261 = vmatprep.mubr.bf16.mxu0 %v1537
      %2262 = vmatmul.mubr.bf16.gmra.mxu0 %v1093
      %v2263 = vpop.f32.mrf.mxu0
      %v2264 = vadd.f32 %v1871, %v2263
      %v2265 = vpop.f32.mrf.mxu0
      %v2266 = vpop.f32.mrf.mxu0
      %v2267 = vadd.f32 %v1874, %v2266
      %v2268 = vpop.f32.mrf.mxu0
      %2269 = vmatprep.mubr.bf16.mxu0 %v1540
      %2270 = vmatmul.mubr.bf16.gmra.mxu0 %v1097
      %v2271 = vpop.f32.mrf.mxu0
      %v2272 = vadd.f32 %v1879, %v2271
      %v2273 = vpop.f32.mrf.mxu0
      %v2274 = vpop.f32.mrf.mxu0
      %v2275 = vadd.f32 %v1882, %v2274
      %v2276 = vpop.f32.mrf.mxu0
      %2277 = vmatprep.mubr.bf16.mxu0 %v1543
      %2278 = vmatmul.mubr.bf16.gmra.mxu0 %v1101
      %v2279 = vpop.f32.mrf.mxu0
      %v2280 = vadd.f32 %v1887, %v2279
      %v2281 = vpop.f32.mrf.mxu0
      %v2282 = vpop.f32.mrf.mxu0
      %v2283 = vadd.f32 %v1890, %v2282
      %v2284 = vpop.f32.mrf.mxu0
      %2285 = vmatprep.mubr.bf16.mxu0 %v1546
      %2286 = vmatmul.mubr.bf16.gmra.mxu0 %v1105
      %v2287 = vpop.f32.mrf.mxu0
      %v2288 = vadd.f32 %v1895, %v2287
      %v2289 = vpop.f32.mrf.mxu0
      %v2290 = vpop.f32.mrf.mxu0
      %v2291 = vadd.f32 %v1898, %v2290
      %v2292 = vpop.f32.mrf.mxu0
      %2293 = vmatprep.mubr.bf16.mxu0 %v1549
      %2294 = vmatmul.mubr.bf16.gmra.mxu0 %v1109
      %v2295 = vpop.f32.mrf.mxu0
      %v2296 = vadd.f32 %v1903, %v2295
      %v2297 = vpop.f32.mrf.mxu0
      %v2298 = vpop.f32.mrf.mxu0
      %v2299 = vadd.f32 %v1906, %v2298
      %v2300 = vpop.f32.mrf.mxu0
      %2301 = vmatprep.mubr.bf16.mxu0 %v1552
      %2302 = vmatmul.mubr.bf16.gmra.mxu0 %v1113
      %v2303 = vpop.f32.mrf.mxu0
      %v2304 = vadd.f32 %v1911, %v2303
      %v2305 = vpop.f32.mrf.mxu0
      %v2306 = vpop.f32.mrf.mxu0
      %v2307 = vadd.f32 %v1914, %v2306
      %v2308 = vpop.f32.mrf.mxu0
      %2309 = vmatprep.mubr.bf16.mxu0 %v1555
      %2310 = vmatmul.mubr.bf16.gmra.mxu0 %v1117
      %v2311 = vpop.f32.mrf.mxu0
      %v2312 = vadd.f32 %v1919, %v2311
      %v2313 = vpop.f32.mrf.mxu0
      %v2314 = vpop.f32.mrf.mxu0
      %v2315 = vadd.f32 %v1922, %v2314
      %v2316 = vpop.f32.mrf.mxu0
      %2317 = vmatprep.mubr.bf16.mxu0 %v1558
      %2318 = vmatmul.mubr.bf16.gmra.mxu0 %v1121
      %v2319 = vpop.f32.mrf.mxu0
      %v2320 = vadd.f32 %v1927, %v2319
      %v2321 = vpop.f32.mrf.mxu0
      %v2322 = vpop.f32.mrf.mxu0
      %v2323 = vadd.f32 %v1930, %v2322
      %v2324 = vpop.f32.mrf.mxu0
      %2325 = vmatprep.mubr.bf16.mxu0 %v1561
      %2326 = vmatmul.mubr.bf16.gmra.mxu0 %v1125
      %v2327 = vpop.f32.mrf.mxu0
      %v2328 = vadd.f32 %v1935, %v2327
      %v2329 = vpop.f32.mrf.mxu0
      %v2330 = vpop.f32.mrf.mxu0
      %v2331 = vadd.f32 %v1938, %v2330
      %v2332 = vpop.f32.mrf.mxu0
      %2333 = vmatprep.mubr.bf16.mxu0 %v1564
      %2334 = vmatmul.mubr.bf16.gmra.mxu0 %v1129
      %v2335 = vpop.f32.mrf.mxu0
      %v2336 = vadd.f32 %v1943, %v2335
      %v2337 = vpop.f32.mrf.mxu0
      %v2338 = vpop.f32.mrf.mxu0
      %v2339 = vadd.f32 %v1946, %v2338
      %v2340 = vpop.f32.mrf.mxu0
      %2341 = vmatprep.mubr.bf16.mxu0 %v1567
      %2342 = vmatmul.mubr.bf16.gmra.mxu0 %v1133
      %v2343 = vpop.f32.mrf.mxu0
      %v2344 = vadd.f32 %v1951, %v2343
      %v2345 = vpop.f32.mrf.mxu0
      %v2346 = vpop.f32.mrf.mxu0
      %v2347 = vadd.f32 %v1954, %v2346
      %v2348 = vpop.f32.mrf.mxu0
      %2349 = vmatprep.mubr.bf16.mxu0 %v1570
      %2350 = vmatmul.mubr.bf16.gmra.mxu0 %v1137
      %v2351 = vpop.f32.mrf.mxu0
      %v2352 = vadd.f32 %v1959, %v2351
      %v2353 = vpop.f32.mrf.mxu0
      %v2354 = vpop.f32.mrf.mxu0
      %v2355 = vadd.f32 %v1962, %v2354
      %v2356 = vpop.f32.mrf.mxu0
      %2357 = vdwg.mxu0
      %v2358 = vmax.f32 %v2000, -30.0
      %v2359 = vmax.f32 %v2003, -30.0
      %v2360 = vmax.f32 %v2008, -30.0
      %v2361 = vmax.f32 %v2011, -30.0
      %v2362 = vmax.f32 %v2016, -30.0
      %v2363 = vmax.f32 %v2019, -30.0
      %v2364 = vmax.f32 %v2024, -30.0
      %v2365 = vmax.f32 %v2027, -30.0
      %v2366 = vmax.f32 %v2032, -30.0
      %v2367 = vmax.f32 %v2035, -30.0
      %v2368 = vmax.f32 %v2040, -30.0
      %v2369 = vmax.f32 %v2043, -30.0
      %v2370 = vmax.f32 %v2048, -30.0
      %v2371 = vmax.f32 %v2051, -30.0
      %v2372 = vmax.f32 %v2056, -30.0
      %v2373 = vmax.f32 %v2059, -30.0
      %v2374 = vmax.f32 %v2064, -30.0
      %v2375 = vmax.f32 %v2067, -30.0
      %v2376 = vmax.f32 %v2072, -30.0
      %v2377 = vmax.f32 %v2075, -30.0
      %v2378 = vmax.f32 %v2080, -30.0
      %v2379 = vmax.f32 %v2083, -30.0
      %v2380 = vmax.f32 %v2088, -30.0
      %v2381 = vmax.f32 %v2091, -30.0
      %v2382 = vmax.f32 %v2096, -30.0
      %v2383 = vmax.f32 %v2099, -30.0
      %v2384 = vmax.f32 %v2104, -30.0
      %v2385 = vmax.f32 %v2107, -30.0
      %v2386 = vmax.f32 %v2112, -30.0
      %v2387 = vmax.f32 %v2115, -30.0
      %v2388 = vmax.f32 %v2120, -30.0
      %v2389 = vmax.f32 %v2123, -30.0
      %v2390 = vmax.f32 %v2128, -30.0
      %v2391 = vmax.f32 %v2131, -30.0
      %v2392 = vmax.f32 %v2136, -30.0
      %v2393 = vmax.f32 %v2139, -30.0
      %v2394 = vmax.f32 %v2144, -30.0
      %v2395 = vmax.f32 %v2147, -30.0
      %v2396 = vmax.f32 %v2152, -30.0
      %v2397 = vmax.f32 %v2155, -30.0
      %v2398 = vmax.f32 %v2160, -30.0
      %v2399 = vmax.f32 %v2163, -30.0
      %v2400 = vmax.f32 %v2168, -30.0
      %v2401 = vmax.f32 %v2171, -30.0
      %v2402 = vmax.f32 %v2176, -30.0
      %v2403 = vmax.f32 %v2179, -30.0
      %v2404 = vmax.f32 %v2184, -30.0
      %v2405 = vmax.f32 %v2187, -30.0
      %v2406 = vmax.f32 %v2192, -30.0
      %v2407 = vmax.f32 %v2195, -30.0
      %v2408 = vmax.f32 %v2200, -30.0
      %v2409 = vmax.f32 %v2203, -30.0
      %v2410 = vmax.f32 %v2208, -30.0
      %v2411 = vmax.f32 %v2211, -30.0
      %v2412 = vmax.f32 %v2216, -30.0
      %v2413 = vmax.f32 %v2219, -30.0
      %v2414 = vmax.f32 %v2224, -30.0
      %v2415 = vmax.f32 %v2227, -30.0
      %v2416 = vmax.f32 %v2232, -30.0
      %v2417 = vmax.f32 %v2235, -30.0
      %v2418 = vmax.f32 %v2240, -30.0
      %v2419 = vmax.f32 %v2243, -30.0
      %v2420 = vmax.f32 %v2248, -30.0
      %v2421 = vmax.f32 %v2251, -30.0
      %v2422 = vmax.f32 %v2256, -30.0
      %v2423 = vmax.f32 %v2259, -30.0
      %v2424 = vmax.f32 %v2264, -30.0
      %v2425 = vmax.f32 %v2267, -30.0
      %v2426 = vmax.f32 %v2272, -30.0
      %v2427 = vmax.f32 %v2275, -30.0
      %v2428 = vmax.f32 %v2280, -30.0
      %v2429 = vmax.f32 %v2283, -30.0
      %v2430 = vmax.f32 %v2288, -30.0
      %v2431 = vmax.f32 %v2291, -30.0
      %v2432 = vmax.f32 %v2296, -30.0
      %v2433 = vmax.f32 %v2299, -30.0
      %v2434 = vmax.f32 %v2304, -30.0
      %v2435 = vmax.f32 %v2307, -30.0
      %v2436 = vmax.f32 %v2312, -30.0
      %v2437 = vmax.f32 %v2315, -30.0
      %v2438 = vmax.f32 %v2320, -30.0
      %v2439 = vmax.f32 %v2323, -30.0
      %v2440 = vmax.f32 %v2328, -30.0
      %v2441 = vmax.f32 %v2331, -30.0
      %v2442 = vmax.f32 %v2336, -30.0
      %v2443 = vmax.f32 %v2339, -30.0
      %v2444 = vmax.f32 %v2344, -30.0
      %v2445 = vmax.f32 %v2347, -30.0
      %v2446 = vmax.f32 %v2352, -30.0
      %v2447 = vmax.f32 %v2355, -30.0
      %v2448 = vmin.f32 %v2358, 30.0
      %v2449 = vmin.f32 %v2359, 30.0
      %v2450 = vmin.f32 %v2360, 30.0
      %v2451 = vmin.f32 %v2361, 30.0
      %v2452 = vmin.f32 %v2362, 30.0
      %v2453 = vmin.f32 %v2363, 30.0
      %v2454 = vmin.f32 %v2364, 30.0
      %v2455 = vmin.f32 %v2365, 30.0
      %v2456 = vmin.f32 %v2366, 30.0
      %v2457 = vmin.f32 %v2367, 30.0
      %v2458 = vmin.f32 %v2368, 30.0
      %v2459 = vmin.f32 %v2369, 30.0
      %v2460 = vmin.f32 %v2370, 30.0
      %v2461 = vmin.f32 %v2371, 30.0
      %v2462 = vmin.f32 %v2372, 30.0
      %v2463 = vmin.f32 %v2373, 30.0
      %v2464 = vmin.f32 %v2374, 30.0
      %v2465 = vmin.f32 %v2375, 30.0
      %v2466 = vmin.f32 %v2376, 30.0
      %v2467 = vmin.f32 %v2377, 30.0
      %v2468 = vmin.f32 %v2378, 30.0
      %v2469 = vmin.f32 %v2379, 30.0
      %v2470 = vmin.f32 %v2380, 30.0
      %v2471 = vmin.f32 %v2381, 30.0
      %v2472 = vmin.f32 %v2382, 30.0
      %v2473 = vmin.f32 %v2383, 30.0
      %v2474 = vmin.f32 %v2384, 30.0
      %v2475 = vmin.f32 %v2385, 30.0
      %v2476 = vmin.f32 %v2386, 30.0
      %v2477 = vmin.f32 %v2387, 30.0
      %v2478 = vmin.f32 %v2388, 30.0
      %v2479 = vmin.f32 %v2389, 30.0
      %v2480 = vmin.f32 %v2390, 30.0
      %v2481 = vmin.f32 %v2391, 30.0
      %v2482 = vmin.f32 %v2392, 30.0
      %v2483 = vmin.f32 %v2393, 30.0
      %v2484 = vmin.f32 %v2394, 30.0
      %v2485 = vmin.f32 %v2395, 30.0
      %v2486 = vmin.f32 %v2396, 30.0
      %v2487 = vmin.f32 %v2397, 30.0
      %v2488 = vmin.f32 %v2398, 30.0
      %v2489 = vmin.f32 %v2399, 30.0
      %v2490 = vmin.f32 %v2400, 30.0
      %v2491 = vmin.f32 %v2401, 30.0
      %v2492 = vmin.f32 %v2402, 30.0
      %v2493 = vmin.f32 %v2403, 30.0
      %v2494 = vmin.f32 %v2404, 30.0
      %v2495 = vmin.f32 %v2405, 30.0
      %v2496 = vmin.f32 %v2406, 30.0
      %v2497 = vmin.f32 %v2407, 30.0
      %v2498 = vmin.f32 %v2408, 30.0
      %v2499 = vmin.f32 %v2409, 30.0
      %v2500 = vmin.f32 %v2410, 30.0
      %v2501 = vmin.f32 %v2411, 30.0
      %v2502 = vmin.f32 %v2412, 30.0
      %v2503 = vmin.f32 %v2413, 30.0
      %v2504 = vmin.f32 %v2414, 30.0
      %v2505 = vmin.f32 %v2415, 30.0
      %v2506 = vmin.f32 %v2416, 30.0
      %v2507 = vmin.f32 %v2417, 30.0
      %v2508 = vmin.f32 %v2418, 30.0
      %v2509 = vmin.f32 %v2419, 30.0
      %v2510 = vmin.f32 %v2420, 30.0
      %v2511 = vmin.f32 %v2421, 30.0
      %v2512 = vmin.f32 %v2422, 30.0
      %v2513 = vmin.f32 %v2423, 30.0
      %v2514 = vmin.f32 %v2424, 30.0
      %v2515 = vmin.f32 %v2425, 30.0
      %v2516 = vmin.f32 %v2426, 30.0
      %v2517 = vmin.f32 %v2427, 30.0
      %v2518 = vmin.f32 %v2428, 30.0
      %v2519 = vmin.f32 %v2429, 30.0
      %v2520 = vmin.f32 %v2430, 30.0
      %v2521 = vmin.f32 %v2431, 30.0
      %v2522 = vmin.f32 %v2432, 30.0
      %v2523 = vmin.f32 %v2433, 30.0
      %v2524 = vmin.f32 %v2434, 30.0
      %v2525 = vmin.f32 %v2435, 30.0
      %v2526 = vmin.f32 %v2436, 30.0
      %v2527 = vmin.f32 %v2437, 30.0
      %v2528 = vmin.f32 %v2438, 30.0
      %v2529 = vmin.f32 %v2439, 30.0
      %v2530 = vmin.f32 %v2440, 30.0
      %v2531 = vmin.f32 %v2441, 30.0
      %v2532 = vmin.f32 %v2442, 30.0
      %v2533 = vmin.f32 %v2443, 30.0
      %v2534 = vmin.f32 %v2444, 30.0
      %v2535 = vmin.f32 %v2445, 30.0
      %v2536 = vmin.f32 %v2446, 30.0
      %v2537 = vmin.f32 %v2447, 30.0
      %v2538 = vsub.f32 0.0, %v2448
      %v2539 = vsub.f32 0.0, %v2449
      %v2540 = vsub.f32 0.0, %v2450
      %v2541 = vsub.f32 0.0, %v2451
      %v2542 = vsub.f32 0.0, %v2452
      %v2543 = vsub.f32 0.0, %v2453
      %v2544 = vsub.f32 0.0, %v2454
      %v2545 = vsub.f32 0.0, %v2455
      %v2546 = vsub.f32 0.0, %v2456
      %v2547 = vsub.f32 0.0, %v2457
      %v2548 = vsub.f32 0.0, %v2458
      %v2549 = vsub.f32 0.0, %v2459
      %v2550 = vsub.f32 0.0, %v2460
      %v2551 = vsub.f32 0.0, %v2461
      %v2552 = vsub.f32 0.0, %v2462
      %v2553 = vsub.f32 0.0, %v2463
      %v2554 = vsub.f32 0.0, %v2464
      %v2555 = vsub.f32 0.0, %v2465
      %v2556 = vsub.f32 0.0, %v2466
      %v2557 = vsub.f32 0.0, %v2467
      %v2558 = vsub.f32 0.0, %v2468
      %v2559 = vsub.f32 0.0, %v2469
      %v2560 = vsub.f32 0.0, %v2470
      %v2561 = vsub.f32 0.0, %v2471
      %v2562 = vsub.f32 0.0, %v2472
      %v2563 = vsub.f32 0.0, %v2473
      %v2564 = vsub.f32 0.0, %v2474
      %v2565 = vsub.f32 0.0, %v2475
      %v2566 = vsub.f32 0.0, %v2476
      %v2567 = vsub.f32 0.0, %v2477
      %v2568 = vsub.f32 0.0, %v2478
      %v2569 = vsub.f32 0.0, %v2479
      %v2570 = vsub.f32 0.0, %v2480
      %v2571 = vsub.f32 0.0, %v2481
      %v2572 = vsub.f32 0.0, %v2482
      %v2573 = vsub.f32 0.0, %v2483
      %v2574 = vsub.f32 0.0, %v2484
      %v2575 = vsub.f32 0.0, %v2485
      %v2576 = vsub.f32 0.0, %v2486
      %v2577 = vsub.f32 0.0, %v2487
      %v2578 = vsub.f32 0.0, %v2488
      %v2579 = vsub.f32 0.0, %v2489
      %v2580 = vsub.f32 0.0, %v2490
      %v2581 = vsub.f32 0.0, %v2491
      %v2582 = vsub.f32 0.0, %v2492
      %v2583 = vsub.f32 0.0, %v2493
      %v2584 = vsub.f32 0.0, %v2494
      %v2585 = vsub.f32 0.0, %v2495
      %v2586 = vsub.f32 0.0, %v2496
      %v2587 = vsub.f32 0.0, %v2497
      %v2588 = vsub.f32 0.0, %v2498
      %v2589 = vsub.f32 0.0, %v2499
      %v2590 = vsub.f32 0.0, %v2500
      %v2591 = vsub.f32 0.0, %v2501
      %v2592 = vsub.f32 0.0, %v2502
      %v2593 = vsub.f32 0.0, %v2503
      %v2594 = vsub.f32 0.0, %v2504
      %v2595 = vsub.f32 0.0, %v2505
      %v2596 = vsub.f32 0.0, %v2506
      %v2597 = vsub.f32 0.0, %v2507
      %v2598 = vsub.f32 0.0, %v2508
      %v2599 = vsub.f32 0.0, %v2509
      %v2600 = vsub.f32 0.0, %v2510
      %v2601 = vsub.f32 0.0, %v2511
      %v2602 = vsub.f32 0.0, %v2512
      %v2603 = vsub.f32 0.0, %v2513
      %v2604 = vsub.f32 0.0, %v2514
      %v2605 = vsub.f32 0.0, %v2515
      %v2606 = vsub.f32 0.0, %v2516
      %v2607 = vsub.f32 0.0, %v2517
      %v2608 = vsub.f32 0.0, %v2518
      %v2609 = vsub.f32 0.0, %v2519
      %v2610 = vsub.f32 0.0, %v2520
      %v2611 = vsub.f32 0.0, %v2521
      %v2612 = vsub.f32 0.0, %v2522
      %v2613 = vsub.f32 0.0, %v2523
      %v2614 = vsub.f32 0.0, %v2524
      %v2615 = vsub.f32 0.0, %v2525
      %v2616 = vsub.f32 0.0, %v2526
      %v2617 = vsub.f32 0.0, %v2527
      %v2618 = vsub.f32 0.0, %v2528
      %v2619 = vsub.f32 0.0, %v2529
      %v2620 = vsub.f32 0.0, %v2530
      %v2621 = vsub.f32 0.0, %v2531
      %v2622 = vsub.f32 0.0, %v2532
      %v2623 = vsub.f32 0.0, %v2533
      %v2624 = vsub.f32 0.0, %v2534
      %v2625 = vsub.f32 0.0, %v2535
      %v2626 = vsub.f32 0.0, %v2536
      %v2627 = vsub.f32 0.0, %v2537
      %v2628 = vmul.f32 %v2538, 1.442695
      %v2629 = vpow.pop %v2628
      %v2630 = vmul.f32 %v2539, 1.442695
      %v2631 = vpow.pop %v2630
      %v2632 = vmul.f32 %v2540, 1.442695
      %v2633 = vpow.pop %v2632
      %v2634 = vmul.f32 %v2541, 1.442695
      %v2635 = vpow.pop %v2634
      %v2636 = vmul.f32 %v2542, 1.442695
      %v2637 = vpow.pop %v2636
      %v2638 = vmul.f32 %v2543, 1.442695
      %v2639 = vpow.pop %v2638
      %v2640 = vmul.f32 %v2544, 1.442695
      %v2641 = vpow.pop %v2640
      %v2642 = vmul.f32 %v2545, 1.442695
      %v2643 = vpow.pop %v2642
      %v2644 = vmul.f32 %v2546, 1.442695
      %v2645 = vpow.pop %v2644
      %v2646 = vmul.f32 %v2547, 1.442695
      %v2647 = vpow.pop %v2646
      %v2648 = vmul.f32 %v2548, 1.442695
      %v2649 = vpow.pop %v2648
      %v2650 = vmul.f32 %v2549, 1.442695
      %v2651 = vpow.pop %v2650
      %v2652 = vmul.f32 %v2550, 1.442695
      %v2653 = vpow.pop %v2652
      %v2654 = vmul.f32 %v2551, 1.442695
      %v2655 = vpow.pop %v2654
      %v2656 = vmul.f32 %v2552, 1.442695
      %v2657 = vpow.pop %v2656
      %v2658 = vmul.f32 %v2553, 1.442695
      %v2659 = vpow.pop %v2658
      %v2660 = vmul.f32 %v2554, 1.442695
      %v2661 = vpow.pop %v2660
      %v2662 = vmul.f32 %v2555, 1.442695
      %v2663 = vpow.pop %v2662
      %v2664 = vmul.f32 %v2556, 1.442695
      %v2665 = vpow.pop %v2664
      %v2666 = vmul.f32 %v2557, 1.442695
      %v2667 = vpow.pop %v2666
      %v2668 = vmul.f32 %v2558, 1.442695
      %v2669 = vpow.pop %v2668
      %v2670 = vmul.f32 %v2559, 1.442695
      %v2671 = vpow.pop %v2670
      %v2672 = vmul.f32 %v2560, 1.442695
      %v2673 = vpow.pop %v2672
      %v2674 = vmul.f32 %v2561, 1.442695
      %v2675 = vpow.pop %v2674
      %v2676 = vmul.f32 %v2562, 1.442695
      %v2677 = vpow.pop %v2676
      %v2678 = vmul.f32 %v2563, 1.442695
      %v2679 = vpow.pop %v2678
      %v2680 = vmul.f32 %v2564, 1.442695
      %v2681 = vpow.pop %v2680
      %v2682 = vmul.f32 %v2565, 1.442695
      %v2683 = vpow.pop %v2682
      %v2684 = vmul.f32 %v2566, 1.442695
      %v2685 = vpow.pop %v2684
      %v2686 = vmul.f32 %v2567, 1.442695
      %v2687 = vpow.pop %v2686
      %v2688 = vmul.f32 %v2568, 1.442695
      %v2689 = vpow.pop %v2688
      %v2690 = vmul.f32 %v2569, 1.442695
      %v2691 = vpow.pop %v2690
      %v2692 = vmul.f32 %v2570, 1.442695
      %v2693 = vpow.pop %v2692
      %v2694 = vmul.f32 %v2571, 1.442695
      %v2695 = vpow.pop %v2694
      %v2696 = vmul.f32 %v2572, 1.442695
      %v2697 = vpow.pop %v2696
      %v2698 = vmul.f32 %v2573, 1.442695
      %v2699 = vpow.pop %v2698
      %v2700 = vmul.f32 %v2574, 1.442695
      %v2701 = vpow.pop %v2700
      %v2702 = vmul.f32 %v2575, 1.442695
      %v2703 = vpow.pop %v2702
      %v2704 = vmul.f32 %v2576, 1.442695
      %v2705 = vpow.pop %v2704
      %v2706 = vmul.f32 %v2577, 1.442695
      %v2707 = vpow.pop %v2706
      %v2708 = vmul.f32 %v2578, 1.442695
      %v2709 = vpow.pop %v2708
      %v2710 = vmul.f32 %v2579, 1.442695
      %v2711 = vpow.pop %v2710
      %v2712 = vmul.f32 %v2580, 1.442695
      %v2713 = vpow.pop %v2712
      %v2714 = vmul.f32 %v2581, 1.442695
      %v2715 = vpow.pop %v2714
      %v2716 = vmul.f32 %v2582, 1.442695
      %v2717 = vpow.pop %v2716
      %v2718 = vmul.f32 %v2583, 1.442695
      %v2719 = vpow.pop %v2718
      %v2720 = vmul.f32 %v2584, 1.442695
      %v2721 = vpow.pop %v2720
      %v2722 = vmul.f32 %v2585, 1.442695
      %v2723 = vpow.pop %v2722
      %v2724 = vmul.f32 %v2586, 1.442695
      %v2725 = vpow.pop %v2724
      %v2726 = vmul.f32 %v2587, 1.442695
      %v2727 = vpow.pop %v2726
      %v2728 = vmul.f32 %v2588, 1.442695
      %v2729 = vpow.pop %v2728
      %v2730 = vmul.f32 %v2589, 1.442695
      %v2731 = vpow.pop %v2730
      %v2732 = vmul.f32 %v2590, 1.442695
      %v2733 = vpow.pop %v2732
      %v2734 = vmul.f32 %v2591, 1.442695
      %v2735 = vpow.pop %v2734
      %v2736 = vmul.f32 %v2592, 1.442695
      %v2737 = vpow.pop %v2736
      %v2738 = vmul.f32 %v2593, 1.442695
      %v2739 = vpow.pop %v2738
      %v2740 = vmul.f32 %v2594, 1.442695
      %v2741 = vpow.pop %v2740
      %v2742 = vmul.f32 %v2595, 1.442695
      %v2743 = vpow.pop %v2742
      %v2744 = vmul.f32 %v2596, 1.442695
      %v2745 = vpow.pop %v2744
      %v2746 = vmul.f32 %v2597, 1.442695
      %v2747 = vpow.pop %v2746
      %v2748 = vmul.f32 %v2598, 1.442695
      %v2749 = vpow.pop %v2748
      %v2750 = vmul.f32 %v2599, 1.442695
      %v2751 = vpow.pop %v2750
      %v2752 = vmul.f32 %v2600, 1.442695
      %v2753 = vpow.pop %v2752
      %v2754 = vmul.f32 %v2601, 1.442695
      %v2755 = vpow.pop %v2754
      %v2756 = vmul.f32 %v2602, 1.442695
      %v2757 = vpow.pop %v2756
      %v2758 = vmul.f32 %v2603, 1.442695
      %v2759 = vpow.pop %v2758
      %v2760 = vmul.f32 %v2604, 1.442695
      %v2761 = vpow.pop %v2760
      %v2762 = vmul.f32 %v2605, 1.442695
      %v2763 = vpow.pop %v2762
      %v2764 = vmul.f32 %v2606, 1.442695
      %v2765 = vpow.pop %v2764
      %v2766 = vmul.f32 %v2607, 1.442695
      %v2767 = vpow.pop %v2766
      %v2768 = vmul.f32 %v2608, 1.442695
      %v2769 = vpow.pop %v2768
      %v2770 = vmul.f32 %v2609, 1.442695
      %v2771 = vpow.pop %v2770
      %v2772 = vmul.f32 %v2610, 1.442695
      %v2773 = vpow.pop %v2772
      %v2774 = vmul.f32 %v2611, 1.442695
      %v2775 = vpow.pop %v2774
      %v2776 = vmul.f32 %v2612, 1.442695
      %v2777 = vpow.pop %v2776
      %v2778 = vmul.f32 %v2613, 1.442695
      %v2779 = vpow.pop %v2778
      %v2780 = vmul.f32 %v2614, 1.442695
      %v2781 = vpow.pop %v2780
      %v2782 = vmul.f32 %v2615, 1.442695
      %v2783 = vpow.pop %v2782
      %v2784 = vmul.f32 %v2616, 1.442695
      %v2785 = vpow.pop %v2784
      %v2786 = vmul.f32 %v2617, 1.442695
      %v2787 = vpow.pop %v2786
      %v2788 = vmul.f32 %v2618, 1.442695
      %v2789 = vpow.pop %v2788
      %v2790 = vmul.f32 %v2619, 1.442695
      %v2791 = vpow.pop %v2790
      %v2792 = vmul.f32 %v2620, 1.442695
      %v2793 = vpow.pop %v2792
      %v2794 = vmul.f32 %v2621, 1.442695
      %v2795 = vpow.pop %v2794
      %v2796 = vmul.f32 %v2622, 1.442695
      %v2797 = vpow.pop %v2796
      %v2798 = vmul.f32 %v2623, 1.442695
      %v2799 = vpow.pop %v2798
      %v2800 = vmul.f32 %v2624, 1.442695
      %v2801 = vpow.pop %v2800
      %v2802 = vmul.f32 %v2625, 1.442695
      %v2803 = vpow.pop %v2802
      %v2804 = vmul.f32 %v2626, 1.442695
      %v2805 = vpow.pop %v2804
      %v2806 = vmul.f32 %v2627, 1.442695
      %v2807 = vpow.pop %v2806
      %v2808 = vadd.f32 %v2629, 1.0
      %v2809 = vadd.f32 %v2631, 1.0
      %v2810 = vadd.f32 %v2633, 1.0
      %v2811 = vadd.f32 %v2635, 1.0
      %v2812 = vadd.f32 %v2637, 1.0
      %v2813 = vadd.f32 %v2639, 1.0
      %v2814 = vadd.f32 %v2641, 1.0
      %v2815 = vadd.f32 %v2643, 1.0
      %v2816 = vadd.f32 %v2645, 1.0
      %v2817 = vadd.f32 %v2647, 1.0
      %v2818 = vadd.f32 %v2649, 1.0
      %v2819 = vadd.f32 %v2651, 1.0
      %v2820 = vadd.f32 %v2653, 1.0
      %v2821 = vadd.f32 %v2655, 1.0
      %v2822 = vadd.f32 %v2657, 1.0
      %v2823 = vadd.f32 %v2659, 1.0
      %v2824 = vadd.f32 %v2661, 1.0
      %v2825 = vadd.f32 %v2663, 1.0
      %v2826 = vadd.f32 %v2665, 1.0
      %v2827 = vadd.f32 %v2667, 1.0
      %v2828 = vadd.f32 %v2669, 1.0
      %v2829 = vadd.f32 %v2671, 1.0
      %v2830 = vadd.f32 %v2673, 1.0
      %v2831 = vadd.f32 %v2675, 1.0
      %v2832 = vadd.f32 %v2677, 1.0
      %v2833 = vadd.f32 %v2679, 1.0
      %v2834 = vadd.f32 %v2681, 1.0
      %v2835 = vadd.f32 %v2683, 1.0
      %v2836 = vadd.f32 %v2685, 1.0
      %v2837 = vadd.f32 %v2687, 1.0
      %v2838 = vadd.f32 %v2689, 1.0
      %v2839 = vadd.f32 %v2691, 1.0
      %v2840 = vadd.f32 %v2693, 1.0
      %v2841 = vadd.f32 %v2695, 1.0
      %v2842 = vadd.f32 %v2697, 1.0
      %v2843 = vadd.f32 %v2699, 1.0
      %v2844 = vadd.f32 %v2701, 1.0
      %v2845 = vadd.f32 %v2703, 1.0
      %v2846 = vadd.f32 %v2705, 1.0
      %v2847 = vadd.f32 %v2707, 1.0
      %v2848 = vadd.f32 %v2709, 1.0
      %v2849 = vadd.f32 %v2711, 1.0
      %v2850 = vadd.f32 %v2713, 1.0
      %v2851 = vadd.f32 %v2715, 1.0
      %v2852 = vadd.f32 %v2717, 1.0
      %v2853 = vadd.f32 %v2719, 1.0
      %v2854 = vadd.f32 %v2721, 1.0
      %v2855 = vadd.f32 %v2723, 1.0
      %v2856 = vadd.f32 %v2725, 1.0
      %v2857 = vadd.f32 %v2727, 1.0
      %v2858 = vadd.f32 %v2729, 1.0
      %v2859 = vadd.f32 %v2731, 1.0
      %v2860 = vadd.f32 %v2733, 1.0
      %v2861 = vadd.f32 %v2735, 1.0
      %v2862 = vadd.f32 %v2737, 1.0
      %v2863 = vadd.f32 %v2739, 1.0
      %v2864 = vadd.f32 %v2741, 1.0
      %v2865 = vadd.f32 %v2743, 1.0
      %v2866 = vadd.f32 %v2745, 1.0
      %v2867 = vadd.f32 %v2747, 1.0
      %v2868 = vadd.f32 %v2749, 1.0
      %v2869 = vadd.f32 %v2751, 1.0
      %v2870 = vadd.f32 %v2753, 1.0
      %v2871 = vadd.f32 %v2755, 1.0
      %v2872 = vadd.f32 %v2757, 1.0
      %v2873 = vadd.f32 %v2759, 1.0
      %v2874 = vadd.f32 %v2761, 1.0
      %v2875 = vadd.f32 %v2763, 1.0
      %v2876 = vadd.f32 %v2765, 1.0
      %v2877 = vadd.f32 %v2767, 1.0
      %v2878 = vadd.f32 %v2769, 1.0
      %v2879 = vadd.f32 %v2771, 1.0
      %v2880 = vadd.f32 %v2773, 1.0
      %v2881 = vadd.f32 %v2775, 1.0
      %v2882 = vadd.f32 %v2777, 1.0
      %v2883 = vadd.f32 %v2779, 1.0
      %v2884 = vadd.f32 %v2781, 1.0
      %v2885 = vadd.f32 %v2783, 1.0
      %v2886 = vadd.f32 %v2785, 1.0
      %v2887 = vadd.f32 %v2787, 1.0
      %v2888 = vadd.f32 %v2789, 1.0
      %v2889 = vadd.f32 %v2791, 1.0
      %v2890 = vadd.f32 %v2793, 1.0
      %v2891 = vadd.f32 %v2795, 1.0
      %v2892 = vadd.f32 %v2797, 1.0
      %v2893 = vadd.f32 %v2799, 1.0
      %v2894 = vadd.f32 %v2801, 1.0
      %v2895 = vadd.f32 %v2803, 1.0
      %v2896 = vadd.f32 %v2805, 1.0
      %v2897 = vadd.f32 %v2807, 1.0
      %v2898 = vrcp.pop %v2808
      %v2899 = vrcp.pop %v2809
      %v2900 = vrcp.pop %v2810
      %v2901 = vrcp.pop %v2811
      %v2902 = vrcp.pop %v2812
      %v2903 = vrcp.pop %v2813
      %v2904 = vrcp.pop %v2814
      %v2905 = vrcp.pop %v2815
      %v2906 = vrcp.pop %v2816
      %v2907 = vrcp.pop %v2817
      %v2908 = vrcp.pop %v2818
      %v2909 = vrcp.pop %v2819
      %v2910 = vrcp.pop %v2820
      %v2911 = vrcp.pop %v2821
      %v2912 = vrcp.pop %v2822
      %v2913 = vrcp.pop %v2823
      %v2914 = vrcp.pop %v2824
      %v2915 = vrcp.pop %v2825
      %v2916 = vrcp.pop %v2826
      %v2917 = vrcp.pop %v2827
      %v2918 = vrcp.pop %v2828
      %v2919 = vrcp.pop %v2829
      %v2920 = vrcp.pop %v2830
      %v2921 = vrcp.pop %v2831
      %v2922 = vrcp.pop %v2832
      %v2923 = vrcp.pop %v2833
      %v2924 = vrcp.pop %v2834
      %v2925 = vrcp.pop %v2835
      %v2926 = vrcp.pop %v2836
      %v2927 = vrcp.pop %v2837
      %v2928 = vrcp.pop %v2838
      %v2929 = vrcp.pop %v2839
      %v2930 = vrcp.pop %v2840
      %v2931 = vrcp.pop %v2841
      %v2932 = vrcp.pop %v2842
      %v2933 = vrcp.pop %v2843
      %v2934 = vrcp.pop %v2844
      %v2935 = vrcp.pop %v2845
      %v2936 = vrcp.pop %v2846
      %v2937 = vrcp.pop %v2847
      %v2938 = vrcp.pop %v2848
      %v2939 = vrcp.pop %v2849
      %v2940 = vrcp.pop %v2850
      %v2941 = vrcp.pop %v2851
      %v2942 = vrcp.pop %v2852
      %v2943 = vrcp.pop %v2853
      %v2944 = vrcp.pop %v2854
      %v2945 = vrcp.pop %v2855
      %v2946 = vrcp.pop %v2856
      %v2947 = vrcp.pop %v2857
      %v2948 = vrcp.pop %v2858
      %v2949 = vrcp.pop %v2859
      %v2950 = vrcp.pop %v2860
      %v2951 = vrcp.pop %v2861
      %v2952 = vrcp.pop %v2862
      %v2953 = vrcp.pop %v2863
      %v2954 = vrcp.pop %v2864
      %v2955 = vrcp.pop %v2865
      %v2956 = vrcp.pop %v2866
      %v2957 = vrcp.pop %v2867
      %v2958 = vrcp.pop %v2868
      %v2959 = vrcp.pop %v2869
      %v2960 = vrcp.pop %v2870
      %v2961 = vrcp.pop %v2871
      %v2962 = vrcp.pop %v2872
      %v2963 = vrcp.pop %v2873
      %v2964 = vrcp.pop %v2874
      %v2965 = vrcp.pop %v2875
      %v2966 = vrcp.pop %v2876
      %v2967 = vrcp.pop %v2877
      %v2968 = vrcp.pop %v2878
      %v2969 = vrcp.pop %v2879
      %v2970 = vrcp.pop %v2880
      %v2971 = vrcp.pop %v2881
      %v2972 = vrcp.pop %v2882
      %v2973 = vrcp.pop %v2883
      %v2974 = vrcp.pop %v2884
      %v2975 = vrcp.pop %v2885
      %v2976 = vrcp.pop %v2886
      %v2977 = vrcp.pop %v2887
      %v2978 = vrcp.pop %v2888
      %v2979 = vrcp.pop %v2889
      %v2980 = vrcp.pop %v2890
      %v2981 = vrcp.pop %v2891
      %v2982 = vrcp.pop %v2892
      %v2983 = vrcp.pop %v2893
      %v2984 = vrcp.pop %v2894
      %v2985 = vrcp.pop %v2895
      %v2986 = vrcp.pop %v2896
      %v2987 = vrcp.pop %v2897
      %v2988 = vmax.f32 %v2898, 0.0
      %v2989 = vmax.f32 %v2899, 0.0
      %v2990 = vmax.f32 %v2900, 0.0
      %v2991 = vmax.f32 %v2901, 0.0
      %v2992 = vmax.f32 %v2902, 0.0
      %v2993 = vmax.f32 %v2903, 0.0
      %v2994 = vmax.f32 %v2904, 0.0
      %v2995 = vmax.f32 %v2905, 0.0
      %v2996 = vmax.f32 %v2906, 0.0
      %v2997 = vmax.f32 %v2907, 0.0
      %v2998 = vmax.f32 %v2908, 0.0
      %v2999 = vmax.f32 %v2909, 0.0
      %v3000 = vmax.f32 %v2910, 0.0
      %v3001 = vmax.f32 %v2911, 0.0
      %v3002 = vmax.f32 %v2912, 0.0
      %v3003 = vmax.f32 %v2913, 0.0
      %v3004 = vmax.f32 %v2914, 0.0
      %v3005 = vmax.f32 %v2915, 0.0
      %v3006 = vmax.f32 %v2916, 0.0
      %v3007 = vmax.f32 %v2917, 0.0
      %v3008 = vmax.f32 %v2918, 0.0
      %v3009 = vmax.f32 %v2919, 0.0
      %v3010 = vmax.f32 %v2920, 0.0
      %v3011 = vmax.f32 %v2921, 0.0
      %v3012 = vmax.f32 %v2922, 0.0
      %v3013 = vmax.f32 %v2923, 0.0
      %v3014 = vmax.f32 %v2924, 0.0
      %v3015 = vmax.f32 %v2925, 0.0
      %v3016 = vmax.f32 %v2926, 0.0
      %v3017 = vmax.f32 %v2927, 0.0
      %v3018 = vmax.f32 %v2928, 0.0
      %v3019 = vmax.f32 %v2929, 0.0
      %v3020 = vmax.f32 %v2930, 0.0
      %v3021 = vmax.f32 %v2931, 0.0
      %v3022 = vmax.f32 %v2932, 0.0
      %v3023 = vmax.f32 %v2933, 0.0
      %v3024 = vmax.f32 %v2934, 0.0
      %v3025 = vmax.f32 %v2935, 0.0
      %v3026 = vmax.f32 %v2936, 0.0
      %v3027 = vmax.f32 %v2937, 0.0
      %v3028 = vmax.f32 %v2938, 0.0
      %v3029 = vmax.f32 %v2939, 0.0
      %v3030 = vmax.f32 %v2940, 0.0
      %v3031 = vmax.f32 %v2941, 0.0
      %v3032 = vmax.f32 %v2942, 0.0
      %v3033 = vmax.f32 %v2943, 0.0
      %v3034 = vmax.f32 %v2944, 0.0
      %v3035 = vmax.f32 %v2945, 0.0
      %v3036 = vmax.f32 %v2946, 0.0
      %v3037 = vmax.f32 %v2947, 0.0
      %v3038 = vmax.f32 %v2948, 0.0
      %v3039 = vmax.f32 %v2949, 0.0
      %v3040 = vmax.f32 %v2950, 0.0
      %v3041 = vmax.f32 %v2951, 0.0
      %v3042 = vmax.f32 %v2952, 0.0
      %v3043 = vmax.f32 %v2953, 0.0
      %v3044 = vmax.f32 %v2954, 0.0
      %v3045 = vmax.f32 %v2955, 0.0
      %v3046 = vmax.f32 %v2956, 0.0
      %v3047 = vmax.f32 %v2957, 0.0
      %v3048 = vmax.f32 %v2958, 0.0
      %v3049 = vmax.f32 %v2959, 0.0
      %v3050 = vmax.f32 %v2960, 0.0
      %v3051 = vmax.f32 %v2961, 0.0
      %v3052 = vmax.f32 %v2962, 0.0
      %v3053 = vmax.f32 %v2963, 0.0
      %v3054 = vmax.f32 %v2964, 0.0
      %v3055 = vmax.f32 %v2965, 0.0
      %v3056 = vmax.f32 %v2966, 0.0
      %v3057 = vmax.f32 %v2967, 0.0
      %v3058 = vmax.f32 %v2968, 0.0
      %v3059 = vmax.f32 %v2969, 0.0
      %v3060 = vmax.f32 %v2970, 0.0
      %v3061 = vmax.f32 %v2971, 0.0
      %v3062 = vmax.f32 %v2972, 0.0
      %v3063 = vmax.f32 %v2973, 0.0
      %v3064 = vmax.f32 %v2974, 0.0
      %v3065 = vmax.f32 %v2975, 0.0
      %v3066 = vmax.f32 %v2976, 0.0
      %v3067 = vmax.f32 %v2977, 0.0
      %v3068 = vmax.f32 %v2978, 0.0
      %v3069 = vmax.f32 %v2979, 0.0
      %v3070 = vmax.f32 %v2980, 0.0
      %v3071 = vmax.f32 %v2981, 0.0
      %v3072 = vmax.f32 %v2982, 0.0
      %v3073 = vmax.f32 %v2983, 0.0
      %v3074 = vmax.f32 %v2984, 0.0
      %v3075 = vmax.f32 %v2985, 0.0
      %v3076 = vmax.f32 %v2986, 0.0
      %v3077 = vmax.f32 %v2987, 0.0
      %v3078 = vmin.f32 %v2988, 1.0
      %v3079 = vmin.f32 %v2989, 1.0
      %v3080 = vmin.f32 %v2990, 1.0
      %v3081 = vmin.f32 %v2991, 1.0
      %v3082 = vmin.f32 %v2992, 1.0
      %v3083 = vmin.f32 %v2993, 1.0
      %v3084 = vmin.f32 %v2994, 1.0
      %v3085 = vmin.f32 %v2995, 1.0
      %v3086 = vmin.f32 %v2996, 1.0
      %v3087 = vmin.f32 %v2997, 1.0
      %v3088 = vmin.f32 %v2998, 1.0
      %v3089 = vmin.f32 %v2999, 1.0
      %v3090 = vmin.f32 %v3000, 1.0
      %v3091 = vmin.f32 %v3001, 1.0
      %v3092 = vmin.f32 %v3002, 1.0
      %v3093 = vmin.f32 %v3003, 1.0
      %v3094 = vmin.f32 %v3004, 1.0
      %v3095 = vmin.f32 %v3005, 1.0
      %v3096 = vmin.f32 %v3006, 1.0
      %v3097 = vmin.f32 %v3007, 1.0
      %v3098 = vmin.f32 %v3008, 1.0
      %v3099 = vmin.f32 %v3009, 1.0
      %v3100 = vmin.f32 %v3010, 1.0
      %v3101 = vmin.f32 %v3011, 1.0
      %v3102 = vmin.f32 %v3012, 1.0
      %v3103 = vmin.f32 %v3013, 1.0
      %v3104 = vmin.f32 %v3014, 1.0
      %v3105 = vmin.f32 %v3015, 1.0
      %v3106 = vmin.f32 %v3016, 1.0
      %v3107 = vmin.f32 %v3017, 1.0
      %v3108 = vmin.f32 %v3018, 1.0
      %v3109 = vmin.f32 %v3019, 1.0
      %v3110 = vmin.f32 %v3020, 1.0
      %v3111 = vmin.f32 %v3021, 1.0
      %v3112 = vmin.f32 %v3022, 1.0
      %v3113 = vmin.f32 %v3023, 1.0
      %v3114 = vmin.f32 %v3024, 1.0
      %v3115 = vmin.f32 %v3025, 1.0
      %v3116 = vmin.f32 %v3026, 1.0
      %v3117 = vmin.f32 %v3027, 1.0
      %v3118 = vmin.f32 %v3028, 1.0
      %v3119 = vmin.f32 %v3029, 1.0
      %v3120 = vmin.f32 %v3030, 1.0
      %v3121 = vmin.f32 %v3031, 1.0
      %v3122 = vmin.f32 %v3032, 1.0
      %v3123 = vmin.f32 %v3033, 1.0
      %v3124 = vmin.f32 %v3034, 1.0
      %v3125 = vmin.f32 %v3035, 1.0
      %v3126 = vmin.f32 %v3036, 1.0
      %v3127 = vmin.f32 %v3037, 1.0
      %v3128 = vmin.f32 %v3038, 1.0
      %v3129 = vmin.f32 %v3039, 1.0
      %v3130 = vmin.f32 %v3040, 1.0
      %v3131 = vmin.f32 %v3041, 1.0
      %v3132 = vmin.f32 %v3042, 1.0
      %v3133 = vmin.f32 %v3043, 1.0
      %v3134 = vmin.f32 %v3044, 1.0
      %v3135 = vmin.f32 %v3045, 1.0
      %v3136 = vmin.f32 %v3046, 1.0
      %v3137 = vmin.f32 %v3047, 1.0
      %v3138 = vmin.f32 %v3048, 1.0
      %v3139 = vmin.f32 %v3049, 1.0
      %v3140 = vmin.f32 %v3050, 1.0
      %v3141 = vmin.f32 %v3051, 1.0
      %v3142 = vmin.f32 %v3052, 1.0
      %v3143 = vmin.f32 %v3053, 1.0
      %v3144 = vmin.f32 %v3054, 1.0
      %v3145 = vmin.f32 %v3055, 1.0
      %v3146 = vmin.f32 %v3056, 1.0
      %v3147 = vmin.f32 %v3057, 1.0
      %v3148 = vmin.f32 %v3058, 1.0
      %v3149 = vmin.f32 %v3059, 1.0
      %v3150 = vmin.f32 %v3060, 1.0
      %v3151 = vmin.f32 %v3061, 1.0
      %v3152 = vmin.f32 %v3062, 1.0
      %v3153 = vmin.f32 %v3063, 1.0
      %v3154 = vmin.f32 %v3064, 1.0
      %v3155 = vmin.f32 %v3065, 1.0
      %v3156 = vmin.f32 %v3066, 1.0
      %v3157 = vmin.f32 %v3067, 1.0
      %v3158 = vmin.f32 %v3068, 1.0
      %v3159 = vmin.f32 %v3069, 1.0
      %v3160 = vmin.f32 %v3070, 1.0
      %v3161 = vmin.f32 %v3071, 1.0
      %v3162 = vmin.f32 %v3072, 1.0
      %v3163 = vmin.f32 %v3073, 1.0
      %v3164 = vmin.f32 %v3074, 1.0
      %v3165 = vmin.f32 %v3075, 1.0
      %v3166 = vmin.f32 %v3076, 1.0
      %v3167 = vmin.f32 %v3077, 1.0
      %3168 = vst [vmem:[%s175] sm:$0xff] %v3078
      %3169 = vst [vmem:[%s175 + $0x8] sm:$0xff] %v3079
      %3170 = vst [vmem:[%s175 + $0x10] sm:$0xff] %v3080
      %3171 = vst [vmem:[%s175 + $0x18] sm:$0xff] %v3081
      %3172 = vst [vmem:[%s175 + $0x20] sm:$0xff] %v3082
      %3173 = vst [vmem:[%s175 + $0x28] sm:$0xff] %v3083
      %3174 = vst [vmem:[%s175 + $0x30] sm:$0xff] %v3084
      %3175 = vst [vmem:[%s175 + $0x38] sm:$0xff] %v3085
      %3176 = vst [vmem:[%s175 + $0x40] sm:$0xff] %v3086
      %3177 = vst [vmem:[%s175 + $0x48] sm:$0xff] %v3087
      %3178 = vst [vmem:[%s175 + $0x50] sm:$0xff] %v3088
      %3179 = vst [vmem:[%s175 + $0x58] sm:$0xff] %v3089
      %3180 = vst [vmem:[%s175 + $0x60] sm:$0xff] %v3090
      %3181 = vst [vmem:[%s175 + $0x68] sm:$0xff] %v3091
      %3182 = vst [vmem:[%s175 + $0x70] sm:$0xff] %v3092
      %3183 = vst [vmem:[%s175 + $0x78] sm:$0xff] %v3093
      %3184 = vst [vmem:[%s175 + $0x80] sm:$0xff] %v3094
      %3185 = vst [vmem:[%s175 + $0x88] sm:$0xff] %v3095
      %3186 = vst [vmem:[%s175 + $0x90] sm:$0xff] %v3096
      %3187 = vst [vmem:[%s175 + $0x98] sm:$0xff] %v3097
      %3188 = vst [vmem:[%s175 + $0xa0] sm:$0xff] %v3098
      %3189 = vst [vmem:[%s175 + $0xa8] sm:$0xff] %v3099
      %3190 = vst [vmem:[%s175 + $0xb0] sm:$0xff] %v3100
      %3191 = vst [vmem:[%s175 + $0xb8] sm:$0xff] %v3101
      %3192 = vst [vmem:[%s175 + $0xc0] sm:$0xff] %v3102
      %3193 = vst [vmem:[%s175 + $0xc8] sm:$0xff] %v3103
      %3194 = vst [vmem:[%s175 + $0xd0] sm:$0xff] %v3104
      %3195 = vst [vmem:[%s175 + $0xd8] sm:$0xff] %v3105
      %3196 = vst [vmem:[%s175 + $0xe0] sm:$0xff] %v3106
      %3197 = vst [vmem:[%s175 + $0xe8] sm:$0xff] %v3107
      %3198 = vst [vmem:[%s175 + $0xf0] sm:$0xff] %v3108
      %3199 = vst [vmem:[%s175 + $0xf8] sm:$0xff] %v3109
      %3200 = vst [vmem:[%s175 + $0x100] sm:$0xff] %v3110
      %3201 = vst [vmem:[%s175 + $0x108] sm:$0xff] %v3111
      %3202 = vst [vmem:[%s175 + $0x110] sm:$0xff] %v3112
      %3203 = vst [vmem:[%s175 + $0x118] sm:$0xff] %v3113
      %3204 = vst [vmem:[%s175 + $0x120] sm:$0xff] %v3114
      %3205 = vst [vmem:[%s175 + $0x128] sm:$0xff] %v3115
      %3206 = vst [vmem:[%s175 + $0x130] sm:$0xff] %v3116
      %3207 = vst [vmem:[%s175 + $0x138] sm:$0xff] %v3117
      %3208 = vst [vmem:[%s175 + $0x140] sm:$0xff] %v3118
      %3209 = vst [vmem:[%s175 + $0x148] sm:$0xff] %v3119
      %3210 = vst [vmem:[%s175 + $0x150] sm:$0xff] %v3120
      %3211 = vst [vmem:[%s175 + $0x158] sm:$0xff] %v3121
      %3212 = vst [vmem:[%s175 + $0x160] sm:$0xff] %v3122
      %3213 = vst [vmem:[%s175 + $0x168] sm:$0xff] %v3123
      %3214 = vst [vmem:[%s175 + $0x170] sm:$0xff] %v3124
      %3215 = vst [vmem:[%s175 + $0x178] sm:$0xff] %v3125
      %3216 = vst [vmem:[%s175 + $0x180] sm:$0xff] %v3126
      %3217 = vst [vmem:[%s175 + $0x188] sm:$0xff] %v3127
      %3218 = vst [vmem:[%s175 + $0x190] sm:$0xff] %v3128
      %3219 = vst [vmem:[%s175 + $0x198] sm:$0xff] %v3129
      %3220 = vst [vmem:[%s175 + $0x1a0] sm:$0xff] %v3130
      %3221 = vst [vmem:[%s175 + $0x1a8] sm:$0xff] %v3131
      %3222 = vst [vmem:[%s175 + $0x1b0] sm:$0xff] %v3132
      %3223 = vst [vmem:[%s175 + $0x1b8] sm:$0xff] %v3133
      %3224 = vst [vmem:[%s175 + $0x1c0] sm:$0xff] %v3134
      %3225 = vst [vmem:[%s175 + $0x1c8] sm:$0xff] %v3135
      %3226 = vst [vmem:[%s175 + $0x1d0] sm:$0xff] %v3136
      %3227 = vst [vmem:[%s175 + $0x1d8] sm:$0xff] %v3137
      %3228 = vst [vmem:[%s175 + $0x1e0] sm:$0xff] %v3138
      %3229 = vst [vmem:[%s175 + $0x1e8] sm:$0xff] %v3139
      %3230 = vst [vmem:[%s175 + $0x1f0] sm:$0xff] %v3140
      %3231 = vst [vmem:[%s175 + $0x1f8] sm:$0xff] %v3141
      %3232 = vst [vmem:[%s175 + $0x200] sm:$0xff] %v3142
      %3233 = vst [vmem:[%s175 + $0x208] sm:$0xff] %v3143
      %3234 = vst [vmem:[%s175 + $0x210] sm:$0xff] %v3144
      %3235 = vst [vmem:[%s175 + $0x218] sm:$0xff] %v3145
      %3236 = vst [vmem:[%s175 + $0x220] sm:$0xff] %v3146
      %3237 = vst [vmem:[%s175 + $0x228] sm:$0xff] %v3147
      %3238 = vst [vmem:[%s175 + $0x230] sm:$0xff] %v3148
      %3239 = vst [vmem:[%s175 + $0x238] sm:$0xff] %v3149
      %3240 = vst [vmem:[%s175 + $0x240] sm:$0xff] %v3150
      %3241 = vst [vmem:[%s175 + $0x248] sm:$0xff] %v3151
      %3242 = vst [vmem:[%s175 + $0x250] sm:$0xff] %v3152
      %3243 = vst [vmem:[%s175 + $0x258] sm:$0xff] %v3153
      %3244 = vst [vmem:[%s175 + $0x260] sm:$0xff] %v3154
      %3245 = vst [vmem:[%s175 + $0x268] sm:$0xff] %v3155
      %3246 = vst [vmem:[%s175 + $0x270] sm:$0xff] %v3156
      %3247 = vst [vmem:[%s175 + $0x278] sm:$0xff] %v3157
      %3248 = vst [vmem:[%s175 + $0x280] sm:$0xff] %v3158
      %3249 = vst [vmem:[%s175 + $0x288] sm:$0xff] %v3159
      %3250 = vst [vmem:[%s175 + $0x290] sm:$0xff] %v3160
      %3251 = vst [vmem:[%s175 + $0x298] sm:$0xff] %v3161
      %3252 = vst [vmem:[%s175 + $0x2a0] sm:$0xff] %v3162
      %3253 = vst [vmem:[%s175 + $0x2a8] sm:$0xff] %v3163
      %3254 = vst [vmem:[%s175 + $0x2b0] sm:$0xff] %v3164
      %3255 = vst [vmem:[%s175 + $0x2b8] sm:$0xff] %v3165
      %3256 = vst [vmem:[%s175 + $0x2c0] sm:$0xff] %v3166
      %3257 = vst [vmem:[%s175 + $0x2c8] sm:$0xff] %v3167
      %s3258 = smul.u32 90, %s14
      %p3259 = scmp.lt.s32.totalorder %s3258, 1349
      %s3260 = scalar_select %p3259, %s3258, 1349
      %s3261 = smul.addr %s3260, 8
      %s3262 = scalar_lea.vmem %s3, %s3261
      // Predicated region
      $region33: #{conv_ae_forward.9} parent=31 // pred_check
        %p3263 = pneg %p100
      $region34: #{conv_ae_forward.9} parent=31 // pred_check_branch
        %3265 = sbr.rel (%p3263) target = $region36
      $region35: #{conv_ae_forward.9} parent=31 // pred_region
        %s3266 = smul.u32 90, %s14
      $region36: #{conv_ae_forward.9} parent=31 // pred_fallthru
        _
    $region32: #{conv_ae_forward.9} parent=5 // pred_fallthru
      _
    %p3267 = scmp.le.s32.totalorder 2, %s9
    // Predicated region
    $region37: #{conv_ae_forward.9} parent=5 // pred_check
      %p3268 = pneg %p3267
    $region38: #{conv_ae_forward.9} parent=5 // pred_check_branch
      %3270 = sbr.rel (%p3268) target = $region40
    $region39: #{conv_ae_forward.9} parent=5 // pred_region
      %s3271 = ssub.s32 %s9, 2
      // Predicated region
      $region41: #{conv_ae_forward.9} parent=39 // pred_check
        %p3272 = pneg %p106
      $region42: #{conv_ae_forward.9} parent=39 // pred_check_branch
        %3274 = sbr.rel (%p3272) target = $region44
      $region43: #{conv_ae_forward.9} parent=39 // pred_region
        %s3275 = smul.u32 90, %s15
        %p3276 = scmp.lt.s32.totalorder %s3275, 1349
        %s3277 = scalar_select %p3276, %s3275, 1349
        %s3278 = smul.addr %s3277, 8
        %s3279 = scalar_lea.vmem %s3, %s3278
      $region44: #{conv_ae_forward.9} parent=39 // pred_fallthru
        _
    $region40: #{conv_ae_forward.9} parent=5 // pred_fallthru
      _
  $region6: #{conv_ae_forward.9} parent=0 // loop_footer
    %s13 = sadd.s32 1, %s9
  $region7: #{conv_ae_forward.9} parent=0 // loop_footer_branch
    %8 = sbr.rel target = $region3
  $region8: #{conv_ae_forward.9} parent=0 // loop_exit
    _

</llo_original>
